<compile_context>
chip_gen: v6e
topology: v6e:2x2x1
jax: 0.10.0
libtpu: 0.0.40
codegen_flags: <defaults>
</compile_context>

<pallas_src>
import functools

import jax
import jax.numpy as jnp
from jax.experimental import pallas as pl
from jax.experimental.pallas import tpu as pltpu

# Module hyperparameters (from the PyTorch spec).
D_MODEL = 192
NUM_HEAD = 6
HEAD_SIZE = D_MODEL // NUM_HEAD
SEQ_LEN = 128
BATCH = 2
LN_EPS = 1e-5          # PyTorch nn.LayerNorm default
NEG_INF = -1e30        # finite additive mask value (NaN-safe)


def _layernorm(x, g, b):
    mu = jnp.mean(x, axis=-1, keepdims=True)
    var = jnp.mean((x - mu) ** 2, axis=-1, keepdims=True)
    return (x - mu) * jax.lax.rsqrt(var + LN_EPS) * g + b


# =============================== Pallas kernel ===============================

def block_kernel(x_ref, g1_ref, b1_ref, g2_ref, b2_ref,
                 wqkv_ref, wp_ref, bp_ref, w1_ref, bf1_ref, w2_ref, bf2_ref,
                 o_ref, *, bs, seq, d_model, num_head):
    """One grid step = `bs` batch elements x full sequence, whole Block fused."""
    hs = d_model // num_head
    n = bs * seq

    x = x_ref[...].astype(jnp.float32)                          # (n, C)

    # ---- LayerNorm 1 (f32) ---------------------------------------------------
    h1 = _layernorm(x, g1_ref[...], b1_ref[...])
    h1_bf = h1.astype(jnp.bfloat16)

    # ---- fused QKV projection: one bf16 MXU matmul, f32 accumulate ------------
    qkv = jnp.dot(h1_bf, wqkv_ref[...],
                  preferred_element_type=jnp.float32)            # (n, 3C) f32

    # Scale applied once to the whole Q block (torch Head: C**-0.5, C=d_model).
    scale = float(d_model) ** -0.5
    q_all = qkv[:, :d_model] * scale

    # Additive causal mask built & broadcast ONCE (hoisted out of head loop).
    row = jax.lax.broadcasted_iota(jnp.int32, (seq, seq), 0)
    col = jax.lax.broadcasted_iota(jnp.int32, (seq, seq), 1)
    mask_add = jnp.where(col <= row, 0.0, NEG_INF).astype(jnp.float32)
    mask_add = jnp.broadcast_to(mask_add[None], (bs, seq, seq))

    # ---- per-head causal attention; output projection accumulated per head ----
    sa = jnp.broadcast_to(bp_ref[...].astype(jnp.float32), (n, d_model))
    for h in range(num_head):                                    # unrolled, H = 6
        q = q_all[:, h * hs:(h + 1) * hs] \
            .reshape(bs, seq, hs).astype(jnp.bfloat16)
        k = qkv[:, d_model + h * hs: d_model + (h + 1) * hs] \
            .reshape(bs, seq, hs).astype(jnp.bfloat16)
        v = qkv[:, 2 * d_model + h * hs: 2 * d_model + (h + 1) * hs] \
            .reshape(bs, seq, hs).astype(jnp.bfloat16)

        s = jnp.einsum('btd,bsd->bts', q, k,
                       preferred_element_type=jnp.float32) + mask_add  # (bs,T,T)
        m = jnp.max(s, axis=-1, keepdims=True)
        e = jnp.exp(s - m)
        p = e * pl.reciprocal(jnp.sum(e, axis=-1, keepdims=True), approx=True)
        oh = jnp.einsum('bts,bsd->btd', p.astype(jnp.bfloat16), v,
                        preferred_element_type=jnp.float32)             # (bs,T,hs)

        # Head-sum projection: no 32-lane concat of the 6 head outputs.
        sa = sa + jnp.dot(oh.reshape(n, hs).astype(jnp.bfloat16),
                          wp_ref[h * hs:(h + 1) * hs, :],
                          preferred_element_type=jnp.float32)

    # Residual adds use the LayerNorm outputs (matches the PyTorch spec).
    r1 = h1 + sa

    # ---- LayerNorm 2 + FFN + residual (bf16 matmuls, f32 elementwise) ---------
    h2 = _layernorm(r1, g2_ref[...], b2_ref[...])
    ff = jnp.dot(h2.astype(jnp.bfloat16), w1_ref[...],
                 preferred_element_type=jnp.float32) + bf1_ref[...]
    ff = jnp.maximum(ff, 0.0)                                    # ReLU
    ff = jnp.dot(ff.astype(jnp.bfloat16), w2_ref[...],
                 preferred_element_type=jnp.float32) + bf2_ref[...]

    o_ref[...] = (h2 + ff).astype(o_ref.dtype)


# ================================= Wrapper ===================================

def _rep_spec(shape):
    """Full-array block, replicated across the (1-D) grid."""
    zeros = (0,) * len(shape)
    return pl.BlockSpec(shape, lambda i, _z=zeros: _z)


def _tensorcores_per_chip():
    """Best-effort detection: v7x has 2 TensorCores/chip; v5e/v6e have 1."""
    try:
        kind = str(jax.devices()[0].device_kind).lower()
    except Exception:
        return 1
    return 2 if "v7" in kind else 1


def block_forward(x, p):
    """Transformer Block forward.  x: (B, T, C) float32."""
    B, T, C = x.shape
    N = B * T
    x2d = x.reshape(N, C)                        # metadata-only reshape

    # Batch-parallel grid on megacore parts (v7x); single fused step otherwise.
    grid_n = B if (B > 1 and _tensorcores_per_chip() > 1) else 1
    bs = B // grid_n
    rows = bs * T

    args = (x2d,
            p["ln1_g"], p["ln1_b"], p["ln2_g"], p["ln2_b"],
            p["wqkv"], p["proj_w"], p["proj_b"],
            p["w1"], p["b1"], p["w2"], p["b2"])

    out2d = pl.pallas_call(
        functools.partial(block_kernel, bs=bs, seq=T, d_model=C,
                          num_head=NUM_HEAD),
        out_shape=jax.ShapeDtypeStruct((N, C), x.dtype),
        grid=(grid_n,),
        in_specs=[pl.BlockSpec((rows, C), lambda i: (i, 0))]
                 + [_rep_spec(a.shape) for a in args[1:]],
        out_specs=pl.BlockSpec((rows, C), lambda i: (i, 0)),
        compiler_params=pltpu.CompilerParams(
            dimension_semantics=("parallel",)),
    )(*args)
    return out2d.reshape(B, T, C)


# ============================ Parameter init =================================

def init_params(key):
    def nrm(k, shape, scale=0.02):
        return (scale * jax.random.normal(k, shape)).astype(jnp.float32)

    ks = iter(jax.random.split(key, 8))
    return {
        "ln1_g": jnp.ones((1, D_MODEL), jnp.float32),
        "ln1_b": jnp.zeros((1, D_MODEL), jnp.float32),
        "ln2_g": jnp.ones((1, D_MODEL), jnp.float32),
        "ln2_b": jnp.zeros((1, D_MODEL), jnp.float32),
        # Stacked per-head QKV weights: columns [q_h0..q_h5 | k_h0..k_h5 | v_h0..v_h5].
        # Large weights live in HBM as bf16 (MXU-native dtype, half the entry DMA).
        "wqkv": nrm(next(ks), (D_MODEL, 3 * D_MODEL)).astype(jnp.bfloat16),
        "proj_w": nrm(next(ks), (D_MODEL, D_MODEL)).astype(jnp.bfloat16),
        "proj_b": nrm(next(ks), (1, D_MODEL)),
        "w1": nrm(next(ks), (D_MODEL, 4 * D_MODEL)).astype(jnp.bfloat16),
        "b1": nrm(next(ks), (1, 4 * D_MODEL)),
        "w2": nrm(next(ks), (4 * D_MODEL, D_MODEL)).astype(jnp.bfloat16),
        "b2": nrm(next(ks), (1, D_MODEL)),
    }


# ============================ Pure-JAX reference =============================
# Mirrors the PyTorch Block exactly (f32 math), using the same (bf16-valued)
# weights upcast to f32.  The kernel's bf16 matmul operands + approx softmax
# reciprocal introduce small (~1e-3) deviations; tolerance accounts for that.

def reference_block(x, p):
    B, T, C = x.shape
    hs = C // NUM_HEAD
    wqkv = p["wqkv"].astype(jnp.float32)
    proj_w = p["proj_w"].astype(jnp.float32)
    w1 = p["w1"].astype(jnp.float32)
    w2 = p["w2"].astype(jnp.float32)
    mask = jnp.tril(jnp.ones((T, T), bool))
    h1 = _layernorm(x, p["ln1_g"][0], p["ln1_b"][0])
    heads = []
    for h in range(NUM_HEAD):
        wq = wqkv[:, h * hs:(h + 1) * hs]
        wk = wqkv[:, C + h * hs:C + (h + 1) * hs]
        wv = wqkv[:, 2 * C + h * hs:2 * C + (h + 1) * hs]
        q, k, v = h1 @ wq, h1 @ wk, h1 @ wv
        wei = (q @ jnp.swapaxes(k, -2, -1)) * (C ** -0.5)
        wei = jnp.where(mask, wei, -jnp.inf)
        wei = jax.nn.softmax(wei, axis=-1)
        heads.append(wei @ v)
    sa = jnp.concatenate(heads, axis=-1) @ proj_w + p["proj_b"][0]
    r1 = h1 + sa
    h2 = _layernorm(r1, p["ln2_g"][0], p["ln2_b"][0])
    ff = jnp.maximum(h2 @ w1 + p["b1"][0], 0.0) @ w2 + p["b2"][0]
    return h2 + ff


# ================================== Main =====================================

if __name__ == "__main__":
    key = jax.random.PRNGKey(0)
    kx, kp = jax.random.split(key)
    params = init_params(kp)
    x = jax.random.normal(kx, (BATCH, SEQ_LEN, D_MODEL), dtype=jnp.float32)

    out = jax.jit(block_forward)(x, params)
    out = jax.block_until_ready(out)
    assert out.shape == (BATCH, SEQ_LEN, D_MODEL), out.shape

    ref = reference_block(x, params)
    # bf16 MXU operands + approx (EUP) softmax reciprocal vs f32 reference.
    if not jnp.allclose(out, ref, atol=2e-2, rtol=2e-2):
        err = float(jnp.max(jnp.abs(out - ref)))
        raise AssertionError(f"Pallas output mismatch vs reference, max|err|={err}")

    print("KERNEL_OK")
</pallas_src>

<mosaic_0001>
module attributes {stable_mosaic.version = 11 : i64} {
  func.func @block_kernel(%arg0: i32, %arg1: memref<256x192xf32, #tpu.memory_space<vmem>>, %arg2: memref<1x192xf32, #tpu.memory_space<vmem>>, %arg3: memref<1x192xf32, #tpu.memory_space<vmem>>, %arg4: memref<1x192xf32, #tpu.memory_space<vmem>>, %arg5: memref<1x192xf32, #tpu.memory_space<vmem>>, %arg6: memref<192x576xbf16, #tpu.memory_space<vmem>>, %arg7: memref<192x192xbf16, #tpu.memory_space<vmem>>, %arg8: memref<1x192xf32, #tpu.memory_space<vmem>>, %arg9: memref<192x768xbf16, #tpu.memory_space<vmem>>, %arg10: memref<1x768xf32, #tpu.memory_space<vmem>>, %arg11: memref<768x192xbf16, #tpu.memory_space<vmem>>, %arg12: memref<1x192xf32, #tpu.memory_space<vmem>>, %arg13: memref<256x192xf32, #tpu.memory_space<vmem>>) attributes {dimension_semantics = [#tpu.dimension_semantics<parallel>], iteration_bounds = array<i64: 1>, scalar_prefetch = 0 : i64, scratch_operands = 0 : i64, tpu.core_type = #tpu.core_type<tc>, window_params = [{transform_indices = @transform_0, window_bounds = array<i64: 256, 192>}, {pipeline_mode = #tpu.pipeline_mode<synchronous>, transform_indices = @transform_1, window_bounds = array<i64: 1, 192>}, {pipeline_mode = #tpu.pipeline_mode<synchronous>, transform_indices = @transform_2, window_bounds = array<i64: 1, 192>}, {pipeline_mode = #tpu.pipeline_mode<synchronous>, transform_indices = @transform_3, window_bounds = array<i64: 1, 192>}, {pipeline_mode = #tpu.pipeline_mode<synchronous>, transform_indices = @transform_4, window_bounds = array<i64: 1, 192>}, {pipeline_mode = #tpu.pipeline_mode<synchronous>, transform_indices = @transform_5, window_bounds = array<i64: 192, 576>}, {pipeline_mode = #tpu.pipeline_mode<synchronous>, transform_indices = @transform_6, window_bounds = array<i64: 192, 192>}, {pipeline_mode = #tpu.pipeline_mode<synchronous>, transform_indices = @transform_7, window_bounds = array<i64: 1, 192>}, {pipeline_mode = #tpu.pipeline_mode<synchronous>, transform_indices = @transform_8, window_bounds = array<i64: 192, 768>}, {pipeline_mode = #tpu.pipeline_mode<synchronous>, transform_indices = @transform_9, window_bounds = array<i64: 1, 768>}, {pipeline_mode = #tpu.pipeline_mode<synchronous>, transform_indices = @transform_10, window_bounds = array<i64: 768, 192>}, {pipeline_mode = #tpu.pipeline_mode<synchronous>, transform_indices = @transform_11, window_bounds = array<i64: 1, 192>}, {transform_indices = @transform_12, window_bounds = array<i64: 256, 192>}]} {
    %c0 = arith.constant 0 : index
    %c0_0 = arith.constant 0 : index
    %0 = vector.load %arg1[%c0, %c0_0] : memref<256x192xf32, #tpu.memory_space<vmem>>, vector<256x192xf32>
    %c0_1 = arith.constant 0 : index
    %c0_2 = arith.constant 0 : index
    %1 = vector.load %arg2[%c0_1, %c0_2] : memref<1x192xf32, #tpu.memory_space<vmem>>, vector<1x192xf32>
    %c0_3 = arith.constant 0 : index
    %c0_4 = arith.constant 0 : index
    %2 = vector.load %arg3[%c0_3, %c0_4] : memref<1x192xf32, #tpu.memory_space<vmem>>, vector<1x192xf32>
    %cst = arith.constant dense<0.000000e+00> : vector<256xf32>
    %3 = vector.multi_reduction <add>, %0, %cst [1] : vector<256x192xf32> to vector<256xf32>
    %4 = vector.shape_cast %3 : vector<256xf32> to vector<256x1xf32>
    %cst_5 = arith.constant 1.920000e+02 : f32
    %5 = vector.broadcast %cst_5 : f32 to vector<256x1xf32>
    %6 = arith.divf %4, %5 : vector<256x1xf32>
    %7 = vector.broadcast %6 : vector<256x1xf32> to vector<256x192xf32>
    %8 = arith.subf %0, %7 : vector<256x192xf32>
    %9 = arith.mulf %8, %8 : vector<256x192xf32>
    %cst_6 = arith.constant dense<0.000000e+00> : vector<256xf32>
    %10 = vector.multi_reduction <add>, %9, %cst_6 [1] : vector<256x192xf32> to vector<256xf32>
    %11 = vector.shape_cast %10 : vector<256xf32> to vector<256x1xf32>
    %cst_7 = arith.constant 1.920000e+02 : f32
    %12 = vector.broadcast %cst_7 : f32 to vector<256x1xf32>
    %13 = arith.divf %11, %12 : vector<256x1xf32>
    %14 = vector.broadcast %6 : vector<256x1xf32> to vector<256x192xf32>
    %15 = arith.subf %0, %14 : vector<256x192xf32>
    %cst_8 = arith.constant 9.99999974E-6 : f32
    %16 = vector.broadcast %cst_8 : f32 to vector<256x1xf32>
    %17 = arith.addf %13, %16 : vector<256x1xf32>
    %18 = math.rsqrt %17 : vector<256x1xf32>
    %19 = vector.broadcast %18 : vector<256x1xf32> to vector<256x192xf32>
    %20 = arith.mulf %15, %19 : vector<256x192xf32>
    %21 = vector.broadcast %1 : vector<1x192xf32> to vector<256x192xf32>
    %22 = arith.mulf %20, %21 : vector<256x192xf32>
    %23 = vector.broadcast %2 : vector<1x192xf32> to vector<256x192xf32>
    %24 = arith.addf %22, %23 : vector<256x192xf32>
    %25 = arith.truncf %24 : vector<256x192xf32> to vector<256x192xbf16>
    %c0_9 = arith.constant 0 : index
    %c0_10 = arith.constant 0 : index
    %26 = vector.load %arg6[%c0_9, %c0_10] : memref<192x576xbf16, #tpu.memory_space<vmem>>, vector<192x576xbf16>
    %cst_11 = arith.constant dense<0.000000e+00> : vector<256x576xf32>
    %27 = tpu.matmul %25, %26, %cst_11 {dimension_numbers = #tpu.dot_dimension_numbers<[1], [0], [0], [1], [0, 0, 1, 1], [], []>} : vector<256x192xbf16>, vector<192x576xbf16>, vector<256x576xf32> -> vector<256x576xf32>
    %28 = vector.extract_strided_slice %27 {offsets = [0, 0], sizes = [256, 192], strides = [1, 1]} : vector<256x576xf32> to vector<256x192xf32>
    %cst_12 = arith.constant 0.0721687824 : f32
    %29 = vector.broadcast %cst_12 : f32 to vector<256x192xf32>
    %30 = arith.mulf %28, %29 : vector<256x192xf32>
    %31 = tpu.iota {dimensions = array<i32: 0>} : vector<128x128xi32>
    %32 = tpu.iota {dimensions = array<i32: 1>} : vector<128x128xi32>
    %33 = arith.cmpi sle, %32, %31 : vector<128x128xi32>
    %cst_13 = arith.constant 0.000000e+00 : f32
    %cst_14 = arith.constant -1.000000e+30 : f32
    %34 = vector.broadcast %cst_13 : f32 to vector<128x128xf32>
    %35 = vector.broadcast %cst_14 : f32 to vector<128x128xf32>
    %36 = arith.select %33, %34, %35 : vector<128x128xi1>, vector<128x128xf32>
    %37 = vector.shape_cast %36 : vector<128x128xf32> to vector<1x128x128xf32>
    %38 = vector.shape_cast %37 : vector<1x128x128xf32> to vector<1x128x128xf32>
    %39 = vector.broadcast %38 : vector<1x128x128xf32> to vector<2x128x128xf32>
    %c0_15 = arith.constant 0 : index
    %c0_16 = arith.constant 0 : index
    %40 = vector.load %arg8[%c0_15, %c0_16] : memref<1x192xf32, #tpu.memory_space<vmem>>, vector<1x192xf32>
    %41 = vector.shape_cast %40 : vector<1x192xf32> to vector<1x192xf32>
    %42 = vector.broadcast %41 : vector<1x192xf32> to vector<256x192xf32>
    %43 = vector.extract_strided_slice %30 {offsets = [0, 0], sizes = [256, 32], strides = [1, 1]} : vector<256x192xf32> to vector<256x32xf32>
    %44 = vector.shape_cast %43 : vector<256x32xf32> to vector<2x128x32xf32>
    %45 = arith.truncf %44 : vector<2x128x32xf32> to vector<2x128x32xbf16>
    %46 = vector.extract_strided_slice %27 {offsets = [0, 192], sizes = [256, 32], strides = [1, 1]} : vector<256x576xf32> to vector<256x32xf32>
    %47 = vector.shape_cast %46 : vector<256x32xf32> to vector<2x128x32xf32>
    %48 = arith.truncf %47 : vector<2x128x32xf32> to vector<2x128x32xbf16>
    %49 = vector.extract_strided_slice %27 {offsets = [0, 384], sizes = [256, 32], strides = [1, 1]} : vector<256x576xf32> to vector<256x32xf32>
    %50 = vector.shape_cast %49 : vector<256x32xf32> to vector<2x128x32xf32>
    %51 = arith.truncf %50 : vector<2x128x32xf32> to vector<2x128x32xbf16>
    "tpu.trace_start"() <{level = 10 : i32, message = "btd,bsd->bts"}> : () -> ()
    %cst_17 = arith.constant dense<0.000000e+00> : vector<2x128x128xf32>
    %52 = tpu.matmul %45, %48, %cst_17 {dimension_numbers = #tpu.dot_dimension_numbers<[2], [2], [1], [1], [0, 0, 0, 1, 1, 1], [0], [0]>} : vector<2x128x32xbf16>, vector<2x128x32xbf16>, vector<2x128x128xf32> -> vector<2x128x128xf32>
    "tpu.trace_stop"() : () -> ()
    %53 = arith.addf %52, %39 : vector<2x128x128xf32>
    %cst_18 = arith.constant dense<0xFF800000> : vector<2x128xf32>
    %54 = vector.multi_reduction <maximumf>, %53, %cst_18 [2] : vector<2x128x128xf32> to vector<2x128xf32>
    %55 = vector.shape_cast %54 : vector<2x128xf32> to vector<2x128x1xf32>
    %56 = vector.broadcast %55 : vector<2x128x1xf32> to vector<2x128x128xf32>
    %57 = arith.subf %53, %56 : vector<2x128x128xf32>
    %58 = math.exp %57 : vector<2x128x128xf32>
    %cst_19 = arith.constant dense<0.000000e+00> : vector<2x128xf32>
    %59 = vector.multi_reduction <add>, %58, %cst_19 [2] : vector<2x128x128xf32> to vector<2x128xf32>
    %60 = vector.shape_cast %59 : vector<2x128xf32> to vector<2x128x1xf32>
    %61 = tpu.reciprocal %60 {approx = true} : vector<2x128x1xf32> -> vector<2x128x1xf32>
    %62 = vector.broadcast %61 : vector<2x128x1xf32> to vector<2x128x128xf32>
    %63 = arith.mulf %58, %62 : vector<2x128x128xf32>
    %64 = arith.truncf %63 : vector<2x128x128xf32> to vector<2x128x128xbf16>
    "tpu.trace_start"() <{level = 10 : i32, message = "bts,bsd->btd"}> : () -> ()
    %cst_20 = arith.constant dense<0.000000e+00> : vector<2x128x32xf32>
    %65 = tpu.matmul %64, %51, %cst_20 {dimension_numbers = #tpu.dot_dimension_numbers<[2], [1], [1], [2], [0, 0, 0, 1, 1, 2], [0], [0]>} : vector<2x128x128xbf16>, vector<2x128x32xbf16>, vector<2x128x32xf32> -> vector<2x128x32xf32>
    "tpu.trace_stop"() : () -> ()
    %66 = vector.shape_cast %65 : vector<2x128x32xf32> to vector<256x32xf32>
    %67 = arith.truncf %66 : vector<256x32xf32> to vector<256x32xbf16>
    %c0_21 = arith.constant 0 : index
    %c0_22 = arith.constant 0 : index
    %68 = vector.load %arg7[%c0_21, %c0_22] : memref<192x192xbf16, #tpu.memory_space<vmem>>, vector<32x192xbf16>
    %cst_23 = arith.constant dense<0.000000e+00> : vector<256x192xf32>
    %69 = tpu.matmul %67, %68, %cst_23 {dimension_numbers = #tpu.dot_dimension_numbers<[1], [0], [0], [1], [0, 0, 1, 1], [], []>} : vector<256x32xbf16>, vector<32x192xbf16>, vector<256x192xf32> -> vector<256x192xf32>
    %70 = arith.addf %42, %69 : vector<256x192xf32>
    %71 = vector.extract_strided_slice %30 {offsets = [0, 32], sizes = [256, 32], strides = [1, 1]} : vector<256x192xf32> to vector<256x32xf32>
    %72 = vector.shape_cast %71 : vector<256x32xf32> to vector<2x128x32xf32>
    %73 = arith.truncf %72 : vector<2x128x32xf32> to vector<2x128x32xbf16>
    %74 = vector.extract_strided_slice %27 {offsets = [0, 224], sizes = [256, 32], strides = [1, 1]} : vector<256x576xf32> to vector<256x32xf32>
    %75 = vector.shape_cast %74 : vector<256x32xf32> to vector<2x128x32xf32>
    %76 = arith.truncf %75 : vector<2x128x32xf32> to vector<2x128x32xbf16>
    %77 = vector.extract_strided_slice %27 {offsets = [0, 416], sizes = [256, 32], strides = [1, 1]} : vector<256x576xf32> to vector<256x32xf32>
    %78 = vector.shape_cast %77 : vector<256x32xf32> to vector<2x128x32xf32>
    %79 = arith.truncf %78 : vector<2x128x32xf32> to vector<2x128x32xbf16>
    "tpu.trace_start"() <{level = 10 : i32, message = "btd,bsd->bts"}> : () -> ()
    %cst_24 = arith.constant dense<0.000000e+00> : vector<2x128x128xf32>
    %80 = tpu.matmul %73, %76, %cst_24 {dimension_numbers = #tpu.dot_dimension_numbers<[2], [2], [1], [1], [0, 0, 0, 1, 1, 1], [0], [0]>} : vector<2x128x32xbf16>, vector<2x128x32xbf16>, vector<2x128x128xf32> -> vector<2x128x128xf32>
    "tpu.trace_stop"() : () -> ()
    %81 = arith.addf %80, %39 : vector<2x128x128xf32>
    %cst_25 = arith.constant dense<0xFF800000> : vector<2x128xf32>
    %82 = vector.multi_reduction <maximumf>, %81, %cst_25 [2] : vector<2x128x128xf32> to vector<2x128xf32>
    %83 = vector.shape_cast %82 : vector<2x128xf32> to vector<2x128x1xf32>
    %84 = vector.broadcast %83 : vector<2x128x1xf32> to vector<2x128x128xf32>
    %85 = arith.subf %81, %84 : vector<2x128x128xf32>
    %86 = math.exp %85 : vector<2x128x128xf32>
    %cst_26 = arith.constant dense<0.000000e+00> : vector<2x128xf32>
    %87 = vector.multi_reduction <add>, %86, %cst_26 [2] : vector<2x128x128xf32> to vector<2x128xf32>
    %88 = vector.shape_cast %87 : vector<2x128xf32> to vector<2x128x1xf32>
    %89 = tpu.reciprocal %88 {approx = true} : vector<2x128x1xf32> -> vector<2x128x1xf32>
    %90 = vector.broadcast %89 : vector<2x128x1xf32> to vector<2x128x128xf32>
    %91 = arith.mulf %86, %90 : vector<2x128x128xf32>
    %92 = arith.truncf %91 : vector<2x128x128xf32> to vector<2x128x128xbf16>
    "tpu.trace_start"() <{level = 10 : i32, message = "bts,bsd->btd"}> : () -> ()
    %cst_27 = arith.constant dense<0.000000e+00> : vector<2x128x32xf32>
    %93 = tpu.matmul %92, %79, %cst_27 {dimension_numbers = #tpu.dot_dimension_numbers<[2], [1], [1], [2], [0, 0, 0, 1, 1, 2], [0], [0]>} : vector<2x128x128xbf16>, vector<2x128x32xbf16>, vector<2x128x32xf32> -> vector<2x128x32xf32>
    "tpu.trace_stop"() : () -> ()
    %94 = vector.shape_cast %93 : vector<2x128x32xf32> to vector<256x32xf32>
    %95 = arith.truncf %94 : vector<256x32xf32> to vector<256x32xbf16>
    %c32 = arith.constant 32 : index
    %c0_28 = arith.constant 0 : index
    %96 = vector.load %arg7[%c32, %c0_28] : memref<192x192xbf16, #tpu.memory_space<vmem>>, vector<32x192xbf16>
    %cst_29 = arith.constant dense<0.000000e+00> : vector<256x192xf32>
    %97 = tpu.matmul %95, %96, %cst_29 {dimension_numbers = #tpu.dot_dimension_numbers<[1], [0], [0], [1], [0, 0, 1, 1], [], []>} : vector<256x32xbf16>, vector<32x192xbf16>, vector<256x192xf32> -> vector<256x192xf32>
    %98 = arith.addf %70, %97 : vector<256x192xf32>
    %99 = vector.extract_strided_slice %30 {offsets = [0, 64], sizes = [256, 32], strides = [1, 1]} : vector<256x192xf32> to vector<256x32xf32>
    %100 = vector.shape_cast %99 : vector<256x32xf32> to vector<2x128x32xf32>
    %101 = arith.truncf %100 : vector<2x128x32xf32> to vector<2x128x32xbf16>
    %102 = vector.extract_strided_slice %27 {offsets = [0, 256], sizes = [256, 32], strides = [1, 1]} : vector<256x576xf32> to vector<256x32xf32>
    %103 = vector.shape_cast %102 : vector<256x32xf32> to vector<2x128x32xf32>
    %104 = arith.truncf %103 : vector<2x128x32xf32> to vector<2x128x32xbf16>
    %105 = vector.extract_strided_slice %27 {offsets = [0, 448], sizes = [256, 32], strides = [1, 1]} : vector<256x576xf32> to vector<256x32xf32>
    %106 = vector.shape_cast %105 : vector<256x32xf32> to vector<2x128x32xf32>
    %107 = arith.truncf %106 : vector<2x128x32xf32> to vector<2x128x32xbf16>
    "tpu.trace_start"() <{level = 10 : i32, message = "btd,bsd->bts"}> : () -> ()
    %cst_30 = arith.constant dense<0.000000e+00> : vector<2x128x128xf32>
    %108 = tpu.matmul %101, %104, %cst_30 {dimension_numbers = #tpu.dot_dimension_numbers<[2], [2], [1], [1], [0, 0, 0, 1, 1, 1], [0], [0]>} : vector<2x128x32xbf16>, vector<2x128x32xbf16>, vector<2x128x128xf32> -> vector<2x128x128xf32>
    "tpu.trace_stop"() : () -> ()
    %109 = arith.addf %108, %39 : vector<2x128x128xf32>
    %cst_31 = arith.constant dense<0xFF800000> : vector<2x128xf32>
    %110 = vector.multi_reduction <maximumf>, %109, %cst_31 [2] : vector<2x128x128xf32> to vector<2x128xf32>
    %111 = vector.shape_cast %110 : vector<2x128xf32> to vector<2x128x1xf32>
    %112 = vector.broadcast %111 : vector<2x128x1xf32> to vector<2x128x128xf32>
    %113 = arith.subf %109, %112 : vector<2x128x128xf32>
    %114 = math.exp %113 : vector<2x128x128xf32>
    %cst_32 = arith.constant dense<0.000000e+00> : vector<2x128xf32>
    %115 = vector.multi_reduction <add>, %114, %cst_32 [2] : vector<2x128x128xf32> to vector<2x128xf32>
    %116 = vector.shape_cast %115 : vector<2x128xf32> to vector<2x128x1xf32>
    %117 = tpu.reciprocal %116 {approx = true} : vector<2x128x1xf32> -> vector<2x128x1xf32>
    %118 = vector.broadcast %117 : vector<2x128x1xf32> to vector<2x128x128xf32>
    %119 = arith.mulf %114, %118 : vector<2x128x128xf32>
    %120 = arith.truncf %119 : vector<2x128x128xf32> to vector<2x128x128xbf16>
    "tpu.trace_start"() <{level = 10 : i32, message = "bts,bsd->btd"}> : () -> ()
    %cst_33 = arith.constant dense<0.000000e+00> : vector<2x128x32xf32>
    %121 = tpu.matmul %120, %107, %cst_33 {dimension_numbers = #tpu.dot_dimension_numbers<[2], [1], [1], [2], [0, 0, 0, 1, 1, 2], [0], [0]>} : vector<2x128x128xbf16>, vector<2x128x32xbf16>, vector<2x128x32xf32> -> vector<2x128x32xf32>
    "tpu.trace_stop"() : () -> ()
    %122 = vector.shape_cast %121 : vector<2x128x32xf32> to vector<256x32xf32>
    %123 = arith.truncf %122 : vector<256x32xf32> to vector<256x32xbf16>
    %c64 = arith.constant 64 : index
    %c0_34 = arith.constant 0 : index
    %124 = vector.load %arg7[%c64, %c0_34] : memref<192x192xbf16, #tpu.memory_space<vmem>>, vector<32x192xbf16>
    %cst_35 = arith.constant dense<0.000000e+00> : vector<256x192xf32>
    %125 = tpu.matmul %123, %124, %cst_35 {dimension_numbers = #tpu.dot_dimension_numbers<[1], [0], [0], [1], [0, 0, 1, 1], [], []>} : vector<256x32xbf16>, vector<32x192xbf16>, vector<256x192xf32> -> vector<256x192xf32>
    %126 = arith.addf %98, %125 : vector<256x192xf32>
    %127 = vector.extract_strided_slice %30 {offsets = [0, 96], sizes = [256, 32], strides = [1, 1]} : vector<256x192xf32> to vector<256x32xf32>
    %128 = vector.shape_cast %127 : vector<256x32xf32> to vector<2x128x32xf32>
    %129 = arith.truncf %128 : vector<2x128x32xf32> to vector<2x128x32xbf16>
    %130 = vector.extract_strided_slice %27 {offsets = [0, 288], sizes = [256, 32], strides = [1, 1]} : vector<256x576xf32> to vector<256x32xf32>
    %131 = vector.shape_cast %130 : vector<256x32xf32> to vector<2x128x32xf32>
    %132 = arith.truncf %131 : vector<2x128x32xf32> to vector<2x128x32xbf16>
    %133 = vector.extract_strided_slice %27 {offsets = [0, 480], sizes = [256, 32], strides = [1, 1]} : vector<256x576xf32> to vector<256x32xf32>
    %134 = vector.shape_cast %133 : vector<256x32xf32> to vector<2x128x32xf32>
    %135 = arith.truncf %134 : vector<2x128x32xf32> to vector<2x128x32xbf16>
    "tpu.trace_start"() <{level = 10 : i32, message = "btd,bsd->bts"}> : () -> ()
    %cst_36 = arith.constant dense<0.000000e+00> : vector<2x128x128xf32>
    %136 = tpu.matmul %129, %132, %cst_36 {dimension_numbers = #tpu.dot_dimension_numbers<[2], [2], [1], [1], [0, 0, 0, 1, 1, 1], [0], [0]>} : vector<2x128x32xbf16>, vector<2x128x32xbf16>, vector<2x128x128xf32> -> vector<2x128x128xf32>
    "tpu.trace_stop"() : () -> ()
    %137 = arith.addf %136, %39 : vector<2x128x128xf32>
    %cst_37 = arith.constant dense<0xFF800000> : vector<2x128xf32>
    %138 = vector.multi_reduction <maximumf>, %137, %cst_37 [2] : vector<2x128x128xf32> to vector<2x128xf32>
    %139 = vector.shape_cast %138 : vector<2x128xf32> to vector<2x128x1xf32>
    %140 = vector.broadcast %139 : vector<2x128x1xf32> to vector<2x128x128xf32>
    %141 = arith.subf %137, %140 : vector<2x128x128xf32>
    %142 = math.exp %141 : vector<2x128x128xf32>
    %cst_38 = arith.constant dense<0.000000e+00> : vector<2x128xf32>
    %143 = vector.multi_reduction <add>, %142, %cst_38 [2] : vector<2x128x128xf32> to vector<2x128xf32>
    %144 = vector.shape_cast %143 : vector<2x128xf32> to vector<2x128x1xf32>
    %145 = tpu.reciprocal %144 {approx = true} : vector<2x128x1xf32> -> vector<2x128x1xf32>
    %146 = vector.broadcast %145 : vector<2x128x1xf32> to vector<2x128x128xf32>
    %147 = arith.mulf %142, %146 : vector<2x128x128xf32>
    %148 = arith.truncf %147 : vector<2x128x128xf32> to vector<2x128x128xbf16>
    "tpu.trace_start"() <{level = 10 : i32, message = "bts,bsd->btd"}> : () -> ()
    %cst_39 = arith.constant dense<0.000000e+00> : vector<2x128x32xf32>
    %149 = tpu.matmul %148, %135, %cst_39 {dimension_numbers = #tpu.dot_dimension_numbers<[2], [1], [1], [2], [0, 0, 0, 1, 1, 2], [0], [0]>} : vector<2x128x128xbf16>, vector<2x128x32xbf16>, vector<2x128x32xf32> -> vector<2x128x32xf32>
    "tpu.trace_stop"() : () -> ()
    %150 = vector.shape_cast %149 : vector<2x128x32xf32> to vector<256x32xf32>
    %151 = arith.truncf %150 : vector<256x32xf32> to vector<256x32xbf16>
    %c96 = arith.constant 96 : index
    %c0_40 = arith.constant 0 : index
    %152 = vector.load %arg7[%c96, %c0_40] : memref<192x192xbf16, #tpu.memory_space<vmem>>, vector<32x192xbf16>
    %cst_41 = arith.constant dense<0.000000e+00> : vector<256x192xf32>
    %153 = tpu.matmul %151, %152, %cst_41 {dimension_numbers = #tpu.dot_dimension_numbers<[1], [0], [0], [1], [0, 0, 1, 1], [], []>} : vector<256x32xbf16>, vector<32x192xbf16>, vector<256x192xf32> -> vector<256x192xf32>
    %154 = arith.addf %126, %153 : vector<256x192xf32>
    %155 = vector.extract_strided_slice %30 {offsets = [0, 128], sizes = [256, 32], strides = [1, 1]} : vector<256x192xf32> to vector<256x32xf32>
    %156 = vector.shape_cast %155 : vector<256x32xf32> to vector<2x128x32xf32>
    %157 = arith.truncf %156 : vector<2x128x32xf32> to vector<2x128x32xbf16>
    %158 = vector.extract_strided_slice %27 {offsets = [0, 320], sizes = [256, 32], strides = [1, 1]} : vector<256x576xf32> to vector<256x32xf32>
    %159 = vector.shape_cast %158 : vector<256x32xf32> to vector<2x128x32xf32>
    %160 = arith.truncf %159 : vector<2x128x32xf32> to vector<2x128x32xbf16>
    %161 = vector.extract_strided_slice %27 {offsets = [0, 512], sizes = [256, 32], strides = [1, 1]} : vector<256x576xf32> to vector<256x32xf32>
    %162 = vector.shape_cast %161 : vector<256x32xf32> to vector<2x128x32xf32>
    %163 = arith.truncf %162 : vector<2x128x32xf32> to vector<2x128x32xbf16>
    "tpu.trace_start"() <{level = 10 : i32, message = "btd,bsd->bts"}> : () -> ()
    %cst_42 = arith.constant dense<0.000000e+00> : vector<2x128x128xf32>
    %164 = tpu.matmul %157, %160, %cst_42 {dimension_numbers = #tpu.dot_dimension_numbers<[2], [2], [1], [1], [0, 0, 0, 1, 1, 1], [0], [0]>} : vector<2x128x32xbf16>, vector<2x128x32xbf16>, vector<2x128x128xf32> -> vector<2x128x128xf32>
    "tpu.trace_stop"() : () -> ()
    %165 = arith.addf %164, %39 : vector<2x128x128xf32>
    %cst_43 = arith.constant dense<0xFF800000> : vector<2x128xf32>
    %166 = vector.multi_reduction <maximumf>, %165, %cst_43 [2] : vector<2x128x128xf32> to vector<2x128xf32>
    %167 = vector.shape_cast %166 : vector<2x128xf32> to vector<2x128x1xf32>
    %168 = vector.broadcast %167 : vector<2x128x1xf32> to vector<2x128x128xf32>
    %169 = arith.subf %165, %168 : vector<2x128x128xf32>
    %170 = math.exp %169 : vector<2x128x128xf32>
    %cst_44 = arith.constant dense<0.000000e+00> : vector<2x128xf32>
    %171 = vector.multi_reduction <add>, %170, %cst_44 [2] : vector<2x128x128xf32> to vector<2x128xf32>
    %172 = vector.shape_cast %171 : vector<2x128xf32> to vector<2x128x1xf32>
    %173 = tpu.reciprocal %172 {approx = true} : vector<2x128x1xf32> -> vector<2x128x1xf32>
    %174 = vector.broadcast %173 : vector<2x128x1xf32> to vector<2x128x128xf32>
    %175 = arith.mulf %170, %174 : vector<2x128x128xf32>
    %176 = arith.truncf %175 : vector<2x128x128xf32> to vector<2x128x128xbf16>
    "tpu.trace_start"() <{level = 10 : i32, message = "bts,bsd->btd"}> : () -> ()
    %cst_45 = arith.constant dense<0.000000e+00> : vector<2x128x32xf32>
    %177 = tpu.matmul %176, %163, %cst_45 {dimension_numbers = #tpu.dot_dimension_numbers<[2], [1], [1], [2], [0, 0, 0, 1, 1, 2], [0], [0]>} : vector<2x128x128xbf16>, vector<2x128x32xbf16>, vector<2x128x32xf32> -> vector<2x128x32xf32>
    "tpu.trace_stop"() : () -> ()
    %178 = vector.shape_cast %177 : vector<2x128x32xf32> to vector<256x32xf32>
    %179 = arith.truncf %178 : vector<256x32xf32> to vector<256x32xbf16>
    %c128 = arith.constant 128 : index
    %c0_46 = arith.constant 0 : index
    %180 = vector.load %arg7[%c128, %c0_46] : memref<192x192xbf16, #tpu.memory_space<vmem>>, vector<32x192xbf16>
    %cst_47 = arith.constant dense<0.000000e+00> : vector<256x192xf32>
    %181 = tpu.matmul %179, %180, %cst_47 {dimension_numbers = #tpu.dot_dimension_numbers<[1], [0], [0], [1], [0, 0, 1, 1], [], []>} : vector<256x32xbf16>, vector<32x192xbf16>, vector<256x192xf32> -> vector<256x192xf32>
    %182 = arith.addf %154, %181 : vector<256x192xf32>
    %183 = vector.extract_strided_slice %30 {offsets = [0, 160], sizes = [256, 32], strides = [1, 1]} : vector<256x192xf32> to vector<256x32xf32>
    %184 = vector.shape_cast %183 : vector<256x32xf32> to vector<2x128x32xf32>
    %185 = arith.truncf %184 : vector<2x128x32xf32> to vector<2x128x32xbf16>
    %186 = vector.extract_strided_slice %27 {offsets = [0, 352], sizes = [256, 32], strides = [1, 1]} : vector<256x576xf32> to vector<256x32xf32>
    %187 = vector.shape_cast %186 : vector<256x32xf32> to vector<2x128x32xf32>
    %188 = arith.truncf %187 : vector<2x128x32xf32> to vector<2x128x32xbf16>
    %189 = vector.extract_strided_slice %27 {offsets = [0, 544], sizes = [256, 32], strides = [1, 1]} : vector<256x576xf32> to vector<256x32xf32>
    %190 = vector.shape_cast %189 : vector<256x32xf32> to vector<2x128x32xf32>
    %191 = arith.truncf %190 : vector<2x128x32xf32> to vector<2x128x32xbf16>
    "tpu.trace_start"() <{level = 10 : i32, message = "btd,bsd->bts"}> : () -> ()
    %cst_48 = arith.constant dense<0.000000e+00> : vector<2x128x128xf32>
    %192 = tpu.matmul %185, %188, %cst_48 {dimension_numbers = #tpu.dot_dimension_numbers<[2], [2], [1], [1], [0, 0, 0, 1, 1, 1], [0], [0]>} : vector<2x128x32xbf16>, vector<2x128x32xbf16>, vector<2x128x128xf32> -> vector<2x128x128xf32>
    "tpu.trace_stop"() : () -> ()
    %193 = arith.addf %192, %39 : vector<2x128x128xf32>
    %cst_49 = arith.constant dense<0xFF800000> : vector<2x128xf32>
    %194 = vector.multi_reduction <maximumf>, %193, %cst_49 [2] : vector<2x128x128xf32> to vector<2x128xf32>
    %195 = vector.shape_cast %194 : vector<2x128xf32> to vector<2x128x1xf32>
    %196 = vector.broadcast %195 : vector<2x128x1xf32> to vector<2x128x128xf32>
    %197 = arith.subf %193, %196 : vector<2x128x128xf32>
    %198 = math.exp %197 : vector<2x128x128xf32>
    %cst_50 = arith.constant dense<0.000000e+00> : vector<2x128xf32>
    %199 = vector.multi_reduction <add>, %198, %cst_50 [2] : vector<2x128x128xf32> to vector<2x128xf32>
    %200 = vector.shape_cast %199 : vector<2x128xf32> to vector<2x128x1xf32>
    %201 = tpu.reciprocal %200 {approx = true} : vector<2x128x1xf32> -> vector<2x128x1xf32>
    %202 = vector.broadcast %201 : vector<2x128x1xf32> to vector<2x128x128xf32>
    %203 = arith.mulf %198, %202 : vector<2x128x128xf32>
    %204 = arith.truncf %203 : vector<2x128x128xf32> to vector<2x128x128xbf16>
    "tpu.trace_start"() <{level = 10 : i32, message = "bts,bsd->btd"}> : () -> ()
    %cst_51 = arith.constant dense<0.000000e+00> : vector<2x128x32xf32>
    %205 = tpu.matmul %204, %191, %cst_51 {dimension_numbers = #tpu.dot_dimension_numbers<[2], [1], [1], [2], [0, 0, 0, 1, 1, 2], [0], [0]>} : vector<2x128x128xbf16>, vector<2x128x32xbf16>, vector<2x128x32xf32> -> vector<2x128x32xf32>
    "tpu.trace_stop"() : () -> ()
    %206 = vector.shape_cast %205 : vector<2x128x32xf32> to vector<256x32xf32>
    %207 = arith.truncf %206 : vector<256x32xf32> to vector<256x32xbf16>
    %c160 = arith.constant 160 : index
    %c0_52 = arith.constant 0 : index
    %208 = vector.load %arg7[%c160, %c0_52] : memref<192x192xbf16, #tpu.memory_space<vmem>>, vector<32x192xbf16>
    %cst_53 = arith.constant dense<0.000000e+00> : vector<256x192xf32>
    %209 = tpu.matmul %207, %208, %cst_53 {dimension_numbers = #tpu.dot_dimension_numbers<[1], [0], [0], [1], [0, 0, 1, 1], [], []>} : vector<256x32xbf16>, vector<32x192xbf16>, vector<256x192xf32> -> vector<256x192xf32>
    %210 = arith.addf %182, %209 : vector<256x192xf32>
    %211 = arith.addf %24, %210 : vector<256x192xf32>
    %c0_54 = arith.constant 0 : index
    %c0_55 = arith.constant 0 : index
    %212 = vector.load %arg4[%c0_54, %c0_55] : memref<1x192xf32, #tpu.memory_space<vmem>>, vector<1x192xf32>
    %c0_56 = arith.constant 0 : index
    %c0_57 = arith.constant 0 : index
    %213 = vector.load %arg5[%c0_56, %c0_57] : memref<1x192xf32, #tpu.memory_space<vmem>>, vector<1x192xf32>
    %cst_58 = arith.constant dense<0.000000e+00> : vector<256xf32>
    %214 = vector.multi_reduction <add>, %211, %cst_58 [1] : vector<256x192xf32> to vector<256xf32>
    %215 = vector.shape_cast %214 : vector<256xf32> to vector<256x1xf32>
    %cst_59 = arith.constant 1.920000e+02 : f32
    %216 = vector.broadcast %cst_59 : f32 to vector<256x1xf32>
    %217 = arith.divf %215, %216 : vector<256x1xf32>
    %218 = vector.broadcast %217 : vector<256x1xf32> to vector<256x192xf32>
    %219 = arith.subf %211, %218 : vector<256x192xf32>
    %220 = arith.mulf %219, %219 : vector<256x192xf32>
    %cst_60 = arith.constant dense<0.000000e+00> : vector<256xf32>
    %221 = vector.multi_reduction <add>, %220, %cst_60 [1] : vector<256x192xf32> to vector<256xf32>
    %222 = vector.shape_cast %221 : vector<256xf32> to vector<256x1xf32>
    %cst_61 = arith.constant 1.920000e+02 : f32
    %223 = vector.broadcast %cst_61 : f32 to vector<256x1xf32>
    %224 = arith.divf %222, %223 : vector<256x1xf32>
    %225 = vector.broadcast %217 : vector<256x1xf32> to vector<256x192xf32>
    %226 = arith.subf %211, %225 : vector<256x192xf32>
    %cst_62 = arith.constant 9.99999974E-6 : f32
    %227 = vector.broadcast %cst_62 : f32 to vector<256x1xf32>
    %228 = arith.addf %224, %227 : vector<256x1xf32>
    %229 = math.rsqrt %228 : vector<256x1xf32>
    %230 = vector.broadcast %229 : vector<256x1xf32> to vector<256x192xf32>
    %231 = arith.mulf %226, %230 : vector<256x192xf32>
    %232 = vector.broadcast %212 : vector<1x192xf32> to vector<256x192xf32>
    %233 = arith.mulf %231, %232 : vector<256x192xf32>
    %234 = vector.broadcast %213 : vector<1x192xf32> to vector<256x192xf32>
    %235 = arith.addf %233, %234 : vector<256x192xf32>
    %236 = arith.truncf %235 : vector<256x192xf32> to vector<256x192xbf16>
    %c0_63 = arith.constant 0 : index
    %c0_64 = arith.constant 0 : index
    %237 = vector.load %arg9[%c0_63, %c0_64] : memref<192x768xbf16, #tpu.memory_space<vmem>>, vector<192x768xbf16>
    %cst_65 = arith.constant dense<0.000000e+00> : vector<256x768xf32>
    %238 = tpu.matmul %236, %237, %cst_65 {dimension_numbers = #tpu.dot_dimension_numbers<[1], [0], [0], [1], [0, 0, 1, 1], [], []>} : vector<256x192xbf16>, vector<192x768xbf16>, vector<256x768xf32> -> vector<256x768xf32>
    %c0_66 = arith.constant 0 : index
    %c0_67 = arith.constant 0 : index
    %239 = vector.load %arg10[%c0_66, %c0_67] : memref<1x768xf32, #tpu.memory_space<vmem>>, vector<1x768xf32>
    %240 = vector.broadcast %239 : vector<1x768xf32> to vector<256x768xf32>
    %241 = arith.addf %238, %240 : vector<256x768xf32>
    %cst_68 = arith.constant 0.000000e+00 : f32
    %242 = vector.broadcast %cst_68 : f32 to vector<256x768xf32>
    %243 = arith.maximumf %241, %242 : vector<256x768xf32>
    %244 = arith.truncf %243 : vector<256x768xf32> to vector<256x768xbf16>
    %c0_69 = arith.constant 0 : index
    %c0_70 = arith.constant 0 : index
    %245 = vector.load %arg11[%c0_69, %c0_70] : memref<768x192xbf16, #tpu.memory_space<vmem>>, vector<768x192xbf16>
    %cst_71 = arith.constant dense<0.000000e+00> : vector<256x192xf32>
    %246 = tpu.matmul %244, %245, %cst_71 {dimension_numbers = #tpu.dot_dimension_numbers<[1], [0], [0], [1], [0, 0, 1, 1], [], []>} : vector<256x768xbf16>, vector<768x192xbf16>, vector<256x192xf32> -> vector<256x192xf32>
    %c0_72 = arith.constant 0 : index
    %c0_73 = arith.constant 0 : index
    %247 = vector.load %arg12[%c0_72, %c0_73] : memref<1x192xf32, #tpu.memory_space<vmem>>, vector<1x192xf32>
    %248 = vector.broadcast %247 : vector<1x192xf32> to vector<256x192xf32>
    %249 = arith.addf %246, %248 : vector<256x192xf32>
    %250 = arith.addf %235, %249 : vector<256x192xf32>
    %c0_74 = arith.constant 0 : index
    %c0_75 = arith.constant 0 : index
    %251 = vector.load %arg13[%c0_74, %c0_75] : memref<256x192xf32, #tpu.memory_space<vmem>>, vector<256x192xf32>
    tpu.vector_store %arg13[%c0_74, %c0_75], %250 {strides = array<i32>} : memref<256x192xf32, #tpu.memory_space<vmem>>, vector<256x192xf32>,
    return
  }
  func.func @transform_0(%arg0: i32) -> (i32, i32) {
    %c0_i32 = arith.constant 0 : i32
    %c0_i32_0 = arith.constant 0 : i32
    return %arg0, %c0_i32 : i32, i32
  }
  func.func @transform_1(%arg0: i32) -> (i32, i32) {
    %c0_i32 = arith.constant 0 : i32
    %c0_i32_0 = arith.constant 0 : i32
    %c0_i32_1 = arith.constant 0 : i32
    return %c0_i32, %c0_i32_0 : i32, i32
  }
  func.func @transform_2(%arg0: i32) -> (i32, i32) {
    %c0_i32 = arith.constant 0 : i32
    %c0_i32_0 = arith.constant 0 : i32
    %c0_i32_1 = arith.constant 0 : i32
    return %c0_i32, %c0_i32_0 : i32, i32
  }
  func.func @transform_3(%arg0: i32) -> (i32, i32) {
    %c0_i32 = arith.constant 0 : i32
    %c0_i32_0 = arith.constant 0 : i32
    %c0_i32_1 = arith.constant 0 : i32
    return %c0_i32, %c0_i32_0 : i32, i32
  }
  func.func @transform_4(%arg0: i32) -> (i32, i32) {
    %c0_i32 = arith.constant 0 : i32
    %c0_i32_0 = arith.constant 0 : i32
    %c0_i32_1 = arith.constant 0 : i32
    return %c0_i32, %c0_i32_0 : i32, i32
  }
  func.func @transform_5(%arg0: i32) -> (i32, i32) {
    %c0_i32 = arith.constant 0 : i32
    %c0_i32_0 = arith.constant 0 : i32
    %c0_i32_1 = arith.constant 0 : i32
    return %c0_i32, %c0_i32_0 : i32, i32
  }
  func.func @transform_6(%arg0: i32) -> (i32, i32) {
    %c0_i32 = arith.constant 0 : i32
    %c0_i32_0 = arith.constant 0 : i32
    %c0_i32_1 = arith.constant 0 : i32
    return %c0_i32, %c0_i32_0 : i32, i32
  }
  func.func @transform_7(%arg0: i32) -> (i32, i32) {
    %c0_i32 = arith.constant 0 : i32
    %c0_i32_0 = arith.constant 0 : i32
    %c0_i32_1 = arith.constant 0 : i32
    return %c0_i32, %c0_i32_0 : i32, i32
  }
  func.func @transform_8(%arg0: i32) -> (i32, i32) {
    %c0_i32 = arith.constant 0 : i32
    %c0_i32_0 = arith.constant 0 : i32
    %c0_i32_1 = arith.constant 0 : i32
    return %c0_i32, %c0_i32_0 : i32, i32
  }
  func.func @transform_9(%arg0: i32) -> (i32, i32) {
    %c0_i32 = arith.constant 0 : i32
    %c0_i32_0 = arith.constant 0 : i32
    %c0_i32_1 = arith.constant 0 : i32
    return %c0_i32, %c0_i32_0 : i32, i32
  }
  func.func @transform_10(%arg0: i32) -> (i32, i32) {
    %c0_i32 = arith.constant 0 : i32
    %c0_i32_0 = arith.constant 0 : i32
    %c0_i32_1 = arith.constant 0 : i32
    return %c0_i32, %c0_i32_0 : i32, i32
  }
  func.func @transform_11(%arg0: i32) -> (i32, i32) {
    %c0_i32 = arith.constant 0 : i32
    %c0_i32_0 = arith.constant 0 : i32
    %c0_i32_1 = arith.constant 0 : i32
    return %c0_i32, %c0_i32_0 : i32, i32
  }
  func.func @transform_12(%arg0: i32) -> (i32, i32) {
    %c0_i32 = arith.constant 0 : i32
    %c0_i32_0 = arith.constant 0 : i32
    return %arg0, %c0_i32 : i32, i32
  }
}

</mosaic_0001>

<llo_original>
// kernel: block_forward.1
$region0: #{block_forward.1}
  #allocation0 [shape = 'u32[]', space=smem, size = 0x4, offset = 0x4, fixed_abs, tag = 'smem constant byte address 0x4 - core index']
  #allocation1 [shape = 'u32[144,128]{1,0:T(1,128)}', space=vmem, size = 0x12000, scoped, tag = 'internal scratch']
  %s0 = inlined_call_operand.vmem [shape: f32[256,192], index: 0, kind: input, shape index: {}]
  %s1 = inlined_call_operand.vmem [shape: f32[1,192], index: 1, kind: input, shape index: {}]
  %s2 = inlined_call_operand.vmem [shape: f32[1,192], index: 2, kind: input, shape index: {}]
  %s3 = inlined_call_operand.vmem [shape: f32[1,192], index: 3, kind: input, shape index: {}]
  %s4 = inlined_call_operand.vmem [shape: f32[1,192], index: 4, kind: input, shape index: {}]
  %s5 = inlined_call_operand.vmem [shape: bf16[192,576], index: 5, kind: input, shape index: {}]
  %s6 = inlined_call_operand.vmem [shape: bf16[192,192], index: 6, kind: input, shape index: {}]
  %s7 = inlined_call_operand.vmem [shape: f32[1,192], index: 7, kind: input, shape index: {}]
  %s8 = inlined_call_operand.vmem [shape: bf16[192,768], index: 8, kind: input, shape index: {}]
  %s9 = inlined_call_operand.vmem [shape: f32[1,768], index: 9, kind: input, shape index: {}]
  %s10 = inlined_call_operand.vmem [shape: bf16[768,192], index: 10, kind: input, shape index: {}]
  %s11 = inlined_call_operand.vmem [shape: f32[1,192], index: 11, kind: input, shape index: {}]
  %s12 = inlined_call_operand.vmem [shape: f32[256,192], index: 12, kind: output, shape index: {}]
  %s13 = sld [smem:[#allocation0]]
  $region58: #{block_forward.1} parent=0
    _
  %s15 = ssub.s32 1, %s13
  %s16 = scalar_select 0, %s15, %s13
  // Predicated region
  $region2: #{block_forward.1} parent=0 // pred_check
    _
  $region3: #{block_forward.1} parent=0 // pred_check_branch
    %18 = sbr.rel (0) target = $region5
  $region4: #{block_forward.1} parent=0 // pred_region
    _
  $region5: #{block_forward.1} parent=0 // pred_fallthru
    _
  // Predicated region
  $region6: #{block_forward.1} parent=0 // pred_check
    _
  $region7: #{block_forward.1} parent=0 // pred_check_branch
    %20 = sbr.rel (0) target = $region9
  $region8: #{block_forward.1} parent=0 // pred_region
    _
  $region9: #{block_forward.1} parent=0 // pred_fallthru
    _
  // Predicated region
  $region10: #{block_forward.1} parent=0 // pred_check
    _
  $region11: #{block_forward.1} parent=0 // pred_check_branch
    %22 = sbr.rel (0) target = $region13
  $region12: #{block_forward.1} parent=0 // pred_region
    _
  $region13: #{block_forward.1} parent=0 // pred_fallthru
    _
  // Predicated region
  $region14: #{block_forward.1} parent=0 // pred_check
    _
  $region15: #{block_forward.1} parent=0 // pred_check_branch
    %24 = sbr.rel (0) target = $region17
  $region16: #{block_forward.1} parent=0 // pred_region
    _
  $region17: #{block_forward.1} parent=0 // pred_fallthru
    _
  // Predicated region
  $region18: #{block_forward.1} parent=0 // pred_check
    _
  $region19: #{block_forward.1} parent=0 // pred_check_branch
    %26 = sbr.rel (0) target = $region21
  $region20: #{block_forward.1} parent=0 // pred_region
    _
  $region21: #{block_forward.1} parent=0 // pred_fallthru
    _
  // Predicated region
  $region22: #{block_forward.1} parent=0 // pred_check
    _
  $region23: #{block_forward.1} parent=0 // pred_check_branch
    %28 = sbr.rel (0) target = $region25
  $region24: #{block_forward.1} parent=0 // pred_region
    _
  $region25: #{block_forward.1} parent=0 // pred_fallthru
    _
  // Predicated region
  $region26: #{block_forward.1} parent=0 // pred_check
    _
  $region27: #{block_forward.1} parent=0 // pred_check_branch
    %30 = sbr.rel (0) target = $region29
  $region28: #{block_forward.1} parent=0 // pred_region
    _
  $region29: #{block_forward.1} parent=0 // pred_fallthru
    _
  // Predicated region
  $region30: #{block_forward.1} parent=0 // pred_check
    _
  $region31: #{block_forward.1} parent=0 // pred_check_branch
    %32 = sbr.rel (0) target = $region33
  $region32: #{block_forward.1} parent=0 // pred_region
    _
  $region33: #{block_forward.1} parent=0 // pred_fallthru
    _
  // Predicated region
  $region34: #{block_forward.1} parent=0 // pred_check
    _
  $region35: #{block_forward.1} parent=0 // pred_check_branch
    %34 = sbr.rel (0) target = $region37
  $region36: #{block_forward.1} parent=0 // pred_region
    _
  $region37: #{block_forward.1} parent=0 // pred_fallthru
    _
  // Predicated region
  $region38: #{block_forward.1} parent=0 // pred_check
    _
  $region39: #{block_forward.1} parent=0 // pred_check_branch
    %36 = sbr.rel (0) target = $region41
  $region40: #{block_forward.1} parent=0 // pred_region
    _
  $region41: #{block_forward.1} parent=0 // pred_fallthru
    _
  // Predicated region
  $region42: #{block_forward.1} parent=0 // pred_check
    _
  $region43: #{block_forward.1} parent=0 // pred_check_branch
    %38 = sbr.rel (0) target = $region45
  $region44: #{block_forward.1} parent=0 // pred_region
    _
  $region45: #{block_forward.1} parent=0 // pred_fallthru
    _
  // Predicated region
  $region46: #{block_forward.1} parent=0 // pred_check
    _
  $region47: #{block_forward.1} parent=0 // pred_check_branch
    %40 = sbr.rel (0) target = $region49
  $region48: #{block_forward.1} parent=0 // pred_region
    _
  $region49: #{block_forward.1} parent=0 // pred_fallthru
    _
  %v42 = vld [vmem:[%s0] sm:$0xff]
  %v43 = vld [vmem:[%s0 + $0x8] sm:$0xff]
  %v44 = vld [vmem:[%s0 + $0x10] sm:$0xff]
  %v45 = vld [vmem:[%s0 + $0x18] sm:$0xff]
  %v46 = vld [vmem:[%s0 + $0x20] sm:$0xff]
  %v47 = vld [vmem:[%s0 + $0x28] sm:$0xff]
  %v48 = vld [vmem:[%s0 + $0x30] sm:$0xff]
  %v49 = vld [vmem:[%s0 + $0x38] sm:$0xff]
  %v50 = vld [vmem:[%s0 + $0x40] sm:$0xff]
  %v51 = vld [vmem:[%s0 + $0x48] sm:$0xff]
  %v52 = vld [vmem:[%s0 + $0x50] sm:$0xff]
  %v53 = vld [vmem:[%s0 + $0x58] sm:$0xff]
  %v54 = vld [vmem:[%s0 + $0x60] sm:$0xff]
  %v55 = vld [vmem:[%s0 + $0x68] sm:$0xff]
  %v56 = vld [vmem:[%s0 + $0x70] sm:$0xff]
  %v57 = vld [vmem:[%s0 + $0x78] sm:$0xff]
  %v58 = vld [vmem:[%s0 + $0x80] sm:$0xff]
  %v59 = vld [vmem:[%s0 + $0x88] sm:$0xff]
  %v60 = vld [vmem:[%s0 + $0x90] sm:$0xff]
  %v61 = vld [vmem:[%s0 + $0x98] sm:$0xff]
  %v62 = vld [vmem:[%s0 + $0xa0] sm:$0xff]
  %v63 = vld [vmem:[%s0 + $0xa8] sm:$0xff]
  %v64 = vld [vmem:[%s0 + $0xb0] sm:$0xff]
  %v65 = vld [vmem:[%s0 + $0xb8] sm:$0xff]
  %v66 = vld [vmem:[%s0 + $0xc0] sm:$0xff]
  %v67 = vld [vmem:[%s0 + $0xc8] sm:$0xff]
  %v68 = vld [vmem:[%s0 + $0xd0] sm:$0xff]
  %v69 = vld [vmem:[%s0 + $0xd8] sm:$0xff]
  %v70 = vld [vmem:[%s0 + $0xe0] sm:$0xff]
  %v71 = vld [vmem:[%s0 + $0xe8] sm:$0xff]
  %v72 = vld [vmem:[%s0 + $0xf0] sm:$0xff]
  %v73 = vld [vmem:[%s0 + $0xf8] sm:$0xff]
  %v74 = vld [vmem:[%s0 + $0x100] sm:$0xff]
  %v75 = vld [vmem:[%s0 + $0x108] sm:$0xff]
  %v76 = vld [vmem:[%s0 + $0x110] sm:$0xff]
  %v77 = vld [vmem:[%s0 + $0x118] sm:$0xff]
  %v78 = vld [vmem:[%s0 + $0x120] sm:$0xff]
  %v79 = vld [vmem:[%s0 + $0x128] sm:$0xff]
  %v80 = vld [vmem:[%s0 + $0x130] sm:$0xff]
  %v81 = vld [vmem:[%s0 + $0x138] sm:$0xff]
  %v82 = vld [vmem:[%s0 + $0x140] sm:$0xff]
  %v83 = vld [vmem:[%s0 + $0x148] sm:$0xff]
  %v84 = vld [vmem:[%s0 + $0x150] sm:$0xff]
  %v85 = vld [vmem:[%s0 + $0x158] sm:$0xff]
  %v86 = vld [vmem:[%s0 + $0x160] sm:$0xff]
  %v87 = vld [vmem:[%s0 + $0x168] sm:$0xff]
  %v88 = vld [vmem:[%s0 + $0x170] sm:$0xff]
  %v89 = vld [vmem:[%s0 + $0x178] sm:$0xff]
  %v90 = vld [vmem:[%s0 + $0x180] sm:$0xff]
  %v91 = vld [vmem:[%s0 + $0x188] sm:$0xff]
  %v92 = vld [vmem:[%s0 + $0x190] sm:$0xff]
  %v93 = vld [vmem:[%s0 + $0x198] sm:$0xff]
  %v94 = vld [vmem:[%s0 + $0x1a0] sm:$0xff]
  %v95 = vld [vmem:[%s0 + $0x1a8] sm:$0xff]
  %v96 = vld [vmem:[%s0 + $0x1b0] sm:$0xff]
  %v97 = vld [vmem:[%s0 + $0x1b8] sm:$0xff]
  %v98 = vld [vmem:[%s0 + $0x1c0] sm:$0xff]
  %v99 = vld [vmem:[%s0 + $0x1c8] sm:$0xff]
  %v100 = vld [vmem:[%s0 + $0x1d0] sm:$0xff]
  %v101 = vld [vmem:[%s0 + $0x1d8] sm:$0xff]
  %v102 = vld [vmem:[%s0 + $0x1e0] sm:$0xff]
  %v103 = vld [vmem:[%s0 + $0x1e8] sm:$0xff]
  %v104 = vld [vmem:[%s0 + $0x1f0] sm:$0xff]
  %v105 = vld [vmem:[%s0 + $0x1f8] sm:$0xff]
  %v106 = vld [vmem:[%s1] sm:$0x3]
  %v107 = vld [vmem:[%s2] sm:$0x3]
  %vm108 = vcmask 523264
  %v109 = vsel %vm108, %v43, 0.0
  %v110 = vadd.f32 %v42, %v109
  %111 = vadd.xlane.f32.xlu0 %v110
  %v112 = vpop.xlane.xlu0 %111
  %v113 = vsel %vm108, %v45, 0.0
  %v114 = vadd.f32 %v44, %v113
  %115 = vadd.xlane.f32.xlu0 %v114
  %v116 = vpop.xlane.xlu0 %115
  %v117 = vsel %vm108, %v47, 0.0
  %v118 = vadd.f32 %v46, %v117
  %119 = vadd.xlane.f32.xlu0 %v118
  %v120 = vpop.xlane.xlu0 %119
  %v121 = vsel %vm108, %v49, 0.0
  %v122 = vadd.f32 %v48, %v121
  %123 = vadd.xlane.f32.xlu0 %v122
  %v124 = vpop.xlane.xlu0 %123
  %v125 = vsel %vm108, %v51, 0.0
  %v126 = vadd.f32 %v50, %v125
  %127 = vadd.xlane.f32.xlu0 %v126
  %v128 = vpop.xlane.xlu0 %127
  %v129 = vsel %vm108, %v53, 0.0
  %v130 = vadd.f32 %v52, %v129
  %131 = vadd.xlane.f32.xlu0 %v130
  %v132 = vpop.xlane.xlu0 %131
  %v133 = vsel %vm108, %v55, 0.0
  %v134 = vadd.f32 %v54, %v133
  %135 = vadd.xlane.f32.xlu0 %v134
  %v136 = vpop.xlane.xlu0 %135
  %v137 = vsel %vm108, %v57, 0.0
  %v138 = vadd.f32 %v56, %v137
  %139 = vadd.xlane.f32.xlu0 %v138
  %v140 = vpop.xlane.xlu0 %139
  %v141 = vsel %vm108, %v59, 0.0
  %v142 = vadd.f32 %v58, %v141
  %143 = vadd.xlane.f32.xlu0 %v142
  %v144 = vpop.xlane.xlu0 %143
  %v145 = vsel %vm108, %v61, 0.0
  %v146 = vadd.f32 %v60, %v145
  %147 = vadd.xlane.f32.xlu0 %v146
  %v148 = vpop.xlane.xlu0 %147
  %v149 = vsel %vm108, %v63, 0.0
  %v150 = vadd.f32 %v62, %v149
  %151 = vadd.xlane.f32.xlu0 %v150
  %v152 = vpop.xlane.xlu0 %151
  %v153 = vsel %vm108, %v65, 0.0
  %v154 = vadd.f32 %v64, %v153
  %155 = vadd.xlane.f32.xlu0 %v154
  %v156 = vpop.xlane.xlu0 %155
  %v157 = vsel %vm108, %v67, 0.0
  %v158 = vadd.f32 %v66, %v157
  %159 = vadd.xlane.f32.xlu0 %v158
  %v160 = vpop.xlane.xlu0 %159
  %v161 = vsel %vm108, %v69, 0.0
  %v162 = vadd.f32 %v68, %v161
  %163 = vadd.xlane.f32.xlu0 %v162
  %v164 = vpop.xlane.xlu0 %163
  %v165 = vsel %vm108, %v71, 0.0
  %v166 = vadd.f32 %v70, %v165
  %167 = vadd.xlane.f32.xlu0 %v166
  %v168 = vpop.xlane.xlu0 %167
  %v169 = vsel %vm108, %v73, 0.0
  %v170 = vadd.f32 %v72, %v169
  %171 = vadd.xlane.f32.xlu0 %v170
  %v172 = vpop.xlane.xlu0 %171
  %v173 = vsel %vm108, %v75, 0.0
  %v174 = vadd.f32 %v74, %v173
  %175 = vadd.xlane.f32.xlu0 %v174
  %v176 = vpop.xlane.xlu0 %175
  %v177 = vsel %vm108, %v77, 0.0
  %v178 = vadd.f32 %v76, %v177
  %179 = vadd.xlane.f32.xlu0 %v178
  %v180 = vpop.xlane.xlu0 %179
  %v181 = vsel %vm108, %v79, 0.0
  %v182 = vadd.f32 %v78, %v181
  %183 = vadd.xlane.f32.xlu0 %v182
  %v184 = vpop.xlane.xlu0 %183
  %v185 = vsel %vm108, %v81, 0.0
  %v186 = vadd.f32 %v80, %v185
  %187 = vadd.xlane.f32.xlu0 %v186
  %v188 = vpop.xlane.xlu0 %187
  %v189 = vsel %vm108, %v83, 0.0
  %v190 = vadd.f32 %v82, %v189
  %191 = vadd.xlane.f32.xlu0 %v190
  %v192 = vpop.xlane.xlu0 %191
  %v193 = vsel %vm108, %v85, 0.0
  %v194 = vadd.f32 %v84, %v193
  %195 = vadd.xlane.f32.xlu0 %v194
  %v196 = vpop.xlane.xlu0 %195
  %v197 = vsel %vm108, %v87, 0.0
  %v198 = vadd.f32 %v86, %v197
  %199 = vadd.xlane.f32.xlu0 %v198
  %v200 = vpop.xlane.xlu0 %199
  %v201 = vsel %vm108, %v89, 0.0
  %v202 = vadd.f32 %v88, %v201
  %203 = vadd.xlane.f32.xlu0 %v202
  %v204 = vpop.xlane.xlu0 %203
  %v205 = vsel %vm108, %v91, 0.0
  %v206 = vadd.f32 %v90, %v205
  %207 = vadd.xlane.f32.xlu0 %v206
  %v208 = vpop.xlane.xlu0 %207
  %v209 = vsel %vm108, %v93, 0.0
  %v210 = vadd.f32 %v92, %v209
  %211 = vadd.xlane.f32.xlu0 %v210
  %v212 = vpop.xlane.xlu0 %211
  %v213 = vsel %vm108, %v95, 0.0
  %v214 = vadd.f32 %v94, %v213
  %215 = vadd.xlane.f32.xlu0 %v214
  %v216 = vpop.xlane.xlu0 %215
  %v217 = vsel %vm108, %v97, 0.0
  %v218 = vadd.f32 %v96, %v217
  %219 = vadd.xlane.f32.xlu0 %v218
  %v220 = vpop.xlane.xlu0 %219
  %v221 = vsel %vm108, %v99, 0.0
  %v222 = vadd.f32 %v98, %v221
  %223 = vadd.xlane.f32.xlu0 %v222
  %v224 = vpop.xlane.xlu0 %223
  %v225 = vsel %vm108, %v101, 0.0
  %v226 = vadd.f32 %v100, %v225
  %227 = vadd.xlane.f32.xlu0 %v226
  %v228 = vpop.xlane.xlu0 %227
  %v229 = vsel %vm108, %v103, 0.0
  %v230 = vadd.f32 %v102, %v229
  %231 = vadd.xlane.f32.xlu0 %v230
  %v232 = vpop.xlane.xlu0 %231
  %v233 = vsel %vm108, %v105, 0.0
  %v234 = vadd.f32 %v104, %v233
  %235 = vadd.xlane.f32.xlu0 %v234
  %v236 = vpop.xlane.xlu0 %235
  %v237 = vrcp.pop 192.0
  %v238 = vmul.f32 %v112, %v237
  %v239 = vmul.f32 %v116, %v237
  %v240 = vmul.f32 %v120, %v237
  %v241 = vmul.f32 %v124, %v237
  %v242 = vmul.f32 %v128, %v237
  %v243 = vmul.f32 %v132, %v237
  %v244 = vmul.f32 %v136, %v237
  %v245 = vmul.f32 %v140, %v237
  %v246 = vmul.f32 %v144, %v237
  %v247 = vmul.f32 %v148, %v237
  %v248 = vmul.f32 %v152, %v237
  %v249 = vmul.f32 %v156, %v237
  %v250 = vmul.f32 %v160, %v237
  %v251 = vmul.f32 %v164, %v237
  %v252 = vmul.f32 %v168, %v237
  %v253 = vmul.f32 %v172, %v237
  %v254 = vmul.f32 %v176, %v237
  %v255 = vmul.f32 %v180, %v237
  %v256 = vmul.f32 %v184, %v237
  %v257 = vmul.f32 %v188, %v237
  %v258 = vmul.f32 %v192, %v237
  %v259 = vmul.f32 %v196, %v237
  %v260 = vmul.f32 %v200, %v237
  %v261 = vmul.f32 %v204, %v237
  %v262 = vmul.f32 %v208, %v237
  %v263 = vmul.f32 %v212, %v237
  %v264 = vmul.f32 %v216, %v237
  %v265 = vmul.f32 %v220, %v237
  %v266 = vmul.f32 %v224, %v237
  %v267 = vmul.f32 %v228, %v237
  %v268 = vmul.f32 %v232, %v237
  %v269 = vmul.f32 %v236, %v237
  %v270 = vsub.f32 %v42, %v238
  %v271 = vsub.f32 %v43, %v238
  %v272 = vsub.f32 %v44, %v239
  %v273 = vsub.f32 %v45, %v239
  %v274 = vsub.f32 %v46, %v240
  %v275 = vsub.f32 %v47, %v240
  %v276 = vsub.f32 %v48, %v241
  %v277 = vsub.f32 %v49, %v241
  %v278 = vsub.f32 %v50, %v242
  %v279 = vsub.f32 %v51, %v242
  %v280 = vsub.f32 %v52, %v243
  %v281 = vsub.f32 %v53, %v243
  %v282 = vsub.f32 %v54, %v244
  %v283 = vsub.f32 %v55, %v244
  %v284 = vsub.f32 %v56, %v245
  %v285 = vsub.f32 %v57, %v245
  %v286 = vsub.f32 %v58, %v246
  %v287 = vsub.f32 %v59, %v246
  %v288 = vsub.f32 %v60, %v247
  %v289 = vsub.f32 %v61, %v247
  %v290 = vsub.f32 %v62, %v248
  %v291 = vsub.f32 %v63, %v248
  %v292 = vsub.f32 %v64, %v249
  %v293 = vsub.f32 %v65, %v249
  %v294 = vsub.f32 %v66, %v250
  %v295 = vsub.f32 %v67, %v250
  %v296 = vsub.f32 %v68, %v251
  %v297 = vsub.f32 %v69, %v251
  %v298 = vsub.f32 %v70, %v252
  %v299 = vsub.f32 %v71, %v252
  %v300 = vsub.f32 %v72, %v253
  %v301 = vsub.f32 %v73, %v253
  %v302 = vsub.f32 %v74, %v254
  %v303 = vsub.f32 %v75, %v254
  %v304 = vsub.f32 %v76, %v255
  %v305 = vsub.f32 %v77, %v255
  %v306 = vsub.f32 %v78, %v256
  %v307 = vsub.f32 %v79, %v256
  %v308 = vsub.f32 %v80, %v257
  %v309 = vsub.f32 %v81, %v257
  %v310 = vsub.f32 %v82, %v258
  %v311 = vsub.f32 %v83, %v258
  %v312 = vsub.f32 %v84, %v259
  %v313 = vsub.f32 %v85, %v259
  %v314 = vsub.f32 %v86, %v260
  %v315 = vsub.f32 %v87, %v260
  %v316 = vsub.f32 %v88, %v261
  %v317 = vsub.f32 %v89, %v261
  %v318 = vsub.f32 %v90, %v262
  %v319 = vsub.f32 %v91, %v262
  %v320 = vsub.f32 %v92, %v263
  %v321 = vsub.f32 %v93, %v263
  %v322 = vsub.f32 %v94, %v264
  %v323 = vsub.f32 %v95, %v264
  %v324 = vsub.f32 %v96, %v265
  %v325 = vsub.f32 %v97, %v265
  %v326 = vsub.f32 %v98, %v266
  %v327 = vsub.f32 %v99, %v266
  %v328 = vsub.f32 %v100, %v267
  %v329 = vsub.f32 %v101, %v267
  %v330 = vsub.f32 %v102, %v268
  %v331 = vsub.f32 %v103, %v268
  %v332 = vsub.f32 %v104, %v269
  %v333 = vsub.f32 %v105, %v269
  %v334 = vmul.f32 %v270, %v270
  %v335 = vmul.f32 %v271, %v271
  %v336 = vmul.f32 %v272, %v272
  %v337 = vmul.f32 %v273, %v273
  %v338 = vmul.f32 %v274, %v274
  %v339 = vmul.f32 %v275, %v275
  %v340 = vmul.f32 %v276, %v276
  %v341 = vmul.f32 %v277, %v277
  %v342 = vmul.f32 %v278, %v278
  %v343 = vmul.f32 %v279, %v279
  %v344 = vmul.f32 %v280, %v280
  %v345 = vmul.f32 %v281, %v281
  %v346 = vmul.f32 %v282, %v282
  %v347 = vmul.f32 %v283, %v283
  %v348 = vmul.f32 %v284, %v284
  %v349 = vmul.f32 %v285, %v285
  %v350 = vmul.f32 %v286, %v286
  %v351 = vmul.f32 %v287, %v287
  %v352 = vmul.f32 %v288, %v288
  %v353 = vmul.f32 %v289, %v289
  %v354 = vmul.f32 %v290, %v290
  %v355 = vmul.f32 %v291, %v291
  %v356 = vmul.f32 %v292, %v292
  %v357 = vmul.f32 %v293, %v293
  %v358 = vmul.f32 %v294, %v294
  %v359 = vmul.f32 %v295, %v295
  %v360 = vmul.f32 %v296, %v296
  %v361 = vmul.f32 %v297, %v297
  %v362 = vmul.f32 %v298, %v298
  %v363 = vmul.f32 %v299, %v299
  %v364 = vmul.f32 %v300, %v300
  %v365 = vmul.f32 %v301, %v301
  %v366 = vmul.f32 %v302, %v302
  %v367 = vmul.f32 %v303, %v303
  %v368 = vmul.f32 %v304, %v304
  %v369 = vmul.f32 %v305, %v305
  %v370 = vmul.f32 %v306, %v306
  %v371 = vmul.f32 %v307, %v307
  %v372 = vmul.f32 %v308, %v308
  %v373 = vmul.f32 %v309, %v309
  %v374 = vmul.f32 %v310, %v310
  %v375 = vmul.f32 %v311, %v311
  %v376 = vmul.f32 %v312, %v312
  %v377 = vmul.f32 %v313, %v313
  %v378 = vmul.f32 %v314, %v314
  %v379 = vmul.f32 %v315, %v315
  %v380 = vmul.f32 %v316, %v316
  %v381 = vmul.f32 %v317, %v317
  %v382 = vmul.f32 %v318, %v318
  %v383 = vmul.f32 %v319, %v319
  %v384 = vmul.f32 %v320, %v320
  %v385 = vmul.f32 %v321, %v321
  %v386 = vmul.f32 %v322, %v322
  %v387 = vmul.f32 %v323, %v323
  %v388 = vmul.f32 %v324, %v324
  %v389 = vmul.f32 %v325, %v325
  %v390 = vmul.f32 %v326, %v326
  %v391 = vmul.f32 %v327, %v327
  %v392 = vmul.f32 %v328, %v328
  %v393 = vmul.f32 %v329, %v329
  %v394 = vmul.f32 %v330, %v330
  %v395 = vmul.f32 %v331, %v331
  %v396 = vmul.f32 %v332, %v332
  %v397 = vmul.f32 %v333, %v333
  %v398 = vsel %vm108, %v335, 0.0
  %v399 = vadd.f32 %v334, %v398
  %400 = vadd.xlane.f32.xlu0 %v399
  %v401 = vpop.xlane.xlu0 %400
  %v402 = vsel %vm108, %v337, 0.0
  %v403 = vadd.f32 %v336, %v402
  %404 = vadd.xlane.f32.xlu0 %v403
  %v405 = vpop.xlane.xlu0 %404
  %v406 = vsel %vm108, %v339, 0.0
  %v407 = vadd.f32 %v338, %v406
  %408 = vadd.xlane.f32.xlu0 %v407
  %v409 = vpop.xlane.xlu0 %408
  %v410 = vsel %vm108, %v341, 0.0
  %v411 = vadd.f32 %v340, %v410
  %412 = vadd.xlane.f32.xlu0 %v411
  %v413 = vpop.xlane.xlu0 %412
  %v414 = vsel %vm108, %v343, 0.0
  %v415 = vadd.f32 %v342, %v414
  %416 = vadd.xlane.f32.xlu0 %v415
  %v417 = vpop.xlane.xlu0 %416
  %v418 = vsel %vm108, %v345, 0.0
  %v419 = vadd.f32 %v344, %v418
  %420 = vadd.xlane.f32.xlu0 %v419
  %v421 = vpop.xlane.xlu0 %420
  %v422 = vsel %vm108, %v347, 0.0
  %v423 = vadd.f32 %v346, %v422
  %424 = vadd.xlane.f32.xlu0 %v423
  %v425 = vpop.xlane.xlu0 %424
  %v426 = vsel %vm108, %v349, 0.0
  %v427 = vadd.f32 %v348, %v426
  %428 = vadd.xlane.f32.xlu0 %v427
  %v429 = vpop.xlane.xlu0 %428
  %v430 = vsel %vm108, %v351, 0.0
  %v431 = vadd.f32 %v350, %v430
  %432 = vadd.xlane.f32.xlu0 %v431
  %v433 = vpop.xlane.xlu0 %432
  %v434 = vsel %vm108, %v353, 0.0
  %v435 = vadd.f32 %v352, %v434
  %436 = vadd.xlane.f32.xlu0 %v435
  %v437 = vpop.xlane.xlu0 %436
  %v438 = vsel %vm108, %v355, 0.0
  %v439 = vadd.f32 %v354, %v438
  %440 = vadd.xlane.f32.xlu0 %v439
  %v441 = vpop.xlane.xlu0 %440
  %v442 = vsel %vm108, %v357, 0.0
  %v443 = vadd.f32 %v356, %v442
  %444 = vadd.xlane.f32.xlu0 %v443
  %v445 = vpop.xlane.xlu0 %444
  %v446 = vsel %vm108, %v359, 0.0
  %v447 = vadd.f32 %v358, %v446
  %448 = vadd.xlane.f32.xlu0 %v447
  %v449 = vpop.xlane.xlu0 %448
  %v450 = vsel %vm108, %v361, 0.0
  %v451 = vadd.f32 %v360, %v450
  %452 = vadd.xlane.f32.xlu0 %v451
  %v453 = vpop.xlane.xlu0 %452
  %v454 = vsel %vm108, %v363, 0.0
  %v455 = vadd.f32 %v362, %v454
  %456 = vadd.xlane.f32.xlu0 %v455
  %v457 = vpop.xlane.xlu0 %456
  %v458 = vsel %vm108, %v365, 0.0
  %v459 = vadd.f32 %v364, %v458
  %460 = vadd.xlane.f32.xlu0 %v459
  %v461 = vpop.xlane.xlu0 %460
  %v462 = vsel %vm108, %v367, 0.0
  %v463 = vadd.f32 %v366, %v462
  %464 = vadd.xlane.f32.xlu0 %v463
  %v465 = vpop.xlane.xlu0 %464
  %v466 = vsel %vm108, %v369, 0.0
  %v467 = vadd.f32 %v368, %v466
  %468 = vadd.xlane.f32.xlu0 %v467
  %v469 = vpop.xlane.xlu0 %468
  %v470 = vsel %vm108, %v371, 0.0
  %v471 = vadd.f32 %v370, %v470
  %472 = vadd.xlane.f32.xlu0 %v471
  %v473 = vpop.xlane.xlu0 %472
  %v474 = vsel %vm108, %v373, 0.0
  %v475 = vadd.f32 %v372, %v474
  %476 = vadd.xlane.f32.xlu0 %v475
  %v477 = vpop.xlane.xlu0 %476
  %v478 = vsel %vm108, %v375, 0.0
  %v479 = vadd.f32 %v374, %v478
  %480 = vadd.xlane.f32.xlu0 %v479
  %v481 = vpop.xlane.xlu0 %480
  %v482 = vsel %vm108, %v377, 0.0
  %v483 = vadd.f32 %v376, %v482
  %484 = vadd.xlane.f32.xlu0 %v483
  %v485 = vpop.xlane.xlu0 %484
  %v486 = vsel %vm108, %v379, 0.0
  %v487 = vadd.f32 %v378, %v486
  %488 = vadd.xlane.f32.xlu0 %v487
  %v489 = vpop.xlane.xlu0 %488
  %v490 = vsel %vm108, %v381, 0.0
  %v491 = vadd.f32 %v380, %v490
  %492 = vadd.xlane.f32.xlu0 %v491
  %v493 = vpop.xlane.xlu0 %492
  %v494 = vsel %vm108, %v383, 0.0
  %v495 = vadd.f32 %v382, %v494
  %496 = vadd.xlane.f32.xlu0 %v495
  %v497 = vpop.xlane.xlu0 %496
  %v498 = vsel %vm108, %v385, 0.0
  %v499 = vadd.f32 %v384, %v498
  %500 = vadd.xlane.f32.xlu0 %v499
  %v501 = vpop.xlane.xlu0 %500
  %v502 = vsel %vm108, %v387, 0.0
  %v503 = vadd.f32 %v386, %v502
  %504 = vadd.xlane.f32.xlu0 %v503
  %v505 = vpop.xlane.xlu0 %504
  %v506 = vsel %vm108, %v389, 0.0
  %v507 = vadd.f32 %v388, %v506
  %508 = vadd.xlane.f32.xlu0 %v507
  %v509 = vpop.xlane.xlu0 %508
  %v510 = vsel %vm108, %v391, 0.0
  %v511 = vadd.f32 %v390, %v510
  %512 = vadd.xlane.f32.xlu0 %v511
  %v513 = vpop.xlane.xlu0 %512
  %v514 = vsel %vm108, %v393, 0.0
  %v515 = vadd.f32 %v392, %v514
  %516 = vadd.xlane.f32.xlu0 %v515
  %v517 = vpop.xlane.xlu0 %516
  %v518 = vsel %vm108, %v395, 0.0
  %v519 = vadd.f32 %v394, %v518
  %520 = vadd.xlane.f32.xlu0 %v519
  %v521 = vpop.xlane.xlu0 %520
  %v522 = vsel %vm108, %v397, 0.0
  %v523 = vadd.f32 %v396, %v522
  %524 = vadd.xlane.f32.xlu0 %v523
  %v525 = vpop.xlane.xlu0 %524
  %v526 = vmul.f32 %v401, %v237
  %v527 = vmul.f32 %v405, %v237
  %v528 = vmul.f32 %v409, %v237
  %v529 = vmul.f32 %v413, %v237
  %v530 = vmul.f32 %v417, %v237
  %v531 = vmul.f32 %v421, %v237
  %v532 = vmul.f32 %v425, %v237
  %v533 = vmul.f32 %v429, %v237
  %v534 = vmul.f32 %v433, %v237
  %v535 = vmul.f32 %v437, %v237
  %v536 = vmul.f32 %v441, %v237
  %v537 = vmul.f32 %v445, %v237
  %v538 = vmul.f32 %v449, %v237
  %v539 = vmul.f32 %v453, %v237
  %v540 = vmul.f32 %v457, %v237
  %v541 = vmul.f32 %v461, %v237
  %v542 = vmul.f32 %v465, %v237
  %v543 = vmul.f32 %v469, %v237
  %v544 = vmul.f32 %v473, %v237
  %v545 = vmul.f32 %v477, %v237
  %v546 = vmul.f32 %v481, %v237
  %v547 = vmul.f32 %v485, %v237
  %v548 = vmul.f32 %v489, %v237
  %v549 = vmul.f32 %v493, %v237
  %v550 = vmul.f32 %v497, %v237
  %v551 = vmul.f32 %v501, %v237
  %v552 = vmul.f32 %v505, %v237
  %v553 = vmul.f32 %v509, %v237
  %v554 = vmul.f32 %v513, %v237
  %v555 = vmul.f32 %v517, %v237
  %v556 = vmul.f32 %v521, %v237
  %v557 = vmul.f32 %v525, %v237
  %v558 = vadd.f32 %v526, 1e-05
  %v559 = vadd.f32 %v527, 1e-05
  %v560 = vadd.f32 %v528, 1e-05
  %v561 = vadd.f32 %v529, 1e-05
  %v562 = vadd.f32 %v530, 1e-05
  %v563 = vadd.f32 %v531, 1e-05
  %v564 = vadd.f32 %v532, 1e-05
  %v565 = vadd.f32 %v533, 1e-05
  %v566 = vadd.f32 %v534, 1e-05
  %v567 = vadd.f32 %v535, 1e-05
  %v568 = vadd.f32 %v536, 1e-05
  %v569 = vadd.f32 %v537, 1e-05
  %v570 = vadd.f32 %v538, 1e-05
  %v571 = vadd.f32 %v539, 1e-05
  %v572 = vadd.f32 %v540, 1e-05
  %v573 = vadd.f32 %v541, 1e-05
  %v574 = vadd.f32 %v542, 1e-05
  %v575 = vadd.f32 %v543, 1e-05
  %v576 = vadd.f32 %v544, 1e-05
  %v577 = vadd.f32 %v545, 1e-05
  %v578 = vadd.f32 %v546, 1e-05
  %v579 = vadd.f32 %v547, 1e-05
  %v580 = vadd.f32 %v548, 1e-05
  %v581 = vadd.f32 %v549, 1e-05
  %v582 = vadd.f32 %v550, 1e-05
  %v583 = vadd.f32 %v551, 1e-05
  %v584 = vadd.f32 %v552, 1e-05
  %v585 = vadd.f32 %v553, 1e-05
  %v586 = vadd.f32 %v554, 1e-05
  %v587 = vadd.f32 %v555, 1e-05
  %v588 = vadd.f32 %v556, 1e-05
  %v589 = vadd.f32 %v557, 1e-05
  %v590 = vrsqrt.pop %v558
  %v591 = vrsqrt.pop %v559
  %v592 = vrsqrt.pop %v560
  %v593 = vrsqrt.pop %v561
  %v594 = vrsqrt.pop %v562
  %v595 = vrsqrt.pop %v563
  %v596 = vrsqrt.pop %v564
  %v597 = vrsqrt.pop %v565
  %v598 = vrsqrt.pop %v566
  %v599 = vrsqrt.pop %v567
  %v600 = vrsqrt.pop %v568
  %v601 = vrsqrt.pop %v569
  %v602 = vrsqrt.pop %v570
  %v603 = vrsqrt.pop %v571
  %v604 = vrsqrt.pop %v572
  %v605 = vrsqrt.pop %v573
  %v606 = vrsqrt.pop %v574
  %v607 = vrsqrt.pop %v575
  %v608 = vrsqrt.pop %v576
  %v609 = vrsqrt.pop %v577
  %v610 = vrsqrt.pop %v578
  %v611 = vrsqrt.pop %v579
  %v612 = vrsqrt.pop %v580
  %v613 = vrsqrt.pop %v581
  %v614 = vrsqrt.pop %v582
  %v615 = vrsqrt.pop %v583
  %v616 = vrsqrt.pop %v584
  %v617 = vrsqrt.pop %v585
  %v618 = vrsqrt.pop %v586
  %v619 = vrsqrt.pop %v587
  %v620 = vrsqrt.pop %v588
  %v621 = vrsqrt.pop %v589
  %v622 = vmul.f32 %v270, %v590
  %v623 = vmul.f32 %v271, %v590
  %v624 = vmul.f32 %v272, %v591
  %v625 = vmul.f32 %v273, %v591
  %v626 = vmul.f32 %v274, %v592
  %v627 = vmul.f32 %v275, %v592
  %v628 = vmul.f32 %v276, %v593
  %v629 = vmul.f32 %v277, %v593
  %v630 = vmul.f32 %v278, %v594
  %v631 = vmul.f32 %v279, %v594
  %v632 = vmul.f32 %v280, %v595
  %v633 = vmul.f32 %v281, %v595
  %v634 = vmul.f32 %v282, %v596
  %v635 = vmul.f32 %v283, %v596
  %v636 = vmul.f32 %v284, %v597
  %v637 = vmul.f32 %v285, %v597
  %v638 = vmul.f32 %v286, %v598
  %v639 = vmul.f32 %v287, %v598
  %v640 = vmul.f32 %v288, %v599
  %v641 = vmul.f32 %v289, %v599
  %v642 = vmul.f32 %v290, %v600
  %v643 = vmul.f32 %v291, %v600
  %v644 = vmul.f32 %v292, %v601
  %v645 = vmul.f32 %v293, %v601
  %v646 = vmul.f32 %v294, %v602
  %v647 = vmul.f32 %v295, %v602
  %v648 = vmul.f32 %v296, %v603
  %v649 = vmul.f32 %v297, %v603
  %v650 = vmul.f32 %v298, %v604
  %v651 = vmul.f32 %v299, %v604
  %v652 = vmul.f32 %v300, %v605
  %v653 = vmul.f32 %v301, %v605
  %v654 = vmul.f32 %v302, %v606
  %v655 = vmul.f32 %v303, %v606
  %v656 = vmul.f32 %v304, %v607
  %v657 = vmul.f32 %v305, %v607
  %v658 = vmul.f32 %v306, %v608
  %v659 = vmul.f32 %v307, %v608
  %v660 = vmul.f32 %v308, %v609
  %v661 = vmul.f32 %v309, %v609
  %v662 = vmul.f32 %v310, %v610
  %v663 = vmul.f32 %v311, %v610
  %v664 = vmul.f32 %v312, %v611
  %v665 = vmul.f32 %v313, %v611
  %v666 = vmul.f32 %v314, %v612
  %v667 = vmul.f32 %v315, %v612
  %v668 = vmul.f32 %v316, %v613
  %v669 = vmul.f32 %v317, %v613
  %v670 = vmul.f32 %v318, %v614
  %v671 = vmul.f32 %v319, %v614
  %v672 = vmul.f32 %v320, %v615
  %v673 = vmul.f32 %v321, %v615
  %v674 = vmul.f32 %v322, %v616
  %v675 = vmul.f32 %v323, %v616
  %v676 = vmul.f32 %v324, %v617
  %v677 = vmul.f32 %v325, %v617
  %v678 = vmul.f32 %v326, %v618
  %v679 = vmul.f32 %v327, %v618
  %v680 = vmul.f32 %v328, %v619
  %v681 = vmul.f32 %v329, %v619
  %v682 = vmul.f32 %v330, %v620
  %v683 = vmul.f32 %v331, %v620
  %v684 = vmul.f32 %v332, %v621
  %v685 = vmul.f32 %v333, %v621
  %v687 = vlaneseq
  %v688 = vshrl.u32 %v687, 7
  %v689 = vsub.s32 0, %v688
  %v690 = vrot.slane %v106, %v689
  %v691 = vlaneseq
  %v692 = vshrl.u32 %v691, 7
  %v693 = vsub.s32 1, %v692
  %v694 = vrot.slane %v106, %v693
  %v697 = vmul.f32 %v622, %v690
  %v698 = vmul.f32 %v623, %v694
  %v699 = vmul.f32 %v624, %v690
  %v700 = vmul.f32 %v625, %v694
  %v701 = vmul.f32 %v626, %v690
  %v702 = vmul.f32 %v627, %v694
  %v703 = vmul.f32 %v628, %v690
  %v704 = vmul.f32 %v629, %v694
  %v705 = vmul.f32 %v630, %v690
  %v706 = vmul.f32 %v631, %v694
  %v707 = vmul.f32 %v632, %v690
  %v708 = vmul.f32 %v633, %v694
  %v709 = vmul.f32 %v634, %v690
  %v710 = vmul.f32 %v635, %v694
  %v711 = vmul.f32 %v636, %v690
  %v712 = vmul.f32 %v637, %v694
  %v713 = vmul.f32 %v638, %v690
  %v714 = vmul.f32 %v639, %v694
  %v715 = vmul.f32 %v640, %v690
  %v716 = vmul.f32 %v641, %v694
  %v717 = vmul.f32 %v642, %v690
  %v718 = vmul.f32 %v643, %v694
  %v719 = vmul.f32 %v644, %v690
  %v720 = vmul.f32 %v645, %v694
  %v721 = vmul.f32 %v646, %v690
  %v722 = vmul.f32 %v647, %v694
  %v723 = vmul.f32 %v648, %v690
  %v724 = vmul.f32 %v649, %v694
  %v725 = vmul.f32 %v650, %v690
  %v726 = vmul.f32 %v651, %v694
  %v727 = vmul.f32 %v652, %v690
  %v728 = vmul.f32 %v653, %v694
  %v729 = vmul.f32 %v654, %v690
  %v730 = vmul.f32 %v655, %v694
  %v731 = vmul.f32 %v656, %v690
  %v732 = vmul.f32 %v657, %v694
  %v733 = vmul.f32 %v658, %v690
  %v734 = vmul.f32 %v659, %v694
  %v735 = vmul.f32 %v660, %v690
  %v736 = vmul.f32 %v661, %v694
  %v737 = vmul.f32 %v662, %v690
  %v738 = vmul.f32 %v663, %v694
  %v739 = vmul.f32 %v664, %v690
  %v740 = vmul.f32 %v665, %v694
  %v741 = vmul.f32 %v666, %v690
  %v742 = vmul.f32 %v667, %v694
  %v743 = vmul.f32 %v668, %v690
  %v744 = vmul.f32 %v669, %v694
  %v745 = vmul.f32 %v670, %v690
  %v746 = vmul.f32 %v671, %v694
  %v747 = vmul.f32 %v672, %v690
  %v748 = vmul.f32 %v673, %v694
  %v749 = vmul.f32 %v674, %v690
  %v750 = vmul.f32 %v675, %v694
  %v751 = vmul.f32 %v676, %v690
  %v752 = vmul.f32 %v677, %v694
  %v753 = vmul.f32 %v678, %v690
  %v754 = vmul.f32 %v679, %v694
  %v755 = vmul.f32 %v680, %v690
  %v756 = vmul.f32 %v681, %v694
  %v757 = vmul.f32 %v682, %v690
  %v758 = vmul.f32 %v683, %v694
  %v759 = vmul.f32 %v684, %v690
  %v760 = vmul.f32 %v685, %v694
  %v762 = vlaneseq
  %v763 = vshrl.u32 %v762, 7
  %v764 = vsub.s32 0, %v763
  %v765 = vrot.slane %v107, %v764
  %v766 = vlaneseq
  %v767 = vshrl.u32 %v766, 7
  %v768 = vsub.s32 1, %v767
  %v769 = vrot.slane %v107, %v768
  %v772 = vadd.f32 %v697, %v765
  %v773 = vadd.f32 %v698, %v769
  %v774 = vadd.f32 %v699, %v765
  %v775 = vadd.f32 %v700, %v769
  %v776 = vadd.f32 %v701, %v765
  %v777 = vadd.f32 %v702, %v769
  %v778 = vadd.f32 %v703, %v765
  %v779 = vadd.f32 %v704, %v769
  %v780 = vadd.f32 %v705, %v765
  %v781 = vadd.f32 %v706, %v769
  %v782 = vadd.f32 %v707, %v765
  %v783 = vadd.f32 %v708, %v769
  %v784 = vadd.f32 %v709, %v765
  %v785 = vadd.f32 %v710, %v769
  %v786 = vadd.f32 %v711, %v765
  %v787 = vadd.f32 %v712, %v769
  %v788 = vadd.f32 %v713, %v765
  %v789 = vadd.f32 %v714, %v769
  %v790 = vadd.f32 %v715, %v765
  %v791 = vadd.f32 %v716, %v769
  %v792 = vadd.f32 %v717, %v765
  %v793 = vadd.f32 %v718, %v769
  %v794 = vadd.f32 %v719, %v765
  %v795 = vadd.f32 %v720, %v769
  %v796 = vadd.f32 %v721, %v765
  %v797 = vadd.f32 %v722, %v769
  %v798 = vadd.f32 %v723, %v765
  %v799 = vadd.f32 %v724, %v769
  %v800 = vadd.f32 %v725, %v765
  %v801 = vadd.f32 %v726, %v769
  %v802 = vadd.f32 %v727, %v765
  %v803 = vadd.f32 %v728, %v769
  %v804 = vadd.f32 %v729, %v765
  %v805 = vadd.f32 %v730, %v769
  %v806 = vadd.f32 %v731, %v765
  %v807 = vadd.f32 %v732, %v769
  %v808 = vadd.f32 %v733, %v765
  %v809 = vadd.f32 %v734, %v769
  %v810 = vadd.f32 %v735, %v765
  %v811 = vadd.f32 %v736, %v769
  %v812 = vadd.f32 %v737, %v765
  %v813 = vadd.f32 %v738, %v769
  %v814 = vadd.f32 %v739, %v765
  %v815 = vadd.f32 %v740, %v769
  %v816 = vadd.f32 %v741, %v765
  %v817 = vadd.f32 %v742, %v769
  %v818 = vadd.f32 %v743, %v765
  %v819 = vadd.f32 %v744, %v769
  %v820 = vadd.f32 %v745, %v765
  %v821 = vadd.f32 %v746, %v769
  %v822 = vadd.f32 %v747, %v765
  %v823 = vadd.f32 %v748, %v769
  %v824 = vadd.f32 %v749, %v765
  %v825 = vadd.f32 %v750, %v769
  %v826 = vadd.f32 %v751, %v765
  %v827 = vadd.f32 %v752, %v769
  %v828 = vadd.f32 %v753, %v765
  %v829 = vadd.f32 %v754, %v769
  %v830 = vadd.f32 %v755, %v765
  %v831 = vadd.f32 %v756, %v769
  %v832 = vadd.f32 %v757, %v765
  %v833 = vadd.f32 %v758, %v769
  %v834 = vadd.f32 %v759, %v765
  %v835 = vadd.f32 %v760, %v769
  %v836 = vpack.c.bf16 %v774, %v772
  %v837 = vpack.c.bf16 %v775, %v773
  %v838 = vpack.c.bf16 %v778, %v776
  %v839 = vpack.c.bf16 %v779, %v777
  %v840 = vpack.c.bf16 %v782, %v780
  %v841 = vpack.c.bf16 %v783, %v781
  %v842 = vpack.c.bf16 %v786, %v784
  %v843 = vpack.c.bf16 %v787, %v785
  %v844 = vpack.c.bf16 %v790, %v788
  %v845 = vpack.c.bf16 %v791, %v789
  %v846 = vpack.c.bf16 %v794, %v792
  %v847 = vpack.c.bf16 %v795, %v793
  %v848 = vpack.c.bf16 %v798, %v796
  %v849 = vpack.c.bf16 %v799, %v797
  %v850 = vpack.c.bf16 %v802, %v800
  %v851 = vpack.c.bf16 %v803, %v801
  %v852 = vpack.c.bf16 %v806, %v804
  %v853 = vpack.c.bf16 %v807, %v805
  %v854 = vpack.c.bf16 %v810, %v808
  %v855 = vpack.c.bf16 %v811, %v809
  %v856 = vpack.c.bf16 %v814, %v812
  %v857 = vpack.c.bf16 %v815, %v813
  %v858 = vpack.c.bf16 %v818, %v816
  %v859 = vpack.c.bf16 %v819, %v817
  %v860 = vpack.c.bf16 %v822, %v820
  %v861 = vpack.c.bf16 %v823, %v821
  %v862 = vpack.c.bf16 %v826, %v824
  %v863 = vpack.c.bf16 %v827, %v825
  %v864 = vpack.c.bf16 %v830, %v828
  %v865 = vpack.c.bf16 %v831, %v829
  %v866 = vpack.c.bf16 %v834, %v832
  %v867 = vpack.c.bf16 %v835, %v833
  %v868 = vld [vmem:[%s5] sm:$0xff]
  %v869 = vld [vmem:[%s5 + $0x8] sm:$0xff]
  %v870 = vld [vmem:[%s5 + $0x10] sm:$0xf]
  %v871 = vld [vmem:[%s5 + $0x14] sm:$0xff]
  %v872 = vld [vmem:[%s5 + $0x1c] sm:$0xff]
  %v873 = vld [vmem:[%s5 + $0x24] sm:$0xf]
  %v874 = vld [vmem:[%s5 + $0x28] sm:$0xff]
  %v875 = vld [vmem:[%s5 + $0x30] sm:$0xff]
  %v876 = vld [vmem:[%s5 + $0x38] sm:$0xf]
  %v877 = vld [vmem:[%s5 + $0x3c] sm:$0xff]
  %v878 = vld [vmem:[%s5 + $0x44] sm:$0xff]
  %v879 = vld [vmem:[%s5 + $0x4c] sm:$0xf]
  %v880 = vld [vmem:[%s5 + $0x50] sm:$0xff]
  %v881 = vld [vmem:[%s5 + $0x58] sm:$0xff]
  %v882 = vld [vmem:[%s5 + $0x60] sm:$0xf]
  %v883 = vld [vmem:[%s5 + $0x64] sm:$0xff]
  %v884 = vld [vmem:[%s5 + $0x6c] sm:$0xff]
  %v885 = vld [vmem:[%s5 + $0x74] sm:$0xf]
  %v886 = vld [vmem:[%s5 + $0x78] sm:$0xff]
  %v887 = vld [vmem:[%s5 + $0x80] sm:$0xff]
  %v888 = vld [vmem:[%s5 + $0x88] sm:$0xf]
  %v889 = vld [vmem:[%s5 + $0x8c] sm:$0xff]
  %v890 = vld [vmem:[%s5 + $0x94] sm:$0xff]
  %v891 = vld [vmem:[%s5 + $0x9c] sm:$0xf]
  %v892 = vld [vmem:[%s5 + $0xa0] sm:$0xff]
  %v893 = vld [vmem:[%s5 + $0xa8] sm:$0xff]
  %v894 = vld [vmem:[%s5 + $0xb0] sm:$0xf]
  %v895 = vld [vmem:[%s5 + $0xb4] sm:$0xff]
  %v896 = vld [vmem:[%s5 + $0xbc] sm:$0xff]
  %v897 = vld [vmem:[%s5 + $0xc4] sm:$0xf]
  %v898 = vld [vmem:[%s5 + $0xc8] sm:$0xff]
  %v899 = vld [vmem:[%s5 + $0xd0] sm:$0xff]
  %v900 = vld [vmem:[%s5 + $0xd8] sm:$0xf]
  %v901 = vld [vmem:[%s5 + $0xdc] sm:$0xff]
  %v902 = vld [vmem:[%s5 + $0xe4] sm:$0xff]
  %v903 = vld [vmem:[%s5 + $0xec] sm:$0xf]
  %v904 = vld [vmem:[%s5 + $0xf0] sm:$0xff]
  %v905 = vld [vmem:[%s5 + $0xf8] sm:$0xff]
  %v906 = vld [vmem:[%s5 + $0x100] sm:$0xf]
  %v907 = vld [vmem:[%s5 + $0x104] sm:$0xff]
  %v908 = vld [vmem:[%s5 + $0x10c] sm:$0xff]
  %v909 = vld [vmem:[%s5 + $0x114] sm:$0xf]
  %v910 = vld [vmem:[%s5 + $0x118] sm:$0xff]
  %v911 = vld [vmem:[%s5 + $0x120] sm:$0xff]
  %v912 = vld [vmem:[%s5 + $0x128] sm:$0xf]
  %v913 = vld [vmem:[%s5 + $0x12c] sm:$0xff]
  %v914 = vld [vmem:[%s5 + $0x134] sm:$0xff]
  %v915 = vld [vmem:[%s5 + $0x13c] sm:$0xf]
  %v916 = vld [vmem:[%s5 + $0x140] sm:$0xff]
  %v917 = vld [vmem:[%s5 + $0x148] sm:$0xff]
  %v918 = vld [vmem:[%s5 + $0x150] sm:$0xf]
  %v919 = vld [vmem:[%s5 + $0x154] sm:$0xff]
  %v920 = vld [vmem:[%s5 + $0x15c] sm:$0xff]
  %v921 = vld [vmem:[%s5 + $0x164] sm:$0xf]
  %v922 = vld [vmem:[%s5 + $0x168] sm:$0xff]
  %v923 = vld [vmem:[%s5 + $0x170] sm:$0xff]
  %v924 = vld [vmem:[%s5 + $0x178] sm:$0xf]
  %v925 = vld [vmem:[%s5 + $0x17c] sm:$0xff]
  %v926 = vld [vmem:[%s5 + $0x184] sm:$0xff]
  %v927 = vld [vmem:[%s5 + $0x18c] sm:$0xf]
  %v928 = vld [vmem:[%s5 + $0x190] sm:$0xff]
  %v929 = vld [vmem:[%s5 + $0x198] sm:$0xff]
  %v930 = vld [vmem:[%s5 + $0x1a0] sm:$0xf]
  %v931 = vld [vmem:[%s5 + $0x1a4] sm:$0xff]
  %v932 = vld [vmem:[%s5 + $0x1ac] sm:$0xff]
  %v933 = vld [vmem:[%s5 + $0x1b4] sm:$0xf]
  %v934 = vld [vmem:[%s5 + $0x1b8] sm:$0xff]
  %v935 = vld [vmem:[%s5 + $0x1c0] sm:$0xff]
  %v936 = vld [vmem:[%s5 + $0x1c8] sm:$0xf]
  %v937 = vld [vmem:[%s5 + $0x1cc] sm:$0xff]
  %v938 = vld [vmem:[%s5 + $0x1d4] sm:$0xff]
  %v939 = vld [vmem:[%s5 + $0x1dc] sm:$0xf]
  %v1012 = vunpack.c.l.b16 %v868
  %v1013 = vunpack.c.h.b16 %v868
  %v1014 = vunpack.c.l.b16 %v869
  %v1015 = vunpack.c.h.b16 %v869
  %v1016 = vunpack.c.l.b16 %v870
  %v1017 = vunpack.c.l.b16 %v871
  %v1018 = vunpack.c.h.b16 %v871
  %v1019 = vunpack.c.l.b16 %v872
  %v1020 = vunpack.c.h.b16 %v872
  %v1021 = vunpack.c.l.b16 %v873
  %v1022 = vunpack.c.l.b16 %v874
  %v1023 = vunpack.c.h.b16 %v874
  %v1024 = vunpack.c.l.b16 %v875
  %v1025 = vunpack.c.h.b16 %v875
  %v1026 = vunpack.c.l.b16 %v876
  %v1027 = vunpack.c.l.b16 %v877
  %v1028 = vunpack.c.h.b16 %v877
  %v1029 = vunpack.c.l.b16 %v878
  %v1030 = vunpack.c.h.b16 %v878
  %v1031 = vunpack.c.l.b16 %v879
  %v1032 = vunpack.c.l.b16 %v880
  %v1033 = vunpack.c.h.b16 %v880
  %v1034 = vunpack.c.l.b16 %v881
  %v1035 = vunpack.c.h.b16 %v881
  %v1036 = vunpack.c.l.b16 %v882
  %v1037 = vunpack.c.l.b16 %v883
  %v1038 = vunpack.c.h.b16 %v883
  %v1039 = vunpack.c.l.b16 %v884
  %v1040 = vunpack.c.h.b16 %v884
  %v1041 = vunpack.c.l.b16 %v885
  %v1042 = vunpack.c.l.b16 %v886
  %v1043 = vunpack.c.h.b16 %v886
  %v1044 = vunpack.c.l.b16 %v887
  %v1045 = vunpack.c.h.b16 %v887
  %v1046 = vunpack.c.l.b16 %v888
  %v1047 = vunpack.c.l.b16 %v889
  %v1048 = vunpack.c.h.b16 %v889
  %v1049 = vunpack.c.l.b16 %v890
  %v1050 = vunpack.c.h.b16 %v890
  %v1051 = vunpack.c.l.b16 %v891
  %v1052 = vunpack.c.l.b16 %v892
  %v1053 = vunpack.c.h.b16 %v892
  %v1054 = vunpack.c.l.b16 %v893
  %v1055 = vunpack.c.h.b16 %v893
  %v1056 = vunpack.c.l.b16 %v894
  %v1057 = vunpack.c.l.b16 %v895
  %v1058 = vunpack.c.h.b16 %v895
  %v1059 = vunpack.c.l.b16 %v896
  %v1060 = vunpack.c.h.b16 %v896
  %v1061 = vunpack.c.l.b16 %v897
  %v1062 = vunpack.c.l.b16 %v898
  %v1063 = vunpack.c.h.b16 %v898
  %v1064 = vunpack.c.l.b16 %v899
  %v1065 = vunpack.c.h.b16 %v899
  %v1066 = vunpack.c.l.b16 %v900
  %v1067 = vunpack.c.l.b16 %v901
  %v1068 = vunpack.c.h.b16 %v901
  %v1069 = vunpack.c.l.b16 %v902
  %v1070 = vunpack.c.h.b16 %v902
  %v1071 = vunpack.c.l.b16 %v903
  %v1072 = vunpack.c.l.b16 %v904
  %v1073 = vunpack.c.h.b16 %v904
  %v1074 = vunpack.c.l.b16 %v905
  %v1075 = vunpack.c.h.b16 %v905
  %v1076 = vunpack.c.l.b16 %v906
  %v1077 = vunpack.c.l.b16 %v907
  %v1078 = vunpack.c.h.b16 %v907
  %v1079 = vunpack.c.l.b16 %v908
  %v1080 = vunpack.c.h.b16 %v908
  %v1081 = vunpack.c.l.b16 %v909
  %v1082 = vunpack.c.l.b16 %v910
  %v1083 = vunpack.c.h.b16 %v910
  %v1084 = vunpack.c.l.b16 %v911
  %v1085 = vunpack.c.h.b16 %v911
  %v1086 = vunpack.c.l.b16 %v912
  %v1087 = vunpack.c.l.b16 %v913
  %v1088 = vunpack.c.h.b16 %v913
  %v1089 = vunpack.c.l.b16 %v914
  %v1090 = vunpack.c.h.b16 %v914
  %v1091 = vunpack.c.l.b16 %v915
  %v1092 = vunpack.c.l.b16 %v916
  %v1093 = vunpack.c.h.b16 %v916
  %v1094 = vunpack.c.l.b16 %v917
  %v1095 = vunpack.c.h.b16 %v917
  %v1096 = vunpack.c.l.b16 %v918
  %v1097 = vunpack.c.l.b16 %v919
  %v1098 = vunpack.c.h.b16 %v919
  %v1099 = vunpack.c.l.b16 %v920
  %v1100 = vunpack.c.h.b16 %v920
  %v1101 = vunpack.c.l.b16 %v921
  %v1102 = vunpack.c.l.b16 %v922
  %v1103 = vunpack.c.h.b16 %v922
  %v1104 = vunpack.c.l.b16 %v923
  %v1105 = vunpack.c.h.b16 %v923
  %v1106 = vunpack.c.l.b16 %v924
  %v1107 = vunpack.c.l.b16 %v925
  %v1108 = vunpack.c.h.b16 %v925
  %v1109 = vunpack.c.l.b16 %v926
  %v1110 = vunpack.c.h.b16 %v926
  %v1111 = vunpack.c.l.b16 %v927
  %v1112 = vunpack.c.l.b16 %v928
  %v1113 = vunpack.c.h.b16 %v928
  %v1114 = vunpack.c.l.b16 %v929
  %v1115 = vunpack.c.h.b16 %v929
  %v1116 = vunpack.c.l.b16 %v930
  %v1117 = vunpack.c.l.b16 %v931
  %v1118 = vunpack.c.h.b16 %v931
  %v1119 = vunpack.c.l.b16 %v932
  %v1120 = vunpack.c.h.b16 %v932
  %v1121 = vunpack.c.l.b16 %v933
  %v1122 = vunpack.c.l.b16 %v934
  %v1123 = vunpack.c.h.b16 %v934
  %v1124 = vunpack.c.l.b16 %v935
  %v1125 = vunpack.c.h.b16 %v935
  %v1126 = vunpack.c.l.b16 %v936
  %v1127 = vunpack.c.l.b16 %v937
  %v1128 = vunpack.c.h.b16 %v937
  %v1129 = vunpack.c.l.b16 %v938
  %v1130 = vunpack.c.h.b16 %v938
  %v1131 = vunpack.c.l.b16 %v939
  %v1132 = vpack.c.b16 %v1017, %v1012
  %v1133 = vpack.c.b16 %v1018, %v1013
  %v1134 = vpack.c.b16 %v1019, %v1014
  %v1135 = vpack.c.b16 %v1020, %v1015
  %v1136 = vpack.c.b16 %v1021, %v1016
  %v1137 = vpack.c.b16 %v1027, %v1022
  %v1138 = vpack.c.b16 %v1028, %v1023
  %v1139 = vpack.c.b16 %v1029, %v1024
  %v1140 = vpack.c.b16 %v1030, %v1025
  %v1141 = vpack.c.b16 %v1031, %v1026
  %v1142 = vpack.c.b16 %v1037, %v1032
  %v1143 = vpack.c.b16 %v1038, %v1033
  %v1144 = vpack.c.b16 %v1039, %v1034
  %v1145 = vpack.c.b16 %v1040, %v1035
  %v1146 = vpack.c.b16 %v1041, %v1036
  %v1147 = vpack.c.b16 %v1047, %v1042
  %v1148 = vpack.c.b16 %v1048, %v1043
  %v1149 = vpack.c.b16 %v1049, %v1044
  %v1150 = vpack.c.b16 %v1050, %v1045
  %v1151 = vpack.c.b16 %v1051, %v1046
  %v1152 = vpack.c.b16 %v1057, %v1052
  %v1153 = vpack.c.b16 %v1058, %v1053
  %v1154 = vpack.c.b16 %v1059, %v1054
  %v1155 = vpack.c.b16 %v1060, %v1055
  %v1156 = vpack.c.b16 %v1061, %v1056
  %v1157 = vpack.c.b16 %v1067, %v1062
  %v1158 = vpack.c.b16 %v1068, %v1063
  %v1159 = vpack.c.b16 %v1069, %v1064
  %v1160 = vpack.c.b16 %v1070, %v1065
  %v1161 = vpack.c.b16 %v1071, %v1066
  %v1162 = vpack.c.b16 %v1077, %v1072
  %v1163 = vpack.c.b16 %v1078, %v1073
  %v1164 = vpack.c.b16 %v1079, %v1074
  %v1165 = vpack.c.b16 %v1080, %v1075
  %v1166 = vpack.c.b16 %v1081, %v1076
  %v1167 = vpack.c.b16 %v1087, %v1082
  %v1168 = vpack.c.b16 %v1088, %v1083
  %v1169 = vpack.c.b16 %v1089, %v1084
  %v1170 = vpack.c.b16 %v1090, %v1085
  %v1171 = vpack.c.b16 %v1091, %v1086
  %v1172 = vpack.c.b16 %v1097, %v1092
  %v1173 = vpack.c.b16 %v1098, %v1093
  %v1174 = vpack.c.b16 %v1099, %v1094
  %v1175 = vpack.c.b16 %v1100, %v1095
  %v1176 = vpack.c.b16 %v1101, %v1096
  %v1177 = vpack.c.b16 %v1107, %v1102
  %v1178 = vpack.c.b16 %v1108, %v1103
  %v1179 = vpack.c.b16 %v1109, %v1104
  %v1180 = vpack.c.b16 %v1110, %v1105
  %v1181 = vpack.c.b16 %v1111, %v1106
  %v1182 = vpack.c.b16 %v1117, %v1112
  %v1183 = vpack.c.b16 %v1118, %v1113
  %v1184 = vpack.c.b16 %v1119, %v1114
  %v1185 = vpack.c.b16 %v1120, %v1115
  %v1186 = vpack.c.b16 %v1121, %v1116
  %v1187 = vpack.c.b16 %v1127, %v1122
  %v1188 = vpack.c.b16 %v1128, %v1123
  %v1189 = vpack.c.b16 %v1129, %v1124
  %v1190 = vpack.c.b16 %v1130, %v1125
  %v1191 = vpack.c.b16 %v1131, %v1126
  %v1253 = vsel %vm108, %v837, 0
  %v1256 = vsel %vm108, %v839, 0
  %v1259 = vsel %vm108, %v841, 0
  %v1262 = vsel %vm108, %v843, 0
  %v1265 = vsel %vm108, %v845, 0
  %v1268 = vsel %vm108, %v847, 0
  %v1271 = vsel %vm108, %v849, 0
  %v1274 = vsel %vm108, %v851, 0
  %v1277 = vsel %vm108, %v853, 0
  %v1280 = vsel %vm108, %v855, 0
  %v1283 = vsel %vm108, %v857, 0
  %v1286 = vsel %vm108, %v859, 0
  %v1289 = vsel %vm108, %v861, 0
  %v1292 = vsel %vm108, %v863, 0
  %v1295 = vsel %vm108, %v865, 0
  %v1298 = vsel %vm108, %v867, 0
  %1300 = vmatprep.subr.bf16.mxu0 %v1168
  %1301 = vmatpush1.bf16.msra.mxu0 %v1167
  %1302 = vmatprep.subr.bf16.mxu0 %v1163
  %1303 = vmatpush1.bf16.msra.mxu0 %v1162
  %1304 = vmatprep.subr.bf16.mxu0 %v1158
  %1305 = vmatpush1.bf16.msra.mxu0 %v1157
  %1306 = vmatprep.subr.bf16.mxu0 %v1153
  %1307 = vmatpush1.bf16.msra.mxu0 %v1152
  %1308 = vmatprep.subr.bf16.mxu0 %v1148
  %1309 = vmatpush1.bf16.msra.mxu0 %v1147
  %1310 = vmatprep.subr.bf16.mxu0 %v1143
  %1311 = vmatpush1.bf16.msra.mxu0 %v1142
  %1312 = vmatprep.subr.bf16.mxu0 %v1138
  %1313 = vmatpush1.bf16.msra.mxu0 %v1137
  %1314 = vmatprep.subr.bf16.mxu0 %v1133
  %1315 = vmatpush1.bf16.msra.mxu0 %v1132
  %1316 = vmatprep.subr.bf16.mxu0 0
  %1317 = vmatpush2.bf16.msra.mxu0 0
  %1318 = vmatprep.subr.bf16.mxu0 0
  %1319 = vmatpush2.bf16.msra.mxu0 0
  %1320 = vmatprep.subr.bf16.mxu0 0
  %1321 = vmatpush2.bf16.msra.mxu0 0
  %1322 = vmatprep.subr.bf16.mxu0 0
  %1323 = vmatpush2.bf16.msra.mxu0 0
  %1324 = vmatprep.subr.bf16.mxu0 %v1188
  %1325 = vmatpush2.bf16.msra.mxu0 %v1187
  %1326 = vmatprep.subr.bf16.mxu0 %v1183
  %1327 = vmatpush2.bf16.msra.mxu0 %v1182
  %1328 = vmatprep.subr.bf16.mxu0 %v1178
  %1329 = vmatpush2.bf16.msra.mxu0 %v1177
  %1330 = vmatprep.subr.bf16.mxu0 %v1173
  %1331 = vmatpush2.bf16.msra.mxu0 %v1172
  %1332 = vmatprep.mubr.bf16.mxu0 %v1253
  %1333 = vmatmul.mubr.bf16.gmra.mxu0 %v836
  %v1334 = vpop.f32.mrf.mxu0
  %v1335 = vadd.f32 0.0, %v1334
  %v1336 = vpop.f32.mrf.mxu0
  %v1337 = vadd.f32 0.0, %v1336
  %v1338 = vpop.f32.mrf.mxu0
  %v1339 = vadd.f32 0.0, %v1338
  %v1340 = vpop.f32.mrf.mxu0
  %v1341 = vadd.f32 0.0, %v1340
  %1342 = vmatprep.mubr.bf16.mxu0 %v1256
  %1343 = vmatmul.mubr.bf16.gmra.mxu0 %v838
  %v1344 = vpop.f32.mrf.mxu0
  %v1345 = vadd.f32 0.0, %v1344
  %v1346 = vpop.f32.mrf.mxu0
  %v1347 = vadd.f32 0.0, %v1346
  %v1348 = vpop.f32.mrf.mxu0
  %v1349 = vadd.f32 0.0, %v1348
  %v1350 = vpop.f32.mrf.mxu0
  %v1351 = vadd.f32 0.0, %v1350
  %1352 = vmatprep.mubr.bf16.mxu0 %v1259
  %1353 = vmatmul.mubr.bf16.gmra.mxu0 %v840
  %v1354 = vpop.f32.mrf.mxu0
  %v1355 = vadd.f32 0.0, %v1354
  %v1356 = vpop.f32.mrf.mxu0
  %v1357 = vadd.f32 0.0, %v1356
  %v1358 = vpop.f32.mrf.mxu0
  %v1359 = vadd.f32 0.0, %v1358
  %v1360 = vpop.f32.mrf.mxu0
  %v1361 = vadd.f32 0.0, %v1360
  %1362 = vmatprep.mubr.bf16.mxu0 %v1262
  %1363 = vmatmul.mubr.bf16.gmra.mxu0 %v842
  %v1364 = vpop.f32.mrf.mxu0
  %v1365 = vadd.f32 0.0, %v1364
  %v1366 = vpop.f32.mrf.mxu0
  %v1367 = vadd.f32 0.0, %v1366
  %v1368 = vpop.f32.mrf.mxu0
  %v1369 = vadd.f32 0.0, %v1368
  %v1370 = vpop.f32.mrf.mxu0
  %v1371 = vadd.f32 0.0, %v1370
  %1372 = vmatprep.mubr.bf16.mxu0 %v1265
  %1373 = vmatmul.mubr.bf16.gmra.mxu0 %v844
  %v1374 = vpop.f32.mrf.mxu0
  %v1375 = vadd.f32 0.0, %v1374
  %v1376 = vpop.f32.mrf.mxu0
  %v1377 = vadd.f32 0.0, %v1376
  %v1378 = vpop.f32.mrf.mxu0
  %v1379 = vadd.f32 0.0, %v1378
  %v1380 = vpop.f32.mrf.mxu0
  %v1381 = vadd.f32 0.0, %v1380
  %1382 = vmatprep.mubr.bf16.mxu0 %v1268
  %1383 = vmatmul.mubr.bf16.gmra.mxu0 %v846
  %v1384 = vpop.f32.mrf.mxu0
  %v1385 = vadd.f32 0.0, %v1384
  %v1386 = vpop.f32.mrf.mxu0
  %v1387 = vadd.f32 0.0, %v1386
  %v1388 = vpop.f32.mrf.mxu0
  %v1389 = vadd.f32 0.0, %v1388
  %v1390 = vpop.f32.mrf.mxu0
  %v1391 = vadd.f32 0.0, %v1390
  %1392 = vmatprep.mubr.bf16.mxu0 %v1271
  %1393 = vmatmul.mubr.bf16.gmra.mxu0 %v848
  %v1394 = vpop.f32.mrf.mxu0
  %v1395 = vadd.f32 0.0, %v1394
  %v1396 = vpop.f32.mrf.mxu0
  %v1397 = vadd.f32 0.0, %v1396
  %v1398 = vpop.f32.mrf.mxu0
  %v1399 = vadd.f32 0.0, %v1398
  %v1400 = vpop.f32.mrf.mxu0
  %v1401 = vadd.f32 0.0, %v1400
  %1402 = vmatprep.mubr.bf16.mxu0 %v1274
  %1403 = vmatmul.mubr.bf16.gmra.mxu0 %v850
  %v1404 = vpop.f32.mrf.mxu0
  %v1405 = vadd.f32 0.0, %v1404
  %v1406 = vpop.f32.mrf.mxu0
  %v1407 = vadd.f32 0.0, %v1406
  %v1408 = vpop.f32.mrf.mxu0
  %v1409 = vadd.f32 0.0, %v1408
  %v1410 = vpop.f32.mrf.mxu0
  %v1411 = vadd.f32 0.0, %v1410
  %1412 = vmatprep.mubr.bf16.mxu0 %v1277
  %1413 = vmatmul.mubr.bf16.gmra.mxu0 %v852
  %v1414 = vpop.f32.mrf.mxu0
  %v1415 = vadd.f32 0.0, %v1414
  %v1416 = vpop.f32.mrf.mxu0
  %v1417 = vadd.f32 0.0, %v1416
  %v1418 = vpop.f32.mrf.mxu0
  %v1419 = vadd.f32 0.0, %v1418
  %v1420 = vpop.f32.mrf.mxu0
  %v1421 = vadd.f32 0.0, %v1420
  %1422 = vmatprep.mubr.bf16.mxu0 %v1280
  %1423 = vmatmul.mubr.bf16.gmra.mxu0 %v854
  %v1424 = vpop.f32.mrf.mxu0
  %v1425 = vadd.f32 0.0, %v1424
  %v1426 = vpop.f32.mrf.mxu0
  %v1427 = vadd.f32 0.0, %v1426
  %v1428 = vpop.f32.mrf.mxu0
  %v1429 = vadd.f32 0.0, %v1428
  %v1430 = vpop.f32.mrf.mxu0
  %v1431 = vadd.f32 0.0, %v1430
  %1432 = vmatprep.mubr.bf16.mxu0 %v1283
  %1433 = vmatmul.mubr.bf16.gmra.mxu0 %v856
  %v1434 = vpop.f32.mrf.mxu0
  %v1435 = vadd.f32 0.0, %v1434
  %v1436 = vpop.f32.mrf.mxu0
  %v1437 = vadd.f32 0.0, %v1436
  %v1438 = vpop.f32.mrf.mxu0
  %v1439 = vadd.f32 0.0, %v1438
  %v1440 = vpop.f32.mrf.mxu0
  %v1441 = vadd.f32 0.0, %v1440
  %1442 = vmatprep.mubr.bf16.mxu0 %v1286
  %1443 = vmatmul.mubr.bf16.gmra.mxu0 %v858
  %v1444 = vpop.f32.mrf.mxu0
  %v1445 = vadd.f32 0.0, %v1444
  %v1446 = vpop.f32.mrf.mxu0
  %v1447 = vadd.f32 0.0, %v1446
  %v1448 = vpop.f32.mrf.mxu0
  %v1449 = vadd.f32 0.0, %v1448
  %v1450 = vpop.f32.mrf.mxu0
  %v1451 = vadd.f32 0.0, %v1450
  %1452 = vmatprep.mubr.bf16.mxu0 %v1289
  %1453 = vmatmul.mubr.bf16.gmra.mxu0 %v860
  %v1454 = vpop.f32.mrf.mxu0
  %v1455 = vadd.f32 0.0, %v1454
  %v1456 = vpop.f32.mrf.mxu0
  %v1457 = vadd.f32 0.0, %v1456
  %v1458 = vpop.f32.mrf.mxu0
  %v1459 = vadd.f32 0.0, %v1458
  %v1460 = vpop.f32.mrf.mxu0
  %v1461 = vadd.f32 0.0, %v1460
  %1462 = vmatprep.mubr.bf16.mxu0 %v1292
  %1463 = vmatmul.mubr.bf16.gmra.mxu0 %v862
  %v1464 = vpop.f32.mrf.mxu0
  %v1465 = vadd.f32 0.0, %v1464
  %v1466 = vpop.f32.mrf.mxu0
  %v1467 = vadd.f32 0.0, %v1466
  %v1468 = vpop.f32.mrf.mxu0
  %v1469 = vadd.f32 0.0, %v1468
  %v1470 = vpop.f32.mrf.mxu0
  %v1471 = vadd.f32 0.0, %v1470
  %1472 = vmatprep.mubr.bf16.mxu0 %v1295
  %1473 = vmatmul.mubr.bf16.gmra.mxu0 %v864
  %v1474 = vpop.f32.mrf.mxu0
  %v1475 = vadd.f32 0.0, %v1474
  %v1476 = vpop.f32.mrf.mxu0
  %v1477 = vadd.f32 0.0, %v1476
  %v1478 = vpop.f32.mrf.mxu0
  %v1479 = vadd.f32 0.0, %v1478
  %v1480 = vpop.f32.mrf.mxu0
  %v1481 = vadd.f32 0.0, %v1480
  %1482 = vmatprep.mubr.bf16.mxu0 %v1298
  %1483 = vmatmul.mubr.bf16.gmra.mxu0 %v866
  %v1484 = vpop.f32.mrf.mxu0
  %v1485 = vadd.f32 0.0, %v1484
  %v1486 = vpop.f32.mrf.mxu0
  %v1487 = vadd.f32 0.0, %v1486
  %v1488 = vpop.f32.mrf.mxu0
  %v1489 = vadd.f32 0.0, %v1488
  %v1490 = vpop.f32.mrf.mxu0
  %v1491 = vadd.f32 0.0, %v1490
  %1492 = vdwg.mxu0
  %1493 = vmatprep.subr.bf16.mxu0 %v1170
  %1494 = vmatpush1.bf16.msra.mxu0 %v1169
  %1495 = vmatprep.subr.bf16.mxu0 %v1165
  %1496 = vmatpush1.bf16.msra.mxu0 %v1164
  %1497 = vmatprep.subr.bf16.mxu0 %v1160
  %1498 = vmatpush1.bf16.msra.mxu0 %v1159
  %1499 = vmatprep.subr.bf16.mxu0 %v1155
  %1500 = vmatpush1.bf16.msra.mxu0 %v1154
  %1501 = vmatprep.subr.bf16.mxu0 %v1150
  %1502 = vmatpush1.bf16.msra.mxu0 %v1149
  %1503 = vmatprep.subr.bf16.mxu0 %v1145
  %1504 = vmatpush1.bf16.msra.mxu0 %v1144
  %1505 = vmatprep.subr.bf16.mxu0 %v1140
  %1506 = vmatpush1.bf16.msra.mxu0 %v1139
  %1507 = vmatprep.subr.bf16.mxu0 %v1135
  %1508 = vmatpush1.bf16.msra.mxu0 %v1134
  %1509 = vmatprep.subr.bf16.mxu0 0
  %1510 = vmatpush2.bf16.msra.mxu0 0
  %1511 = vmatprep.subr.bf16.mxu0 0
  %1512 = vmatpush2.bf16.msra.mxu0 0
  %1513 = vmatprep.subr.bf16.mxu0 0
  %1514 = vmatpush2.bf16.msra.mxu0 0
  %1515 = vmatprep.subr.bf16.mxu0 0
  %1516 = vmatpush2.bf16.msra.mxu0 0
  %1517 = vmatprep.subr.bf16.mxu0 %v1190
  %1518 = vmatpush2.bf16.msra.mxu0 %v1189
  %1519 = vmatprep.subr.bf16.mxu0 %v1185
  %1520 = vmatpush2.bf16.msra.mxu0 %v1184
  %1521 = vmatprep.subr.bf16.mxu0 %v1180
  %1522 = vmatpush2.bf16.msra.mxu0 %v1179
  %1523 = vmatprep.subr.bf16.mxu0 %v1175
  %1524 = vmatpush2.bf16.msra.mxu0 %v1174
  %1525 = vmatprep.mubr.bf16.mxu0 %v1253
  %1526 = vmatmul.mubr.bf16.gmra.mxu0 %v836
  %v1527 = vpop.f32.mrf.mxu0
  %v1528 = vadd.f32 0.0, %v1527
  %v1529 = vpop.f32.mrf.mxu0
  %v1530 = vadd.f32 0.0, %v1529
  %v1531 = vpop.f32.mrf.mxu0
  %v1532 = vadd.f32 0.0, %v1531
  %v1533 = vpop.f32.mrf.mxu0
  %v1534 = vadd.f32 0.0, %v1533
  %1535 = vmatprep.mubr.bf16.mxu0 %v1256
  %1536 = vmatmul.mubr.bf16.gmra.mxu0 %v838
  %v1537 = vpop.f32.mrf.mxu0
  %v1538 = vadd.f32 0.0, %v1537
  %v1539 = vpop.f32.mrf.mxu0
  %v1540 = vadd.f32 0.0, %v1539
  %v1541 = vpop.f32.mrf.mxu0
  %v1542 = vadd.f32 0.0, %v1541
  %v1543 = vpop.f32.mrf.mxu0
  %v1544 = vadd.f32 0.0, %v1543
  %1545 = vmatprep.mubr.bf16.mxu0 %v1259
  %1546 = vmatmul.mubr.bf16.gmra.mxu0 %v840
  %v1547 = vpop.f32.mrf.mxu0
  %v1548 = vadd.f32 0.0, %v1547
  %v1549 = vpop.f32.mrf.mxu0
  %v1550 = vadd.f32 0.0, %v1549
  %v1551 = vpop.f32.mrf.mxu0
  %v1552 = vadd.f32 0.0, %v1551
  %v1553 = vpop.f32.mrf.mxu0
  %v1554 = vadd.f32 0.0, %v1553
  %1555 = vmatprep.mubr.bf16.mxu0 %v1262
  %1556 = vmatmul.mubr.bf16.gmra.mxu0 %v842
  %v1557 = vpop.f32.mrf.mxu0
  %v1558 = vadd.f32 0.0, %v1557
  %v1559 = vpop.f32.mrf.mxu0
  %v1560 = vadd.f32 0.0, %v1559
  %v1561 = vpop.f32.mrf.mxu0
  %v1562 = vadd.f32 0.0, %v1561
  %v1563 = vpop.f32.mrf.mxu0
  %v1564 = vadd.f32 0.0, %v1563
  %1565 = vmatprep.mubr.bf16.mxu0 %v1265
  %1566 = vmatmul.mubr.bf16.gmra.mxu0 %v844
  %v1567 = vpop.f32.mrf.mxu0
  %v1568 = vadd.f32 0.0, %v1567
  %v1569 = vpop.f32.mrf.mxu0
  %v1570 = vadd.f32 0.0, %v1569
  %v1571 = vpop.f32.mrf.mxu0
  %v1572 = vadd.f32 0.0, %v1571
  %v1573 = vpop.f32.mrf.mxu0
  %v1574 = vadd.f32 0.0, %v1573
  %1575 = vmatprep.mubr.bf16.mxu0 %v1268
  %1576 = vmatmul.mubr.bf16.gmra.mxu0 %v846
  %v1577 = vpop.f32.mrf.mxu0
  %v1578 = vadd.f32 0.0, %v1577
  %v1579 = vpop.f32.mrf.mxu0
  %v1580 = vadd.f32 0.0, %v1579
  %v1581 = vpop.f32.mrf.mxu0
  %v1582 = vadd.f32 0.0, %v1581
  %v1583 = vpop.f32.mrf.mxu0
  %v1584 = vadd.f32 0.0, %v1583
  %1585 = vmatprep.mubr.bf16.mxu0 %v1271
  %1586 = vmatmul.mubr.bf16.gmra.mxu0 %v848
  %v1587 = vpop.f32.mrf.mxu0
  %v1588 = vadd.f32 0.0, %v1587
  %v1589 = vpop.f32.mrf.mxu0
  %v1590 = vadd.f32 0.0, %v1589
  %v1591 = vpop.f32.mrf.mxu0
  %v1592 = vadd.f32 0.0, %v1591
  %v1593 = vpop.f32.mrf.mxu0
  %v1594 = vadd.f32 0.0, %v1593
  %1595 = vmatprep.mubr.bf16.mxu0 %v1274
  %1596 = vmatmul.mubr.bf16.gmra.mxu0 %v850
  %v1597 = vpop.f32.mrf.mxu0
  %v1598 = vadd.f32 0.0, %v1597
  %v1599 = vpop.f32.mrf.mxu0
  %v1600 = vadd.f32 0.0, %v1599
  %v1601 = vpop.f32.mrf.mxu0
  %v1602 = vadd.f32 0.0, %v1601
  %v1603 = vpop.f32.mrf.mxu0
  %v1604 = vadd.f32 0.0, %v1603
  %1605 = vmatprep.mubr.bf16.mxu0 %v1277
  %1606 = vmatmul.mubr.bf16.gmra.mxu0 %v852
  %v1607 = vpop.f32.mrf.mxu0
  %v1608 = vadd.f32 0.0, %v1607
  %v1609 = vpop.f32.mrf.mxu0
  %v1610 = vadd.f32 0.0, %v1609
  %v1611 = vpop.f32.mrf.mxu0
  %v1612 = vadd.f32 0.0, %v1611
  %v1613 = vpop.f32.mrf.mxu0
  %v1614 = vadd.f32 0.0, %v1613
  %1615 = vmatprep.mubr.bf16.mxu0 %v1280
  %1616 = vmatmul.mubr.bf16.gmra.mxu0 %v854
  %v1617 = vpop.f32.mrf.mxu0
  %v1618 = vadd.f32 0.0, %v1617
  %v1619 = vpop.f32.mrf.mxu0
  %v1620 = vadd.f32 0.0, %v1619
  %v1621 = vpop.f32.mrf.mxu0
  %v1622 = vadd.f32 0.0, %v1621
  %v1623 = vpop.f32.mrf.mxu0
  %v1624 = vadd.f32 0.0, %v1623
  %1625 = vmatprep.mubr.bf16.mxu0 %v1283
  %1626 = vmatmul.mubr.bf16.gmra.mxu0 %v856
  %v1627 = vpop.f32.mrf.mxu0
  %v1628 = vadd.f32 0.0, %v1627
  %v1629 = vpop.f32.mrf.mxu0
  %v1630 = vadd.f32 0.0, %v1629
  %v1631 = vpop.f32.mrf.mxu0
  %v1632 = vadd.f32 0.0, %v1631
  %v1633 = vpop.f32.mrf.mxu0
  %v1634 = vadd.f32 0.0, %v1633
  %1635 = vmatprep.mubr.bf16.mxu0 %v1286
  %1636 = vmatmul.mubr.bf16.gmra.mxu0 %v858
  %v1637 = vpop.f32.mrf.mxu0
  %v1638 = vadd.f32 0.0, %v1637
  %v1639 = vpop.f32.mrf.mxu0
  %v1640 = vadd.f32 0.0, %v1639
  %v1641 = vpop.f32.mrf.mxu0
  %v1642 = vadd.f32 0.0, %v1641
  %v1643 = vpop.f32.mrf.mxu0
  %v1644 = vadd.f32 0.0, %v1643
  %1645 = vmatprep.mubr.bf16.mxu0 %v1289
  %1646 = vmatmul.mubr.bf16.gmra.mxu0 %v860
  %v1647 = vpop.f32.mrf.mxu0
  %v1648 = vadd.f32 0.0, %v1647
  %v1649 = vpop.f32.mrf.mxu0
  %v1650 = vadd.f32 0.0, %v1649
  %v1651 = vpop.f32.mrf.mxu0
  %v1652 = vadd.f32 0.0, %v1651
  %v1653 = vpop.f32.mrf.mxu0
  %v1654 = vadd.f32 0.0, %v1653
  %1655 = vmatprep.mubr.bf16.mxu0 %v1292
  %1656 = vmatmul.mubr.bf16.gmra.mxu0 %v862
  %v1657 = vpop.f32.mrf.mxu0
  %v1658 = vadd.f32 0.0, %v1657
  %v1659 = vpop.f32.mrf.mxu0
  %v1660 = vadd.f32 0.0, %v1659
  %v1661 = vpop.f32.mrf.mxu0
  %v1662 = vadd.f32 0.0, %v1661
  %v1663 = vpop.f32.mrf.mxu0
  %v1664 = vadd.f32 0.0, %v1663
  %1665 = vmatprep.mubr.bf16.mxu0 %v1295
  %1666 = vmatmul.mubr.bf16.gmra.mxu0 %v864
  %v1667 = vpop.f32.mrf.mxu0
  %v1668 = vadd.f32 0.0, %v1667
  %v1669 = vpop.f32.mrf.mxu0
  %v1670 = vadd.f32 0.0, %v1669
  %v1671 = vpop.f32.mrf.mxu0
  %v1672 = vadd.f32 0.0, %v1671
  %v1673 = vpop.f32.mrf.mxu0
  %v1674 = vadd.f32 0.0, %v1673
  %1675 = vmatprep.mubr.bf16.mxu0 %v1298
  %1676 = vmatmul.mubr.bf16.gmra.mxu0 %v866
  %v1677 = vpop.f32.mrf.mxu0
  %v1678 = vadd.f32 0.0, %v1677
  %v1679 = vpop.f32.mrf.mxu0
  %v1680 = vadd.f32 0.0, %v1679
  %v1681 = vpop.f32.mrf.mxu0
  %v1682 = vadd.f32 0.0, %v1681
  %v1683 = vpop.f32.mrf.mxu0
  %v1684 = vadd.f32 0.0, %v1683
  %1685 = vdwg.mxu0
  %1686 = vmatprep.subr.bf16.mxu0 0
  %1687 = vmatpush1.bf16.msra.mxu0 %v1171
  %1688 = vmatprep.subr.bf16.mxu0 0
  %1689 = vmatpush1.bf16.msra.mxu0 %v1166
  %1690 = vmatprep.subr.bf16.mxu0 0
  %1691 = vmatpush1.bf16.msra.mxu0 %v1161
  %1692 = vmatprep.subr.bf16.mxu0 0
  %1693 = vmatpush1.bf16.msra.mxu0 %v1156
  %1694 = vmatprep.subr.bf16.mxu0 0
  %1695 = vmatpush1.bf16.msra.mxu0 %v1151
  %1696 = vmatprep.subr.bf16.mxu0 0
  %1697 = vmatpush1.bf16.msra.mxu0 %v1146
  %1698 = vmatprep.subr.bf16.mxu0 0
  %1699 = vmatpush1.bf16.msra.mxu0 %v1141
  %1700 = vmatprep.subr.bf16.mxu0 0
  %1701 = vmatpush1.bf16.msra.mxu0 %v1136
  %1702 = vmatprep.subr.bf16.mxu0 0
  %1703 = vmatpush2.bf16.msra.mxu0 0
  %1704 = vmatprep.subr.bf16.mxu0 0
  %1705 = vmatpush2.bf16.msra.mxu0 0
  %1706 = vmatprep.subr.bf16.mxu0 0
  %1707 = vmatpush2.bf16.msra.mxu0 0
  %1708 = vmatprep.subr.bf16.mxu0 0
  %1709 = vmatpush2.bf16.msra.mxu0 0
  %1710 = vmatprep.subr.bf16.mxu0 0
  %1711 = vmatpush2.bf16.msra.mxu0 %v1191
  %1712 = vmatprep.subr.bf16.mxu0 0
  %1713 = vmatpush2.bf16.msra.mxu0 %v1186
  %1714 = vmatprep.subr.bf16.mxu0 0
  %1715 = vmatpush2.bf16.msra.mxu0 %v1181
  %1716 = vmatprep.subr.bf16.mxu0 0
  %1717 = vmatpush2.bf16.msra.mxu0 %v1176
  %1718 = vmatprep.mubr.bf16.mxu0 %v1253
  %1719 = vmatmul.mubr.bf16.gmra.mxu0 %v836
  %v1720 = vpop.f32.mrf.mxu0
  %v1721 = vadd.f32 0.0, %v1720
  %v1722 = vpop.f32.mrf.mxu0
  %v1723 = vpop.f32.mrf.mxu0
  %v1724 = vadd.f32 0.0, %v1723
  %v1725 = vpop.f32.mrf.mxu0
  %1726 = vmatprep.mubr.bf16.mxu0 %v1256
  %1727 = vmatmul.mubr.bf16.gmra.mxu0 %v838
  %v1728 = vpop.f32.mrf.mxu0
  %v1729 = vadd.f32 0.0, %v1728
  %v1730 = vpop.f32.mrf.mxu0
  %v1731 = vpop.f32.mrf.mxu0
  %v1732 = vadd.f32 0.0, %v1731
  %v1733 = vpop.f32.mrf.mxu0
  %1734 = vmatprep.mubr.bf16.mxu0 %v1259
  %1735 = vmatmul.mubr.bf16.gmra.mxu0 %v840
  %v1736 = vpop.f32.mrf.mxu0
  %v1737 = vadd.f32 0.0, %v1736
  %v1738 = vpop.f32.mrf.mxu0
  %v1739 = vpop.f32.mrf.mxu0
  %v1740 = vadd.f32 0.0, %v1739
  %v1741 = vpop.f32.mrf.mxu0
  %1742 = vmatprep.mubr.bf16.mxu0 %v1262
  %1743 = vmatmul.mubr.bf16.gmra.mxu0 %v842
  %v1744 = vpop.f32.mrf.mxu0
  %v1745 = vadd.f32 0.0, %v1744
  %v1746 = vpop.f32.mrf.mxu0
  %v1747 = vpop.f32.mrf.mxu0
  %v1748 = vadd.f32 0.0, %v1747
  %v1749 = vpop.f32.mrf.mxu0
  %1750 = vmatprep.mubr.bf16.mxu0 %v1265
  %1751 = vmatmul.mubr.bf16.gmra.mxu0 %v844
  %v1752 = vpop.f32.mrf.mxu0
  %v1753 = vadd.f32 0.0, %v1752
  %v1754 = vpop.f32.mrf.mxu0
  %v1755 = vpop.f32.mrf.mxu0
  %v1756 = vadd.f32 0.0, %v1755
  %v1757 = vpop.f32.mrf.mxu0
  %1758 = vmatprep.mubr.bf16.mxu0 %v1268
  %1759 = vmatmul.mubr.bf16.gmra.mxu0 %v846
  %v1760 = vpop.f32.mrf.mxu0
  %v1761 = vadd.f32 0.0, %v1760
  %v1762 = vpop.f32.mrf.mxu0
  %v1763 = vpop.f32.mrf.mxu0
  %v1764 = vadd.f32 0.0, %v1763
  %v1765 = vpop.f32.mrf.mxu0
  %1766 = vmatprep.mubr.bf16.mxu0 %v1271
  %1767 = vmatmul.mubr.bf16.gmra.mxu0 %v848
  %v1768 = vpop.f32.mrf.mxu0
  %v1769 = vadd.f32 0.0, %v1768
  %v1770 = vpop.f32.mrf.mxu0
  %v1771 = vpop.f32.mrf.mxu0
  %v1772 = vadd.f32 0.0, %v1771
  %v1773 = vpop.f32.mrf.mxu0
  %1774 = vmatprep.mubr.bf16.mxu0 %v1274
  %1775 = vmatmul.mubr.bf16.gmra.mxu0 %v850
  %v1776 = vpop.f32.mrf.mxu0
  %v1777 = vadd.f32 0.0, %v1776
  %v1778 = vpop.f32.mrf.mxu0
  %v1779 = vpop.f32.mrf.mxu0
  %v1780 = vadd.f32 0.0, %v1779
  %v1781 = vpop.f32.mrf.mxu0
  %1782 = vmatprep.mubr.bf16.mxu0 %v1277
  %1783 = vmatmul.mubr.bf16.gmra.mxu0 %v852
  %v1784 = vpop.f32.mrf.mxu0
  %v1785 = vadd.f32 0.0, %v1784
  %v1786 = vpop.f32.mrf.mxu0
  %v1787 = vpop.f32.mrf.mxu0
  %v1788 = vadd.f32 0.0, %v1787
  %v1789 = vpop.f32.mrf.mxu0
  %1790 = vmatprep.mubr.bf16.mxu0 %v1280
  %1791 = vmatmul.mubr.bf16.gmra.mxu0 %v854
  %v1792 = vpop.f32.mrf.mxu0
  %v1793 = vadd.f32 0.0, %v1792
  %v1794 = vpop.f32.mrf.mxu0
  %v1795 = vpop.f32.mrf.mxu0
  %v1796 = vadd.f32 0.0, %v1795
  %v1797 = vpop.f32.mrf.mxu0
  %1798 = vmatprep.mubr.bf16.mxu0 %v1283
  %1799 = vmatmul.mubr.bf16.gmra.mxu0 %v856
  %v1800 = vpop.f32.mrf.mxu0
  %v1801 = vadd.f32 0.0, %v1800
  %v1802 = vpop.f32.mrf.mxu0
  %v1803 = vpop.f32.mrf.mxu0
  %v1804 = vadd.f32 0.0, %v1803
  %v1805 = vpop.f32.mrf.mxu0
  %1806 = vmatprep.mubr.bf16.mxu0 %v1286
  %1807 = vmatmul.mubr.bf16.gmra.mxu0 %v858
  %v1808 = vpop.f32.mrf.mxu0
  %v1809 = vadd.f32 0.0, %v1808
  %v1810 = vpop.f32.mrf.mxu0
  %v1811 = vpop.f32.mrf.mxu0
  %v1812 = vadd.f32 0.0, %v1811
  %v1813 = vpop.f32.mrf.mxu0
  %1814 = vmatprep.mubr.bf16.mxu0 %v1289
  %1815 = vmatmul.mubr.bf16.gmra.mxu0 %v860
  %v1816 = vpop.f32.mrf.mxu0
  %v1817 = vadd.f32 0.0, %v1816
  %v1818 = vpop.f32.mrf.mxu0
  %v1819 = vpop.f32.mrf.mxu0
  %v1820 = vadd.f32 0.0, %v1819
  %v1821 = vpop.f32.mrf.mxu0
  %1822 = vmatprep.mubr.bf16.mxu0 %v1292
  %1823 = vmatmul.mubr.bf16.gmra.mxu0 %v862
  %v1824 = vpop.f32.mrf.mxu0
  %v1825 = vadd.f32 0.0, %v1824
  %v1826 = vpop.f32.mrf.mxu0
  %v1827 = vpop.f32.mrf.mxu0
  %v1828 = vadd.f32 0.0, %v1827
  %v1829 = vpop.f32.mrf.mxu0
  %1830 = vmatprep.mubr.bf16.mxu0 %v1295
  %1831 = vmatmul.mubr.bf16.gmra.mxu0 %v864
  %v1832 = vpop.f32.mrf.mxu0
  %v1833 = vadd.f32 0.0, %v1832
  %v1834 = vpop.f32.mrf.mxu0
  %v1835 = vpop.f32.mrf.mxu0
  %v1836 = vadd.f32 0.0, %v1835
  %v1837 = vpop.f32.mrf.mxu0
  %1838 = vmatprep.mubr.bf16.mxu0 %v1298
  %1839 = vmatmul.mubr.bf16.gmra.mxu0 %v866
  %v1840 = vpop.f32.mrf.mxu0
  %v1841 = vadd.f32 0.0, %v1840
  %v1842 = vpop.f32.mrf.mxu0
  %v1843 = vpop.f32.mrf.mxu0
  %v1844 = vadd.f32 0.0, %v1843
  %v1845 = vpop.f32.mrf.mxu0
  %1846 = vdwg.mxu0
  %v1847 = vmul.f32 %v1335, 0.07216878
  %v1848 = vmul.f32 %v1337, 0.07216878
  %v1849 = vmul.f32 %v1339, 0.07216878
  %v1850 = vmul.f32 %v1341, 0.07216878
  %v1851 = vmul.f32 %v1345, 0.07216878
  %v1852 = vmul.f32 %v1347, 0.07216878
  %v1853 = vmul.f32 %v1349, 0.07216878
  %v1854 = vmul.f32 %v1351, 0.07216878
  %v1855 = vmul.f32 %v1355, 0.07216878
  %v1856 = vmul.f32 %v1357, 0.07216878
  %v1857 = vmul.f32 %v1359, 0.07216878
  %v1858 = vmul.f32 %v1361, 0.07216878
  %v1859 = vmul.f32 %v1365, 0.07216878
  %v1860 = vmul.f32 %v1367, 0.07216878
  %v1861 = vmul.f32 %v1369, 0.07216878
  %v1862 = vmul.f32 %v1371, 0.07216878
  %v1863 = vmul.f32 %v1375, 0.07216878
  %v1864 = vmul.f32 %v1377, 0.07216878
  %v1865 = vmul.f32 %v1379, 0.07216878
  %v1866 = vmul.f32 %v1381, 0.07216878
  %v1867 = vmul.f32 %v1385, 0.07216878
  %v1868 = vmul.f32 %v1387, 0.07216878
  %v1869 = vmul.f32 %v1389, 0.07216878
  %v1870 = vmul.f32 %v1391, 0.07216878
  %v1871 = vmul.f32 %v1395, 0.07216878
  %v1872 = vmul.f32 %v1397, 0.07216878
  %v1873 = vmul.f32 %v1399, 0.07216878
  %v1874 = vmul.f32 %v1401, 0.07216878
  %v1875 = vmul.f32 %v1405, 0.07216878
  %v1876 = vmul.f32 %v1407, 0.07216878
  %v1877 = vmul.f32 %v1409, 0.07216878
  %v1878 = vmul.f32 %v1411, 0.07216878
  %v1879 = vmul.f32 %v1415, 0.07216878
  %v1880 = vmul.f32 %v1417, 0.07216878
  %v1881 = vmul.f32 %v1419, 0.07216878
  %v1882 = vmul.f32 %v1421, 0.07216878
  %v1883 = vmul.f32 %v1425, 0.07216878
  %v1884 = vmul.f32 %v1427, 0.07216878
  %v1885 = vmul.f32 %v1429, 0.07216878
  %v1886 = vmul.f32 %v1431, 0.07216878
  %v1887 = vmul.f32 %v1435, 0.07216878
  %v1888 = vmul.f32 %v1437, 0.07216878
  %v1889 = vmul.f32 %v1439, 0.07216878
  %v1890 = vmul.f32 %v1441, 0.07216878
  %v1891 = vmul.f32 %v1445, 0.07216878
  %v1892 = vmul.f32 %v1447, 0.07216878
  %v1893 = vmul.f32 %v1449, 0.07216878
  %v1894 = vmul.f32 %v1451, 0.07216878
  %v1895 = vmul.f32 %v1455, 0.07216878
  %v1896 = vmul.f32 %v1457, 0.07216878
  %v1897 = vmul.f32 %v1459, 0.07216878
  %v1898 = vmul.f32 %v1461, 0.07216878
  %v1899 = vmul.f32 %v1465, 0.07216878
  %v1900 = vmul.f32 %v1467, 0.07216878
  %v1901 = vmul.f32 %v1469, 0.07216878
  %v1902 = vmul.f32 %v1471, 0.07216878
  %v1903 = vmul.f32 %v1475, 0.07216878
  %v1904 = vmul.f32 %v1477, 0.07216878
  %v1905 = vmul.f32 %v1479, 0.07216878
  %v1906 = vmul.f32 %v1481, 0.07216878
  %v1907 = vmul.f32 %v1485, 0.07216878
  %v1908 = vmul.f32 %v1487, 0.07216878
  %v1909 = vmul.f32 %v1489, 0.07216878
  %v1910 = vmul.f32 %v1491, 0.07216878
  %v1911 = vlaneseq
  %v1912 = vshrl.u32 %v1911, 7
  %v1913 = vadd.s32 %v1912, 8
  %v1914 = vadd.s32 %v1912, 16
  %v1915 = vadd.s32 %v1912, 24
  %v1916 = vadd.s32 %v1912, 32
  %v1917 = vadd.s32 %v1912, 40
  %v1918 = vadd.s32 %v1912, 48
  %v1919 = vadd.s32 %v1912, 56
  %v1920 = vadd.s32 %v1912, 64
  %v1921 = vadd.s32 %v1912, 72
  %v1922 = vadd.s32 %v1912, 80
  %v1923 = vadd.s32 %v1912, 88
  %v1924 = vadd.s32 %v1912, 96
  %v1925 = vadd.s32 %v1912, 104
  %v1926 = vadd.s32 %v1912, 112
  %v1927 = vadd.s32 %v1912, 120
  %v1928 = vlaneseq
  %v1929 = vand.u32 %v1928, 127
  %vm1930 = vcmp.le.s32.totalorder %v1929, %v1912
  %vm1931 = vcmp.le.s32.totalorder %v1929, %v1913
  %vm1932 = vcmp.le.s32.totalorder %v1929, %v1914
  %vm1933 = vcmp.le.s32.totalorder %v1929, %v1915
  %vm1934 = vcmp.le.s32.totalorder %v1929, %v1916
  %vm1935 = vcmp.le.s32.totalorder %v1929, %v1917
  %vm1936 = vcmp.le.s32.totalorder %v1929, %v1918
  %vm1937 = vcmp.le.s32.totalorder %v1929, %v1919
  %vm1938 = vcmp.le.s32.totalorder %v1929, %v1920
  %vm1939 = vcmp.le.s32.totalorder %v1929, %v1921
  %vm1940 = vcmp.le.s32.totalorder %v1929, %v1922
  %vm1941 = vcmp.le.s32.totalorder %v1929, %v1923
  %vm1942 = vcmp.le.s32.totalorder %v1929, %v1924
  %vm1943 = vcmp.le.s32.totalorder %v1929, %v1925
  %vm1944 = vcmp.le.s32.totalorder %v1929, %v1926
  %vm1945 = vcmp.le.s32.totalorder %v1929, %v1927
  %v1946 = vsel %vm1930, 0.0, -1e+30
  %v1947 = vsel %vm1931, 0.0, -1e+30
  %v1948 = vsel %vm1932, 0.0, -1e+30
  %v1949 = vsel %vm1933, 0.0, -1e+30
  %v1950 = vsel %vm1934, 0.0, -1e+30
  %v1951 = vsel %vm1935, 0.0, -1e+30
  %v1952 = vsel %vm1936, 0.0, -1e+30
  %v1953 = vsel %vm1937, 0.0, -1e+30
  %v1954 = vsel %vm1938, 0.0, -1e+30
  %v1955 = vsel %vm1939, 0.0, -1e+30
  %v1956 = vsel %vm1940, 0.0, -1e+30
  %v1957 = vsel %vm1941, 0.0, -1e+30
  %v1958 = vsel %vm1942, 0.0, -1e+30
  %v1959 = vsel %vm1943, 0.0, -1e+30
  %v1960 = vsel %vm1944, 0.0, -1e+30
  %v1961 = vsel %vm1945, 0.0, -1e+30
  %v1962 = vld [vmem:[%s7] sm:$0x3]
  %v1964 = vlaneseq
  %v1965 = vshrl.u32 %v1964, 7
  %v1966 = vsub.s32 0, %v1965
  %v1967 = vrot.slane %v1962, %v1966
  %v1968 = vlaneseq
  %v1969 = vshrl.u32 %v1968, 7
  %v1970 = vsub.s32 1, %v1969
  %v1971 = vrot.slane %v1962, %v1970
  %v1974 = vpack.c.bf16 %v1849, %v1847
  %v1975 = vpack.c.bf16 %v1853, %v1851
  %v1976 = vpack.c.bf16 %v1857, %v1855
  %v1977 = vpack.c.bf16 %v1861, %v1859
  %v1978 = vpack.c.bf16 %v1865, %v1863
  %v1979 = vpack.c.bf16 %v1869, %v1867
  %v1980 = vpack.c.bf16 %v1873, %v1871
  %v1981 = vpack.c.bf16 %v1877, %v1875
  %v1982 = vpack.c.bf16 %v1881, %v1879
  %v1983 = vpack.c.bf16 %v1885, %v1883
  %v1984 = vpack.c.bf16 %v1889, %v1887
  %v1985 = vpack.c.bf16 %v1893, %v1891
  %v1986 = vpack.c.bf16 %v1897, %v1895
  %v1987 = vpack.c.bf16 %v1901, %v1899
  %v1988 = vpack.c.bf16 %v1905, %v1903
  %v1989 = vpack.c.bf16 %v1909, %v1907
  %v1990 = vpack.c.bf16 %v1341, %v1337
  %v1991 = vpack.c.bf16 %v1351, %v1347
  %v1992 = vpack.c.bf16 %v1361, %v1357
  %v1993 = vpack.c.bf16 %v1371, %v1367
  %v1994 = vpack.c.bf16 %v1381, %v1377
  %v1995 = vpack.c.bf16 %v1391, %v1387
  %v1996 = vpack.c.bf16 %v1401, %v1397
  %v1997 = vpack.c.bf16 %v1411, %v1407
  %v1998 = vpack.c.bf16 %v1421, %v1417
  %v1999 = vpack.c.bf16 %v1431, %v1427
  %v2000 = vpack.c.bf16 %v1441, %v1437
  %v2001 = vpack.c.bf16 %v1451, %v1447
  %v2002 = vpack.c.bf16 %v1461, %v1457
  %v2003 = vpack.c.bf16 %v1471, %v1467
  %v2004 = vpack.c.bf16 %v1481, %v1477
  %v2005 = vpack.c.bf16 %v1491, %v1487
  %v2006 = vpack.c.bf16 %v1534, %v1530
  %v2007 = vpack.c.bf16 %v1544, %v1540
  %v2008 = vpack.c.bf16 %v1554, %v1550
  %v2009 = vpack.c.bf16 %v1564, %v1560
  %v2010 = vpack.c.bf16 %v1574, %v1570
  %v2011 = vpack.c.bf16 %v1584, %v1580
  %v2012 = vpack.c.bf16 %v1594, %v1590
  %v2013 = vpack.c.bf16 %v1604, %v1600
  %v2014 = vpack.c.bf16 %v1614, %v1610
  %v2015 = vpack.c.bf16 %v1624, %v1620
  %v2016 = vpack.c.bf16 %v1634, %v1630
  %v2017 = vpack.c.bf16 %v1644, %v1640
  %v2018 = vpack.c.bf16 %v1654, %v1650
  %v2019 = vpack.c.bf16 %v1664, %v1660
  %v2020 = vpack.c.bf16 %v1674, %v1670
  %v2021 = vpack.c.bf16 %v1684, %v1680
  %2030 = vrot.lane.b32.xlu0 %v1990, 64
  %v2031 = vpop.permute.xlu0 %2030
  %2032 = vrot.lane.b32.xlu0 %v1991, 64
  %v2033 = vpop.permute.xlu0 %2032
  %2034 = vrot.lane.b32.xlu0 %v1992, 64
  %v2035 = vpop.permute.xlu0 %2034
  %2036 = vrot.lane.b32.xlu0 %v1993, 64
  %v2037 = vpop.permute.xlu0 %2036
  %2038 = vrot.lane.b32.xlu0 %v1994, 64
  %v2039 = vpop.permute.xlu0 %2038
  %2040 = vrot.lane.b32.xlu0 %v1995, 64
  %v2041 = vpop.permute.xlu0 %2040
  %2042 = vrot.lane.b32.xlu0 %v1996, 64
  %v2043 = vpop.permute.xlu0 %2042
  %2044 = vrot.lane.b32.xlu0 %v1997, 64
  %v2045 = vpop.permute.xlu0 %2044
  %vm2046 = vcmask 261120
  %v2048 = vsel %vm2046, %v1974, 0
  %v2051 = vsel %vm2046, %v1975, 0
  %v2054 = vsel %vm2046, %v1976, 0
  %v2057 = vsel %vm2046, %v1977, 0
  %v2060 = vsel %vm2046, %v1978, 0
  %v2063 = vsel %vm2046, %v1979, 0
  %v2066 = vsel %vm2046, %v1980, 0
  %v2069 = vsel %vm2046, %v1981, 0
  %v2072 = vsel %vm2046, %v2031, 0
  %v2075 = vsel %vm2046, %v2033, 0
  %v2078 = vsel %vm2046, %v2035, 0
  %v2081 = vsel %vm2046, %v2037, 0
  %v2084 = vsel %vm2046, %v2039, 0
  %v2087 = vsel %vm2046, %v2041, 0
  %v2090 = vsel %vm2046, %v2043, 0
  %v2093 = vsel %vm2046, %v2045, 0
  %2095 = vmatprep.subr.bf16.mxu0 0
  %2096 = vmatpush1.bf16.xpose.msra.mxu0 %v2093
  %2097 = vmatprep.subr.bf16.mxu0 0
  %2098 = vmatpush1.bf16.xpose.msra.mxu0 %v2090
  %2099 = vmatprep.subr.bf16.mxu0 0
  %2100 = vmatpush1.bf16.xpose.msra.mxu0 %v2087
  %2101 = vmatprep.subr.bf16.mxu0 0
  %2102 = vmatpush1.bf16.xpose.msra.mxu0 %v2084
  %2103 = vmatprep.subr.bf16.mxu0 0
  %2104 = vmatpush1.bf16.xpose.msra.mxu0 %v2081
  %2105 = vmatprep.subr.bf16.mxu0 0
  %2106 = vmatpush1.bf16.xpose.msra.mxu0 %v2078
  %2107 = vmatprep.subr.bf16.mxu0 0
  %2108 = vmatpush1.bf16.xpose.msra.mxu0 %v2075
  %2109 = vmatprep.subr.bf16.mxu0 0
  %2110 = vmatpush1.bf16.xpose.msra.mxu0 %v2072
  %2111 = vmatprep.subr.bf16.mxu0 0
  %2112 = vmatpush2.bf16.xpose.msra.mxu0 0
  %2113 = vmatprep.subr.bf16.mxu0 0
  %2114 = vmatpush2.bf16.xpose.msra.mxu0 0
  %2115 = vmatprep.subr.bf16.mxu0 0
  %2116 = vmatpush2.bf16.xpose.msra.mxu0 0
  %2117 = vmatprep.subr.bf16.mxu0 0
  %2118 = vmatpush2.bf16.xpose.msra.mxu0 0
  %2119 = vmatprep.subr.bf16.mxu0 0
  %2120 = vmatpush2.bf16.xpose.msra.mxu0 0
  %2121 = vmatprep.subr.bf16.mxu0 0
  %2122 = vmatpush2.bf16.xpose.msra.mxu0 0
  %2123 = vmatprep.subr.bf16.mxu0 0
  %2124 = vmatpush2.bf16.xpose.msra.mxu0 0
  %2125 = vmatprep.subr.bf16.mxu0 0
  %2126 = vmatpush2.bf16.xpose.msra.mxu0 0
  %2127 = vmatprep.mubr.bf16.mxu0 0
  %2128 = vmatmul.mubr.bf16.gmra.mxu0 %v2048
  %v2129 = vpop.f32.mrf.mxu0
  %v2130 = vadd.f32 %v1946, %v2129
  %v2131 = vpop.f32.mrf.mxu0
  %v2132 = vpop.f32.mrf.mxu0
  %v2133 = vadd.f32 %v1947, %v2132
  %v2134 = vpop.f32.mrf.mxu0
  %2135 = vmatprep.mubr.bf16.mxu0 0
  %2136 = vmatmul.mubr.bf16.gmra.mxu0 %v2051
  %v2137 = vpop.f32.mrf.mxu0
  %v2138 = vadd.f32 %v1948, %v2137
  %v2139 = vpop.f32.mrf.mxu0
  %v2140 = vpop.f32.mrf.mxu0
  %v2141 = vadd.f32 %v1949, %v2140
  %v2142 = vpop.f32.mrf.mxu0
  %2143 = vmatprep.mubr.bf16.mxu0 0
  %2144 = vmatmul.mubr.bf16.gmra.mxu0 %v2054
  %v2145 = vpop.f32.mrf.mxu0
  %v2146 = vadd.f32 %v1950, %v2145
  %v2147 = vpop.f32.mrf.mxu0
  %v2148 = vpop.f32.mrf.mxu0
  %v2149 = vadd.f32 %v1951, %v2148
  %v2150 = vpop.f32.mrf.mxu0
  %2151 = vmatprep.mubr.bf16.mxu0 0
  %2152 = vmatmul.mubr.bf16.gmra.mxu0 %v2057
  %v2153 = vpop.f32.mrf.mxu0
  %v2154 = vadd.f32 %v1952, %v2153
  %v2155 = vpop.f32.mrf.mxu0
  %v2156 = vpop.f32.mrf.mxu0
  %v2157 = vadd.f32 %v1953, %v2156
  %v2158 = vpop.f32.mrf.mxu0
  %2159 = vmatprep.mubr.bf16.mxu0 0
  %2160 = vmatmul.mubr.bf16.gmra.mxu0 %v2060
  %v2161 = vpop.f32.mrf.mxu0
  %v2162 = vadd.f32 %v1954, %v2161
  %v2163 = vpop.f32.mrf.mxu0
  %v2164 = vpop.f32.mrf.mxu0
  %v2165 = vadd.f32 %v1955, %v2164
  %v2166 = vpop.f32.mrf.mxu0
  %2167 = vmatprep.mubr.bf16.mxu0 0
  %2168 = vmatmul.mubr.bf16.gmra.mxu0 %v2063
  %v2169 = vpop.f32.mrf.mxu0
  %v2170 = vadd.f32 %v1956, %v2169
  %v2171 = vpop.f32.mrf.mxu0
  %v2172 = vpop.f32.mrf.mxu0
  %v2173 = vadd.f32 %v1957, %v2172
  %v2174 = vpop.f32.mrf.mxu0
  %2175 = vmatprep.mubr.bf16.mxu0 0
  %2176 = vmatmul.mubr.bf16.gmra.mxu0 %v2066
  %v2177 = vpop.f32.mrf.mxu0
  %v2178 = vadd.f32 %v1958, %v2177
  %v2179 = vpop.f32.mrf.mxu0
  %v2180 = vpop.f32.mrf.mxu0
  %v2181 = vadd.f32 %v1959, %v2180
  %v2182 = vpop.f32.mrf.mxu0
  %2183 = vmatprep.mubr.bf16.mxu0 0
  %2184 = vmatmul.mubr.bf16.gmra.mxu0 %v2069
  %v2185 = vpop.f32.mrf.mxu0
  %v2186 = vadd.f32 %v1960, %v2185
  %v2187 = vpop.f32.mrf.mxu0
  %v2188 = vpop.f32.mrf.mxu0
  %v2189 = vadd.f32 %v1961, %v2188
  %v2190 = vpop.f32.mrf.mxu0
  %2191 = vdwg.mxu0
  %2200 = vrot.lane.b32.xlu0 %v1998, 64
  %v2201 = vpop.permute.xlu0 %2200
  %2202 = vrot.lane.b32.xlu0 %v1999, 64
  %v2203 = vpop.permute.xlu0 %2202
  %2204 = vrot.lane.b32.xlu0 %v2000, 64
  %v2205 = vpop.permute.xlu0 %2204
  %2206 = vrot.lane.b32.xlu0 %v2001, 64
  %v2207 = vpop.permute.xlu0 %2206
  %2208 = vrot.lane.b32.xlu0 %v2002, 64
  %v2209 = vpop.permute.xlu0 %2208
  %2210 = vrot.lane.b32.xlu0 %v2003, 64
  %v2211 = vpop.permute.xlu0 %2210
  %2212 = vrot.lane.b32.xlu0 %v2004, 64
  %v2213 = vpop.permute.xlu0 %2212
  %2214 = vrot.lane.b32.xlu0 %v2005, 64
  %v2215 = vpop.permute.xlu0 %2214
  %v2217 = vsel %vm2046, %v1982, 0
  %v2220 = vsel %vm2046, %v1983, 0
  %v2223 = vsel %vm2046, %v1984, 0
  %v2226 = vsel %vm2046, %v1985, 0
  %v2229 = vsel %vm2046, %v1986, 0
  %v2232 = vsel %vm2046, %v1987, 0
  %v2235 = vsel %vm2046, %v1988, 0
  %v2238 = vsel %vm2046, %v1989, 0
  %v2241 = vsel %vm2046, %v2201, 0
  %v2244 = vsel %vm2046, %v2203, 0
  %v2247 = vsel %vm2046, %v2205, 0
  %v2250 = vsel %vm2046, %v2207, 0
  %v2253 = vsel %vm2046, %v2209, 0
  %v2256 = vsel %vm2046, %v2211, 0
  %v2259 = vsel %vm2046, %v2213, 0
  %v2262 = vsel %vm2046, %v2215, 0
  %2264 = vmatprep.subr.bf16.mxu0 0
  %2265 = vmatpush1.bf16.xpose.msra.mxu0 %v2262
  %2266 = vmatprep.subr.bf16.mxu0 0
  %2267 = vmatpush1.bf16.xpose.msra.mxu0 %v2259
  %2268 = vmatprep.subr.bf16.mxu0 0
  %2269 = vmatpush1.bf16.xpose.msra.mxu0 %v2256
  %2270 = vmatprep.subr.bf16.mxu0 0
  %2271 = vmatpush1.bf16.xpose.msra.mxu0 %v2253
  %2272 = vmatprep.subr.bf16.mxu0 0
  %2273 = vmatpush1.bf16.xpose.msra.mxu0 %v2250
  %2274 = vmatprep.subr.bf16.mxu0 0
  %2275 = vmatpush1.bf16.xpose.msra.mxu0 %v2247
  %2276 = vmatprep.subr.bf16.mxu0 0
  %2277 = vmatpush1.bf16.xpose.msra.mxu0 %v2244
  %2278 = vmatprep.subr.bf16.mxu0 0
  %2279 = vmatpush1.bf16.xpose.msra.mxu0 %v2241
  %2280 = vmatprep.subr.bf16.mxu0 0
  %2281 = vmatpush2.bf16.xpose.msra.mxu0 0
  %2282 = vmatprep.subr.bf16.mxu0 0
  %2283 = vmatpush2.bf16.xpose.msra.mxu0 0
  %2284 = vmatprep.subr.bf16.mxu0 0
  %2285 = vmatpush2.bf16.xpose.msra.mxu0 0
  %2286 = vmatprep.subr.bf16.mxu0 0
  %2287 = vmatpush2.bf16.xpose.msra.mxu0 0
  %2288 = vmatprep.subr.bf16.mxu0 0
  %2289 = vmatpush2.bf16.xpose.msra.mxu0 0
  %2290 = vmatprep.subr.bf16.mxu0 0
  %2291 = vmatpush2.bf16.xpose.msra.mxu0 0
  %2292 = vmatprep.subr.bf16.mxu0 0
  %2293 = vmatpush2.bf16.xpose.msra.mxu0 0
  %2294 = vmatprep.subr.bf16.mxu0 0
  %2295 = vmatpush2.bf16.xpose.msra.mxu0 0
  %2296 = vmatprep.mubr.bf16.mxu0 0
  %2297 = vmatmul.mubr.bf16.gmra.mxu0 %v2217
  %v2298 = vpop.f32.mrf.mxu0
  %v2299 = vadd.f32 %v1946, %v2298
  %v2300 = vpop.f32.mrf.mxu0
  %v2301 = vpop.f32.mrf.mxu0
  %v2302 = vadd.f32 %v1947, %v2301
  %v2303 = vpop.f32.mrf.mxu0
  %2304 = vmatprep.mubr.bf16.mxu0 0
  %2305 = vmatmul.mubr.bf16.gmra.mxu0 %v2220
  %v2306 = vpop.f32.mrf.mxu0
  %v2307 = vadd.f32 %v1948, %v2306
  %v2308 = vpop.f32.mrf.mxu0
  %v2309 = vpop.f32.mrf.mxu0
  %v2310 = vadd.f32 %v1949, %v2309
  %v2311 = vpop.f32.mrf.mxu0
  %2312 = vmatprep.mubr.bf16.mxu0 0
  %2313 = vmatmul.mubr.bf16.gmra.mxu0 %v2223
  %v2314 = vpop.f32.mrf.mxu0
  %v2315 = vadd.f32 %v1950, %v2314
  %v2316 = vpop.f32.mrf.mxu0
  %v2317 = vpop.f32.mrf.mxu0
  %v2318 = vadd.f32 %v1951, %v2317
  %v2319 = vpop.f32.mrf.mxu0
  %2320 = vmatprep.mubr.bf16.mxu0 0
  %2321 = vmatmul.mubr.bf16.gmra.mxu0 %v2226
  %v2322 = vpop.f32.mrf.mxu0
  %v2323 = vadd.f32 %v1952, %v2322
  %v2324 = vpop.f32.mrf.mxu0
  %v2325 = vpop.f32.mrf.mxu0
  %v2326 = vadd.f32 %v1953, %v2325
  %v2327 = vpop.f32.mrf.mxu0
  %2328 = vmatprep.mubr.bf16.mxu0 0
  %2329 = vmatmul.mubr.bf16.gmra.mxu0 %v2229
  %v2330 = vpop.f32.mrf.mxu0
  %v2331 = vadd.f32 %v1954, %v2330
  %v2332 = vpop.f32.mrf.mxu0
  %v2333 = vpop.f32.mrf.mxu0
  %v2334 = vadd.f32 %v1955, %v2333
  %v2335 = vpop.f32.mrf.mxu0
  %2336 = vmatprep.mubr.bf16.mxu0 0
  %2337 = vmatmul.mubr.bf16.gmra.mxu0 %v2232
  %v2338 = vpop.f32.mrf.mxu0
  %v2339 = vadd.f32 %v1956, %v2338
  %v2340 = vpop.f32.mrf.mxu0
  %v2341 = vpop.f32.mrf.mxu0
  %v2342 = vadd.f32 %v1957, %v2341
  %v2343 = vpop.f32.mrf.mxu0
  %2344 = vmatprep.mubr.bf16.mxu0 0
  %2345 = vmatmul.mubr.bf16.gmra.mxu0 %v2235
  %v2346 = vpop.f32.mrf.mxu0
  %v2347 = vadd.f32 %v1958, %v2346
  %v2348 = vpop.f32.mrf.mxu0
  %v2349 = vpop.f32.mrf.mxu0
  %v2350 = vadd.f32 %v1959, %v2349
  %v2351 = vpop.f32.mrf.mxu0
  %2352 = vmatprep.mubr.bf16.mxu0 0
  %2353 = vmatmul.mubr.bf16.gmra.mxu0 %v2238
  %v2354 = vpop.f32.mrf.mxu0
  %v2355 = vadd.f32 %v1960, %v2354
  %v2356 = vpop.f32.mrf.mxu0
  %v2357 = vpop.f32.mrf.mxu0
  %v2358 = vadd.f32 %v1961, %v2357
  %v2359 = vpop.f32.mrf.mxu0
  %2360 = vdwg.mxu0
  %2361 = vmax.xlane.f32.xlu0 %v2130
  %v2362 = vpop.xlane.xlu0 %2361
  %2363 = vmax.xlane.f32.xlu0 %v2133
  %v2364 = vpop.xlane.xlu0 %2363
  %2365 = vmax.xlane.f32.xlu0 %v2138
  %v2366 = vpop.xlane.xlu0 %2365
  %2367 = vmax.xlane.f32.xlu0 %v2141
  %v2368 = vpop.xlane.xlu0 %2367
  %2369 = vmax.xlane.f32.xlu0 %v2146
  %v2370 = vpop.xlane.xlu0 %2369
  %2371 = vmax.xlane.f32.xlu0 %v2149
  %v2372 = vpop.xlane.xlu0 %2371
  %2373 = vmax.xlane.f32.xlu0 %v2154
  %v2374 = vpop.xlane.xlu0 %2373
  %2375 = vmax.xlane.f32.xlu0 %v2157
  %v2376 = vpop.xlane.xlu0 %2375
  %2377 = vmax.xlane.f32.xlu0 %v2162
  %v2378 = vpop.xlane.xlu0 %2377
  %2379 = vmax.xlane.f32.xlu0 %v2165
  %v2380 = vpop.xlane.xlu0 %2379
  %2381 = vmax.xlane.f32.xlu0 %v2170
  %v2382 = vpop.xlane.xlu0 %2381
  %2383 = vmax.xlane.f32.xlu0 %v2173
  %v2384 = vpop.xlane.xlu0 %2383
  %2385 = vmax.xlane.f32.xlu0 %v2178
  %v2386 = vpop.xlane.xlu0 %2385
  %2387 = vmax.xlane.f32.xlu0 %v2181
  %v2388 = vpop.xlane.xlu0 %2387
  %2389 = vmax.xlane.f32.xlu0 %v2186
  %v2390 = vpop.xlane.xlu0 %2389
  %2391 = vmax.xlane.f32.xlu0 %v2189
  %v2392 = vpop.xlane.xlu0 %2391
  %2393 = vmax.xlane.f32.xlu0 %v2299
  %v2394 = vpop.xlane.xlu0 %2393
  %2395 = vmax.xlane.f32.xlu0 %v2302
  %v2396 = vpop.xlane.xlu0 %2395
  %2397 = vmax.xlane.f32.xlu0 %v2307
  %v2398 = vpop.xlane.xlu0 %2397
  %2399 = vmax.xlane.f32.xlu0 %v2310
  %v2400 = vpop.xlane.xlu0 %2399
  %2401 = vmax.xlane.f32.xlu0 %v2315
  %v2402 = vpop.xlane.xlu0 %2401
  %2403 = vmax.xlane.f32.xlu0 %v2318
  %v2404 = vpop.xlane.xlu0 %2403
  %2405 = vmax.xlane.f32.xlu0 %v2323
  %v2406 = vpop.xlane.xlu0 %2405
  %2407 = vmax.xlane.f32.xlu0 %v2326
  %v2408 = vpop.xlane.xlu0 %2407
  %2409 = vmax.xlane.f32.xlu0 %v2331
  %v2410 = vpop.xlane.xlu0 %2409
  %2411 = vmax.xlane.f32.xlu0 %v2334
  %v2412 = vpop.xlane.xlu0 %2411
  %2413 = vmax.xlane.f32.xlu0 %v2339
  %v2414 = vpop.xlane.xlu0 %2413
  %2415 = vmax.xlane.f32.xlu0 %v2342
  %v2416 = vpop.xlane.xlu0 %2415
  %2417 = vmax.xlane.f32.xlu0 %v2347
  %v2418 = vpop.xlane.xlu0 %2417
  %2419 = vmax.xlane.f32.xlu0 %v2350
  %v2420 = vpop.xlane.xlu0 %2419
  %2421 = vmax.xlane.f32.xlu0 %v2355
  %v2422 = vpop.xlane.xlu0 %2421
  %2423 = vmax.xlane.f32.xlu0 %v2358
  %v2424 = vpop.xlane.xlu0 %2423
  %v2425 = vsub.f32 %v2130, %v2362
  %v2426 = vsub.f32 %v2133, %v2364
  %v2427 = vsub.f32 %v2138, %v2366
  %v2428 = vsub.f32 %v2141, %v2368
  %v2429 = vsub.f32 %v2146, %v2370
  %v2430 = vsub.f32 %v2149, %v2372
  %v2431 = vsub.f32 %v2154, %v2374
  %v2432 = vsub.f32 %v2157, %v2376
  %v2433 = vsub.f32 %v2162, %v2378
  %v2434 = vsub.f32 %v2165, %v2380
  %v2435 = vsub.f32 %v2170, %v2382
  %v2436 = vsub.f32 %v2173, %v2384
  %v2437 = vsub.f32 %v2178, %v2386
  %v2438 = vsub.f32 %v2181, %v2388
  %v2439 = vsub.f32 %v2186, %v2390
  %v2440 = vsub.f32 %v2189, %v2392
  %v2441 = vsub.f32 %v2299, %v2394
  %v2442 = vsub.f32 %v2302, %v2396
  %v2443 = vsub.f32 %v2307, %v2398
  %v2444 = vsub.f32 %v2310, %v2400
  %v2445 = vsub.f32 %v2315, %v2402
  %v2446 = vsub.f32 %v2318, %v2404
  %v2447 = vsub.f32 %v2323, %v2406
  %v2448 = vsub.f32 %v2326, %v2408
  %v2449 = vsub.f32 %v2331, %v2410
  %v2450 = vsub.f32 %v2334, %v2412
  %v2451 = vsub.f32 %v2339, %v2414
  %v2452 = vsub.f32 %v2342, %v2416
  %v2453 = vsub.f32 %v2347, %v2418
  %v2454 = vsub.f32 %v2350, %v2420
  %v2455 = vsub.f32 %v2355, %v2422
  %v2456 = vsub.f32 %v2358, %v2424
  %v2457 = vmul.f32 %v2425, 1.442695
  %v2458 = vpow.pop %v2457
  %v2459 = vmul.f32 %v2426, 1.442695
  %v2460 = vpow.pop %v2459
  %v2461 = vmul.f32 %v2427, 1.442695
  %v2462 = vpow.pop %v2461
  %v2463 = vmul.f32 %v2428, 1.442695
  %v2464 = vpow.pop %v2463
  %v2465 = vmul.f32 %v2429, 1.442695
  %v2466 = vpow.pop %v2465
  %v2467 = vmul.f32 %v2430, 1.442695
  %v2468 = vpow.pop %v2467
  %v2469 = vmul.f32 %v2431, 1.442695
  %v2470 = vpow.pop %v2469
  %v2471 = vmul.f32 %v2432, 1.442695
  %v2472 = vpow.pop %v2471
  %v2473 = vmul.f32 %v2433, 1.442695
  %v2474 = vpow.pop %v2473
  %v2475 = vmul.f32 %v2434, 1.442695
  %v2476 = vpow.pop %v2475
  %v2477 = vmul.f32 %v2435, 1.442695
  %v2478 = vpow.pop %v2477
  %v2479 = vmul.f32 %v2436, 1.442695
  %v2480 = vpow.pop %v2479
  %v2481 = vmul.f32 %v2437, 1.442695
  %v2482 = vpow.pop %v2481
  %v2483 = vmul.f32 %v2438, 1.442695
  %v2484 = vpow.pop %v2483
  %v2485 = vmul.f32 %v2439, 1.442695
  %v2486 = vpow.pop %v2485
  %v2487 = vmul.f32 %v2440, 1.442695
  %v2488 = vpow.pop %v2487
  %v2489 = vmul.f32 %v2441, 1.442695
  %v2490 = vpow.pop %v2489
  %v2491 = vmul.f32 %v2442, 1.442695
  %v2492 = vpow.pop %v2491
  %v2493 = vmul.f32 %v2443, 1.442695
  %v2494 = vpow.pop %v2493
  %v2495 = vmul.f32 %v2444, 1.442695
  %v2496 = vpow.pop %v2495
  %v2497 = vmul.f32 %v2445, 1.442695
  %v2498 = vpow.pop %v2497
  %v2499 = vmul.f32 %v2446, 1.442695
  %v2500 = vpow.pop %v2499
  %v2501 = vmul.f32 %v2447, 1.442695
  %v2502 = vpow.pop %v2501
  %v2503 = vmul.f32 %v2448, 1.442695
  %v2504 = vpow.pop %v2503
  %v2505 = vmul.f32 %v2449, 1.442695
  %v2506 = vpow.pop %v2505
  %v2507 = vmul.f32 %v2450, 1.442695
  %v2508 = vpow.pop %v2507
  %v2509 = vmul.f32 %v2451, 1.442695
  %v2510 = vpow.pop %v2509
  %v2511 = vmul.f32 %v2452, 1.442695
  %v2512 = vpow.pop %v2511
  %v2513 = vmul.f32 %v2453, 1.442695
  %v2514 = vpow.pop %v2513
  %v2515 = vmul.f32 %v2454, 1.442695
  %v2516 = vpow.pop %v2515
  %v2517 = vmul.f32 %v2455, 1.442695
  %v2518 = vpow.pop %v2517
  %v2519 = vmul.f32 %v2456, 1.442695
  %v2520 = vpow.pop %v2519
  %2521 = vadd.xlane.f32.xlu0 %v2458
  %v2522 = vpop.xlane.xlu0 %2521
  %2523 = vadd.xlane.f32.xlu0 %v2460
  %v2524 = vpop.xlane.xlu0 %2523
  %2525 = vadd.xlane.f32.xlu0 %v2462
  %v2526 = vpop.xlane.xlu0 %2525
  %2527 = vadd.xlane.f32.xlu0 %v2464
  %v2528 = vpop.xlane.xlu0 %2527
  %2529 = vadd.xlane.f32.xlu0 %v2466
  %v2530 = vpop.xlane.xlu0 %2529
  %2531 = vadd.xlane.f32.xlu0 %v2468
  %v2532 = vpop.xlane.xlu0 %2531
  %2533 = vadd.xlane.f32.xlu0 %v2470
  %v2534 = vpop.xlane.xlu0 %2533
  %2535 = vadd.xlane.f32.xlu0 %v2472
  %v2536 = vpop.xlane.xlu0 %2535
  %2537 = vadd.xlane.f32.xlu0 %v2474
  %v2538 = vpop.xlane.xlu0 %2537
  %2539 = vadd.xlane.f32.xlu0 %v2476
  %v2540 = vpop.xlane.xlu0 %2539
  %2541 = vadd.xlane.f32.xlu0 %v2478
  %v2542 = vpop.xlane.xlu0 %2541
  %2543 = vadd.xlane.f32.xlu0 %v2480
  %v2544 = vpop.xlane.xlu0 %2543
  %2545 = vadd.xlane.f32.xlu0 %v2482
  %v2546 = vpop.xlane.xlu0 %2545
  %2547 = vadd.xlane.f32.xlu0 %v2484
  %v2548 = vpop.xlane.xlu0 %2547
  %2549 = vadd.xlane.f32.xlu0 %v2486
  %v2550 = vpop.xlane.xlu0 %2549
  %2551 = vadd.xlane.f32.xlu0 %v2488
  %v2552 = vpop.xlane.xlu0 %2551
  %2553 = vadd.xlane.f32.xlu0 %v2490
  %v2554 = vpop.xlane.xlu0 %2553
  %2555 = vadd.xlane.f32.xlu0 %v2492
  %v2556 = vpop.xlane.xlu0 %2555
  %2557 = vadd.xlane.f32.xlu0 %v2494
  %v2558 = vpop.xlane.xlu0 %2557
  %2559 = vadd.xlane.f32.xlu0 %v2496
  %v2560 = vpop.xlane.xlu0 %2559
  %2561 = vadd.xlane.f32.xlu0 %v2498
  %v2562 = vpop.xlane.xlu0 %2561
  %2563 = vadd.xlane.f32.xlu0 %v2500
  %v2564 = vpop.xlane.xlu0 %2563
  %2565 = vadd.xlane.f32.xlu0 %v2502
  %v2566 = vpop.xlane.xlu0 %2565
  %2567 = vadd.xlane.f32.xlu0 %v2504
  %v2568 = vpop.xlane.xlu0 %2567
  %2569 = vadd.xlane.f32.xlu0 %v2506
  %v2570 = vpop.xlane.xlu0 %2569
  %2571 = vadd.xlane.f32.xlu0 %v2508
  %v2572 = vpop.xlane.xlu0 %2571
  %2573 = vadd.xlane.f32.xlu0 %v2510
  %v2574 = vpop.xlane.xlu0 %2573
  %2575 = vadd.xlane.f32.xlu0 %v2512
  %v2576 = vpop.xlane.xlu0 %2575
  %2577 = vadd.xlane.f32.xlu0 %v2514
  %v2578 = vpop.xlane.xlu0 %2577
  %2579 = vadd.xlane.f32.xlu0 %v2516
  %v2580 = vpop.xlane.xlu0 %2579
  %2581 = vadd.xlane.f32.xlu0 %v2518
  %v2582 = vpop.xlane.xlu0 %2581
  %2583 = vadd.xlane.f32.xlu0 %v2520
  %v2584 = vpop.xlane.xlu0 %2583
  %v2585 = vrcp.pop %v2522
  %v2586 = vrcp.pop %v2524
  %v2587 = vrcp.pop %v2526
  %v2588 = vrcp.pop %v2528
  %v2589 = vrcp.pop %v2530
  %v2590 = vrcp.pop %v2532
  %v2591 = vrcp.pop %v2534
  %v2592 = vrcp.pop %v2536
  %v2593 = vrcp.pop %v2538
  %v2594 = vrcp.pop %v2540
  %v2595 = vrcp.pop %v2542
  %v2596 = vrcp.pop %v2544
  %v2597 = vrcp.pop %v2546
  %v2598 = vrcp.pop %v2548
  %v2599 = vrcp.pop %v2550
  %v2600 = vrcp.pop %v2552
  %v2601 = vrcp.pop %v2554
  %v2602 = vrcp.pop %v2556
  %v2603 = vrcp.pop %v2558
  %v2604 = vrcp.pop %v2560
  %v2605 = vrcp.pop %v2562
  %v2606 = vrcp.pop %v2564
  %v2607 = vrcp.pop %v2566
  %v2608 = vrcp.pop %v2568
  %v2609 = vrcp.pop %v2570
  %v2610 = vrcp.pop %v2572
  %v2611 = vrcp.pop %v2574
  %v2612 = vrcp.pop %v2576
  %v2613 = vrcp.pop %v2578
  %v2614 = vrcp.pop %v2580
  %v2615 = vrcp.pop %v2582
  %v2616 = vrcp.pop %v2584
  %v2617 = vmul.f32 %v2458, %v2585
  %v2618 = vmul.f32 %v2460, %v2586
  %v2619 = vmul.f32 %v2462, %v2587
  %v2620 = vmul.f32 %v2464, %v2588
  %v2621 = vmul.f32 %v2466, %v2589
  %v2622 = vmul.f32 %v2468, %v2590
  %v2623 = vmul.f32 %v2470, %v2591
  %v2624 = vmul.f32 %v2472, %v2592
  %v2625 = vmul.f32 %v2474, %v2593
  %v2626 = vmul.f32 %v2476, %v2594
  %v2627 = vmul.f32 %v2478, %v2595
  %v2628 = vmul.f32 %v2480, %v2596
  %v2629 = vmul.f32 %v2482, %v2597
  %v2630 = vmul.f32 %v2484, %v2598
  %v2631 = vmul.f32 %v2486, %v2599
  %v2632 = vmul.f32 %v2488, %v2600
  %v2633 = vmul.f32 %v2490, %v2601
  %v2634 = vmul.f32 %v2492, %v2602
  %v2635 = vmul.f32 %v2494, %v2603
  %v2636 = vmul.f32 %v2496, %v2604
  %v2637 = vmul.f32 %v2498, %v2605
  %v2638 = vmul.f32 %v2500, %v2606
  %v2639 = vmul.f32 %v2502, %v2607
  %v2640 = vmul.f32 %v2504, %v2608
  %v2641 = vmul.f32 %v2506, %v2609
  %v2642 = vmul.f32 %v2508, %v2610
  %v2643 = vmul.f32 %v2510, %v2611
  %v2644 = vmul.f32 %v2512, %v2612
  %v2645 = vmul.f32 %v2514, %v2613
  %v2646 = vmul.f32 %v2516, %v2614
  %v2647 = vmul.f32 %v2518, %v2615
  %v2648 = vmul.f32 %v2520, %v2616
  %v2649 = vpack.c.bf16 %v2618, %v2617
  %v2650 = vpack.c.bf16 %v2620, %v2619
  %v2651 = vpack.c.bf16 %v2622, %v2621
  %v2652 = vpack.c.bf16 %v2624, %v2623
  %v2653 = vpack.c.bf16 %v2626, %v2625
  %v2654 = vpack.c.bf16 %v2628, %v2627
  %v2655 = vpack.c.bf16 %v2630, %v2629
  %v2656 = vpack.c.bf16 %v2632, %v2631
  %v2657 = vpack.c.bf16 %v2634, %v2633
  %v2658 = vpack.c.bf16 %v2636, %v2635
  %v2659 = vpack.c.bf16 %v2638, %v2637
  %v2660 = vpack.c.bf16 %v2640, %v2639
  %v2661 = vpack.c.bf16 %v2642, %v2641
  %v2662 = vpack.c.bf16 %v2644, %v2643
  %v2663 = vpack.c.bf16 %v2646, %v2645
  %v2664 = vpack.c.bf16 %v2648, %v2647
  %2665 = vmatprep.subr.bf16.mxu0 0
  %2666 = vmatpush1.bf16.msra.mxu0 %v2013
  %2667 = vmatprep.subr.bf16.mxu0 0
  %2668 = vmatpush1.bf16.msra.mxu0 %v2012
  %2669 = vmatprep.subr.bf16.mxu0 0
  %2670 = vmatpush1.bf16.msra.mxu0 %v2011
  %2671 = vmatprep.subr.bf16.mxu0 0
  %2672 = vmatpush1.bf16.msra.mxu0 %v2010
  %2673 = vmatprep.subr.bf16.mxu0 0
  %2674 = vmatpush1.bf16.msra.mxu0 %v2009
  %2675 = vmatprep.subr.bf16.mxu0 0
  %2676 = vmatpush1.bf16.msra.mxu0 %v2008
  %2677 = vmatprep.subr.bf16.mxu0 0
  %2678 = vmatpush1.bf16.msra.mxu0 %v2007
  %2679 = vmatprep.subr.bf16.mxu0 0
  %2680 = vmatpush1.bf16.msra.mxu0 %v2006
  %2681 = vmatprep.subr.bf16.mxu0 0
  %2682 = vmatpush2.bf16.msra.mxu0 0
  %2683 = vmatprep.subr.bf16.mxu0 0
  %2684 = vmatpush2.bf16.msra.mxu0 0
  %2685 = vmatprep.subr.bf16.mxu0 0
  %2686 = vmatpush2.bf16.msra.mxu0 0
  %2687 = vmatprep.subr.bf16.mxu0 0
  %2688 = vmatpush2.bf16.msra.mxu0 0
  %2689 = vmatprep.subr.bf16.mxu0 0
  %2690 = vmatpush2.bf16.msra.mxu0 0
  %2691 = vmatprep.subr.bf16.mxu0 0
  %2692 = vmatpush2.bf16.msra.mxu0 0
  %2693 = vmatprep.subr.bf16.mxu0 0
  %2694 = vmatpush2.bf16.msra.mxu0 0
  %2695 = vmatprep.subr.bf16.mxu0 0
  %2696 = vmatpush2.bf16.msra.mxu0 0
  %2697 = vmatprep.mubr.bf16.mxu0 0
  %2698 = vmatmul.mubr.bf16.gmra.mxu0 %v2649
  %v2699 = vpop.f32.mrf.mxu0
  %v2700 = vadd.f32 0.0, %v2699
  %v2701 = vpop.f32.mrf.mxu0
  %v2702 = vpop.f32.mrf.mxu0
  %v2703 = vadd.f32 0.0, %v2702
  %v2704 = vpop.f32.mrf.mxu0
  %2705 = vmatprep.mubr.bf16.mxu0 0
  %2706 = vmatmul.mubr.bf16.gmra.mxu0 %v2650
  %v2707 = vpop.f32.mrf.mxu0
  %v2708 = vadd.f32 0.0, %v2707
  %v2709 = vpop.f32.mrf.mxu0
  %v2710 = vpop.f32.mrf.mxu0
  %v2711 = vadd.f32 0.0, %v2710
  %v2712 = vpop.f32.mrf.mxu0
  %2713 = vmatprep.mubr.bf16.mxu0 0
  %2714 = vmatmul.mubr.bf16.gmra.mxu0 %v2651
  %v2715 = vpop.f32.mrf.mxu0
  %v2716 = vadd.f32 0.0, %v2715
  %v2717 = vpop.f32.mrf.mxu0
  %v2718 = vpop.f32.mrf.mxu0
  %v2719 = vadd.f32 0.0, %v2718
  %v2720 = vpop.f32.mrf.mxu0
  %2721 = vmatprep.mubr.bf16.mxu0 0
  %2722 = vmatmul.mubr.bf16.gmra.mxu0 %v2652
  %v2723 = vpop.f32.mrf.mxu0
  %v2724 = vadd.f32 0.0, %v2723
  %v2725 = vpop.f32.mrf.mxu0
  %v2726 = vpop.f32.mrf.mxu0
  %v2727 = vadd.f32 0.0, %v2726
  %v2728 = vpop.f32.mrf.mxu0
  %2729 = vmatprep.mubr.bf16.mxu0 0
  %2730 = vmatmul.mubr.bf16.gmra.mxu0 %v2653
  %v2731 = vpop.f32.mrf.mxu0
  %v2732 = vadd.f32 0.0, %v2731
  %v2733 = vpop.f32.mrf.mxu0
  %v2734 = vpop.f32.mrf.mxu0
  %v2735 = vadd.f32 0.0, %v2734
  %v2736 = vpop.f32.mrf.mxu0
  %2737 = vmatprep.mubr.bf16.mxu0 0
  %2738 = vmatmul.mubr.bf16.gmra.mxu0 %v2654
  %v2739 = vpop.f32.mrf.mxu0
  %v2740 = vadd.f32 0.0, %v2739
  %v2741 = vpop.f32.mrf.mxu0
  %v2742 = vpop.f32.mrf.mxu0
  %v2743 = vadd.f32 0.0, %v2742
  %v2744 = vpop.f32.mrf.mxu0
  %2745 = vmatprep.mubr.bf16.mxu0 0
  %2746 = vmatmul.mubr.bf16.gmra.mxu0 %v2655
  %v2747 = vpop.f32.mrf.mxu0
  %v2748 = vadd.f32 0.0, %v2747
  %v2749 = vpop.f32.mrf.mxu0
  %v2750 = vpop.f32.mrf.mxu0
  %v2751 = vadd.f32 0.0, %v2750
  %v2752 = vpop.f32.mrf.mxu0
  %2753 = vmatprep.mubr.bf16.mxu0 0
  %2754 = vmatmul.mubr.bf16.gmra.mxu0 %v2656
  %v2755 = vpop.f32.mrf.mxu0
  %v2756 = vadd.f32 0.0, %v2755
  %v2757 = vpop.f32.mrf.mxu0
  %v2758 = vpop.f32.mrf.mxu0
  %v2759 = vadd.f32 0.0, %v2758
  %v2760 = vpop.f32.mrf.mxu0
  %2761 = vdwg.mxu0
  %2762 = vmatprep.subr.bf16.mxu0 0
  %2763 = vmatpush1.bf16.msra.mxu0 %v2021
  %2764 = vmatprep.subr.bf16.mxu0 0
  %2765 = vmatpush1.bf16.msra.mxu0 %v2020
  %2766 = vmatprep.subr.bf16.mxu0 0
  %2767 = vmatpush1.bf16.msra.mxu0 %v2019
  %2768 = vmatprep.subr.bf16.mxu0 0
  %2769 = vmatpush1.bf16.msra.mxu0 %v2018
  %2770 = vmatprep.subr.bf16.mxu0 0
  %2771 = vmatpush1.bf16.msra.mxu0 %v2017
  %2772 = vmatprep.subr.bf16.mxu0 0
  %2773 = vmatpush1.bf16.msra.mxu0 %v2016
  %2774 = vmatprep.subr.bf16.mxu0 0
  %2775 = vmatpush1.bf16.msra.mxu0 %v2015
  %2776 = vmatprep.subr.bf16.mxu0 0
  %2777 = vmatpush1.bf16.msra.mxu0 %v2014
  %2778 = vmatprep.subr.bf16.mxu0 0
  %2779 = vmatpush2.bf16.msra.mxu0 0
  %2780 = vmatprep.subr.bf16.mxu0 0
  %2781 = vmatpush2.bf16.msra.mxu0 0
  %2782 = vmatprep.subr.bf16.mxu0 0
  %2783 = vmatpush2.bf16.msra.mxu0 0
  %2784 = vmatprep.subr.bf16.mxu0 0
  %2785 = vmatpush2.bf16.msra.mxu0 0
  %2786 = vmatprep.subr.bf16.mxu0 0
  %2787 = vmatpush2.bf16.msra.mxu0 0
  %2788 = vmatprep.subr.bf16.mxu0 0
  %2789 = vmatpush2.bf16.msra.mxu0 0
  %2790 = vmatprep.subr.bf16.mxu0 0
  %2791 = vmatpush2.bf16.msra.mxu0 0
  %2792 = vmatprep.subr.bf16.mxu0 0
  %2793 = vmatpush2.bf16.msra.mxu0 0
  %2794 = vmatprep.mubr.bf16.mxu0 0
  %2795 = vmatmul.mubr.bf16.gmra.mxu0 %v2657
  %v2796 = vpop.f32.mrf.mxu0
  %v2797 = vadd.f32 0.0, %v2796
  %v2798 = vpop.f32.mrf.mxu0
  %v2799 = vpop.f32.mrf.mxu0
  %v2800 = vadd.f32 0.0, %v2799
  %v2801 = vpop.f32.mrf.mxu0
  %2802 = vmatprep.mubr.bf16.mxu0 0
  %2803 = vmatmul.mubr.bf16.gmra.mxu0 %v2658
  %v2804 = vpop.f32.mrf.mxu0
  %v2805 = vadd.f32 0.0, %v2804
  %v2806 = vpop.f32.mrf.mxu0
  %v2807 = vpop.f32.mrf.mxu0
  %v2808 = vadd.f32 0.0, %v2807
  %v2809 = vpop.f32.mrf.mxu0
  %2810 = vmatprep.mubr.bf16.mxu0 0
  %2811 = vmatmul.mubr.bf16.gmra.mxu0 %v2659
  %v2812 = vpop.f32.mrf.mxu0
  %v2813 = vadd.f32 0.0, %v2812
  %v2814 = vpop.f32.mrf.mxu0
  %v2815 = vpop.f32.mrf.mxu0
  %v2816 = vadd.f32 0.0, %v2815
  %v2817 = vpop.f32.mrf.mxu0
  %2818 = vmatprep.mubr.bf16.mxu0 0
  %2819 = vmatmul.mubr.bf16.gmra.mxu0 %v2660
  %v2820 = vpop.f32.mrf.mxu0
  %v2821 = vadd.f32 0.0, %v2820
  %v2822 = vpop.f32.mrf.mxu0
  %v2823 = vpop.f32.mrf.mxu0
  %v2824 = vadd.f32 0.0, %v2823
  %v2825 = vpop.f32.mrf.mxu0
  %2826 = vmatprep.mubr.bf16.mxu0 0
  %2827 = vmatmul.mubr.bf16.gmra.mxu0 %v2661
  %v2828 = vpop.f32.mrf.mxu0
  %v2829 = vadd.f32 0.0, %v2828
  %v2830 = vpop.f32.mrf.mxu0
  %v2831 = vpop.f32.mrf.mxu0
  %v2832 = vadd.f32 0.0, %v2831
  %v2833 = vpop.f32.mrf.mxu0
  %2834 = vmatprep.mubr.bf16.mxu0 0
  %2835 = vmatmul.mubr.bf16.gmra.mxu0 %v2662
  %v2836 = vpop.f32.mrf.mxu0
  %v2837 = vadd.f32 0.0, %v2836
  %v2838 = vpop.f32.mrf.mxu0
  %v2839 = vpop.f32.mrf.mxu0
  %v2840 = vadd.f32 0.0, %v2839
  %v2841 = vpop.f32.mrf.mxu0
  %2842 = vmatprep.mubr.bf16.mxu0 0
  %2843 = vmatmul.mubr.bf16.gmra.mxu0 %v2663
  %v2844 = vpop.f32.mrf.mxu0
  %v2845 = vadd.f32 0.0, %v2844
  %v2846 = vpop.f32.mrf.mxu0
  %v2847 = vpop.f32.mrf.mxu0
  %v2848 = vadd.f32 0.0, %v2847
  %v2849 = vpop.f32.mrf.mxu0
  %2850 = vmatprep.mubr.bf16.mxu0 0
  %2851 = vmatmul.mubr.bf16.gmra.mxu0 %v2664
  %v2852 = vpop.f32.mrf.mxu0
  %v2853 = vadd.f32 0.0, %v2852
  %v2854 = vpop.f32.mrf.mxu0
  %v2855 = vpop.f32.mrf.mxu0
  %v2856 = vadd.f32 0.0, %v2855
  %v2857 = vpop.f32.mrf.mxu0
  %2858 = vdwg.mxu0
  %v2859 = vpack.c.bf16 %v2703, %v2700
  %v2860 = vpack.c.bf16 %v2711, %v2708
  %v2861 = vpack.c.bf16 %v2719, %v2716
  %v2862 = vpack.c.bf16 %v2727, %v2724
  %v2863 = vpack.c.bf16 %v2735, %v2732
  %v2864 = vpack.c.bf16 %v2743, %v2740
  %v2865 = vpack.c.bf16 %v2751, %v2748
  %v2866 = vpack.c.bf16 %v2759, %v2756
  %v2867 = vpack.c.bf16 %v2800, %v2797
  %v2868 = vpack.c.bf16 %v2808, %v2805
  %v2869 = vpack.c.bf16 %v2816, %v2813
  %v2870 = vpack.c.bf16 %v2824, %v2821
  %v2871 = vpack.c.bf16 %v2832, %v2829
  %v2872 = vpack.c.bf16 %v2840, %v2837
  %v2873 = vpack.c.bf16 %v2848, %v2845
  %v2874 = vpack.c.bf16 %v2856, %v2853
  %v2875 = vld [vmem:[%s6] sm:$0xff]
  %v2876 = vld [vmem:[%s6 + $0x8] sm:$0xff]
  %v2877 = vld [vmem:[%s6 + $0x10] sm:$0xff]
  %v2878 = vld [vmem:[%s6 + $0x18] sm:$0xff]
  %v2883 = vunpack.c.l.b16 %v2875
  %v2884 = vunpack.c.h.b16 %v2875
  %v2885 = vunpack.c.l.b16 %v2876
  %v2886 = vunpack.c.h.b16 %v2876
  %v2887 = vunpack.c.l.b16 %v2877
  %v2888 = vunpack.c.h.b16 %v2877
  %v2889 = vunpack.c.l.b16 %v2878
  %v2890 = vunpack.c.h.b16 %v2878
  %v2891 = vpack.c.b16 %v2885, %v2883
  %v2892 = vpack.c.b16 %v2886, %v2884
  %v2893 = vpack.c.b16 %v2889, %v2887
  %v2894 = vpack.c.b16 %v2890, %v2888
  %v2900 = vsel %vm2046, %v2859, 0
  %v2903 = vsel %vm2046, %v2860, 0
  %v2906 = vsel %vm2046, %v2861, 0
  %v2909 = vsel %vm2046, %v2862, 0
  %v2912 = vsel %vm2046, %v2863, 0
  %v2915 = vsel %vm2046, %v2864, 0
  %v2918 = vsel %vm2046, %v2865, 0
  %v2921 = vsel %vm2046, %v2866, 0
  %v2924 = vsel %vm2046, %v2867, 0
  %v2927 = vsel %vm2046, %v2868, 0
  %v2930 = vsel %vm2046, %v2869, 0
  %v2933 = vsel %vm2046, %v2870, 0
  %v2936 = vsel %vm2046, %v2871, 0
  %v2939 = vsel %vm2046, %v2872, 0
  %v2942 = vsel %vm2046, %v2873, 0
  %v2945 = vsel %vm2046, %v2874, 0
  %2947 = vmatprep.subr.bf16.mxu0 0
  %2948 = vmatpush1.bf16.msra.mxu0 0
  %2949 = vmatprep.subr.bf16.mxu0 0
  %2950 = vmatpush1.bf16.msra.mxu0 0
  %2951 = vmatprep.subr.bf16.mxu0 0
  %2952 = vmatpush1.bf16.msra.mxu0 0
  %2953 = vmatprep.subr.bf16.mxu0 0
  %2954 = vmatpush1.bf16.msra.mxu0 0
  %2955 = vmatprep.subr.bf16.mxu0 0
  %2956 = vmatpush1.bf16.msra.mxu0 0
  %2957 = vmatprep.subr.bf16.mxu0 0
  %2958 = vmatpush1.bf16.msra.mxu0 0
  %2959 = vmatprep.subr.bf16.mxu0 %v2894
  %2960 = vmatpush1.bf16.msra.mxu0 %v2893
  %2961 = vmatprep.subr.bf16.mxu0 %v2892
  %2962 = vmatpush1.bf16.msra.mxu0 %v2891
  %2963 = vmatprep.subr.bf16.mxu0 0
  %2964 = vmatpush2.bf16.msra.mxu0 0
  %2965 = vmatprep.subr.bf16.mxu0 0
  %2966 = vmatpush2.bf16.msra.mxu0 0
  %2967 = vmatprep.subr.bf16.mxu0 0
  %2968 = vmatpush2.bf16.msra.mxu0 0
  %2969 = vmatprep.subr.bf16.mxu0 0
  %2970 = vmatpush2.bf16.msra.mxu0 0
  %2971 = vmatprep.subr.bf16.mxu0 0
  %2972 = vmatpush2.bf16.msra.mxu0 0
  %2973 = vmatprep.subr.bf16.mxu0 0
  %2974 = vmatpush2.bf16.msra.mxu0 0
  %2975 = vmatprep.subr.bf16.mxu0 0
  %2976 = vmatpush2.bf16.msra.mxu0 0
  %2977 = vmatprep.subr.bf16.mxu0 0
  %2978 = vmatpush2.bf16.msra.mxu0 0
  %2979 = vmatprep.mubr.bf16.mxu0 0
  %2980 = vmatmul.mubr.bf16.gmra.mxu0 %v2900
  %v2981 = vpop.f32.mrf.mxu0
  %v2982 = vadd.f32 0.0, %v2981
  %v2983 = vpop.f32.mrf.mxu0
  %v2984 = vadd.f32 0.0, %v2983
  %v2985 = vpop.f32.mrf.mxu0
  %v2986 = vadd.f32 0.0, %v2985
  %v2987 = vpop.f32.mrf.mxu0
  %v2988 = vadd.f32 0.0, %v2987
  %2989 = vmatprep.mubr.bf16.mxu0 0
  %2990 = vmatmul.mubr.bf16.gmra.mxu0 %v2903
  %v2991 = vpop.f32.mrf.mxu0
  %v2992 = vadd.f32 0.0, %v2991
  %v2993 = vpop.f32.mrf.mxu0
  %v2994 = vadd.f32 0.0, %v2993
  %v2995 = vpop.f32.mrf.mxu0
  %v2996 = vadd.f32 0.0, %v2995
  %v2997 = vpop.f32.mrf.mxu0
  %v2998 = vadd.f32 0.0, %v2997
  %2999 = vmatprep.mubr.bf16.mxu0 0
  %3000 = vmatmul.mubr.bf16.gmra.mxu0 %v2906
  %v3001 = vpop.f32.mrf.mxu0
  %v3002 = vadd.f32 0.0, %v3001
  %v3003 = vpop.f32.mrf.mxu0
  %v3004 = vadd.f32 0.0, %v3003
  %v3005 = vpop.f32.mrf.mxu0
  %v3006 = vadd.f32 0.0, %v3005
  %v3007 = vpop.f32.mrf.mxu0
  %v3008 = vadd.f32 0.0, %v3007
  %3009 = vmatprep.mubr.bf16.mxu0 0
  %3010 = vmatmul.mubr.bf16.gmra.mxu0 %v2909
  %v3011 = vpop.f32.mrf.mxu0
  %v3012 = vadd.f32 0.0, %v3011
  %v3013 = vpop.f32.mrf.mxu0
  %v3014 = vadd.f32 0.0, %v3013
  %v3015 = vpop.f32.mrf.mxu0
  %v3016 = vadd.f32 0.0, %v3015
  %v3017 = vpop.f32.mrf.mxu0
  %v3018 = vadd.f32 0.0, %v3017
  %3019 = vmatprep.mubr.bf16.mxu0 0
  %3020 = vmatmul.mubr.bf16.gmra.mxu0 %v2912
  %v3021 = vpop.f32.mrf.mxu0
  %v3022 = vadd.f32 0.0, %v3021
  %v3023 = vpop.f32.mrf.mxu0
  %v3024 = vadd.f32 0.0, %v3023
  %v3025 = vpop.f32.mrf.mxu0
  %v3026 = vadd.f32 0.0, %v3025
  %v3027 = vpop.f32.mrf.mxu0
  %v3028 = vadd.f32 0.0, %v3027
  %3029 = vmatprep.mubr.bf16.mxu0 0
  %3030 = vmatmul.mubr.bf16.gmra.mxu0 %v2915
  %v3031 = vpop.f32.mrf.mxu0
  %v3032 = vadd.f32 0.0, %v3031
  %v3033 = vpop.f32.mrf.mxu0
  %v3034 = vadd.f32 0.0, %v3033
  %v3035 = vpop.f32.mrf.mxu0
  %v3036 = vadd.f32 0.0, %v3035
  %v3037 = vpop.f32.mrf.mxu0
  %v3038 = vadd.f32 0.0, %v3037
  %3039 = vmatprep.mubr.bf16.mxu0 0
  %3040 = vmatmul.mubr.bf16.gmra.mxu0 %v2918
  %v3041 = vpop.f32.mrf.mxu0
  %v3042 = vadd.f32 0.0, %v3041
  %v3043 = vpop.f32.mrf.mxu0
  %v3044 = vadd.f32 0.0, %v3043
  %v3045 = vpop.f32.mrf.mxu0
  %v3046 = vadd.f32 0.0, %v3045
  %v3047 = vpop.f32.mrf.mxu0
  %v3048 = vadd.f32 0.0, %v3047
  %3049 = vmatprep.mubr.bf16.mxu0 0
  %3050 = vmatmul.mubr.bf16.gmra.mxu0 %v2921
  %v3051 = vpop.f32.mrf.mxu0
  %v3052 = vadd.f32 0.0, %v3051
  %v3053 = vpop.f32.mrf.mxu0
  %v3054 = vadd.f32 0.0, %v3053
  %v3055 = vpop.f32.mrf.mxu0
  %v3056 = vadd.f32 0.0, %v3055
  %v3057 = vpop.f32.mrf.mxu0
  %v3058 = vadd.f32 0.0, %v3057
  %3059 = vmatprep.mubr.bf16.mxu0 0
  %3060 = vmatmul.mubr.bf16.gmra.mxu0 %v2924
  %v3061 = vpop.f32.mrf.mxu0
  %v3062 = vadd.f32 0.0, %v3061
  %v3063 = vpop.f32.mrf.mxu0
  %v3064 = vadd.f32 0.0, %v3063
  %v3065 = vpop.f32.mrf.mxu0
  %v3066 = vadd.f32 0.0, %v3065
  %v3067 = vpop.f32.mrf.mxu0
  %v3068 = vadd.f32 0.0, %v3067
  %3069 = vmatprep.mubr.bf16.mxu0 0
  %3070 = vmatmul.mubr.bf16.gmra.mxu0 %v2927
  %v3071 = vpop.f32.mrf.mxu0
  %v3072 = vadd.f32 0.0, %v3071
  %v3073 = vpop.f32.mrf.mxu0
  %v3074 = vadd.f32 0.0, %v3073
  %v3075 = vpop.f32.mrf.mxu0
  %v3076 = vadd.f32 0.0, %v3075
  %v3077 = vpop.f32.mrf.mxu0
  %v3078 = vadd.f32 0.0, %v3077
  %3079 = vmatprep.mubr.bf16.mxu0 0
  %3080 = vmatmul.mubr.bf16.gmra.mxu0 %v2930
  %v3081 = vpop.f32.mrf.mxu0
  %v3082 = vadd.f32 0.0, %v3081
  %v3083 = vpop.f32.mrf.mxu0
  %v3084 = vadd.f32 0.0, %v3083
  %v3085 = vpop.f32.mrf.mxu0
  %v3086 = vadd.f32 0.0, %v3085
  %v3087 = vpop.f32.mrf.mxu0
  %v3088 = vadd.f32 0.0, %v3087
  %3089 = vmatprep.mubr.bf16.mxu0 0
  %3090 = vmatmul.mubr.bf16.gmra.mxu0 %v2933
  %v3091 = vpop.f32.mrf.mxu0
  %v3092 = vadd.f32 0.0, %v3091
  %v3093 = vpop.f32.mrf.mxu0
  %v3094 = vadd.f32 0.0, %v3093
  %v3095 = vpop.f32.mrf.mxu0
  %v3096 = vadd.f32 0.0, %v3095
  %v3097 = vpop.f32.mrf.mxu0
  %v3098 = vadd.f32 0.0, %v3097
  %3099 = vmatprep.mubr.bf16.mxu0 0
  %3100 = vmatmul.mubr.bf16.gmra.mxu0 %v2936
  %v3101 = vpop.f32.mrf.mxu0
  %v3102 = vadd.f32 0.0, %v3101
  %v3103 = vpop.f32.mrf.mxu0
  %v3104 = vadd.f32 0.0, %v3103
  %v3105 = vpop.f32.mrf.mxu0
  %v3106 = vadd.f32 0.0, %v3105
  %v3107 = vpop.f32.mrf.mxu0
  %v3108 = vadd.f32 0.0, %v3107
  %3109 = vmatprep.mubr.bf16.mxu0 0
  %3110 = vmatmul.mubr.bf16.gmra.mxu0 %v2939
  %v3111 = vpop.f32.mrf.mxu0
  %v3112 = vadd.f32 0.0, %v3111
  %v3113 = vpop.f32.mrf.mxu0
  %v3114 = vadd.f32 0.0, %v3113
  %v3115 = vpop.f32.mrf.mxu0
  %v3116 = vadd.f32 0.0, %v3115
  %v3117 = vpop.f32.mrf.mxu0
  %v3118 = vadd.f32 0.0, %v3117
  %3119 = vmatprep.mubr.bf16.mxu0 0
  %3120 = vmatmul.mubr.bf16.gmra.mxu0 %v2942
  %v3121 = vpop.f32.mrf.mxu0
  %v3122 = vadd.f32 0.0, %v3121
  %v3123 = vpop.f32.mrf.mxu0
  %v3124 = vadd.f32 0.0, %v3123
  %v3125 = vpop.f32.mrf.mxu0
  %v3126 = vadd.f32 0.0, %v3125
  %v3127 = vpop.f32.mrf.mxu0
  %v3128 = vadd.f32 0.0, %v3127
  %3129 = vmatprep.mubr.bf16.mxu0 0
  %3130 = vmatmul.mubr.bf16.gmra.mxu0 %v2945
  %v3131 = vpop.f32.mrf.mxu0
  %v3132 = vadd.f32 0.0, %v3131
  %v3133 = vpop.f32.mrf.mxu0
  %v3134 = vadd.f32 0.0, %v3133
  %v3135 = vpop.f32.mrf.mxu0
  %v3136 = vadd.f32 0.0, %v3135
  %v3137 = vpop.f32.mrf.mxu0
  %v3138 = vadd.f32 0.0, %v3137
  %3139 = vdwg.mxu0
  %v3140 = vadd.f32 %v1967, %v2982
  %v3141 = vadd.f32 %v1971, %v2984
  %v3142 = vadd.f32 %v1967, %v2986
  %v3143 = vadd.f32 %v1971, %v2988
  %v3144 = vadd.f32 %v1967, %v2992
  %v3145 = vadd.f32 %v1971, %v2994
  %v3146 = vadd.f32 %v1967, %v2996
  %v3147 = vadd.f32 %v1971, %v2998
  %v3148 = vadd.f32 %v1967, %v3002
  %v3149 = vadd.f32 %v1971, %v3004
  %v3150 = vadd.f32 %v1967, %v3006
  %v3151 = vadd.f32 %v1971, %v3008
  %v3152 = vadd.f32 %v1967, %v3012
  %v3153 = vadd.f32 %v1971, %v3014
  %v3154 = vadd.f32 %v1967, %v3016
  %v3155 = vadd.f32 %v1971, %v3018
  %v3156 = vadd.f32 %v1967, %v3022
  %v3157 = vadd.f32 %v1971, %v3024
  %v3158 = vadd.f32 %v1967, %v3026
  %v3159 = vadd.f32 %v1971, %v3028
  %v3160 = vadd.f32 %v1967, %v3032
  %v3161 = vadd.f32 %v1971, %v3034
  %v3162 = vadd.f32 %v1967, %v3036
  %v3163 = vadd.f32 %v1971, %v3038
  %v3164 = vadd.f32 %v1967, %v3042
  %v3165 = vadd.f32 %v1971, %v3044
  %v3166 = vadd.f32 %v1967, %v3046
  %v3167 = vadd.f32 %v1971, %v3048
  %v3168 = vadd.f32 %v1967, %v3052
  %v3169 = vadd.f32 %v1971, %v3054
  %v3170 = vadd.f32 %v1967, %v3056
  %v3171 = vadd.f32 %v1971, %v3058
  %v3172 = vadd.f32 %v1967, %v3062
  %v3173 = vadd.f32 %v1971, %v3064
  %v3174 = vadd.f32 %v1967, %v3066
  %v3175 = vadd.f32 %v1971, %v3068
  %v3176 = vadd.f32 %v1967, %v3072
  %v3177 = vadd.f32 %v1971, %v3074
  %v3178 = vadd.f32 %v1967, %v3076
  %v3179 = vadd.f32 %v1971, %v3078
  %v3180 = vadd.f32 %v1967, %v3082
  %v3181 = vadd.f32 %v1971, %v3084
  %v3182 = vadd.f32 %v1967, %v3086
  %v3183 = vadd.f32 %v1971, %v3088
  %v3184 = vadd.f32 %v1967, %v3092
  %v3185 = vadd.f32 %v1971, %v3094
  %v3186 = vadd.f32 %v1967, %v3096
  %v3187 = vadd.f32 %v1971, %v3098
  %v3188 = vadd.f32 %v1967, %v3102
  %v3189 = vadd.f32 %v1971, %v3104
  %v3190 = vadd.f32 %v1967, %v3106
  %v3191 = vadd.f32 %v1971, %v3108
  %v3192 = vadd.f32 %v1967, %v3112
  %v3193 = vadd.f32 %v1971, %v3114
  %v3194 = vadd.f32 %v1967, %v3116
  %v3195 = vadd.f32 %v1971, %v3118
  %v3196 = vadd.f32 %v1967, %v3122
  %v3197 = vadd.f32 %v1971, %v3124
  %v3198 = vadd.f32 %v1967, %v3126
  %v3199 = vadd.f32 %v1971, %v3128
  %v3200 = vadd.f32 %v1967, %v3132
  %v3201 = vadd.f32 %v1971, %v3134
  %v3202 = vadd.f32 %v1967, %v3136
  %v3203 = vadd.f32 %v1971, %v3138
  %3212 = vrot.lane.b32.xlu0 %v1974, 96
  %v3213 = vpop.permute.xlu0 %3212
  %3214 = vrot.lane.b32.xlu0 %v1975, 96
  %v3215 = vpop.permute.xlu0 %3214
  %3216 = vrot.lane.b32.xlu0 %v1976, 96
  %v3217 = vpop.permute.xlu0 %3216
  %3218 = vrot.lane.b32.xlu0 %v1977, 96
  %v3219 = vpop.permute.xlu0 %3218
  %3220 = vrot.lane.b32.xlu0 %v1978, 96
  %v3221 = vpop.permute.xlu0 %3220
  %3222 = vrot.lane.b32.xlu0 %v1979, 96
  %v3223 = vpop.permute.xlu0 %3222
  %3224 = vrot.lane.b32.xlu0 %v1980, 96
  %v3225 = vpop.permute.xlu0 %3224
  %3226 = vrot.lane.b32.xlu0 %v1981, 96
  %v3227 = vpop.permute.xlu0 %3226
  %3228 = vrot.lane.b32.xlu0 %v1990, 32
  %v3229 = vpop.permute.xlu0 %3228
  %3230 = vrot.lane.b32.xlu0 %v1991, 32
  %v3231 = vpop.permute.xlu0 %3230
  %3232 = vrot.lane.b32.xlu0 %v1992, 32
  %v3233 = vpop.permute.xlu0 %3232
  %3234 = vrot.lane.b32.xlu0 %v1993, 32
  %v3235 = vpop.permute.xlu0 %3234
  %3236 = vrot.lane.b32.xlu0 %v1994, 32
  %v3237 = vpop.permute.xlu0 %3236
  %3238 = vrot.lane.b32.xlu0 %v1995, 32
  %v3239 = vpop.permute.xlu0 %3238
  %3240 = vrot.lane.b32.xlu0 %v1996, 32
  %v3241 = vpop.permute.xlu0 %3240
  %3242 = vrot.lane.b32.xlu0 %v1997, 32
  %v3243 = vpop.permute.xlu0 %3242
  %v3245 = vsel %vm2046, %v3213, 0
  %v3248 = vsel %vm2046, %v3215, 0
  %v3251 = vsel %vm2046, %v3217, 0
  %v3254 = vsel %vm2046, %v3219, 0
  %v3257 = vsel %vm2046, %v3221, 0
  %v3260 = vsel %vm2046, %v3223, 0
  %v3263 = vsel %vm2046, %v3225, 0
  %v3266 = vsel %vm2046, %v3227, 0
  %v3269 = vsel %vm2046, %v3229, 0
  %v3272 = vsel %vm2046, %v3231, 0
  %v3275 = vsel %vm2046, %v3233, 0
  %v3278 = vsel %vm2046, %v3235, 0
  %v3281 = vsel %vm2046, %v3237, 0
  %v3284 = vsel %vm2046, %v3239, 0
  %v3287 = vsel %vm2046, %v3241, 0
  %v3290 = vsel %vm2046, %v3243, 0
  %3292 = vmatprep.subr.bf16.mxu0 0
  %3293 = vmatpush1.bf16.xpose.msra.mxu0 %v3290
  %3294 = vmatprep.subr.bf16.mxu0 0
  %3295 = vmatpush1.bf16.xpose.msra.mxu0 %v3287
  %3296 = vmatprep.subr.bf16.mxu0 0
  %3297 = vmatpush1.bf16.xpose.msra.mxu0 %v3284
  %3298 = vmatprep.subr.bf16.mxu0 0
  %3299 = vmatpush1.bf16.xpose.msra.mxu0 %v3281
  %3300 = vmatprep.subr.bf16.mxu0 0
  %3301 = vmatpush1.bf16.xpose.msra.mxu0 %v3278
  %3302 = vmatprep.subr.bf16.mxu0 0
  %3303 = vmatpush1.bf16.xpose.msra.mxu0 %v3275
  %3304 = vmatprep.subr.bf16.mxu0 0
  %3305 = vmatpush1.bf16.xpose.msra.mxu0 %v3272
  %3306 = vmatprep.subr.bf16.mxu0 0
  %3307 = vmatpush1.bf16.xpose.msra.mxu0 %v3269
  %3308 = vmatprep.subr.bf16.mxu0 0
  %3309 = vmatpush2.bf16.xpose.msra.mxu0 0
  %3310 = vmatprep.subr.bf16.mxu0 0
  %3311 = vmatpush2.bf16.xpose.msra.mxu0 0
  %3312 = vmatprep.subr.bf16.mxu0 0
  %3313 = vmatpush2.bf16.xpose.msra.mxu0 0
  %3314 = vmatprep.subr.bf16.mxu0 0
  %3315 = vmatpush2.bf16.xpose.msra.mxu0 0
  %3316 = vmatprep.subr.bf16.mxu0 0
  %3317 = vmatpush2.bf16.xpose.msra.mxu0 0
  %3318 = vmatprep.subr.bf16.mxu0 0
  %3319 = vmatpush2.bf16.xpose.msra.mxu0 0
  %3320 = vmatprep.subr.bf16.mxu0 0
  %3321 = vmatpush2.bf16.xpose.msra.mxu0 0
  %3322 = vmatprep.subr.bf16.mxu0 0
  %3323 = vmatpush2.bf16.xpose.msra.mxu0 0
  %3324 = vmatprep.mubr.bf16.mxu0 0
  %3325 = vmatmul.mubr.bf16.gmra.mxu0 %v3245
  %v3326 = vpop.f32.mrf.mxu0
  %v3327 = vadd.f32 %v1946, %v3326
  %v3328 = vpop.f32.mrf.mxu0
  %v3329 = vpop.f32.mrf.mxu0
  %v3330 = vadd.f32 %v1947, %v3329
  %v3331 = vpop.f32.mrf.mxu0
  %3332 = vmatprep.mubr.bf16.mxu0 0
  %3333 = vmatmul.mubr.bf16.gmra.mxu0 %v3248
  %v3334 = vpop.f32.mrf.mxu0
  %v3335 = vadd.f32 %v1948, %v3334
  %v3336 = vpop.f32.mrf.mxu0
  %v3337 = vpop.f32.mrf.mxu0
  %v3338 = vadd.f32 %v1949, %v3337
  %v3339 = vpop.f32.mrf.mxu0
  %3340 = vmatprep.mubr.bf16.mxu0 0
  %3341 = vmatmul.mubr.bf16.gmra.mxu0 %v3251
  %v3342 = vpop.f32.mrf.mxu0
  %v3343 = vadd.f32 %v1950, %v3342
  %v3344 = vpop.f32.mrf.mxu0
  %v3345 = vpop.f32.mrf.mxu0
  %v3346 = vadd.f32 %v1951, %v3345
  %v3347 = vpop.f32.mrf.mxu0
  %3348 = vmatprep.mubr.bf16.mxu0 0
  %3349 = vmatmul.mubr.bf16.gmra.mxu0 %v3254
  %v3350 = vpop.f32.mrf.mxu0
  %v3351 = vadd.f32 %v1952, %v3350
  %v3352 = vpop.f32.mrf.mxu0
  %v3353 = vpop.f32.mrf.mxu0
  %v3354 = vadd.f32 %v1953, %v3353
  %v3355 = vpop.f32.mrf.mxu0
  %3356 = vmatprep.mubr.bf16.mxu0 0
  %3357 = vmatmul.mubr.bf16.gmra.mxu0 %v3257
  %v3358 = vpop.f32.mrf.mxu0
  %v3359 = vadd.f32 %v1954, %v3358
  %v3360 = vpop.f32.mrf.mxu0
  %v3361 = vpop.f32.mrf.mxu0
  %v3362 = vadd.f32 %v1955, %v3361
  %v3363 = vpop.f32.mrf.mxu0
  %3364 = vmatprep.mubr.bf16.mxu0 0
  %3365 = vmatmul.mubr.bf16.gmra.mxu0 %v3260
  %v3366 = vpop.f32.mrf.mxu0
  %v3367 = vadd.f32 %v1956, %v3366
  %v3368 = vpop.f32.mrf.mxu0
  %v3369 = vpop.f32.mrf.mxu0
  %v3370 = vadd.f32 %v1957, %v3369
  %v3371 = vpop.f32.mrf.mxu0
  %3372 = vmatprep.mubr.bf16.mxu0 0
  %3373 = vmatmul.mubr.bf16.gmra.mxu0 %v3263
  %v3374 = vpop.f32.mrf.mxu0
  %v3375 = vadd.f32 %v1958, %v3374
  %v3376 = vpop.f32.mrf.mxu0
  %v3377 = vpop.f32.mrf.mxu0
  %v3378 = vadd.f32 %v1959, %v3377
  %v3379 = vpop.f32.mrf.mxu0
  %3380 = vmatprep.mubr.bf16.mxu0 0
  %3381 = vmatmul.mubr.bf16.gmra.mxu0 %v3266
  %v3382 = vpop.f32.mrf.mxu0
  %v3383 = vadd.f32 %v1960, %v3382
  %v3384 = vpop.f32.mrf.mxu0
  %v3385 = vpop.f32.mrf.mxu0
  %v3386 = vadd.f32 %v1961, %v3385
  %v3387 = vpop.f32.mrf.mxu0
  %3388 = vdwg.mxu0
  %3397 = vrot.lane.b32.xlu0 %v1982, 96
  %v3398 = vpop.permute.xlu0 %3397
  %3399 = vrot.lane.b32.xlu0 %v1983, 96
  %v3400 = vpop.permute.xlu0 %3399
  %3401 = vrot.lane.b32.xlu0 %v1984, 96
  %v3402 = vpop.permute.xlu0 %3401
  %3403 = vrot.lane.b32.xlu0 %v1985, 96
  %v3404 = vpop.permute.xlu0 %3403
  %3405 = vrot.lane.b32.xlu0 %v1986, 96
  %v3406 = vpop.permute.xlu0 %3405
  %3407 = vrot.lane.b32.xlu0 %v1987, 96
  %v3408 = vpop.permute.xlu0 %3407
  %3409 = vrot.lane.b32.xlu0 %v1988, 96
  %v3410 = vpop.permute.xlu0 %3409
  %3411 = vrot.lane.b32.xlu0 %v1989, 96
  %v3412 = vpop.permute.xlu0 %3411
  %3413 = vrot.lane.b32.xlu0 %v1998, 32
  %v3414 = vpop.permute.xlu0 %3413
  %3415 = vrot.lane.b32.xlu0 %v1999, 32
  %v3416 = vpop.permute.xlu0 %3415
  %3417 = vrot.lane.b32.xlu0 %v2000, 32
  %v3418 = vpop.permute.xlu0 %3417
  %3419 = vrot.lane.b32.xlu0 %v2001, 32
  %v3420 = vpop.permute.xlu0 %3419
  %3421 = vrot.lane.b32.xlu0 %v2002, 32
  %v3422 = vpop.permute.xlu0 %3421
  %3423 = vrot.lane.b32.xlu0 %v2003, 32
  %v3424 = vpop.permute.xlu0 %3423
  %3425 = vrot.lane.b32.xlu0 %v2004, 32
  %v3426 = vpop.permute.xlu0 %3425
  %3427 = vrot.lane.b32.xlu0 %v2005, 32
  %v3428 = vpop.permute.xlu0 %3427
  %v3430 = vsel %vm2046, %v3398, 0
  %v3433 = vsel %vm2046, %v3400, 0
  %v3436 = vsel %vm2046, %v3402, 0
  %v3439 = vsel %vm2046, %v3404, 0
  %v3442 = vsel %vm2046, %v3406, 0
  %v3445 = vsel %vm2046, %v3408, 0
  %v3448 = vsel %vm2046, %v3410, 0
  %v3451 = vsel %vm2046, %v3412, 0
  %v3454 = vsel %vm2046, %v3414, 0
  %v3457 = vsel %vm2046, %v3416, 0
  %v3460 = vsel %vm2046, %v3418, 0
  %v3463 = vsel %vm2046, %v3420, 0
  %v3466 = vsel %vm2046, %v3422, 0
  %v3469 = vsel %vm2046, %v3424, 0
  %v3472 = vsel %vm2046, %v3426, 0
  %v3475 = vsel %vm2046, %v3428, 0
  %3477 = vmatprep.subr.bf16.mxu0 0
  %3478 = vmatpush1.bf16.xpose.msra.mxu0 %v3475
  %3479 = vmatprep.subr.bf16.mxu0 0
  %3480 = vmatpush1.bf16.xpose.msra.mxu0 %v3472
  %3481 = vmatprep.subr.bf16.mxu0 0
  %3482 = vmatpush1.bf16.xpose.msra.mxu0 %v3469
  %3483 = vmatprep.subr.bf16.mxu0 0
  %3484 = vmatpush1.bf16.xpose.msra.mxu0 %v3466
  %3485 = vmatprep.subr.bf16.mxu0 0
  %3486 = vmatpush1.bf16.xpose.msra.mxu0 %v3463
  %3487 = vmatprep.subr.bf16.mxu0 0
  %3488 = vmatpush1.bf16.xpose.msra.mxu0 %v3460
  %3489 = vmatprep.subr.bf16.mxu0 0
  %3490 = vmatpush1.bf16.xpose.msra.mxu0 %v3457
  %3491 = vmatprep.subr.bf16.mxu0 0
  %3492 = vmatpush1.bf16.xpose.msra.mxu0 %v3454
  %3493 = vmatprep.subr.bf16.mxu0 0
  %3494 = vmatpush2.bf16.xpose.msra.mxu0 0
  %3495 = vmatprep.subr.bf16.mxu0 0
  %3496 = vmatpush2.bf16.xpose.msra.mxu0 0
  %3497 = vmatprep.subr.bf16.mxu0 0
  %3498 = vmatpush2.bf16.xpose.msra.mxu0 0
  %3499 = vmatprep.subr.bf16.mxu0 0
  %3500 = vmatpush2.bf16.xpose.msra.mxu0 0
  %3501 = vmatprep.subr.bf16.mxu0 0
  %3502 = vmatpush2.bf16.xpose.msra.mxu0 0
  %3503 = vmatprep.subr.bf16.mxu0 0
  %3504 = vmatpush2.bf16.xpose.msra.mxu0 0
  %3505 = vmatprep.subr.bf16.mxu0 0
  %3506 = vmatpush2.bf16.xpose.msra.mxu0 0
  %3507 = vmatprep.subr.bf16.mxu0 0
  %3508 = vmatpush2.bf16.xpose.msra.mxu0 0
  %3509 = vmatprep.mubr.bf16.mxu0 0
  %3510 = vmatmul.mubr.bf16.gmra.mxu0 %v3430
  %v3511 = vpop.f32.mrf.mxu0
  %v3512 = vadd.f32 %v1946, %v3511
  %v3513 = vpop.f32.mrf.mxu0
  %v3514 = vpop.f32.mrf.mxu0
  %v3515 = vadd.f32 %v1947, %v3514
  %v3516 = vpop.f32.mrf.mxu0
  %3517 = vmatprep.mubr.bf16.mxu0 0
  %3518 = vmatmul.mubr.bf16.gmra.mxu0 %v3433
  %v3519 = vpop.f32.mrf.mxu0
  %v3520 = vadd.f32 %v1948, %v3519
  %v3521 = vpop.f32.mrf.mxu0
  %v3522 = vpop.f32.mrf.mxu0
  %v3523 = vadd.f32 %v1949, %v3522
  %v3524 = vpop.f32.mrf.mxu0
  %3525 = vmatprep.mubr.bf16.mxu0 0
  %3526 = vmatmul.mubr.bf16.gmra.mxu0 %v3436
  %v3527 = vpop.f32.mrf.mxu0
  %v3528 = vadd.f32 %v1950, %v3527
  %v3529 = vpop.f32.mrf.mxu0
  %v3530 = vpop.f32.mrf.mxu0
  %v3531 = vadd.f32 %v1951, %v3530
  %v3532 = vpop.f32.mrf.mxu0
  %3533 = vmatprep.mubr.bf16.mxu0 0
  %3534 = vmatmul.mubr.bf16.gmra.mxu0 %v3439
  %v3535 = vpop.f32.mrf.mxu0
  %v3536 = vadd.f32 %v1952, %v3535
  %v3537 = vpop.f32.mrf.mxu0
  %v3538 = vpop.f32.mrf.mxu0
  %v3539 = vadd.f32 %v1953, %v3538
  %v3540 = vpop.f32.mrf.mxu0
  %3541 = vmatprep.mubr.bf16.mxu0 0
  %3542 = vmatmul.mubr.bf16.gmra.mxu0 %v3442
  %v3543 = vpop.f32.mrf.mxu0
  %v3544 = vadd.f32 %v1954, %v3543
  %v3545 = vpop.f32.mrf.mxu0
  %v3546 = vpop.f32.mrf.mxu0
  %v3547 = vadd.f32 %v1955, %v3546
  %v3548 = vpop.f32.mrf.mxu0
  %3549 = vmatprep.mubr.bf16.mxu0 0
  %3550 = vmatmul.mubr.bf16.gmra.mxu0 %v3445
  %v3551 = vpop.f32.mrf.mxu0
  %v3552 = vadd.f32 %v1956, %v3551
  %v3553 = vpop.f32.mrf.mxu0
  %v3554 = vpop.f32.mrf.mxu0
  %v3555 = vadd.f32 %v1957, %v3554
  %v3556 = vpop.f32.mrf.mxu0
  %3557 = vmatprep.mubr.bf16.mxu0 0
  %3558 = vmatmul.mubr.bf16.gmra.mxu0 %v3448
  %v3559 = vpop.f32.mrf.mxu0
  %v3560 = vadd.f32 %v1958, %v3559
  %v3561 = vpop.f32.mrf.mxu0
  %v3562 = vpop.f32.mrf.mxu0
  %v3563 = vadd.f32 %v1959, %v3562
  %v3564 = vpop.f32.mrf.mxu0
  %3565 = vmatprep.mubr.bf16.mxu0 0
  %3566 = vmatmul.mubr.bf16.gmra.mxu0 %v3451
  %v3567 = vpop.f32.mrf.mxu0
  %v3568 = vadd.f32 %v1960, %v3567
  %v3569 = vpop.f32.mrf.mxu0
  %v3570 = vpop.f32.mrf.mxu0
  %v3571 = vadd.f32 %v1961, %v3570
  %v3572 = vpop.f32.mrf.mxu0
  %3573 = vdwg.mxu0
  %3574 = vmax.xlane.f32.xlu0 %v3327
  %v3575 = vpop.xlane.xlu0 %3574
  %3576 = vmax.xlane.f32.xlu0 %v3330
  %v3577 = vpop.xlane.xlu0 %3576
  %3578 = vmax.xlane.f32.xlu0 %v3335
  %v3579 = vpop.xlane.xlu0 %3578
  %3580 = vmax.xlane.f32.xlu0 %v3338
  %v3581 = vpop.xlane.xlu0 %3580
  %3582 = vmax.xlane.f32.xlu0 %v3343
  %v3583 = vpop.xlane.xlu0 %3582
  %3584 = vmax.xlane.f32.xlu0 %v3346
  %v3585 = vpop.xlane.xlu0 %3584
  %3586 = vmax.xlane.f32.xlu0 %v3351
  %v3587 = vpop.xlane.xlu0 %3586
  %3588 = vmax.xlane.f32.xlu0 %v3354
  %v3589 = vpop.xlane.xlu0 %3588
  %3590 = vmax.xlane.f32.xlu0 %v3359
  %v3591 = vpop.xlane.xlu0 %3590
  %3592 = vmax.xlane.f32.xlu0 %v3362
  %v3593 = vpop.xlane.xlu0 %3592
  %3594 = vmax.xlane.f32.xlu0 %v3367
  %v3595 = vpop.xlane.xlu0 %3594
  %3596 = vmax.xlane.f32.xlu0 %v3370
  %v3597 = vpop.xlane.xlu0 %3596
  %3598 = vmax.xlane.f32.xlu0 %v3375
  %v3599 = vpop.xlane.xlu0 %3598
  %3600 = vmax.xlane.f32.xlu0 %v3378
  %v3601 = vpop.xlane.xlu0 %3600
  %3602 = vmax.xlane.f32.xlu0 %v3383
  %v3603 = vpop.xlane.xlu0 %3602
  %3604 = vmax.xlane.f32.xlu0 %v3386
  %v3605 = vpop.xlane.xlu0 %3604
  %3606 = vmax.xlane.f32.xlu0 %v3512
  %v3607 = vpop.xlane.xlu0 %3606
  %3608 = vmax.xlane.f32.xlu0 %v3515
  %v3609 = vpop.xlane.xlu0 %3608
  %3610 = vmax.xlane.f32.xlu0 %v3520
  %v3611 = vpop.xlane.xlu0 %3610
  %3612 = vmax.xlane.f32.xlu0 %v3523
  %v3613 = vpop.xlane.xlu0 %3612
  %3614 = vmax.xlane.f32.xlu0 %v3528
  %v3615 = vpop.xlane.xlu0 %3614
  %3616 = vmax.xlane.f32.xlu0 %v3531
  %v3617 = vpop.xlane.xlu0 %3616
  %3618 = vmax.xlane.f32.xlu0 %v3536
  %v3619 = vpop.xlane.xlu0 %3618
  %3620 = vmax.xlane.f32.xlu0 %v3539
  %v3621 = vpop.xlane.xlu0 %3620
  %3622 = vmax.xlane.f32.xlu0 %v3544
  %v3623 = vpop.xlane.xlu0 %3622
  %3624 = vmax.xlane.f32.xlu0 %v3547
  %v3625 = vpop.xlane.xlu0 %3624
  %3626 = vmax.xlane.f32.xlu0 %v3552
  %v3627 = vpop.xlane.xlu0 %3626
  %3628 = vmax.xlane.f32.xlu0 %v3555
  %v3629 = vpop.xlane.xlu0 %3628
  %3630 = vmax.xlane.f32.xlu0 %v3560
  %v3631 = vpop.xlane.xlu0 %3630
  %3632 = vmax.xlane.f32.xlu0 %v3563
  %v3633 = vpop.xlane.xlu0 %3632
  %3634 = vmax.xlane.f32.xlu0 %v3568
  %v3635 = vpop.xlane.xlu0 %3634
  %3636 = vmax.xlane.f32.xlu0 %v3571
  %v3637 = vpop.xlane.xlu0 %3636
  %v3638 = vsub.f32 %v3327, %v3575
  %v3639 = vsub.f32 %v3330, %v3577
  %v3640 = vsub.f32 %v3335, %v3579
  %v3641 = vsub.f32 %v3338, %v3581
  %v3642 = vsub.f32 %v3343, %v3583
  %v3643 = vsub.f32 %v3346, %v3585
  %v3644 = vsub.f32 %v3351, %v3587
  %v3645 = vsub.f32 %v3354, %v3589
  %v3646 = vsub.f32 %v3359, %v3591
  %v3647 = vsub.f32 %v3362, %v3593
  %v3648 = vsub.f32 %v3367, %v3595
  %v3649 = vsub.f32 %v3370, %v3597
  %v3650 = vsub.f32 %v3375, %v3599
  %v3651 = vsub.f32 %v3378, %v3601
  %v3652 = vsub.f32 %v3383, %v3603
  %v3653 = vsub.f32 %v3386, %v3605
  %v3654 = vsub.f32 %v3512, %v3607
  %v3655 = vsub.f32 %v3515, %v3609
  %v3656 = vsub.f32 %v3520, %v3611
  %v3657 = vsub.f32 %v3523, %v3613
  %v3658 = vsub.f32 %v3528, %v3615
  %v3659 = vsub.f32 %v3531, %v3617
  %v3660 = vsub.f32 %v3536, %v3619
  %v3661 = vsub.f32 %v3539, %v3621
  %v3662 = vsub.f32 %v3544, %v3623
  %v3663 = vsub.f32 %v3547, %v3625
  %v3664 = vsub.f32 %v3552, %v3627
  %v3665 = vsub.f32 %v3555, %v3629
  %v3666 = vsub.f32 %v3560, %v3631
  %v3667 = vsub.f32 %v3563, %v3633
  %v3668 = vsub.f32 %v3568, %v3635
  %v3669 = vsub.f32 %v3571, %v3637
  %v3670 = vmul.f32 %v3638, 1.442695
  %v3671 = vpow.pop %v3670
  %v3672 = vmul.f32 %v3639, 1.442695
  %v3673 = vpow.pop %v3672
  %v3674 = vmul.f32 %v3640, 1.442695
  %v3675 = vpow.pop %v3674
  %v3676 = vmul.f32 %v3641, 1.442695
  %v3677 = vpow.pop %v3676
  %v3678 = vmul.f32 %v3642, 1.442695
  %v3679 = vpow.pop %v3678
  %v3680 = vmul.f32 %v3643, 1.442695
  %v3681 = vpow.pop %v3680
  %v3682 = vmul.f32 %v3644, 1.442695
  %v3683 = vpow.pop %v3682
  %v3684 = vmul.f32 %v3645, 1.442695
  %v3685 = vpow.pop %v3684
  %v3686 = vmul.f32 %v3646, 1.442695
  %v3687 = vpow.pop %v3686
  %v3688 = vmul.f32 %v3647, 1.442695
  %v3689 = vpow.pop %v3688
  %v3690 = vmul.f32 %v3648, 1.442695
  %v3691 = vpow.pop %v3690
  %v3692 = vmul.f32 %v3649, 1.442695
  %v3693 = vpow.pop %v3692
  %v3694 = vmul.f32 %v3650, 1.442695
  %v3695 = vpow.pop %v3694
  %v3696 = vmul.f32 %v3651, 1.442695
  %v3697 = vpow.pop %v3696
  %v3698 = vmul.f32 %v3652, 1.442695
  %v3699 = vpow.pop %v3698
  %v3700 = vmul.f32 %v3653, 1.442695
  %v3701 = vpow.pop %v3700
  %v3702 = vmul.f32 %v3654, 1.442695
  %v3703 = vpow.pop %v3702
  %v3704 = vmul.f32 %v3655, 1.442695
  %v3705 = vpow.pop %v3704
  %v3706 = vmul.f32 %v3656, 1.442695
  %v3707 = vpow.pop %v3706
  %v3708 = vmul.f32 %v3657, 1.442695
  %v3709 = vpow.pop %v3708
  %v3710 = vmul.f32 %v3658, 1.442695
  %v3711 = vpow.pop %v3710
  %v3712 = vmul.f32 %v3659, 1.442695
  %v3713 = vpow.pop %v3712
  %v3714 = vmul.f32 %v3660, 1.442695
  %v3715 = vpow.pop %v3714
  %v3716 = vmul.f32 %v3661, 1.442695
  %v3717 = vpow.pop %v3716
  %v3718 = vmul.f32 %v3662, 1.442695
  %v3719 = vpow.pop %v3718
  %v3720 = vmul.f32 %v3663, 1.442695
  %v3721 = vpow.pop %v3720
  %v3722 = vmul.f32 %v3664, 1.442695
  %v3723 = vpow.pop %v3722
  %v3724 = vmul.f32 %v3665, 1.442695
  %v3725 = vpow.pop %v3724
  %v3726 = vmul.f32 %v3666, 1.442695
  %v3727 = vpow.pop %v3726
  %v3728 = vmul.f32 %v3667, 1.442695
  %v3729 = vpow.pop %v3728
  %v3730 = vmul.f32 %v3668, 1.442695
  %v3731 = vpow.pop %v3730
  %v3732 = vmul.f32 %v3669, 1.442695
  %v3733 = vpow.pop %v3732
  %3734 = vadd.xlane.f32.xlu0 %v3671
  %v3735 = vpop.xlane.xlu0 %3734
  %3736 = vadd.xlane.f32.xlu0 %v3673
  %v3737 = vpop.xlane.xlu0 %3736
  %3738 = vadd.xlane.f32.xlu0 %v3675
  %v3739 = vpop.xlane.xlu0 %3738
  %3740 = vadd.xlane.f32.xlu0 %v3677
  %v3741 = vpop.xlane.xlu0 %3740
  %3742 = vadd.xlane.f32.xlu0 %v3679
  %v3743 = vpop.xlane.xlu0 %3742
  %3744 = vadd.xlane.f32.xlu0 %v3681
  %v3745 = vpop.xlane.xlu0 %3744
  %3746 = vadd.xlane.f32.xlu0 %v3683
  %v3747 = vpop.xlane.xlu0 %3746
  %3748 = vadd.xlane.f32.xlu0 %v3685
  %v3749 = vpop.xlane.xlu0 %3748
  %3750 = vadd.xlane.f32.xlu0 %v3687
  %v3751 = vpop.xlane.xlu0 %3750
  %3752 = vadd.xlane.f32.xlu0 %v3689
  %v3753 = vpop.xlane.xlu0 %3752
  %3754 = vadd.xlane.f32.xlu0 %v3691
  %v3755 = vpop.xlane.xlu0 %3754
  %3756 = vadd.xlane.f32.xlu0 %v3693
  %v3757 = vpop.xlane.xlu0 %3756
  %3758 = vadd.xlane.f32.xlu0 %v3695
  %v3759 = vpop.xlane.xlu0 %3758
  %3760 = vadd.xlane.f32.xlu0 %v3697
  %v3761 = vpop.xlane.xlu0 %3760
  %3762 = vadd.xlane.f32.xlu0 %v3699
  %v3763 = vpop.xlane.xlu0 %3762
  %3764 = vadd.xlane.f32.xlu0 %v3701
  %v3765 = vpop.xlane.xlu0 %3764
  %3766 = vadd.xlane.f32.xlu0 %v3703
  %v3767 = vpop.xlane.xlu0 %3766
  %3768 = vadd.xlane.f32.xlu0 %v3705
  %v3769 = vpop.xlane.xlu0 %3768
  %3770 = vadd.xlane.f32.xlu0 %v3707
  %v3771 = vpop.xlane.xlu0 %3770
  %3772 = vadd.xlane.f32.xlu0 %v3709
  %v3773 = vpop.xlane.xlu0 %3772
  %3774 = vadd.xlane.f32.xlu0 %v3711
  %v3775 = vpop.xlane.xlu0 %3774
  %3776 = vadd.xlane.f32.xlu0 %v3713
  %v3777 = vpop.xlane.xlu0 %3776
  %3778 = vadd.xlane.f32.xlu0 %v3715
  %v3779 = vpop.xlane.xlu0 %3778
  %3780 = vadd.xlane.f32.xlu0 %v3717
  %v3781 = vpop.xlane.xlu0 %3780
  %3782 = vadd.xlane.f32.xlu0 %v3719
  %v3783 = vpop.xlane.xlu0 %3782
  %3784 = vadd.xlane.f32.xlu0 %v3721
  %v3785 = vpop.xlane.xlu0 %3784
  %3786 = vadd.xlane.f32.xlu0 %v3723
  %v3787 = vpop.xlane.xlu0 %3786
  %3788 = vadd.xlane.f32.xlu0 %v3725
  %v3789 = vpop.xlane.xlu0 %3788
  %3790 = vadd.xlane.f32.xlu0 %v3727
  %v3791 = vpop.xlane.xlu0 %3790
  %3792 = vadd.xlane.f32.xlu0 %v3729
  %v3793 = vpop.xlane.xlu0 %3792
  %3794 = vadd.xlane.f32.xlu0 %v3731
  %v3795 = vpop.xlane.xlu0 %3794
  %3796 = vadd.xlane.f32.xlu0 %v3733
  %v3797 = vpop.xlane.xlu0 %3796
  %v3798 = vrcp.pop %v3735
  %v3799 = vrcp.pop %v3737
  %v3800 = vrcp.pop %v3739
  %v3801 = vrcp.pop %v3741
  %v3802 = vrcp.pop %v3743
  %v3803 = vrcp.pop %v3745
  %v3804 = vrcp.pop %v3747
  %v3805 = vrcp.pop %v3749
  %v3806 = vrcp.pop %v3751
  %v3807 = vrcp.pop %v3753
  %v3808 = vrcp.pop %v3755
  %v3809 = vrcp.pop %v3757
  %v3810 = vrcp.pop %v3759
  %v3811 = vrcp.pop %v3761
  %v3812 = vrcp.pop %v3763
  %v3813 = vrcp.pop %v3765
  %v3814 = vrcp.pop %v3767
  %v3815 = vrcp.pop %v3769
  %v3816 = vrcp.pop %v3771
  %v3817 = vrcp.pop %v3773
  %v3818 = vrcp.pop %v3775
  %v3819 = vrcp.pop %v3777
  %v3820 = vrcp.pop %v3779
  %v3821 = vrcp.pop %v3781
  %v3822 = vrcp.pop %v3783
  %v3823 = vrcp.pop %v3785
  %v3824 = vrcp.pop %v3787
  %v3825 = vrcp.pop %v3789
  %v3826 = vrcp.pop %v3791
  %v3827 = vrcp.pop %v3793
  %v3828 = vrcp.pop %v3795
  %v3829 = vrcp.pop %v3797
  %v3830 = vmul.f32 %v3671, %v3798
  %v3831 = vmul.f32 %v3673, %v3799
  %v3832 = vmul.f32 %v3675, %v3800
  %v3833 = vmul.f32 %v3677, %v3801
  %v3834 = vmul.f32 %v3679, %v3802
  %v3835 = vmul.f32 %v3681, %v3803
  %v3836 = vmul.f32 %v3683, %v3804
  %v3837 = vmul.f32 %v3685, %v3805
  %v3838 = vmul.f32 %v3687, %v3806
  %v3839 = vmul.f32 %v3689, %v3807
  %v3840 = vmul.f32 %v3691, %v3808
  %v3841 = vmul.f32 %v3693, %v3809
  %v3842 = vmul.f32 %v3695, %v3810
  %v3843 = vmul.f32 %v3697, %v3811
  %v3844 = vmul.f32 %v3699, %v3812
  %v3845 = vmul.f32 %v3701, %v3813
  %v3846 = vmul.f32 %v3703, %v3814
  %v3847 = vmul.f32 %v3705, %v3815
  %v3848 = vmul.f32 %v3707, %v3816
  %v3849 = vmul.f32 %v3709, %v3817
  %v3850 = vmul.f32 %v3711, %v3818
  %v3851 = vmul.f32 %v3713, %v3819
  %v3852 = vmul.f32 %v3715, %v3820
  %v3853 = vmul.f32 %v3717, %v3821
  %v3854 = vmul.f32 %v3719, %v3822
  %v3855 = vmul.f32 %v3721, %v3823
  %v3856 = vmul.f32 %v3723, %v3824
  %v3857 = vmul.f32 %v3725, %v3825
  %v3858 = vmul.f32 %v3727, %v3826
  %v3859 = vmul.f32 %v3729, %v3827
  %v3860 = vmul.f32 %v3731, %v3828
  %v3861 = vmul.f32 %v3733, %v3829
  %v3862 = vpack.c.bf16 %v3831, %v3830
  %v3863 = vpack.c.bf16 %v3833, %v3832
  %v3864 = vpack.c.bf16 %v3835, %v3834
  %v3865 = vpack.c.bf16 %v3837, %v3836
  %v3866 = vpack.c.bf16 %v3839, %v3838
  %v3867 = vpack.c.bf16 %v3841, %v3840
  %v3868 = vpack.c.bf16 %v3843, %v3842
  %v3869 = vpack.c.bf16 %v3845, %v3844
  %v3870 = vpack.c.bf16 %v3847, %v3846
  %v3871 = vpack.c.bf16 %v3849, %v3848
  %v3872 = vpack.c.bf16 %v3851, %v3850
  %v3873 = vpack.c.bf16 %v3853, %v3852
  %v3874 = vpack.c.bf16 %v3855, %v3854
  %v3875 = vpack.c.bf16 %v3857, %v3856
  %v3876 = vpack.c.bf16 %v3859, %v3858
  %v3877 = vpack.c.bf16 %v3861, %v3860
  %3886 = vrot.lane.b32.xlu0 %v2006, 96
  %v3887 = vpop.permute.xlu0 %3886
  %3888 = vrot.lane.b32.xlu0 %v2007, 96
  %v3889 = vpop.permute.xlu0 %3888
  %3890 = vrot.lane.b32.xlu0 %v2008, 96
  %v3891 = vpop.permute.xlu0 %3890
  %3892 = vrot.lane.b32.xlu0 %v2009, 96
  %v3893 = vpop.permute.xlu0 %3892
  %3894 = vrot.lane.b32.xlu0 %v2010, 96
  %v3895 = vpop.permute.xlu0 %3894
  %3896 = vrot.lane.b32.xlu0 %v2011, 96
  %v3897 = vpop.permute.xlu0 %3896
  %3898 = vrot.lane.b32.xlu0 %v2012, 96
  %v3899 = vpop.permute.xlu0 %3898
  %3900 = vrot.lane.b32.xlu0 %v2013, 96
  %v3901 = vpop.permute.xlu0 %3900
  %3910 = vmatprep.subr.bf16.mxu0 0
  %3911 = vmatpush1.bf16.msra.mxu0 %v3901
  %3912 = vmatprep.subr.bf16.mxu0 0
  %3913 = vmatpush1.bf16.msra.mxu0 %v3899
  %3914 = vmatprep.subr.bf16.mxu0 0
  %3915 = vmatpush1.bf16.msra.mxu0 %v3897
  %3916 = vmatprep.subr.bf16.mxu0 0
  %3917 = vmatpush1.bf16.msra.mxu0 %v3895
  %3918 = vmatprep.subr.bf16.mxu0 0
  %3919 = vmatpush1.bf16.msra.mxu0 %v3893
  %3920 = vmatprep.subr.bf16.mxu0 0
  %3921 = vmatpush1.bf16.msra.mxu0 %v3891
  %3922 = vmatprep.subr.bf16.mxu0 0
  %3923 = vmatpush1.bf16.msra.mxu0 %v3889
  %3924 = vmatprep.subr.bf16.mxu0 0
  %3925 = vmatpush1.bf16.msra.mxu0 %v3887
  %3926 = vmatprep.subr.bf16.mxu0 0
  %3927 = vmatpush2.bf16.msra.mxu0 0
  %3928 = vmatprep.subr.bf16.mxu0 0
  %3929 = vmatpush2.bf16.msra.mxu0 0
  %3930 = vmatprep.subr.bf16.mxu0 0
  %3931 = vmatpush2.bf16.msra.mxu0 0
  %3932 = vmatprep.subr.bf16.mxu0 0
  %3933 = vmatpush2.bf16.msra.mxu0 0
  %3934 = vmatprep.subr.bf16.mxu0 0
  %3935 = vmatpush2.bf16.msra.mxu0 0
  %3936 = vmatprep.subr.bf16.mxu0 0
  %3937 = vmatpush2.bf16.msra.mxu0 0
  %3938 = vmatprep.subr.bf16.mxu0 0
  %3939 = vmatpush2.bf16.msra.mxu0 0
  %3940 = vmatprep.subr.bf16.mxu0 0
  %3941 = vmatpush2.bf16.msra.mxu0 0
  %3942 = vmatprep.mubr.bf16.mxu0 0
  %3943 = vmatmul.mubr.bf16.gmra.mxu0 %v3862
  %v3944 = vpop.f32.mrf.mxu0
  %v3945 = vadd.f32 0.0, %v3944
  %v3946 = vpop.f32.mrf.mxu0
  %v3947 = vpop.f32.mrf.mxu0
  %v3948 = vadd.f32 0.0, %v3947
  %v3949 = vpop.f32.mrf.mxu0
  %3950 = vmatprep.mubr.bf16.mxu0 0
  %3951 = vmatmul.mubr.bf16.gmra.mxu0 %v3863
  %v3952 = vpop.f32.mrf.mxu0
  %v3953 = vadd.f32 0.0, %v3952
  %v3954 = vpop.f32.mrf.mxu0
  %v3955 = vpop.f32.mrf.mxu0
  %v3956 = vadd.f32 0.0, %v3955
  %v3957 = vpop.f32.mrf.mxu0
  %3958 = vmatprep.mubr.bf16.mxu0 0
  %3959 = vmatmul.mubr.bf16.gmra.mxu0 %v3864
  %v3960 = vpop.f32.mrf.mxu0
  %v3961 = vadd.f32 0.0, %v3960
  %v3962 = vpop.f32.mrf.mxu0
  %v3963 = vpop.f32.mrf.mxu0
  %v3964 = vadd.f32 0.0, %v3963
  %v3965 = vpop.f32.mrf.mxu0
  %3966 = vmatprep.mubr.bf16.mxu0 0
  %3967 = vmatmul.mubr.bf16.gmra.mxu0 %v3865
  %v3968 = vpop.f32.mrf.mxu0
  %v3969 = vadd.f32 0.0, %v3968
  %v3970 = vpop.f32.mrf.mxu0
  %v3971 = vpop.f32.mrf.mxu0
  %v3972 = vadd.f32 0.0, %v3971
  %v3973 = vpop.f32.mrf.mxu0
  %3974 = vmatprep.mubr.bf16.mxu0 0
  %3975 = vmatmul.mubr.bf16.gmra.mxu0 %v3866
  %v3976 = vpop.f32.mrf.mxu0
  %v3977 = vadd.f32 0.0, %v3976
  %v3978 = vpop.f32.mrf.mxu0
  %v3979 = vpop.f32.mrf.mxu0
  %v3980 = vadd.f32 0.0, %v3979
  %v3981 = vpop.f32.mrf.mxu0
  %3982 = vmatprep.mubr.bf16.mxu0 0
  %3983 = vmatmul.mubr.bf16.gmra.mxu0 %v3867
  %v3984 = vpop.f32.mrf.mxu0
  %v3985 = vadd.f32 0.0, %v3984
  %v3986 = vpop.f32.mrf.mxu0
  %v3987 = vpop.f32.mrf.mxu0
  %v3988 = vadd.f32 0.0, %v3987
  %v3989 = vpop.f32.mrf.mxu0
  %3990 = vmatprep.mubr.bf16.mxu0 0
  %3991 = vmatmul.mubr.bf16.gmra.mxu0 %v3868
  %v3992 = vpop.f32.mrf.mxu0
  %v3993 = vadd.f32 0.0, %v3992
  %v3994 = vpop.f32.mrf.mxu0
  %v3995 = vpop.f32.mrf.mxu0
  %v3996 = vadd.f32 0.0, %v3995
  %v3997 = vpop.f32.mrf.mxu0
  %3998 = vmatprep.mubr.bf16.mxu0 0
  %3999 = vmatmul.mubr.bf16.gmra.mxu0 %v3869
  %v4000 = vpop.f32.mrf.mxu0
  %v4001 = vadd.f32 0.0, %v4000
  %v4002 = vpop.f32.mrf.mxu0
  %v4003 = vpop.f32.mrf.mxu0
  %v4004 = vadd.f32 0.0, %v4003
  %v4005 = vpop.f32.mrf.mxu0
  %4006 = vdwg.mxu0
  %4015 = vrot.lane.b32.xlu0 %v2014, 96
  %v4016 = vpop.permute.xlu0 %4015
  %4017 = vrot.lane.b32.xlu0 %v2015, 96
  %v4018 = vpop.permute.xlu0 %4017
  %4019 = vrot.lane.b32.xlu0 %v2016, 96
  %v4020 = vpop.permute.xlu0 %4019
  %4021 = vrot.lane.b32.xlu0 %v2017, 96
  %v4022 = vpop.permute.xlu0 %4021
  %4023 = vrot.lane.b32.xlu0 %v2018, 96
  %v4024 = vpop.permute.xlu0 %4023
  %4025 = vrot.lane.b32.xlu0 %v2019, 96
  %v4026 = vpop.permute.xlu0 %4025
  %4027 = vrot.lane.b32.xlu0 %v2020, 96
  %v4028 = vpop.permute.xlu0 %4027
  %4029 = vrot.lane.b32.xlu0 %v2021, 96
  %v4030 = vpop.permute.xlu0 %4029
  %4039 = vmatprep.subr.bf16.mxu0 0
  %4040 = vmatpush1.bf16.msra.mxu0 %v4030
  %4041 = vmatprep.subr.bf16.mxu0 0
  %4042 = vmatpush1.bf16.msra.mxu0 %v4028
  %4043 = vmatprep.subr.bf16.mxu0 0
  %4044 = vmatpush1.bf16.msra.mxu0 %v4026
  %4045 = vmatprep.subr.bf16.mxu0 0
  %4046 = vmatpush1.bf16.msra.mxu0 %v4024
  %4047 = vmatprep.subr.bf16.mxu0 0
  %4048 = vmatpush1.bf16.msra.mxu0 %v4022
  %4049 = vmatprep.subr.bf16.mxu0 0
  %4050 = vmatpush1.bf16.msra.mxu0 %v4020
  %4051 = vmatprep.subr.bf16.mxu0 0
  %4052 = vmatpush1.bf16.msra.mxu0 %v4018
  %4053 = vmatprep.subr.bf16.mxu0 0
  %4054 = vmatpush1.bf16.msra.mxu0 %v4016
  %4055 = vmatprep.subr.bf16.mxu0 0
  %4056 = vmatpush2.bf16.msra.mxu0 0
  %4057 = vmatprep.subr.bf16.mxu0 0
  %4058 = vmatpush2.bf16.msra.mxu0 0
  %4059 = vmatprep.subr.bf16.mxu0 0
  %4060 = vmatpush2.bf16.msra.mxu0 0
  %4061 = vmatprep.subr.bf16.mxu0 0
  %4062 = vmatpush2.bf16.msra.mxu0 0
  %4063 = vmatprep.subr.bf16.mxu0 0
  %4064 = vmatpush2.bf16.msra.mxu0 0
  %4065 = vmatprep.subr.bf16.mxu0 0
  %4066 = vmatpush2.bf16.msra.mxu0 0
  %4067 = vmatprep.subr.bf16.mxu0 0
  %4068 = vmatpush2.bf16.msra.mxu0 0
  %4069 = vmatprep.subr.bf16.mxu0 0
  %4070 = vmatpush2.bf16.msra.mxu0 0
  %4071 = vmatprep.mubr.bf16.mxu0 0
  %4072 = vmatmul.mubr.bf16.gmra.mxu0 %v3870
  %v4073 = vpop.f32.mrf.mxu0
  %v4074 = vadd.f32 0.0, %v4073
  %v4075 = vpop.f32.mrf.mxu0
  %v4076 = vpop.f32.mrf.mxu0
  %v4077 = vadd.f32 0.0, %v4076
  %v4078 = vpop.f32.mrf.mxu0
  %4079 = vmatprep.mubr.bf16.mxu0 0
  %4080 = vmatmul.mubr.bf16.gmra.mxu0 %v3871
  %v4081 = vpop.f32.mrf.mxu0
  %v4082 = vadd.f32 0.0, %v4081
  %v4083 = vpop.f32.mrf.mxu0
  %v4084 = vpop.f32.mrf.mxu0
  %v4085 = vadd.f32 0.0, %v4084
  %v4086 = vpop.f32.mrf.mxu0
  %4087 = vmatprep.mubr.bf16.mxu0 0
  %4088 = vmatmul.mubr.bf16.gmra.mxu0 %v3872
  %v4089 = vpop.f32.mrf.mxu0
  %v4090 = vadd.f32 0.0, %v4089
  %v4091 = vpop.f32.mrf.mxu0
  %v4092 = vpop.f32.mrf.mxu0
  %v4093 = vadd.f32 0.0, %v4092
  %v4094 = vpop.f32.mrf.mxu0
  %4095 = vmatprep.mubr.bf16.mxu0 0
  %4096 = vmatmul.mubr.bf16.gmra.mxu0 %v3873
  %v4097 = vpop.f32.mrf.mxu0
  %v4098 = vadd.f32 0.0, %v4097
  %v4099 = vpop.f32.mrf.mxu0
  %v4100 = vpop.f32.mrf.mxu0
  %v4101 = vadd.f32 0.0, %v4100
  %v4102 = vpop.f32.mrf.mxu0
  %4103 = vmatprep.mubr.bf16.mxu0 0
  %4104 = vmatmul.mubr.bf16.gmra.mxu0 %v3874
  %v4105 = vpop.f32.mrf.mxu0
  %v4106 = vadd.f32 0.0, %v4105
  %v4107 = vpop.f32.mrf.mxu0
  %v4108 = vpop.f32.mrf.mxu0
  %v4109 = vadd.f32 0.0, %v4108
  %v4110 = vpop.f32.mrf.mxu0
  %4111 = vmatprep.mubr.bf16.mxu0 0
  %4112 = vmatmul.mubr.bf16.gmra.mxu0 %v3875
  %v4113 = vpop.f32.mrf.mxu0
  %v4114 = vadd.f32 0.0, %v4113
  %v4115 = vpop.f32.mrf.mxu0
  %v4116 = vpop.f32.mrf.mxu0
  %v4117 = vadd.f32 0.0, %v4116
  %v4118 = vpop.f32.mrf.mxu0
  %4119 = vmatprep.mubr.bf16.mxu0 0
  %4120 = vmatmul.mubr.bf16.gmra.mxu0 %v3876
  %v4121 = vpop.f32.mrf.mxu0
  %v4122 = vadd.f32 0.0, %v4121
  %v4123 = vpop.f32.mrf.mxu0
  %v4124 = vpop.f32.mrf.mxu0
  %v4125 = vadd.f32 0.0, %v4124
  %v4126 = vpop.f32.mrf.mxu0
  %4127 = vmatprep.mubr.bf16.mxu0 0
  %4128 = vmatmul.mubr.bf16.gmra.mxu0 %v3877
  %v4129 = vpop.f32.mrf.mxu0
  %v4130 = vadd.f32 0.0, %v4129
  %v4131 = vpop.f32.mrf.mxu0
  %v4132 = vpop.f32.mrf.mxu0
  %v4133 = vadd.f32 0.0, %v4132
  %v4134 = vpop.f32.mrf.mxu0
  %4135 = vdwg.mxu0
  %v4136 = vpack.c.bf16 %v3948, %v3945
  %v4137 = vpack.c.bf16 %v3956, %v3953
  %v4138 = vpack.c.bf16 %v3964, %v3961
  %v4139 = vpack.c.bf16 %v3972, %v3969
  %v4140 = vpack.c.bf16 %v3980, %v3977
  %v4141 = vpack.c.bf16 %v3988, %v3985
  %v4142 = vpack.c.bf16 %v3996, %v3993
  %v4143 = vpack.c.bf16 %v4004, %v4001
  %v4144 = vpack.c.bf16 %v4077, %v4074
  %v4145 = vpack.c.bf16 %v4085, %v4082
  %v4146 = vpack.c.bf16 %v4093, %v4090
  %v4147 = vpack.c.bf16 %v4101, %v4098
  %v4148 = vpack.c.bf16 %v4109, %v4106
  %v4149 = vpack.c.bf16 %v4117, %v4114
  %v4150 = vpack.c.bf16 %v4125, %v4122
  %v4151 = vpack.c.bf16 %v4133, %v4130
  %v4152 = vld [vmem:[%s6 + $0x20] sm:$0xff]
  %v4153 = vld [vmem:[%s6 + $0x28] sm:$0xff]
  %v4154 = vld [vmem:[%s6 + $0x30] sm:$0xff]
  %v4155 = vld [vmem:[%s6 + $0x38] sm:$0xff]
  %v4160 = vunpack.c.l.b16 %v4152
  %v4161 = vunpack.c.h.b16 %v4152
  %v4162 = vunpack.c.l.b16 %v4153
  %v4163 = vunpack.c.h.b16 %v4153
  %v4164 = vunpack.c.l.b16 %v4154
  %v4165 = vunpack.c.h.b16 %v4154
  %v4166 = vunpack.c.l.b16 %v4155
  %v4167 = vunpack.c.h.b16 %v4155
  %v4168 = vpack.c.b16 %v4162, %v4160
  %v4169 = vpack.c.b16 %v4163, %v4161
  %v4170 = vpack.c.b16 %v4166, %v4164
  %v4171 = vpack.c.b16 %v4167, %v4165
  %v4177 = vsel %vm2046, %v4136, 0
  %v4180 = vsel %vm2046, %v4137, 0
  %v4183 = vsel %vm2046, %v4138, 0
  %v4186 = vsel %vm2046, %v4139, 0
  %v4189 = vsel %vm2046, %v4140, 0
  %v4192 = vsel %vm2046, %v4141, 0
  %v4195 = vsel %vm2046, %v4142, 0
  %v4198 = vsel %vm2046, %v4143, 0
  %v4201 = vsel %vm2046, %v4144, 0
  %v4204 = vsel %vm2046, %v4145, 0
  %v4207 = vsel %vm2046, %v4146, 0
  %v4210 = vsel %vm2046, %v4147, 0
  %v4213 = vsel %vm2046, %v4148, 0
  %v4216 = vsel %vm2046, %v4149, 0
  %v4219 = vsel %vm2046, %v4150, 0
  %v4222 = vsel %vm2046, %v4151, 0
  %4224 = vmatprep.subr.bf16.mxu0 0
  %4225 = vmatpush1.bf16.msra.mxu0 0
  %4226 = vmatprep.subr.bf16.mxu0 0
  %4227 = vmatpush1.bf16.msra.mxu0 0
  %4228 = vmatprep.subr.bf16.mxu0 0
  %4229 = vmatpush1.bf16.msra.mxu0 0
  %4230 = vmatprep.subr.bf16.mxu0 0
  %4231 = vmatpush1.bf16.msra.mxu0 0
  %4232 = vmatprep.subr.bf16.mxu0 0
  %4233 = vmatpush1.bf16.msra.mxu0 0
  %4234 = vmatprep.subr.bf16.mxu0 0
  %4235 = vmatpush1.bf16.msra.mxu0 0
  %4236 = vmatprep.subr.bf16.mxu0 %v4171
  %4237 = vmatpush1.bf16.msra.mxu0 %v4170
  %4238 = vmatprep.subr.bf16.mxu0 %v4169
  %4239 = vmatpush1.bf16.msra.mxu0 %v4168
  %4240 = vmatprep.subr.bf16.mxu0 0
  %4241 = vmatpush2.bf16.msra.mxu0 0
  %4242 = vmatprep.subr.bf16.mxu0 0
  %4243 = vmatpush2.bf16.msra.mxu0 0
  %4244 = vmatprep.subr.bf16.mxu0 0
  %4245 = vmatpush2.bf16.msra.mxu0 0
  %4246 = vmatprep.subr.bf16.mxu0 0
  %4247 = vmatpush2.bf16.msra.mxu0 0
  %4248 = vmatprep.subr.bf16.mxu0 0
  %4249 = vmatpush2.bf16.msra.mxu0 0
  %4250 = vmatprep.subr.bf16.mxu0 0
  %4251 = vmatpush2.bf16.msra.mxu0 0
  %4252 = vmatprep.subr.bf16.mxu0 0
  %4253 = vmatpush2.bf16.msra.mxu0 0
  %4254 = vmatprep.subr.bf16.mxu0 0
  %4255 = vmatpush2.bf16.msra.mxu0 0
  %4256 = vmatprep.mubr.bf16.mxu0 0
  %4257 = vmatmul.mubr.bf16.gmra.mxu0 %v4177
  %v4258 = vpop.f32.mrf.mxu0
  %v4259 = vadd.f32 0.0, %v4258
  %v4260 = vpop.f32.mrf.mxu0
  %v4261 = vadd.f32 0.0, %v4260
  %v4262 = vpop.f32.mrf.mxu0
  %v4263 = vadd.f32 0.0, %v4262
  %v4264 = vpop.f32.mrf.mxu0
  %v4265 = vadd.f32 0.0, %v4264
  %4266 = vmatprep.mubr.bf16.mxu0 0
  %4267 = vmatmul.mubr.bf16.gmra.mxu0 %v4180
  %v4268 = vpop.f32.mrf.mxu0
  %v4269 = vadd.f32 0.0, %v4268
  %v4270 = vpop.f32.mrf.mxu0
  %v4271 = vadd.f32 0.0, %v4270
  %v4272 = vpop.f32.mrf.mxu0
  %v4273 = vadd.f32 0.0, %v4272
  %v4274 = vpop.f32.mrf.mxu0
  %v4275 = vadd.f32 0.0, %v4274
  %4276 = vmatprep.mubr.bf16.mxu0 0
  %4277 = vmatmul.mubr.bf16.gmra.mxu0 %v4183
  %v4278 = vpop.f32.mrf.mxu0
  %v4279 = vadd.f32 0.0, %v4278
  %v4280 = vpop.f32.mrf.mxu0
  %v4281 = vadd.f32 0.0, %v4280
  %v4282 = vpop.f32.mrf.mxu0
  %v4283 = vadd.f32 0.0, %v4282
  %v4284 = vpop.f32.mrf.mxu0
  %v4285 = vadd.f32 0.0, %v4284
  %4286 = vmatprep.mubr.bf16.mxu0 0
  %4287 = vmatmul.mubr.bf16.gmra.mxu0 %v4186
  %v4288 = vpop.f32.mrf.mxu0
  %v4289 = vadd.f32 0.0, %v4288
  %v4290 = vpop.f32.mrf.mxu0
  %v4291 = vadd.f32 0.0, %v4290
  %v4292 = vpop.f32.mrf.mxu0
  %v4293 = vadd.f32 0.0, %v4292
  %v4294 = vpop.f32.mrf.mxu0
  %v4295 = vadd.f32 0.0, %v4294
  %4296 = vmatprep.mubr.bf16.mxu0 0
  %4297 = vmatmul.mubr.bf16.gmra.mxu0 %v4189
  %v4298 = vpop.f32.mrf.mxu0
  %v4299 = vadd.f32 0.0, %v4298
  %v4300 = vpop.f32.mrf.mxu0
  %v4301 = vadd.f32 0.0, %v4300
  %v4302 = vpop.f32.mrf.mxu0
  %v4303 = vadd.f32 0.0, %v4302
  %v4304 = vpop.f32.mrf.mxu0
  %v4305 = vadd.f32 0.0, %v4304
  %4306 = vmatprep.mubr.bf16.mxu0 0
  %4307 = vmatmul.mubr.bf16.gmra.mxu0 %v4192
  %v4308 = vpop.f32.mrf.mxu0
  %v4309 = vadd.f32 0.0, %v4308
  %v4310 = vpop.f32.mrf.mxu0
  %v4311 = vadd.f32 0.0, %v4310
  %v4312 = vpop.f32.mrf.mxu0
  %v4313 = vadd.f32 0.0, %v4312
  %v4314 = vpop.f32.mrf.mxu0
  %v4315 = vadd.f32 0.0, %v4314
  %4316 = vmatprep.mubr.bf16.mxu0 0
  %4317 = vmatmul.mubr.bf16.gmra.mxu0 %v4195
  %v4318 = vpop.f32.mrf.mxu0
  %v4319 = vadd.f32 0.0, %v4318
  %v4320 = vpop.f32.mrf.mxu0
  %v4321 = vadd.f32 0.0, %v4320
  %v4322 = vpop.f32.mrf.mxu0
  %v4323 = vadd.f32 0.0, %v4322
  %v4324 = vpop.f32.mrf.mxu0
  %v4325 = vadd.f32 0.0, %v4324
  %4326 = vmatprep.mubr.bf16.mxu0 0
  %4327 = vmatmul.mubr.bf16.gmra.mxu0 %v4198
  %v4328 = vpop.f32.mrf.mxu0
  %v4329 = vadd.f32 0.0, %v4328
  %v4330 = vpop.f32.mrf.mxu0
  %v4331 = vadd.f32 0.0, %v4330
  %v4332 = vpop.f32.mrf.mxu0
  %v4333 = vadd.f32 0.0, %v4332
  %v4334 = vpop.f32.mrf.mxu0
  %v4335 = vadd.f32 0.0, %v4334
  %4336 = vmatprep.mubr.bf16.mxu0 0
  %4337 = vmatmul.mubr.bf16.gmra.mxu0 %v4201
  %v4338 = vpop.f32.mrf.mxu0
  %v4339 = vadd.f32 0.0, %v4338
  %v4340 = vpop.f32.mrf.mxu0
  %v4341 = vadd.f32 0.0, %v4340
  %v4342 = vpop.f32.mrf.mxu0
  %v4343 = vadd.f32 0.0, %v4342
  %v4344 = vpop.f32.mrf.mxu0
  %v4345 = vadd.f32 0.0, %v4344
  %4346 = vmatprep.mubr.bf16.mxu0 0
  %4347 = vmatmul.mubr.bf16.gmra.mxu0 %v4204
  %v4348 = vpop.f32.mrf.mxu0
  %v4349 = vadd.f32 0.0, %v4348
  %v4350 = vpop.f32.mrf.mxu0
  %v4351 = vadd.f32 0.0, %v4350
  %v4352 = vpop.f32.mrf.mxu0
  %v4353 = vadd.f32 0.0, %v4352
  %v4354 = vpop.f32.mrf.mxu0
  %v4355 = vadd.f32 0.0, %v4354
  %4356 = vmatprep.mubr.bf16.mxu0 0
  %4357 = vmatmul.mubr.bf16.gmra.mxu0 %v4207
  %v4358 = vpop.f32.mrf.mxu0
  %v4359 = vadd.f32 0.0, %v4358
  %v4360 = vpop.f32.mrf.mxu0
  %v4361 = vadd.f32 0.0, %v4360
  %v4362 = vpop.f32.mrf.mxu0
  %v4363 = vadd.f32 0.0, %v4362
  %v4364 = vpop.f32.mrf.mxu0
  %v4365 = vadd.f32 0.0, %v4364
  %4366 = vmatprep.mubr.bf16.mxu0 0
  %4367 = vmatmul.mubr.bf16.gmra.mxu0 %v4210
  %v4368 = vpop.f32.mrf.mxu0
  %v4369 = vadd.f32 0.0, %v4368
  %v4370 = vpop.f32.mrf.mxu0
  %v4371 = vadd.f32 0.0, %v4370
  %v4372 = vpop.f32.mrf.mxu0
  %v4373 = vadd.f32 0.0, %v4372
  %v4374 = vpop.f32.mrf.mxu0
  %v4375 = vadd.f32 0.0, %v4374
  %4376 = vmatprep.mubr.bf16.mxu0 0
  %4377 = vmatmul.mubr.bf16.gmra.mxu0 %v4213
  %v4378 = vpop.f32.mrf.mxu0
  %v4379 = vadd.f32 0.0, %v4378
  %v4380 = vpop.f32.mrf.mxu0
  %v4381 = vadd.f32 0.0, %v4380
  %v4382 = vpop.f32.mrf.mxu0
  %v4383 = vadd.f32 0.0, %v4382
  %v4384 = vpop.f32.mrf.mxu0
  %v4385 = vadd.f32 0.0, %v4384
  %4386 = vmatprep.mubr.bf16.mxu0 0
  %4387 = vmatmul.mubr.bf16.gmra.mxu0 %v4216
  %v4388 = vpop.f32.mrf.mxu0
  %v4389 = vadd.f32 0.0, %v4388
  %v4390 = vpop.f32.mrf.mxu0
  %v4391 = vadd.f32 0.0, %v4390
  %v4392 = vpop.f32.mrf.mxu0
  %v4393 = vadd.f32 0.0, %v4392
  %v4394 = vpop.f32.mrf.mxu0
  %v4395 = vadd.f32 0.0, %v4394
  %4396 = vmatprep.mubr.bf16.mxu0 0
  %4397 = vmatmul.mubr.bf16.gmra.mxu0 %v4219
  %v4398 = vpop.f32.mrf.mxu0
  %v4399 = vadd.f32 0.0, %v4398
  %v4400 = vpop.f32.mrf.mxu0
  %v4401 = vadd.f32 0.0, %v4400
  %v4402 = vpop.f32.mrf.mxu0
  %v4403 = vadd.f32 0.0, %v4402
  %v4404 = vpop.f32.mrf.mxu0
  %v4405 = vadd.f32 0.0, %v4404
  %4406 = vmatprep.mubr.bf16.mxu0 0
  %4407 = vmatmul.mubr.bf16.gmra.mxu0 %v4222
  %v4408 = vpop.f32.mrf.mxu0
  %v4409 = vadd.f32 0.0, %v4408
  %v4410 = vpop.f32.mrf.mxu0
  %v4411 = vadd.f32 0.0, %v4410
  %v4412 = vpop.f32.mrf.mxu0
  %v4413 = vadd.f32 0.0, %v4412
  %v4414 = vpop.f32.mrf.mxu0
  %v4415 = vadd.f32 0.0, %v4414
  %4416 = vdwg.mxu0
  %v4417 = vadd.f32 %v3140, %v4259
  %v4418 = vadd.f32 %v3141, %v4261
  %v4419 = vadd.f32 %v3142, %v4263
  %v4420 = vadd.f32 %v3143, %v4265
  %v4421 = vadd.f32 %v3144, %v4269
  %v4422 = vadd.f32 %v3145, %v4271
  %v4423 = vadd.f32 %v3146, %v4273
  %v4424 = vadd.f32 %v3147, %v4275
  %v4425 = vadd.f32 %v3148, %v4279
  %v4426 = vadd.f32 %v3149, %v4281
  %v4427 = vadd.f32 %v3150, %v4283
  %v4428 = vadd.f32 %v3151, %v4285
  %v4429 = vadd.f32 %v3152, %v4289
  %v4430 = vadd.f32 %v3153, %v4291
  %v4431 = vadd.f32 %v3154, %v4293
  %v4432 = vadd.f32 %v3155, %v4295
  %v4433 = vadd.f32 %v3156, %v4299
  %v4434 = vadd.f32 %v3157, %v4301
  %v4435 = vadd.f32 %v3158, %v4303
  %v4436 = vadd.f32 %v3159, %v4305
  %v4437 = vadd.f32 %v3160, %v4309
  %v4438 = vadd.f32 %v3161, %v4311
  %v4439 = vadd.f32 %v3162, %v4313
  %v4440 = vadd.f32 %v3163, %v4315
  %v4441 = vadd.f32 %v3164, %v4319
  %v4442 = vadd.f32 %v3165, %v4321
  %v4443 = vadd.f32 %v3166, %v4323
  %v4444 = vadd.f32 %v3167, %v4325
  %v4445 = vadd.f32 %v3168, %v4329
  %v4446 = vadd.f32 %v3169, %v4331
  %v4447 = vadd.f32 %v3170, %v4333
  %v4448 = vadd.f32 %v3171, %v4335
  %v4449 = vadd.f32 %v3172, %v4339
  %v4450 = vadd.f32 %v3173, %v4341
  %v4451 = vadd.f32 %v3174, %v4343
  %v4452 = vadd.f32 %v3175, %v4345
  %v4453 = vadd.f32 %v3176, %v4349
  %v4454 = vadd.f32 %v3177, %v4351
  %v4455 = vadd.f32 %v3178, %v4353
  %v4456 = vadd.f32 %v3179, %v4355
  %v4457 = vadd.f32 %v3180, %v4359
  %v4458 = vadd.f32 %v3181, %v4361
  %v4459 = vadd.f32 %v3182, %v4363
  %v4460 = vadd.f32 %v3183, %v4365
  %v4461 = vadd.f32 %v3184, %v4369
  %v4462 = vadd.f32 %v3185, %v4371
  %v4463 = vadd.f32 %v3186, %v4373
  %v4464 = vadd.f32 %v3187, %v4375
  %v4465 = vadd.f32 %v3188, %v4379
  %v4466 = vadd.f32 %v3189, %v4381
  %v4467 = vadd.f32 %v3190, %v4383
  %v4468 = vadd.f32 %v3191, %v4385
  %v4469 = vadd.f32 %v3192, %v4389
  %v4470 = vadd.f32 %v3193, %v4391
  %v4471 = vadd.f32 %v3194, %v4393
  %v4472 = vadd.f32 %v3195, %v4395
  %v4473 = vadd.f32 %v3196, %v4399
  %v4474 = vadd.f32 %v3197, %v4401
  %v4475 = vadd.f32 %v3198, %v4403
  %v4476 = vadd.f32 %v3199, %v4405
  %v4477 = vadd.f32 %v3200, %v4409
  %v4478 = vadd.f32 %v3201, %v4411
  %v4479 = vadd.f32 %v3202, %v4413
  %v4480 = vadd.f32 %v3203, %v4415
  %v4481 = vpack.c.bf16 %v1532, %v1528
  %v4482 = vpack.c.bf16 %v1542, %v1538
  %v4483 = vpack.c.bf16 %v1552, %v1548
  %v4484 = vpack.c.bf16 %v1562, %v1558
  %v4485 = vpack.c.bf16 %v1572, %v1568
  %v4486 = vpack.c.bf16 %v1582, %v1578
  %v4487 = vpack.c.bf16 %v1592, %v1588
  %v4488 = vpack.c.bf16 %v1602, %v1598
  %v4489 = vpack.c.bf16 %v1612, %v1608
  %v4490 = vpack.c.bf16 %v1622, %v1618
  %v4491 = vpack.c.bf16 %v1632, %v1628
  %v4492 = vpack.c.bf16 %v1642, %v1638
  %v4493 = vpack.c.bf16 %v1652, %v1648
  %v4494 = vpack.c.bf16 %v1662, %v1658
  %v4495 = vpack.c.bf16 %v1672, %v1668
  %v4496 = vpack.c.bf16 %v1682, %v1678
  %4497 = vrot.lane.b32.xlu0 %v1974, 64
  %v4498 = vpop.permute.xlu0 %4497
  %4499 = vrot.lane.b32.xlu0 %v1975, 64
  %v4500 = vpop.permute.xlu0 %4499
  %4501 = vrot.lane.b32.xlu0 %v1976, 64
  %v4502 = vpop.permute.xlu0 %4501
  %4503 = vrot.lane.b32.xlu0 %v1977, 64
  %v4504 = vpop.permute.xlu0 %4503
  %4505 = vrot.lane.b32.xlu0 %v1978, 64
  %v4506 = vpop.permute.xlu0 %4505
  %4507 = vrot.lane.b32.xlu0 %v1979, 64
  %v4508 = vpop.permute.xlu0 %4507
  %4509 = vrot.lane.b32.xlu0 %v1980, 64
  %v4510 = vpop.permute.xlu0 %4509
  %4511 = vrot.lane.b32.xlu0 %v1981, 64
  %v4512 = vpop.permute.xlu0 %4511
  %v4514 = vsel %vm2046, %v4498, 0
  %v4517 = vsel %vm2046, %v4500, 0
  %v4520 = vsel %vm2046, %v4502, 0
  %v4523 = vsel %vm2046, %v4504, 0
  %v4526 = vsel %vm2046, %v4506, 0
  %v4529 = vsel %vm2046, %v4508, 0
  %v4532 = vsel %vm2046, %v4510, 0
  %v4535 = vsel %vm2046, %v4512, 0
  %v4538 = vsel %vm2046, %v4481, 0
  %v4541 = vsel %vm2046, %v4482, 0
  %v4544 = vsel %vm2046, %v4483, 0
  %v4547 = vsel %vm2046, %v4484, 0
  %v4550 = vsel %vm2046, %v4485, 0
  %v4553 = vsel %vm2046, %v4486, 0
  %v4556 = vsel %vm2046, %v4487, 0
  %v4559 = vsel %vm2046, %v4488, 0
  %4561 = vmatprep.subr.bf16.mxu0 0
  %4562 = vmatpush1.bf16.xpose.msra.mxu0 %v4559
  %4563 = vmatprep.subr.bf16.mxu0 0
  %4564 = vmatpush1.bf16.xpose.msra.mxu0 %v4556
  %4565 = vmatprep.subr.bf16.mxu0 0
  %4566 = vmatpush1.bf16.xpose.msra.mxu0 %v4553
  %4567 = vmatprep.subr.bf16.mxu0 0
  %4568 = vmatpush1.bf16.xpose.msra.mxu0 %v4550
  %4569 = vmatprep.subr.bf16.mxu0 0
  %4570 = vmatpush1.bf16.xpose.msra.mxu0 %v4547
  %4571 = vmatprep.subr.bf16.mxu0 0
  %4572 = vmatpush1.bf16.xpose.msra.mxu0 %v4544
  %4573 = vmatprep.subr.bf16.mxu0 0
  %4574 = vmatpush1.bf16.xpose.msra.mxu0 %v4541
  %4575 = vmatprep.subr.bf16.mxu0 0
  %4576 = vmatpush1.bf16.xpose.msra.mxu0 %v4538
  %4577 = vmatprep.subr.bf16.mxu0 0
  %4578 = vmatpush2.bf16.xpose.msra.mxu0 0
  %4579 = vmatprep.subr.bf16.mxu0 0
  %4580 = vmatpush2.bf16.xpose.msra.mxu0 0
  %4581 = vmatprep.subr.bf16.mxu0 0
  %4582 = vmatpush2.bf16.xpose.msra.mxu0 0
  %4583 = vmatprep.subr.bf16.mxu0 0
  %4584 = vmatpush2.bf16.xpose.msra.mxu0 0
  %4585 = vmatprep.subr.bf16.mxu0 0
  %4586 = vmatpush2.bf16.xpose.msra.mxu0 0
  %4587 = vmatprep.subr.bf16.mxu0 0
  %4588 = vmatpush2.bf16.xpose.msra.mxu0 0
  %4589 = vmatprep.subr.bf16.mxu0 0
  %4590 = vmatpush2.bf16.xpose.msra.mxu0 0
  %4591 = vmatprep.subr.bf16.mxu0 0
  %4592 = vmatpush2.bf16.xpose.msra.mxu0 0
  %4593 = vmatprep.mubr.bf16.mxu0 0
  %4594 = vmatmul.mubr.bf16.gmra.mxu0 %v4514
  %v4595 = vpop.f32.mrf.mxu0
  %v4596 = vadd.f32 %v1946, %v4595
  %v4597 = vpop.f32.mrf.mxu0
  %v4598 = vpop.f32.mrf.mxu0
  %v4599 = vadd.f32 %v1947, %v4598
  %v4600 = vpop.f32.mrf.mxu0
  %4601 = vmatprep.mubr.bf16.mxu0 0
  %4602 = vmatmul.mubr.bf16.gmra.mxu0 %v4517
  %v4603 = vpop.f32.mrf.mxu0
  %v4604 = vadd.f32 %v1948, %v4603
  %v4605 = vpop.f32.mrf.mxu0
  %v4606 = vpop.f32.mrf.mxu0
  %v4607 = vadd.f32 %v1949, %v4606
  %v4608 = vpop.f32.mrf.mxu0
  %4609 = vmatprep.mubr.bf16.mxu0 0
  %4610 = vmatmul.mubr.bf16.gmra.mxu0 %v4520
  %v4611 = vpop.f32.mrf.mxu0
  %v4612 = vadd.f32 %v1950, %v4611
  %v4613 = vpop.f32.mrf.mxu0
  %v4614 = vpop.f32.mrf.mxu0
  %v4615 = vadd.f32 %v1951, %v4614
  %v4616 = vpop.f32.mrf.mxu0
  %4617 = vmatprep.mubr.bf16.mxu0 0
  %4618 = vmatmul.mubr.bf16.gmra.mxu0 %v4523
  %v4619 = vpop.f32.mrf.mxu0
  %v4620 = vadd.f32 %v1952, %v4619
  %v4621 = vpop.f32.mrf.mxu0
  %v4622 = vpop.f32.mrf.mxu0
  %v4623 = vadd.f32 %v1953, %v4622
  %v4624 = vpop.f32.mrf.mxu0
  %4625 = vmatprep.mubr.bf16.mxu0 0
  %4626 = vmatmul.mubr.bf16.gmra.mxu0 %v4526
  %v4627 = vpop.f32.mrf.mxu0
  %v4628 = vadd.f32 %v1954, %v4627
  %v4629 = vpop.f32.mrf.mxu0
  %v4630 = vpop.f32.mrf.mxu0
  %v4631 = vadd.f32 %v1955, %v4630
  %v4632 = vpop.f32.mrf.mxu0
  %4633 = vmatprep.mubr.bf16.mxu0 0
  %4634 = vmatmul.mubr.bf16.gmra.mxu0 %v4529
  %v4635 = vpop.f32.mrf.mxu0
  %v4636 = vadd.f32 %v1956, %v4635
  %v4637 = vpop.f32.mrf.mxu0
  %v4638 = vpop.f32.mrf.mxu0
  %v4639 = vadd.f32 %v1957, %v4638
  %v4640 = vpop.f32.mrf.mxu0
  %4641 = vmatprep.mubr.bf16.mxu0 0
  %4642 = vmatmul.mubr.bf16.gmra.mxu0 %v4532
  %v4643 = vpop.f32.mrf.mxu0
  %v4644 = vadd.f32 %v1958, %v4643
  %v4645 = vpop.f32.mrf.mxu0
  %v4646 = vpop.f32.mrf.mxu0
  %v4647 = vadd.f32 %v1959, %v4646
  %v4648 = vpop.f32.mrf.mxu0
  %4649 = vmatprep.mubr.bf16.mxu0 0
  %4650 = vmatmul.mubr.bf16.gmra.mxu0 %v4535
  %v4651 = vpop.f32.mrf.mxu0
  %v4652 = vadd.f32 %v1960, %v4651
  %v4653 = vpop.f32.mrf.mxu0
  %v4654 = vpop.f32.mrf.mxu0
  %v4655 = vadd.f32 %v1961, %v4654
  %v4656 = vpop.f32.mrf.mxu0
  %4657 = vdwg.mxu0
  %4658 = vrot.lane.b32.xlu0 %v1982, 64
  %v4659 = vpop.permute.xlu0 %4658
  %4660 = vrot.lane.b32.xlu0 %v1983, 64
  %v4661 = vpop.permute.xlu0 %4660
  %4662 = vrot.lane.b32.xlu0 %v1984, 64
  %v4663 = vpop.permute.xlu0 %4662
  %4664 = vrot.lane.b32.xlu0 %v1985, 64
  %v4665 = vpop.permute.xlu0 %4664
  %4666 = vrot.lane.b32.xlu0 %v1986, 64
  %v4667 = vpop.permute.xlu0 %4666
  %4668 = vrot.lane.b32.xlu0 %v1987, 64
  %v4669 = vpop.permute.xlu0 %4668
  %4670 = vrot.lane.b32.xlu0 %v1988, 64
  %v4671 = vpop.permute.xlu0 %4670
  %4672 = vrot.lane.b32.xlu0 %v1989, 64
  %v4673 = vpop.permute.xlu0 %4672
  %v4675 = vsel %vm2046, %v4659, 0
  %v4678 = vsel %vm2046, %v4661, 0
  %v4681 = vsel %vm2046, %v4663, 0
  %v4684 = vsel %vm2046, %v4665, 0
  %v4687 = vsel %vm2046, %v4667, 0
  %v4690 = vsel %vm2046, %v4669, 0
  %v4693 = vsel %vm2046, %v4671, 0
  %v4696 = vsel %vm2046, %v4673, 0
  %v4699 = vsel %vm2046, %v4489, 0
  %v4702 = vsel %vm2046, %v4490, 0
  %v4705 = vsel %vm2046, %v4491, 0
  %v4708 = vsel %vm2046, %v4492, 0
  %v4711 = vsel %vm2046, %v4493, 0
  %v4714 = vsel %vm2046, %v4494, 0
  %v4717 = vsel %vm2046, %v4495, 0
  %v4720 = vsel %vm2046, %v4496, 0
  %4722 = vmatprep.subr.bf16.mxu0 0
  %4723 = vmatpush1.bf16.xpose.msra.mxu0 %v4720
  %4724 = vmatprep.subr.bf16.mxu0 0
  %4725 = vmatpush1.bf16.xpose.msra.mxu0 %v4717
  %4726 = vmatprep.subr.bf16.mxu0 0
  %4727 = vmatpush1.bf16.xpose.msra.mxu0 %v4714
  %4728 = vmatprep.subr.bf16.mxu0 0
  %4729 = vmatpush1.bf16.xpose.msra.mxu0 %v4711
  %4730 = vmatprep.subr.bf16.mxu0 0
  %4731 = vmatpush1.bf16.xpose.msra.mxu0 %v4708
  %4732 = vmatprep.subr.bf16.mxu0 0
  %4733 = vmatpush1.bf16.xpose.msra.mxu0 %v4705
  %4734 = vmatprep.subr.bf16.mxu0 0
  %4735 = vmatpush1.bf16.xpose.msra.mxu0 %v4702
  %4736 = vmatprep.subr.bf16.mxu0 0
  %4737 = vmatpush1.bf16.xpose.msra.mxu0 %v4699
  %4738 = vmatprep.subr.bf16.mxu0 0
  %4739 = vmatpush2.bf16.xpose.msra.mxu0 0
  %4740 = vmatprep.subr.bf16.mxu0 0
  %4741 = vmatpush2.bf16.xpose.msra.mxu0 0
  %4742 = vmatprep.subr.bf16.mxu0 0
  %4743 = vmatpush2.bf16.xpose.msra.mxu0 0
  %4744 = vmatprep.subr.bf16.mxu0 0
  %4745 = vmatpush2.bf16.xpose.msra.mxu0 0
  %4746 = vmatprep.subr.bf16.mxu0 0
  %4747 = vmatpush2.bf16.xpose.msra.mxu0 0
  %4748 = vmatprep.subr.bf16.mxu0 0
  %4749 = vmatpush2.bf16.xpose.msra.mxu0 0
  %4750 = vmatprep.subr.bf16.mxu0 0
  %4751 = vmatpush2.bf16.xpose.msra.mxu0 0
  %4752 = vmatprep.subr.bf16.mxu0 0
  %4753 = vmatpush2.bf16.xpose.msra.mxu0 0
  %4754 = vmatprep.mubr.bf16.mxu0 0
  %4755 = vmatmul.mubr.bf16.gmra.mxu0 %v4675
  %v4756 = vpop.f32.mrf.mxu0
  %v4757 = vadd.f32 %v1946, %v4756
  %v4758 = vpop.f32.mrf.mxu0
  %v4759 = vpop.f32.mrf.mxu0
  %v4760 = vadd.f32 %v1947, %v4759
  %v4761 = vpop.f32.mrf.mxu0
  %4762 = vmatprep.mubr.bf16.mxu0 0
  %4763 = vmatmul.mubr.bf16.gmra.mxu0 %v4678
  %v4764 = vpop.f32.mrf.mxu0
  %v4765 = vadd.f32 %v1948, %v4764
  %v4766 = vpop.f32.mrf.mxu0
  %v4767 = vpop.f32.mrf.mxu0
  %v4768 = vadd.f32 %v1949, %v4767
  %v4769 = vpop.f32.mrf.mxu0
  %4770 = vmatprep.mubr.bf16.mxu0 0
  %4771 = vmatmul.mubr.bf16.gmra.mxu0 %v4681
  %v4772 = vpop.f32.mrf.mxu0
  %v4773 = vadd.f32 %v1950, %v4772
  %v4774 = vpop.f32.mrf.mxu0
  %v4775 = vpop.f32.mrf.mxu0
  %v4776 = vadd.f32 %v1951, %v4775
  %v4777 = vpop.f32.mrf.mxu0
  %4778 = vmatprep.mubr.bf16.mxu0 0
  %4779 = vmatmul.mubr.bf16.gmra.mxu0 %v4684
  %v4780 = vpop.f32.mrf.mxu0
  %v4781 = vadd.f32 %v1952, %v4780
  %v4782 = vpop.f32.mrf.mxu0
  %v4783 = vpop.f32.mrf.mxu0
  %v4784 = vadd.f32 %v1953, %v4783
  %v4785 = vpop.f32.mrf.mxu0
  %4786 = vmatprep.mubr.bf16.mxu0 0
  %4787 = vmatmul.mubr.bf16.gmra.mxu0 %v4687
  %v4788 = vpop.f32.mrf.mxu0
  %v4789 = vadd.f32 %v1954, %v4788
  %v4790 = vpop.f32.mrf.mxu0
  %v4791 = vpop.f32.mrf.mxu0
  %v4792 = vadd.f32 %v1955, %v4791
  %v4793 = vpop.f32.mrf.mxu0
  %4794 = vmatprep.mubr.bf16.mxu0 0
  %4795 = vmatmul.mubr.bf16.gmra.mxu0 %v4690
  %v4796 = vpop.f32.mrf.mxu0
  %v4797 = vadd.f32 %v1956, %v4796
  %v4798 = vpop.f32.mrf.mxu0
  %v4799 = vpop.f32.mrf.mxu0
  %v4800 = vadd.f32 %v1957, %v4799
  %v4801 = vpop.f32.mrf.mxu0
  %4802 = vmatprep.mubr.bf16.mxu0 0
  %4803 = vmatmul.mubr.bf16.gmra.mxu0 %v4693
  %v4804 = vpop.f32.mrf.mxu0
  %v4805 = vadd.f32 %v1958, %v4804
  %v4806 = vpop.f32.mrf.mxu0
  %v4807 = vpop.f32.mrf.mxu0
  %v4808 = vadd.f32 %v1959, %v4807
  %v4809 = vpop.f32.mrf.mxu0
  %4810 = vmatprep.mubr.bf16.mxu0 0
  %4811 = vmatmul.mubr.bf16.gmra.mxu0 %v4696
  %v4812 = vpop.f32.mrf.mxu0
  %v4813 = vadd.f32 %v1960, %v4812
  %v4814 = vpop.f32.mrf.mxu0
  %v4815 = vpop.f32.mrf.mxu0
  %v4816 = vadd.f32 %v1961, %v4815
  %v4817 = vpop.f32.mrf.mxu0
  %4818 = vdwg.mxu0
  %4819 = vmax.xlane.f32.xlu0 %v4596
  %v4820 = vpop.xlane.xlu0 %4819
  %4821 = vmax.xlane.f32.xlu0 %v4599
  %v4822 = vpop.xlane.xlu0 %4821
  %4823 = vmax.xlane.f32.xlu0 %v4604
  %v4824 = vpop.xlane.xlu0 %4823
  %4825 = vmax.xlane.f32.xlu0 %v4607
  %v4826 = vpop.xlane.xlu0 %4825
  %4827 = vmax.xlane.f32.xlu0 %v4612
  %v4828 = vpop.xlane.xlu0 %4827
  %4829 = vmax.xlane.f32.xlu0 %v4615
  %v4830 = vpop.xlane.xlu0 %4829
  %4831 = vmax.xlane.f32.xlu0 %v4620
  %v4832 = vpop.xlane.xlu0 %4831
  %4833 = vmax.xlane.f32.xlu0 %v4623
  %v4834 = vpop.xlane.xlu0 %4833
  %4835 = vmax.xlane.f32.xlu0 %v4628
  %v4836 = vpop.xlane.xlu0 %4835
  %4837 = vmax.xlane.f32.xlu0 %v4631
  %v4838 = vpop.xlane.xlu0 %4837
  %4839 = vmax.xlane.f32.xlu0 %v4636
  %v4840 = vpop.xlane.xlu0 %4839
  %4841 = vmax.xlane.f32.xlu0 %v4639
  %v4842 = vpop.xlane.xlu0 %4841
  %4843 = vmax.xlane.f32.xlu0 %v4644
  %v4844 = vpop.xlane.xlu0 %4843
  %4845 = vmax.xlane.f32.xlu0 %v4647
  %v4846 = vpop.xlane.xlu0 %4845
  %4847 = vmax.xlane.f32.xlu0 %v4652
  %v4848 = vpop.xlane.xlu0 %4847
  %4849 = vmax.xlane.f32.xlu0 %v4655
  %v4850 = vpop.xlane.xlu0 %4849
  %4851 = vmax.xlane.f32.xlu0 %v4757
  %v4852 = vpop.xlane.xlu0 %4851
  %4853 = vmax.xlane.f32.xlu0 %v4760
  %v4854 = vpop.xlane.xlu0 %4853
  %4855 = vmax.xlane.f32.xlu0 %v4765
  %v4856 = vpop.xlane.xlu0 %4855
  %4857 = vmax.xlane.f32.xlu0 %v4768
  %v4858 = vpop.xlane.xlu0 %4857
  %4859 = vmax.xlane.f32.xlu0 %v4773
  %v4860 = vpop.xlane.xlu0 %4859
  %4861 = vmax.xlane.f32.xlu0 %v4776
  %v4862 = vpop.xlane.xlu0 %4861
  %4863 = vmax.xlane.f32.xlu0 %v4781
  %v4864 = vpop.xlane.xlu0 %4863
  %4865 = vmax.xlane.f32.xlu0 %v4784
  %v4866 = vpop.xlane.xlu0 %4865
  %4867 = vmax.xlane.f32.xlu0 %v4789
  %v4868 = vpop.xlane.xlu0 %4867
  %4869 = vmax.xlane.f32.xlu0 %v4792
  %v4870 = vpop.xlane.xlu0 %4869
  %4871 = vmax.xlane.f32.xlu0 %v4797
  %v4872 = vpop.xlane.xlu0 %4871
  %4873 = vmax.xlane.f32.xlu0 %v4800
  %v4874 = vpop.xlane.xlu0 %4873
  %4875 = vmax.xlane.f32.xlu0 %v4805
  %v4876 = vpop.xlane.xlu0 %4875
  %4877 = vmax.xlane.f32.xlu0 %v4808
  %v4878 = vpop.xlane.xlu0 %4877
  %4879 = vmax.xlane.f32.xlu0 %v4813
  %v4880 = vpop.xlane.xlu0 %4879
  %4881 = vmax.xlane.f32.xlu0 %v4816
  %v4882 = vpop.xlane.xlu0 %4881
  %v4883 = vsub.f32 %v4596, %v4820
  %v4884 = vsub.f32 %v4599, %v4822
  %v4885 = vsub.f32 %v4604, %v4824
  %v4886 = vsub.f32 %v4607, %v4826
  %v4887 = vsub.f32 %v4612, %v4828
  %v4888 = vsub.f32 %v4615, %v4830
  %v4889 = vsub.f32 %v4620, %v4832
  %v4890 = vsub.f32 %v4623, %v4834
  %v4891 = vsub.f32 %v4628, %v4836
  %v4892 = vsub.f32 %v4631, %v4838
  %v4893 = vsub.f32 %v4636, %v4840
  %v4894 = vsub.f32 %v4639, %v4842
  %v4895 = vsub.f32 %v4644, %v4844
  %v4896 = vsub.f32 %v4647, %v4846
  %v4897 = vsub.f32 %v4652, %v4848
  %v4898 = vsub.f32 %v4655, %v4850
  %v4899 = vsub.f32 %v4757, %v4852
  %v4900 = vsub.f32 %v4760, %v4854
  %v4901 = vsub.f32 %v4765, %v4856
  %v4902 = vsub.f32 %v4768, %v4858
  %v4903 = vsub.f32 %v4773, %v4860
  %v4904 = vsub.f32 %v4776, %v4862
  %v4905 = vsub.f32 %v4781, %v4864
  %v4906 = vsub.f32 %v4784, %v4866
  %v4907 = vsub.f32 %v4789, %v4868
  %v4908 = vsub.f32 %v4792, %v4870
  %v4909 = vsub.f32 %v4797, %v4872
  %v4910 = vsub.f32 %v4800, %v4874
  %v4911 = vsub.f32 %v4805, %v4876
  %v4912 = vsub.f32 %v4808, %v4878
  %v4913 = vsub.f32 %v4813, %v4880
  %v4914 = vsub.f32 %v4816, %v4882
  %v4915 = vmul.f32 %v4883, 1.442695
  %v4916 = vpow.pop %v4915
  %v4917 = vmul.f32 %v4884, 1.442695
  %v4918 = vpow.pop %v4917
  %v4919 = vmul.f32 %v4885, 1.442695
  %v4920 = vpow.pop %v4919
  %v4921 = vmul.f32 %v4886, 1.442695
  %v4922 = vpow.pop %v4921
  %v4923 = vmul.f32 %v4887, 1.442695
  %v4924 = vpow.pop %v4923
  %v4925 = vmul.f32 %v4888, 1.442695
  %v4926 = vpow.pop %v4925
  %v4927 = vmul.f32 %v4889, 1.442695
  %v4928 = vpow.pop %v4927
  %v4929 = vmul.f32 %v4890, 1.442695
  %v4930 = vpow.pop %v4929
  %v4931 = vmul.f32 %v4891, 1.442695
  %v4932 = vpow.pop %v4931
  %v4933 = vmul.f32 %v4892, 1.442695
  %v4934 = vpow.pop %v4933
  %v4935 = vmul.f32 %v4893, 1.442695
  %v4936 = vpow.pop %v4935
  %v4937 = vmul.f32 %v4894, 1.442695
  %v4938 = vpow.pop %v4937
  %v4939 = vmul.f32 %v4895, 1.442695
  %v4940 = vpow.pop %v4939
  %v4941 = vmul.f32 %v4896, 1.442695
  %v4942 = vpow.pop %v4941
  %v4943 = vmul.f32 %v4897, 1.442695
  %v4944 = vpow.pop %v4943
  %v4945 = vmul.f32 %v4898, 1.442695
  %v4946 = vpow.pop %v4945
  %v4947 = vmul.f32 %v4899, 1.442695
  %v4948 = vpow.pop %v4947
  %v4949 = vmul.f32 %v4900, 1.442695
  %v4950 = vpow.pop %v4949
  %v4951 = vmul.f32 %v4901, 1.442695
  %v4952 = vpow.pop %v4951
  %v4953 = vmul.f32 %v4902, 1.442695
  %v4954 = vpow.pop %v4953
  %v4955 = vmul.f32 %v4903, 1.442695
  %v4956 = vpow.pop %v4955
  %v4957 = vmul.f32 %v4904, 1.442695
  %v4958 = vpow.pop %v4957
  %v4959 = vmul.f32 %v4905, 1.442695
  %v4960 = vpow.pop %v4959
  %v4961 = vmul.f32 %v4906, 1.442695
  %v4962 = vpow.pop %v4961
  %v4963 = vmul.f32 %v4907, 1.442695
  %v4964 = vpow.pop %v4963
  %v4965 = vmul.f32 %v4908, 1.442695
  %v4966 = vpow.pop %v4965
  %v4967 = vmul.f32 %v4909, 1.442695
  %v4968 = vpow.pop %v4967
  %v4969 = vmul.f32 %v4910, 1.442695
  %v4970 = vpow.pop %v4969
  %v4971 = vmul.f32 %v4911, 1.442695
  %v4972 = vpow.pop %v4971
  %v4973 = vmul.f32 %v4912, 1.442695
  %v4974 = vpow.pop %v4973
  %v4975 = vmul.f32 %v4913, 1.442695
  %v4976 = vpow.pop %v4975
  %v4977 = vmul.f32 %v4914, 1.442695
  %v4978 = vpow.pop %v4977
  %4979 = vadd.xlane.f32.xlu0 %v4916
  %v4980 = vpop.xlane.xlu0 %4979
  %4981 = vadd.xlane.f32.xlu0 %v4918
  %v4982 = vpop.xlane.xlu0 %4981
  %4983 = vadd.xlane.f32.xlu0 %v4920
  %v4984 = vpop.xlane.xlu0 %4983
  %4985 = vadd.xlane.f32.xlu0 %v4922
  %v4986 = vpop.xlane.xlu0 %4985
  %4987 = vadd.xlane.f32.xlu0 %v4924
  %v4988 = vpop.xlane.xlu0 %4987
  %4989 = vadd.xlane.f32.xlu0 %v4926
  %v4990 = vpop.xlane.xlu0 %4989
  %4991 = vadd.xlane.f32.xlu0 %v4928
  %v4992 = vpop.xlane.xlu0 %4991
  %4993 = vadd.xlane.f32.xlu0 %v4930
  %v4994 = vpop.xlane.xlu0 %4993
  %4995 = vadd.xlane.f32.xlu0 %v4932
  %v4996 = vpop.xlane.xlu0 %4995
  %4997 = vadd.xlane.f32.xlu0 %v4934
  %v4998 = vpop.xlane.xlu0 %4997
  %4999 = vadd.xlane.f32.xlu0 %v4936
  %v5000 = vpop.xlane.xlu0 %4999
  %5001 = vadd.xlane.f32.xlu0 %v4938
  %v5002 = vpop.xlane.xlu0 %5001
  %5003 = vadd.xlane.f32.xlu0 %v4940
  %v5004 = vpop.xlane.xlu0 %5003
  %5005 = vadd.xlane.f32.xlu0 %v4942
  %v5006 = vpop.xlane.xlu0 %5005
  %5007 = vadd.xlane.f32.xlu0 %v4944
  %v5008 = vpop.xlane.xlu0 %5007
  %5009 = vadd.xlane.f32.xlu0 %v4946
  %v5010 = vpop.xlane.xlu0 %5009
  %5011 = vadd.xlane.f32.xlu0 %v4948
  %v5012 = vpop.xlane.xlu0 %5011
  %5013 = vadd.xlane.f32.xlu0 %v4950
  %v5014 = vpop.xlane.xlu0 %5013
  %5015 = vadd.xlane.f32.xlu0 %v4952
  %v5016 = vpop.xlane.xlu0 %5015
  %5017 = vadd.xlane.f32.xlu0 %v4954
  %v5018 = vpop.xlane.xlu0 %5017
  %5019 = vadd.xlane.f32.xlu0 %v4956
  %v5020 = vpop.xlane.xlu0 %5019
  %5021 = vadd.xlane.f32.xlu0 %v4958
  %v5022 = vpop.xlane.xlu0 %5021
  %5023 = vadd.xlane.f32.xlu0 %v4960
  %v5024 = vpop.xlane.xlu0 %5023
  %5025 = vadd.xlane.f32.xlu0 %v4962
  %v5026 = vpop.xlane.xlu0 %5025
  %5027 = vadd.xlane.f32.xlu0 %v4964
  %v5028 = vpop.xlane.xlu0 %5027
  %5029 = vadd.xlane.f32.xlu0 %v4966
  %v5030 = vpop.xlane.xlu0 %5029
  %5031 = vadd.xlane.f32.xlu0 %v4968
  %v5032 = vpop.xlane.xlu0 %5031
  %5033 = vadd.xlane.f32.xlu0 %v4970
  %v5034 = vpop.xlane.xlu0 %5033
  %5035 = vadd.xlane.f32.xlu0 %v4972
  %v5036 = vpop.xlane.xlu0 %5035
  %5037 = vadd.xlane.f32.xlu0 %v4974
  %v5038 = vpop.xlane.xlu0 %5037
  %5039 = vadd.xlane.f32.xlu0 %v4976
  %v5040 = vpop.xlane.xlu0 %5039
  %5041 = vadd.xlane.f32.xlu0 %v4978
  %v5042 = vpop.xlane.xlu0 %5041
  %v5043 = vrcp.pop %v4980
  %v5044 = vrcp.pop %v4982
  %v5045 = vrcp.pop %v4984
  %v5046 = vrcp.pop %v4986
  %v5047 = vrcp.pop %v4988
  %v5048 = vrcp.pop %v4990
  %v5049 = vrcp.pop %v4992
  %v5050 = vrcp.pop %v4994
  %v5051 = vrcp.pop %v4996
  %v5052 = vrcp.pop %v4998
  %v5053 = vrcp.pop %v5000
  %v5054 = vrcp.pop %v5002
  %v5055 = vrcp.pop %v5004
  %v5056 = vrcp.pop %v5006
  %v5057 = vrcp.pop %v5008
  %v5058 = vrcp.pop %v5010
  %v5059 = vrcp.pop %v5012
  %v5060 = vrcp.pop %v5014
  %v5061 = vrcp.pop %v5016
  %v5062 = vrcp.pop %v5018
  %v5063 = vrcp.pop %v5020
  %v5064 = vrcp.pop %v5022
  %v5065 = vrcp.pop %v5024
  %v5066 = vrcp.pop %v5026
  %v5067 = vrcp.pop %v5028
  %v5068 = vrcp.pop %v5030
  %v5069 = vrcp.pop %v5032
  %v5070 = vrcp.pop %v5034
  %v5071 = vrcp.pop %v5036
  %v5072 = vrcp.pop %v5038
  %v5073 = vrcp.pop %v5040
  %v5074 = vrcp.pop %v5042
  %v5075 = vmul.f32 %v4916, %v5043
  %v5076 = vmul.f32 %v4918, %v5044
  %v5077 = vmul.f32 %v4920, %v5045
  %v5078 = vmul.f32 %v4922, %v5046
  %v5079 = vmul.f32 %v4924, %v5047
  %v5080 = vmul.f32 %v4926, %v5048
  %v5081 = vmul.f32 %v4928, %v5049
  %v5082 = vmul.f32 %v4930, %v5050
  %v5083 = vmul.f32 %v4932, %v5051
  %v5084 = vmul.f32 %v4934, %v5052
  %v5085 = vmul.f32 %v4936, %v5053
  %v5086 = vmul.f32 %v4938, %v5054
  %v5087 = vmul.f32 %v4940, %v5055
  %v5088 = vmul.f32 %v4942, %v5056
  %v5089 = vmul.f32 %v4944, %v5057
  %v5090 = vmul.f32 %v4946, %v5058
  %v5091 = vmul.f32 %v4948, %v5059
  %v5092 = vmul.f32 %v4950, %v5060
  %v5093 = vmul.f32 %v4952, %v5061
  %v5094 = vmul.f32 %v4954, %v5062
  %v5095 = vmul.f32 %v4956, %v5063
  %v5096 = vmul.f32 %v4958, %v5064
  %v5097 = vmul.f32 %v4960, %v5065
  %v5098 = vmul.f32 %v4962, %v5066
  %v5099 = vmul.f32 %v4964, %v5067
  %v5100 = vmul.f32 %v4966, %v5068
  %v5101 = vmul.f32 %v4968, %v5069
  %v5102 = vmul.f32 %v4970, %v5070
  %v5103 = vmul.f32 %v4972, %v5071
  %v5104 = vmul.f32 %v4974, %v5072
  %v5105 = vmul.f32 %v4976, %v5073
  %v5106 = vmul.f32 %v4978, %v5074
  %v5107 = vpack.c.bf16 %v5076, %v5075
  %v5108 = vpack.c.bf16 %v5078, %v5077
  %v5109 = vpack.c.bf16 %v5080, %v5079
  %v5110 = vpack.c.bf16 %v5082, %v5081
  %v5111 = vpack.c.bf16 %v5084, %v5083
  %v5112 = vpack.c.bf16 %v5086, %v5085
  %v5113 = vpack.c.bf16 %v5088, %v5087
  %v5114 = vpack.c.bf16 %v5090, %v5089
  %v5115 = vpack.c.bf16 %v5092, %v5091
  %v5116 = vpack.c.bf16 %v5094, %v5093
  %v5117 = vpack.c.bf16 %v5096, %v5095
  %v5118 = vpack.c.bf16 %v5098, %v5097
  %v5119 = vpack.c.bf16 %v5100, %v5099
  %v5120 = vpack.c.bf16 %v5102, %v5101
  %v5121 = vpack.c.bf16 %v5104, %v5103
  %v5122 = vpack.c.bf16 %v5106, %v5105
  %5123 = vrot.lane.b32.xlu0 %v2006, 64
  %v5124 = vpop.permute.xlu0 %5123
  %5125 = vrot.lane.b32.xlu0 %v2007, 64
  %v5126 = vpop.permute.xlu0 %5125
  %5127 = vrot.lane.b32.xlu0 %v2008, 64
  %v5128 = vpop.permute.xlu0 %5127
  %5129 = vrot.lane.b32.xlu0 %v2009, 64
  %v5130 = vpop.permute.xlu0 %5129
  %5131 = vrot.lane.b32.xlu0 %v2010, 64
  %v5132 = vpop.permute.xlu0 %5131
  %5133 = vrot.lane.b32.xlu0 %v2011, 64
  %v5134 = vpop.permute.xlu0 %5133
  %5135 = vrot.lane.b32.xlu0 %v2012, 64
  %v5136 = vpop.permute.xlu0 %5135
  %5137 = vrot.lane.b32.xlu0 %v2013, 64
  %v5138 = vpop.permute.xlu0 %5137
  %5147 = vmatprep.subr.bf16.mxu0 0
  %5148 = vmatpush1.bf16.msra.mxu0 %v5138
  %5149 = vmatprep.subr.bf16.mxu0 0
  %5150 = vmatpush1.bf16.msra.mxu0 %v5136
  %5151 = vmatprep.subr.bf16.mxu0 0
  %5152 = vmatpush1.bf16.msra.mxu0 %v5134
  %5153 = vmatprep.subr.bf16.mxu0 0
  %5154 = vmatpush1.bf16.msra.mxu0 %v5132
  %5155 = vmatprep.subr.bf16.mxu0 0
  %5156 = vmatpush1.bf16.msra.mxu0 %v5130
  %5157 = vmatprep.subr.bf16.mxu0 0
  %5158 = vmatpush1.bf16.msra.mxu0 %v5128
  %5159 = vmatprep.subr.bf16.mxu0 0
  %5160 = vmatpush1.bf16.msra.mxu0 %v5126
  %5161 = vmatprep.subr.bf16.mxu0 0
  %5162 = vmatpush1.bf16.msra.mxu0 %v5124
  %5163 = vmatprep.subr.bf16.mxu0 0
  %5164 = vmatpush2.bf16.msra.mxu0 0
  %5165 = vmatprep.subr.bf16.mxu0 0
  %5166 = vmatpush2.bf16.msra.mxu0 0
  %5167 = vmatprep.subr.bf16.mxu0 0
  %5168 = vmatpush2.bf16.msra.mxu0 0
  %5169 = vmatprep.subr.bf16.mxu0 0
  %5170 = vmatpush2.bf16.msra.mxu0 0
  %5171 = vmatprep.subr.bf16.mxu0 0
  %5172 = vmatpush2.bf16.msra.mxu0 0
  %5173 = vmatprep.subr.bf16.mxu0 0
  %5174 = vmatpush2.bf16.msra.mxu0 0
  %5175 = vmatprep.subr.bf16.mxu0 0
  %5176 = vmatpush2.bf16.msra.mxu0 0
  %5177 = vmatprep.subr.bf16.mxu0 0
  %5178 = vmatpush2.bf16.msra.mxu0 0
  %5179 = vmatprep.mubr.bf16.mxu0 0
  %5180 = vmatmul.mubr.bf16.gmra.mxu0 %v5107
  %v5181 = vpop.f32.mrf.mxu0
  %v5182 = vadd.f32 0.0, %v5181
  %v5183 = vpop.f32.mrf.mxu0
  %v5184 = vpop.f32.mrf.mxu0
  %v5185 = vadd.f32 0.0, %v5184
  %v5186 = vpop.f32.mrf.mxu0
  %5187 = vmatprep.mubr.bf16.mxu0 0
  %5188 = vmatmul.mubr.bf16.gmra.mxu0 %v5108
  %v5189 = vpop.f32.mrf.mxu0
  %v5190 = vadd.f32 0.0, %v5189
  %v5191 = vpop.f32.mrf.mxu0
  %v5192 = vpop.f32.mrf.mxu0
  %v5193 = vadd.f32 0.0, %v5192
  %v5194 = vpop.f32.mrf.mxu0
  %5195 = vmatprep.mubr.bf16.mxu0 0
  %5196 = vmatmul.mubr.bf16.gmra.mxu0 %v5109
  %v5197 = vpop.f32.mrf.mxu0
  %v5198 = vadd.f32 0.0, %v5197
  %v5199 = vpop.f32.mrf.mxu0
  %v5200 = vpop.f32.mrf.mxu0
  %v5201 = vadd.f32 0.0, %v5200
  %v5202 = vpop.f32.mrf.mxu0
  %5203 = vmatprep.mubr.bf16.mxu0 0
  %5204 = vmatmul.mubr.bf16.gmra.mxu0 %v5110
  %v5205 = vpop.f32.mrf.mxu0
  %v5206 = vadd.f32 0.0, %v5205
  %v5207 = vpop.f32.mrf.mxu0
  %v5208 = vpop.f32.mrf.mxu0
  %v5209 = vadd.f32 0.0, %v5208
  %v5210 = vpop.f32.mrf.mxu0
  %5211 = vmatprep.mubr.bf16.mxu0 0
  %5212 = vmatmul.mubr.bf16.gmra.mxu0 %v5111
  %v5213 = vpop.f32.mrf.mxu0
  %v5214 = vadd.f32 0.0, %v5213
  %v5215 = vpop.f32.mrf.mxu0
  %v5216 = vpop.f32.mrf.mxu0
  %v5217 = vadd.f32 0.0, %v5216
  %v5218 = vpop.f32.mrf.mxu0
  %5219 = vmatprep.mubr.bf16.mxu0 0
  %5220 = vmatmul.mubr.bf16.gmra.mxu0 %v5112
  %v5221 = vpop.f32.mrf.mxu0
  %v5222 = vadd.f32 0.0, %v5221
  %v5223 = vpop.f32.mrf.mxu0
  %v5224 = vpop.f32.mrf.mxu0
  %v5225 = vadd.f32 0.0, %v5224
  %v5226 = vpop.f32.mrf.mxu0
  %5227 = vmatprep.mubr.bf16.mxu0 0
  %5228 = vmatmul.mubr.bf16.gmra.mxu0 %v5113
  %v5229 = vpop.f32.mrf.mxu0
  %v5230 = vadd.f32 0.0, %v5229
  %v5231 = vpop.f32.mrf.mxu0
  %v5232 = vpop.f32.mrf.mxu0
  %v5233 = vadd.f32 0.0, %v5232
  %v5234 = vpop.f32.mrf.mxu0
  %5235 = vmatprep.mubr.bf16.mxu0 0
  %5236 = vmatmul.mubr.bf16.gmra.mxu0 %v5114
  %v5237 = vpop.f32.mrf.mxu0
  %v5238 = vadd.f32 0.0, %v5237
  %v5239 = vpop.f32.mrf.mxu0
  %v5240 = vpop.f32.mrf.mxu0
  %v5241 = vadd.f32 0.0, %v5240
  %v5242 = vpop.f32.mrf.mxu0
  %5243 = vdwg.mxu0
  %5244 = vrot.lane.b32.xlu0 %v2014, 64
  %v5245 = vpop.permute.xlu0 %5244
  %5246 = vrot.lane.b32.xlu0 %v2015, 64
  %v5247 = vpop.permute.xlu0 %5246
  %5248 = vrot.lane.b32.xlu0 %v2016, 64
  %v5249 = vpop.permute.xlu0 %5248
  %5250 = vrot.lane.b32.xlu0 %v2017, 64
  %v5251 = vpop.permute.xlu0 %5250
  %5252 = vrot.lane.b32.xlu0 %v2018, 64
  %v5253 = vpop.permute.xlu0 %5252
  %5254 = vrot.lane.b32.xlu0 %v2019, 64
  %v5255 = vpop.permute.xlu0 %5254
  %5256 = vrot.lane.b32.xlu0 %v2020, 64
  %v5257 = vpop.permute.xlu0 %5256
  %5258 = vrot.lane.b32.xlu0 %v2021, 64
  %v5259 = vpop.permute.xlu0 %5258
  %5268 = vmatprep.subr.bf16.mxu0 0
  %5269 = vmatpush1.bf16.msra.mxu0 %v5259
  %5270 = vmatprep.subr.bf16.mxu0 0
  %5271 = vmatpush1.bf16.msra.mxu0 %v5257
  %5272 = vmatprep.subr.bf16.mxu0 0
  %5273 = vmatpush1.bf16.msra.mxu0 %v5255
  %5274 = vmatprep.subr.bf16.mxu0 0
  %5275 = vmatpush1.bf16.msra.mxu0 %v5253
  %5276 = vmatprep.subr.bf16.mxu0 0
  %5277 = vmatpush1.bf16.msra.mxu0 %v5251
  %5278 = vmatprep.subr.bf16.mxu0 0
  %5279 = vmatpush1.bf16.msra.mxu0 %v5249
  %5280 = vmatprep.subr.bf16.mxu0 0
  %5281 = vmatpush1.bf16.msra.mxu0 %v5247
  %5282 = vmatprep.subr.bf16.mxu0 0
  %5283 = vmatpush1.bf16.msra.mxu0 %v5245
  %5284 = vmatprep.subr.bf16.mxu0 0
  %5285 = vmatpush2.bf16.msra.mxu0 0
  %5286 = vmatprep.subr.bf16.mxu0 0
  %5287 = vmatpush2.bf16.msra.mxu0 0
  %5288 = vmatprep.subr.bf16.mxu0 0
  %5289 = vmatpush2.bf16.msra.mxu0 0
  %5290 = vmatprep.subr.bf16.mxu0 0
  %5291 = vmatpush2.bf16.msra.mxu0 0
  %5292 = vmatprep.subr.bf16.mxu0 0
  %5293 = vmatpush2.bf16.msra.mxu0 0
  %5294 = vmatprep.subr.bf16.mxu0 0
  %5295 = vmatpush2.bf16.msra.mxu0 0
  %5296 = vmatprep.subr.bf16.mxu0 0
  %5297 = vmatpush2.bf16.msra.mxu0 0
  %5298 = vmatprep.subr.bf16.mxu0 0
  %5299 = vmatpush2.bf16.msra.mxu0 0
  %5300 = vmatprep.mubr.bf16.mxu0 0
  %5301 = vmatmul.mubr.bf16.gmra.mxu0 %v5115
  %v5302 = vpop.f32.mrf.mxu0
  %v5303 = vadd.f32 0.0, %v5302
  %v5304 = vpop.f32.mrf.mxu0
  %v5305 = vpop.f32.mrf.mxu0
  %v5306 = vadd.f32 0.0, %v5305
  %v5307 = vpop.f32.mrf.mxu0
  %5308 = vmatprep.mubr.bf16.mxu0 0
  %5309 = vmatmul.mubr.bf16.gmra.mxu0 %v5116
  %v5310 = vpop.f32.mrf.mxu0
  %v5311 = vadd.f32 0.0, %v5310
  %v5312 = vpop.f32.mrf.mxu0
  %v5313 = vpop.f32.mrf.mxu0
  %v5314 = vadd.f32 0.0, %v5313
  %v5315 = vpop.f32.mrf.mxu0
  %5316 = vmatprep.mubr.bf16.mxu0 0
  %5317 = vmatmul.mubr.bf16.gmra.mxu0 %v5117
  %v5318 = vpop.f32.mrf.mxu0
  %v5319 = vadd.f32 0.0, %v5318
  %v5320 = vpop.f32.mrf.mxu0
  %v5321 = vpop.f32.mrf.mxu0
  %v5322 = vadd.f32 0.0, %v5321
  %v5323 = vpop.f32.mrf.mxu0
  %5324 = vmatprep.mubr.bf16.mxu0 0
  %5325 = vmatmul.mubr.bf16.gmra.mxu0 %v5118
  %v5326 = vpop.f32.mrf.mxu0
  %v5327 = vadd.f32 0.0, %v5326
  %v5328 = vpop.f32.mrf.mxu0
  %v5329 = vpop.f32.mrf.mxu0
  %v5330 = vadd.f32 0.0, %v5329
  %v5331 = vpop.f32.mrf.mxu0
  %5332 = vmatprep.mubr.bf16.mxu0 0
  %5333 = vmatmul.mubr.bf16.gmra.mxu0 %v5119
  %v5334 = vpop.f32.mrf.mxu0
  %v5335 = vadd.f32 0.0, %v5334
  %v5336 = vpop.f32.mrf.mxu0
  %v5337 = vpop.f32.mrf.mxu0
  %v5338 = vadd.f32 0.0, %v5337
  %v5339 = vpop.f32.mrf.mxu0
  %5340 = vmatprep.mubr.bf16.mxu0 0
  %5341 = vmatmul.mubr.bf16.gmra.mxu0 %v5120
  %v5342 = vpop.f32.mrf.mxu0
  %v5343 = vadd.f32 0.0, %v5342
  %v5344 = vpop.f32.mrf.mxu0
  %v5345 = vpop.f32.mrf.mxu0
  %v5346 = vadd.f32 0.0, %v5345
  %v5347 = vpop.f32.mrf.mxu0
  %5348 = vmatprep.mubr.bf16.mxu0 0
  %5349 = vmatmul.mubr.bf16.gmra.mxu0 %v5121
  %v5350 = vpop.f32.mrf.mxu0
  %v5351 = vadd.f32 0.0, %v5350
  %v5352 = vpop.f32.mrf.mxu0
  %v5353 = vpop.f32.mrf.mxu0
  %v5354 = vadd.f32 0.0, %v5353
  %v5355 = vpop.f32.mrf.mxu0
  %5356 = vmatprep.mubr.bf16.mxu0 0
  %5357 = vmatmul.mubr.bf16.gmra.mxu0 %v5122
  %v5358 = vpop.f32.mrf.mxu0
  %v5359 = vadd.f32 0.0, %v5358
  %v5360 = vpop.f32.mrf.mxu0
  %v5361 = vpop.f32.mrf.mxu0
  %v5362 = vadd.f32 0.0, %v5361
  %v5363 = vpop.f32.mrf.mxu0
  %5364 = vdwg.mxu0
  %v5365 = vpack.c.bf16 %v5185, %v5182
  %v5366 = vpack.c.bf16 %v5193, %v5190
  %v5367 = vpack.c.bf16 %v5201, %v5198
  %v5368 = vpack.c.bf16 %v5209, %v5206
  %v5369 = vpack.c.bf16 %v5217, %v5214
  %v5370 = vpack.c.bf16 %v5225, %v5222
  %v5371 = vpack.c.bf16 %v5233, %v5230
  %v5372 = vpack.c.bf16 %v5241, %v5238
  %v5373 = vpack.c.bf16 %v5306, %v5303
  %v5374 = vpack.c.bf16 %v5314, %v5311
  %v5375 = vpack.c.bf16 %v5322, %v5319
  %v5376 = vpack.c.bf16 %v5330, %v5327
  %v5377 = vpack.c.bf16 %v5338, %v5335
  %v5378 = vpack.c.bf16 %v5346, %v5343
  %v5379 = vpack.c.bf16 %v5354, %v5351
  %v5380 = vpack.c.bf16 %v5362, %v5359
  %v5381 = vld [vmem:[%s6 + $0x40] sm:$0xff]
  %v5382 = vld [vmem:[%s6 + $0x48] sm:$0xff]
  %v5383 = vld [vmem:[%s6 + $0x50] sm:$0xff]
  %v5384 = vld [vmem:[%s6 + $0x58] sm:$0xff]
  %v5389 = vunpack.c.l.b16 %v5381
  %v5390 = vunpack.c.h.b16 %v5381
  %v5391 = vunpack.c.l.b16 %v5382
  %v5392 = vunpack.c.h.b16 %v5382
  %v5393 = vunpack.c.l.b16 %v5383
  %v5394 = vunpack.c.h.b16 %v5383
  %v5395 = vunpack.c.l.b16 %v5384
  %v5396 = vunpack.c.h.b16 %v5384
  %v5397 = vpack.c.b16 %v5391, %v5389
  %v5398 = vpack.c.b16 %v5392, %v5390
  %v5399 = vpack.c.b16 %v5395, %v5393
  %v5400 = vpack.c.b16 %v5396, %v5394
  %v5406 = vsel %vm2046, %v5365, 0
  %v5409 = vsel %vm2046, %v5366, 0
  %v5412 = vsel %vm2046, %v5367, 0
  %v5415 = vsel %vm2046, %v5368, 0
  %v5418 = vsel %vm2046, %v5369, 0
  %v5421 = vsel %vm2046, %v5370, 0
  %v5424 = vsel %vm2046, %v5371, 0
  %v5427 = vsel %vm2046, %v5372, 0
  %v5430 = vsel %vm2046, %v5373, 0
  %v5433 = vsel %vm2046, %v5374, 0
  %v5436 = vsel %vm2046, %v5375, 0
  %v5439 = vsel %vm2046, %v5376, 0
  %v5442 = vsel %vm2046, %v5377, 0
  %v5445 = vsel %vm2046, %v5378, 0
  %v5448 = vsel %vm2046, %v5379, 0
  %v5451 = vsel %vm2046, %v5380, 0
  %5453 = vmatprep.subr.bf16.mxu0 0
  %5454 = vmatpush1.bf16.msra.mxu0 0
  %5455 = vmatprep.subr.bf16.mxu0 0
  %5456 = vmatpush1.bf16.msra.mxu0 0
  %5457 = vmatprep.subr.bf16.mxu0 0
  %5458 = vmatpush1.bf16.msra.mxu0 0
  %5459 = vmatprep.subr.bf16.mxu0 0
  %5460 = vmatpush1.bf16.msra.mxu0 0
  %5461 = vmatprep.subr.bf16.mxu0 0
  %5462 = vmatpush1.bf16.msra.mxu0 0
  %5463 = vmatprep.subr.bf16.mxu0 0
  %5464 = vmatpush1.bf16.msra.mxu0 0
  %5465 = vmatprep.subr.bf16.mxu0 %v5400
  %5466 = vmatpush1.bf16.msra.mxu0 %v5399
  %5467 = vmatprep.subr.bf16.mxu0 %v5398
  %5468 = vmatpush1.bf16.msra.mxu0 %v5397
  %5469 = vmatprep.subr.bf16.mxu0 0
  %5470 = vmatpush2.bf16.msra.mxu0 0
  %5471 = vmatprep.subr.bf16.mxu0 0
  %5472 = vmatpush2.bf16.msra.mxu0 0
  %5473 = vmatprep.subr.bf16.mxu0 0
  %5474 = vmatpush2.bf16.msra.mxu0 0
  %5475 = vmatprep.subr.bf16.mxu0 0
  %5476 = vmatpush2.bf16.msra.mxu0 0
  %5477 = vmatprep.subr.bf16.mxu0 0
  %5478 = vmatpush2.bf16.msra.mxu0 0
  %5479 = vmatprep.subr.bf16.mxu0 0
  %5480 = vmatpush2.bf16.msra.mxu0 0
  %5481 = vmatprep.subr.bf16.mxu0 0
  %5482 = vmatpush2.bf16.msra.mxu0 0
  %5483 = vmatprep.subr.bf16.mxu0 0
  %5484 = vmatpush2.bf16.msra.mxu0 0
  %5485 = vmatprep.mubr.bf16.mxu0 0
  %5486 = vmatmul.mubr.bf16.gmra.mxu0 %v5406
  %v5487 = vpop.f32.mrf.mxu0
  %v5488 = vadd.f32 0.0, %v5487
  %v5489 = vpop.f32.mrf.mxu0
  %v5490 = vadd.f32 0.0, %v5489
  %v5491 = vpop.f32.mrf.mxu0
  %v5492 = vadd.f32 0.0, %v5491
  %v5493 = vpop.f32.mrf.mxu0
  %v5494 = vadd.f32 0.0, %v5493
  %5495 = vmatprep.mubr.bf16.mxu0 0
  %5496 = vmatmul.mubr.bf16.gmra.mxu0 %v5409
  %v5497 = vpop.f32.mrf.mxu0
  %v5498 = vadd.f32 0.0, %v5497
  %v5499 = vpop.f32.mrf.mxu0
  %v5500 = vadd.f32 0.0, %v5499
  %v5501 = vpop.f32.mrf.mxu0
  %v5502 = vadd.f32 0.0, %v5501
  %v5503 = vpop.f32.mrf.mxu0
  %v5504 = vadd.f32 0.0, %v5503
  %5505 = vmatprep.mubr.bf16.mxu0 0
  %5506 = vmatmul.mubr.bf16.gmra.mxu0 %v5412
  %v5507 = vpop.f32.mrf.mxu0
  %v5508 = vadd.f32 0.0, %v5507
  %v5509 = vpop.f32.mrf.mxu0
  %v5510 = vadd.f32 0.0, %v5509
  %v5511 = vpop.f32.mrf.mxu0
  %v5512 = vadd.f32 0.0, %v5511
  %v5513 = vpop.f32.mrf.mxu0
  %v5514 = vadd.f32 0.0, %v5513
  %5515 = vmatprep.mubr.bf16.mxu0 0
  %5516 = vmatmul.mubr.bf16.gmra.mxu0 %v5415
  %v5517 = vpop.f32.mrf.mxu0
  %v5518 = vadd.f32 0.0, %v5517
  %v5519 = vpop.f32.mrf.mxu0
  %v5520 = vadd.f32 0.0, %v5519
  %v5521 = vpop.f32.mrf.mxu0
  %v5522 = vadd.f32 0.0, %v5521
  %v5523 = vpop.f32.mrf.mxu0
  %v5524 = vadd.f32 0.0, %v5523
  %5525 = vmatprep.mubr.bf16.mxu0 0
  %5526 = vmatmul.mubr.bf16.gmra.mxu0 %v5418
  %v5527 = vpop.f32.mrf.mxu0
  %v5528 = vadd.f32 0.0, %v5527
  %v5529 = vpop.f32.mrf.mxu0
  %v5530 = vadd.f32 0.0, %v5529
  %v5531 = vpop.f32.mrf.mxu0
  %v5532 = vadd.f32 0.0, %v5531
  %v5533 = vpop.f32.mrf.mxu0
  %v5534 = vadd.f32 0.0, %v5533
  %5535 = vmatprep.mubr.bf16.mxu0 0
  %5536 = vmatmul.mubr.bf16.gmra.mxu0 %v5421
  %v5537 = vpop.f32.mrf.mxu0
  %v5538 = vadd.f32 0.0, %v5537
  %v5539 = vpop.f32.mrf.mxu0
  %v5540 = vadd.f32 0.0, %v5539
  %v5541 = vpop.f32.mrf.mxu0
  %v5542 = vadd.f32 0.0, %v5541
  %v5543 = vpop.f32.mrf.mxu0
  %v5544 = vadd.f32 0.0, %v5543
  %5545 = vmatprep.mubr.bf16.mxu0 0
  %5546 = vmatmul.mubr.bf16.gmra.mxu0 %v5424
  %v5547 = vpop.f32.mrf.mxu0
  %v5548 = vadd.f32 0.0, %v5547
  %v5549 = vpop.f32.mrf.mxu0
  %v5550 = vadd.f32 0.0, %v5549
  %v5551 = vpop.f32.mrf.mxu0
  %v5552 = vadd.f32 0.0, %v5551
  %v5553 = vpop.f32.mrf.mxu0
  %v5554 = vadd.f32 0.0, %v5553
  %5555 = vmatprep.mubr.bf16.mxu0 0
  %5556 = vmatmul.mubr.bf16.gmra.mxu0 %v5427
  %v5557 = vpop.f32.mrf.mxu0
  %v5558 = vadd.f32 0.0, %v5557
  %v5559 = vpop.f32.mrf.mxu0
  %v5560 = vadd.f32 0.0, %v5559
  %v5561 = vpop.f32.mrf.mxu0
  %v5562 = vadd.f32 0.0, %v5561
  %v5563 = vpop.f32.mrf.mxu0
  %v5564 = vadd.f32 0.0, %v5563
  %5565 = vmatprep.mubr.bf16.mxu0 0
  %5566 = vmatmul.mubr.bf16.gmra.mxu0 %v5430
  %v5567 = vpop.f32.mrf.mxu0
  %v5568 = vadd.f32 0.0, %v5567
  %v5569 = vpop.f32.mrf.mxu0
  %v5570 = vadd.f32 0.0, %v5569
  %v5571 = vpop.f32.mrf.mxu0
  %v5572 = vadd.f32 0.0, %v5571
  %v5573 = vpop.f32.mrf.mxu0
  %v5574 = vadd.f32 0.0, %v5573
  %5575 = vmatprep.mubr.bf16.mxu0 0
  %5576 = vmatmul.mubr.bf16.gmra.mxu0 %v5433
  %v5577 = vpop.f32.mrf.mxu0
  %v5578 = vadd.f32 0.0, %v5577
  %v5579 = vpop.f32.mrf.mxu0
  %v5580 = vadd.f32 0.0, %v5579
  %v5581 = vpop.f32.mrf.mxu0
  %v5582 = vadd.f32 0.0, %v5581
  %v5583 = vpop.f32.mrf.mxu0
  %v5584 = vadd.f32 0.0, %v5583
  %5585 = vmatprep.mubr.bf16.mxu0 0
  %5586 = vmatmul.mubr.bf16.gmra.mxu0 %v5436
  %v5587 = vpop.f32.mrf.mxu0
  %v5588 = vadd.f32 0.0, %v5587
  %v5589 = vpop.f32.mrf.mxu0
  %v5590 = vadd.f32 0.0, %v5589
  %v5591 = vpop.f32.mrf.mxu0
  %v5592 = vadd.f32 0.0, %v5591
  %v5593 = vpop.f32.mrf.mxu0
  %v5594 = vadd.f32 0.0, %v5593
  %5595 = vmatprep.mubr.bf16.mxu0 0
  %5596 = vmatmul.mubr.bf16.gmra.mxu0 %v5439
  %v5597 = vpop.f32.mrf.mxu0
  %v5598 = vadd.f32 0.0, %v5597
  %v5599 = vpop.f32.mrf.mxu0
  %v5600 = vadd.f32 0.0, %v5599
  %v5601 = vpop.f32.mrf.mxu0
  %v5602 = vadd.f32 0.0, %v5601
  %v5603 = vpop.f32.mrf.mxu0
  %v5604 = vadd.f32 0.0, %v5603
  %5605 = vmatprep.mubr.bf16.mxu0 0
  %5606 = vmatmul.mubr.bf16.gmra.mxu0 %v5442
  %v5607 = vpop.f32.mrf.mxu0
  %v5608 = vadd.f32 0.0, %v5607
  %v5609 = vpop.f32.mrf.mxu0
  %v5610 = vadd.f32 0.0, %v5609
  %v5611 = vpop.f32.mrf.mxu0
  %v5612 = vadd.f32 0.0, %v5611
  %v5613 = vpop.f32.mrf.mxu0
  %v5614 = vadd.f32 0.0, %v5613
  %5615 = vmatprep.mubr.bf16.mxu0 0
  %5616 = vmatmul.mubr.bf16.gmra.mxu0 %v5445
  %v5617 = vpop.f32.mrf.mxu0
  %v5618 = vadd.f32 0.0, %v5617
  %v5619 = vpop.f32.mrf.mxu0
  %v5620 = vadd.f32 0.0, %v5619
  %v5621 = vpop.f32.mrf.mxu0
  %v5622 = vadd.f32 0.0, %v5621
  %v5623 = vpop.f32.mrf.mxu0
  %v5624 = vadd.f32 0.0, %v5623
  %5625 = vmatprep.mubr.bf16.mxu0 0
  %5626 = vmatmul.mubr.bf16.gmra.mxu0 %v5448
  %v5627 = vpop.f32.mrf.mxu0
  %v5628 = vadd.f32 0.0, %v5627
  %v5629 = vpop.f32.mrf.mxu0
  %v5630 = vadd.f32 0.0, %v5629
  %v5631 = vpop.f32.mrf.mxu0
  %v5632 = vadd.f32 0.0, %v5631
  %v5633 = vpop.f32.mrf.mxu0
  %v5634 = vadd.f32 0.0, %v5633
  %5635 = vmatprep.mubr.bf16.mxu0 0
  %5636 = vmatmul.mubr.bf16.gmra.mxu0 %v5451
  %v5637 = vpop.f32.mrf.mxu0
  %v5638 = vadd.f32 0.0, %v5637
  %v5639 = vpop.f32.mrf.mxu0
  %v5640 = vadd.f32 0.0, %v5639
  %v5641 = vpop.f32.mrf.mxu0
  %v5642 = vadd.f32 0.0, %v5641
  %v5643 = vpop.f32.mrf.mxu0
  %v5644 = vadd.f32 0.0, %v5643
  %5645 = vdwg.mxu0
  %v5646 = vadd.f32 %v4417, %v5488
  %v5647 = vadd.f32 %v4418, %v5490
  %v5648 = vadd.f32 %v4419, %v5492
  %v5649 = vadd.f32 %v4420, %v5494
  %v5650 = vadd.f32 %v4421, %v5498
  %v5651 = vadd.f32 %v4422, %v5500
  %v5652 = vadd.f32 %v4423, %v5502
  %v5653 = vadd.f32 %v4424, %v5504
  %v5654 = vadd.f32 %v4425, %v5508
  %v5655 = vadd.f32 %v4426, %v5510
  %v5656 = vadd.f32 %v4427, %v5512
  %v5657 = vadd.f32 %v4428, %v5514
  %v5658 = vadd.f32 %v4429, %v5518
  %v5659 = vadd.f32 %v4430, %v5520
  %v5660 = vadd.f32 %v4431, %v5522
  %v5661 = vadd.f32 %v4432, %v5524
  %v5662 = vadd.f32 %v4433, %v5528
  %v5663 = vadd.f32 %v4434, %v5530
  %v5664 = vadd.f32 %v4435, %v5532
  %v5665 = vadd.f32 %v4436, %v5534
  %v5666 = vadd.f32 %v4437, %v5538
  %v5667 = vadd.f32 %v4438, %v5540
  %v5668 = vadd.f32 %v4439, %v5542
  %v5669 = vadd.f32 %v4440, %v5544
  %v5670 = vadd.f32 %v4441, %v5548
  %v5671 = vadd.f32 %v4442, %v5550
  %v5672 = vadd.f32 %v4443, %v5552
  %v5673 = vadd.f32 %v4444, %v5554
  %v5674 = vadd.f32 %v4445, %v5558
  %v5675 = vadd.f32 %v4446, %v5560
  %v5676 = vadd.f32 %v4447, %v5562
  %v5677 = vadd.f32 %v4448, %v5564
  %v5678 = vadd.f32 %v4449, %v5568
  %v5679 = vadd.f32 %v4450, %v5570
  %v5680 = vadd.f32 %v4451, %v5572
  %v5681 = vadd.f32 %v4452, %v5574
  %v5682 = vadd.f32 %v4453, %v5578
  %v5683 = vadd.f32 %v4454, %v5580
  %v5684 = vadd.f32 %v4455, %v5582
  %v5685 = vadd.f32 %v4456, %v5584
  %v5686 = vadd.f32 %v4457, %v5588
  %v5687 = vadd.f32 %v4458, %v5590
  %v5688 = vadd.f32 %v4459, %v5592
  %v5689 = vadd.f32 %v4460, %v5594
  %v5690 = vadd.f32 %v4461, %v5598
  %v5691 = vadd.f32 %v4462, %v5600
  %v5692 = vadd.f32 %v4463, %v5602
  %v5693 = vadd.f32 %v4464, %v5604
  %v5694 = vadd.f32 %v4465, %v5608
  %v5695 = vadd.f32 %v4466, %v5610
  %v5696 = vadd.f32 %v4467, %v5612
  %v5697 = vadd.f32 %v4468, %v5614
  %v5698 = vadd.f32 %v4469, %v5618
  %v5699 = vadd.f32 %v4470, %v5620
  %v5700 = vadd.f32 %v4471, %v5622
  %v5701 = vadd.f32 %v4472, %v5624
  %v5702 = vadd.f32 %v4473, %v5628
  %v5703 = vadd.f32 %v4474, %v5630
  %v5704 = vadd.f32 %v4475, %v5632
  %v5705 = vadd.f32 %v4476, %v5634
  %v5706 = vadd.f32 %v4477, %v5638
  %v5707 = vadd.f32 %v4478, %v5640
  %v5708 = vadd.f32 %v4479, %v5642
  %v5709 = vadd.f32 %v4480, %v5644
  %5710 = vrot.lane.b32.xlu0 %v1974, 32
  %v5711 = vpop.permute.xlu0 %5710
  %5712 = vrot.lane.b32.xlu0 %v1975, 32
  %v5713 = vpop.permute.xlu0 %5712
  %5714 = vrot.lane.b32.xlu0 %v1976, 32
  %v5715 = vpop.permute.xlu0 %5714
  %5716 = vrot.lane.b32.xlu0 %v1977, 32
  %v5717 = vpop.permute.xlu0 %5716
  %5718 = vrot.lane.b32.xlu0 %v1978, 32
  %v5719 = vpop.permute.xlu0 %5718
  %5720 = vrot.lane.b32.xlu0 %v1979, 32
  %v5721 = vpop.permute.xlu0 %5720
  %5722 = vrot.lane.b32.xlu0 %v1980, 32
  %v5723 = vpop.permute.xlu0 %5722
  %5724 = vrot.lane.b32.xlu0 %v1981, 32
  %v5725 = vpop.permute.xlu0 %5724
  %5734 = vrot.lane.b32.xlu0 %v4481, 96
  %v5735 = vpop.permute.xlu0 %5734
  %5736 = vrot.lane.b32.xlu0 %v4482, 96
  %v5737 = vpop.permute.xlu0 %5736
  %5738 = vrot.lane.b32.xlu0 %v4483, 96
  %v5739 = vpop.permute.xlu0 %5738
  %5740 = vrot.lane.b32.xlu0 %v4484, 96
  %v5741 = vpop.permute.xlu0 %5740
  %5742 = vrot.lane.b32.xlu0 %v4485, 96
  %v5743 = vpop.permute.xlu0 %5742
  %5744 = vrot.lane.b32.xlu0 %v4486, 96
  %v5745 = vpop.permute.xlu0 %5744
  %5746 = vrot.lane.b32.xlu0 %v4487, 96
  %v5747 = vpop.permute.xlu0 %5746
  %5748 = vrot.lane.b32.xlu0 %v4488, 96
  %v5749 = vpop.permute.xlu0 %5748
  %v5751 = vsel %vm2046, %v5711, 0
  %v5754 = vsel %vm2046, %v5713, 0
  %v5757 = vsel %vm2046, %v5715, 0
  %v5760 = vsel %vm2046, %v5717, 0
  %v5763 = vsel %vm2046, %v5719, 0
  %v5766 = vsel %vm2046, %v5721, 0
  %v5769 = vsel %vm2046, %v5723, 0
  %v5772 = vsel %vm2046, %v5725, 0
  %v5775 = vsel %vm2046, %v5735, 0
  %v5778 = vsel %vm2046, %v5737, 0
  %v5781 = vsel %vm2046, %v5739, 0
  %v5784 = vsel %vm2046, %v5741, 0
  %v5787 = vsel %vm2046, %v5743, 0
  %v5790 = vsel %vm2046, %v5745, 0
  %v5793 = vsel %vm2046, %v5747, 0
  %v5796 = vsel %vm2046, %v5749, 0
  %5798 = vmatprep.subr.bf16.mxu0 0
  %5799 = vmatpush1.bf16.xpose.msra.mxu0 %v5796
  %5800 = vmatprep.subr.bf16.mxu0 0
  %5801 = vmatpush1.bf16.xpose.msra.mxu0 %v5793
  %5802 = vmatprep.subr.bf16.mxu0 0
  %5803 = vmatpush1.bf16.xpose.msra.mxu0 %v5790
  %5804 = vmatprep.subr.bf16.mxu0 0
  %5805 = vmatpush1.bf16.xpose.msra.mxu0 %v5787
  %5806 = vmatprep.subr.bf16.mxu0 0
  %5807 = vmatpush1.bf16.xpose.msra.mxu0 %v5784
  %5808 = vmatprep.subr.bf16.mxu0 0
  %5809 = vmatpush1.bf16.xpose.msra.mxu0 %v5781
  %5810 = vmatprep.subr.bf16.mxu0 0
  %5811 = vmatpush1.bf16.xpose.msra.mxu0 %v5778
  %5812 = vmatprep.subr.bf16.mxu0 0
  %5813 = vmatpush1.bf16.xpose.msra.mxu0 %v5775
  %5814 = vmatprep.subr.bf16.mxu0 0
  %5815 = vmatpush2.bf16.xpose.msra.mxu0 0
  %5816 = vmatprep.subr.bf16.mxu0 0
  %5817 = vmatpush2.bf16.xpose.msra.mxu0 0
  %5818 = vmatprep.subr.bf16.mxu0 0
  %5819 = vmatpush2.bf16.xpose.msra.mxu0 0
  %5820 = vmatprep.subr.bf16.mxu0 0
  %5821 = vmatpush2.bf16.xpose.msra.mxu0 0
  %5822 = vmatprep.subr.bf16.mxu0 0
  %5823 = vmatpush2.bf16.xpose.msra.mxu0 0
  %5824 = vmatprep.subr.bf16.mxu0 0
  %5825 = vmatpush2.bf16.xpose.msra.mxu0 0
  %5826 = vmatprep.subr.bf16.mxu0 0
  %5827 = vmatpush2.bf16.xpose.msra.mxu0 0
  %5828 = vmatprep.subr.bf16.mxu0 0
  %5829 = vmatpush2.bf16.xpose.msra.mxu0 0
  %5830 = vmatprep.mubr.bf16.mxu0 0
  %5831 = vmatmul.mubr.bf16.gmra.mxu0 %v5751
  %v5832 = vpop.f32.mrf.mxu0
  %v5833 = vadd.f32 %v1946, %v5832
  %v5834 = vpop.f32.mrf.mxu0
  %v5835 = vpop.f32.mrf.mxu0
  %v5836 = vadd.f32 %v1947, %v5835
  %v5837 = vpop.f32.mrf.mxu0
  %5838 = vmatprep.mubr.bf16.mxu0 0
  %5839 = vmatmul.mubr.bf16.gmra.mxu0 %v5754
  %v5840 = vpop.f32.mrf.mxu0
  %v5841 = vadd.f32 %v1948, %v5840
  %v5842 = vpop.f32.mrf.mxu0
  %v5843 = vpop.f32.mrf.mxu0
  %v5844 = vadd.f32 %v1949, %v5843
  %v5845 = vpop.f32.mrf.mxu0
  %5846 = vmatprep.mubr.bf16.mxu0 0
  %5847 = vmatmul.mubr.bf16.gmra.mxu0 %v5757
  %v5848 = vpop.f32.mrf.mxu0
  %v5849 = vadd.f32 %v1950, %v5848
  %v5850 = vpop.f32.mrf.mxu0
  %v5851 = vpop.f32.mrf.mxu0
  %v5852 = vadd.f32 %v1951, %v5851
  %v5853 = vpop.f32.mrf.mxu0
  %5854 = vmatprep.mubr.bf16.mxu0 0
  %5855 = vmatmul.mubr.bf16.gmra.mxu0 %v5760
  %v5856 = vpop.f32.mrf.mxu0
  %v5857 = vadd.f32 %v1952, %v5856
  %v5858 = vpop.f32.mrf.mxu0
  %v5859 = vpop.f32.mrf.mxu0
  %v5860 = vadd.f32 %v1953, %v5859
  %v5861 = vpop.f32.mrf.mxu0
  %5862 = vmatprep.mubr.bf16.mxu0 0
  %5863 = vmatmul.mubr.bf16.gmra.mxu0 %v5763
  %v5864 = vpop.f32.mrf.mxu0
  %v5865 = vadd.f32 %v1954, %v5864
  %v5866 = vpop.f32.mrf.mxu0
  %v5867 = vpop.f32.mrf.mxu0
  %v5868 = vadd.f32 %v1955, %v5867
  %v5869 = vpop.f32.mrf.mxu0
  %5870 = vmatprep.mubr.bf16.mxu0 0
  %5871 = vmatmul.mubr.bf16.gmra.mxu0 %v5766
  %v5872 = vpop.f32.mrf.mxu0
  %v5873 = vadd.f32 %v1956, %v5872
  %v5874 = vpop.f32.mrf.mxu0
  %v5875 = vpop.f32.mrf.mxu0
  %v5876 = vadd.f32 %v1957, %v5875
  %v5877 = vpop.f32.mrf.mxu0
  %5878 = vmatprep.mubr.bf16.mxu0 0
  %5879 = vmatmul.mubr.bf16.gmra.mxu0 %v5769
  %v5880 = vpop.f32.mrf.mxu0
  %v5881 = vadd.f32 %v1958, %v5880
  %v5882 = vpop.f32.mrf.mxu0
  %v5883 = vpop.f32.mrf.mxu0
  %v5884 = vadd.f32 %v1959, %v5883
  %v5885 = vpop.f32.mrf.mxu0
  %5886 = vmatprep.mubr.bf16.mxu0 0
  %5887 = vmatmul.mubr.bf16.gmra.mxu0 %v5772
  %v5888 = vpop.f32.mrf.mxu0
  %v5889 = vadd.f32 %v1960, %v5888
  %v5890 = vpop.f32.mrf.mxu0
  %v5891 = vpop.f32.mrf.mxu0
  %v5892 = vadd.f32 %v1961, %v5891
  %v5893 = vpop.f32.mrf.mxu0
  %5894 = vdwg.mxu0
  %5895 = vrot.lane.b32.xlu0 %v1982, 32
  %v5896 = vpop.permute.xlu0 %5895
  %5897 = vrot.lane.b32.xlu0 %v1983, 32
  %v5898 = vpop.permute.xlu0 %5897
  %5899 = vrot.lane.b32.xlu0 %v1984, 32
  %v5900 = vpop.permute.xlu0 %5899
  %5901 = vrot.lane.b32.xlu0 %v1985, 32
  %v5902 = vpop.permute.xlu0 %5901
  %5903 = vrot.lane.b32.xlu0 %v1986, 32
  %v5904 = vpop.permute.xlu0 %5903
  %5905 = vrot.lane.b32.xlu0 %v1987, 32
  %v5906 = vpop.permute.xlu0 %5905
  %5907 = vrot.lane.b32.xlu0 %v1988, 32
  %v5908 = vpop.permute.xlu0 %5907
  %5909 = vrot.lane.b32.xlu0 %v1989, 32
  %v5910 = vpop.permute.xlu0 %5909
  %5919 = vrot.lane.b32.xlu0 %v4489, 96
  %v5920 = vpop.permute.xlu0 %5919
  %5921 = vrot.lane.b32.xlu0 %v4490, 96
  %v5922 = vpop.permute.xlu0 %5921
  %5923 = vrot.lane.b32.xlu0 %v4491, 96
  %v5924 = vpop.permute.xlu0 %5923
  %5925 = vrot.lane.b32.xlu0 %v4492, 96
  %v5926 = vpop.permute.xlu0 %5925
  %5927 = vrot.lane.b32.xlu0 %v4493, 96
  %v5928 = vpop.permute.xlu0 %5927
  %5929 = vrot.lane.b32.xlu0 %v4494, 96
  %v5930 = vpop.permute.xlu0 %5929
  %5931 = vrot.lane.b32.xlu0 %v4495, 96
  %v5932 = vpop.permute.xlu0 %5931
  %5933 = vrot.lane.b32.xlu0 %v4496, 96
  %v5934 = vpop.permute.xlu0 %5933
  %v5936 = vsel %vm2046, %v5896, 0
  %v5939 = vsel %vm2046, %v5898, 0
  %v5942 = vsel %vm2046, %v5900, 0
  %v5945 = vsel %vm2046, %v5902, 0
  %v5948 = vsel %vm2046, %v5904, 0
  %v5951 = vsel %vm2046, %v5906, 0
  %v5954 = vsel %vm2046, %v5908, 0
  %v5957 = vsel %vm2046, %v5910, 0
  %v5960 = vsel %vm2046, %v5920, 0
  %v5963 = vsel %vm2046, %v5922, 0
  %v5966 = vsel %vm2046, %v5924, 0
  %v5969 = vsel %vm2046, %v5926, 0
  %v5972 = vsel %vm2046, %v5928, 0
  %v5975 = vsel %vm2046, %v5930, 0
  %v5978 = vsel %vm2046, %v5932, 0
  %v5981 = vsel %vm2046, %v5934, 0
  %5983 = vmatprep.subr.bf16.mxu0 0
  %5984 = vmatpush1.bf16.xpose.msra.mxu0 %v5981
  %5985 = vmatprep.subr.bf16.mxu0 0
  %5986 = vmatpush1.bf16.xpose.msra.mxu0 %v5978
  %5987 = vmatprep.subr.bf16.mxu0 0
  %5988 = vmatpush1.bf16.xpose.msra.mxu0 %v5975
  %5989 = vmatprep.subr.bf16.mxu0 0
  %5990 = vmatpush1.bf16.xpose.msra.mxu0 %v5972
  %5991 = vmatprep.subr.bf16.mxu0 0
  %5992 = vmatpush1.bf16.xpose.msra.mxu0 %v5969
  %5993 = vmatprep.subr.bf16.mxu0 0
  %5994 = vmatpush1.bf16.xpose.msra.mxu0 %v5966
  %5995 = vmatprep.subr.bf16.mxu0 0
  %5996 = vmatpush1.bf16.xpose.msra.mxu0 %v5963
  %5997 = vmatprep.subr.bf16.mxu0 0
  %5998 = vmatpush1.bf16.xpose.msra.mxu0 %v5960
  %5999 = vmatprep.subr.bf16.mxu0 0
  %6000 = vmatpush2.bf16.xpose.msra.mxu0 0
  %6001 = vmatprep.subr.bf16.mxu0 0
  %6002 = vmatpush2.bf16.xpose.msra.mxu0 0
  %6003 = vmatprep.subr.bf16.mxu0 0
  %6004 = vmatpush2.bf16.xpose.msra.mxu0 0
  %6005 = vmatprep.subr.bf16.mxu0 0
  %6006 = vmatpush2.bf16.xpose.msra.mxu0 0
  %6007 = vmatprep.subr.bf16.mxu0 0
  %6008 = vmatpush2.bf16.xpose.msra.mxu0 0
  %6009 = vmatprep.subr.bf16.mxu0 0
  %6010 = vmatpush2.bf16.xpose.msra.mxu0 0
  %6011 = vmatprep.subr.bf16.mxu0 0
  %6012 = vmatpush2.bf16.xpose.msra.mxu0 0
  %6013 = vmatprep.subr.bf16.mxu0 0
  %6014 = vmatpush2.bf16.xpose.msra.mxu0 0
  %6015 = vmatprep.mubr.bf16.mxu0 0
  %6016 = vmatmul.mubr.bf16.gmra.mxu0 %v5936
  %v6017 = vpop.f32.mrf.mxu0
  %v6018 = vadd.f32 %v1946, %v6017
  %v6019 = vpop.f32.mrf.mxu0
  %v6020 = vpop.f32.mrf.mxu0
  %v6021 = vadd.f32 %v1947, %v6020
  %v6022 = vpop.f32.mrf.mxu0
  %6023 = vmatprep.mubr.bf16.mxu0 0
  %6024 = vmatmul.mubr.bf16.gmra.mxu0 %v5939
  %v6025 = vpop.f32.mrf.mxu0
  %v6026 = vadd.f32 %v1948, %v6025
  %v6027 = vpop.f32.mrf.mxu0
  %v6028 = vpop.f32.mrf.mxu0
  %v6029 = vadd.f32 %v1949, %v6028
  %v6030 = vpop.f32.mrf.mxu0
  %6031 = vmatprep.mubr.bf16.mxu0 0
  %6032 = vmatmul.mubr.bf16.gmra.mxu0 %v5942
  %v6033 = vpop.f32.mrf.mxu0
  %v6034 = vadd.f32 %v1950, %v6033
  %v6035 = vpop.f32.mrf.mxu0
  %v6036 = vpop.f32.mrf.mxu0
  %v6037 = vadd.f32 %v1951, %v6036
  %v6038 = vpop.f32.mrf.mxu0
  %6039 = vmatprep.mubr.bf16.mxu0 0
  %6040 = vmatmul.mubr.bf16.gmra.mxu0 %v5945
  %v6041 = vpop.f32.mrf.mxu0
  %v6042 = vadd.f32 %v1952, %v6041
  %v6043 = vpop.f32.mrf.mxu0
  %v6044 = vpop.f32.mrf.mxu0
  %v6045 = vadd.f32 %v1953, %v6044
  %v6046 = vpop.f32.mrf.mxu0
  %6047 = vmatprep.mubr.bf16.mxu0 0
  %6048 = vmatmul.mubr.bf16.gmra.mxu0 %v5948
  %v6049 = vpop.f32.mrf.mxu0
  %v6050 = vadd.f32 %v1954, %v6049
  %v6051 = vpop.f32.mrf.mxu0
  %v6052 = vpop.f32.mrf.mxu0
  %v6053 = vadd.f32 %v1955, %v6052
  %v6054 = vpop.f32.mrf.mxu0
  %6055 = vmatprep.mubr.bf16.mxu0 0
  %6056 = vmatmul.mubr.bf16.gmra.mxu0 %v5951
  %v6057 = vpop.f32.mrf.mxu0
  %v6058 = vadd.f32 %v1956, %v6057
  %v6059 = vpop.f32.mrf.mxu0
  %v6060 = vpop.f32.mrf.mxu0
  %v6061 = vadd.f32 %v1957, %v6060
  %v6062 = vpop.f32.mrf.mxu0
  %6063 = vmatprep.mubr.bf16.mxu0 0
  %6064 = vmatmul.mubr.bf16.gmra.mxu0 %v5954
  %v6065 = vpop.f32.mrf.mxu0
  %v6066 = vadd.f32 %v1958, %v6065
  %v6067 = vpop.f32.mrf.mxu0
  %v6068 = vpop.f32.mrf.mxu0
  %v6069 = vadd.f32 %v1959, %v6068
  %v6070 = vpop.f32.mrf.mxu0
  %6071 = vmatprep.mubr.bf16.mxu0 0
  %6072 = vmatmul.mubr.bf16.gmra.mxu0 %v5957
  %v6073 = vpop.f32.mrf.mxu0
  %v6074 = vadd.f32 %v1960, %v6073
  %v6075 = vpop.f32.mrf.mxu0
  %v6076 = vpop.f32.mrf.mxu0
  %v6077 = vadd.f32 %v1961, %v6076
  %v6078 = vpop.f32.mrf.mxu0
  %6079 = vdwg.mxu0
  %6080 = vmax.xlane.f32.xlu0 %v5833
  %v6081 = vpop.xlane.xlu0 %6080
  %6082 = vmax.xlane.f32.xlu0 %v5836
  %v6083 = vpop.xlane.xlu0 %6082
  %6084 = vmax.xlane.f32.xlu0 %v5841
  %v6085 = vpop.xlane.xlu0 %6084
  %6086 = vmax.xlane.f32.xlu0 %v5844
  %v6087 = vpop.xlane.xlu0 %6086
  %6088 = vmax.xlane.f32.xlu0 %v5849
  %v6089 = vpop.xlane.xlu0 %6088
  %6090 = vmax.xlane.f32.xlu0 %v5852
  %v6091 = vpop.xlane.xlu0 %6090
  %6092 = vmax.xlane.f32.xlu0 %v5857
  %v6093 = vpop.xlane.xlu0 %6092
  %6094 = vmax.xlane.f32.xlu0 %v5860
  %v6095 = vpop.xlane.xlu0 %6094
  %6096 = vmax.xlane.f32.xlu0 %v5865
  %v6097 = vpop.xlane.xlu0 %6096
  %6098 = vmax.xlane.f32.xlu0 %v5868
  %v6099 = vpop.xlane.xlu0 %6098
  %6100 = vmax.xlane.f32.xlu0 %v5873
  %v6101 = vpop.xlane.xlu0 %6100
  %6102 = vmax.xlane.f32.xlu0 %v5876
  %v6103 = vpop.xlane.xlu0 %6102
  %6104 = vmax.xlane.f32.xlu0 %v5881
  %v6105 = vpop.xlane.xlu0 %6104
  %6106 = vmax.xlane.f32.xlu0 %v5884
  %v6107 = vpop.xlane.xlu0 %6106
  %6108 = vmax.xlane.f32.xlu0 %v5889
  %v6109 = vpop.xlane.xlu0 %6108
  %6110 = vmax.xlane.f32.xlu0 %v5892
  %v6111 = vpop.xlane.xlu0 %6110
  %6112 = vmax.xlane.f32.xlu0 %v6018
  %v6113 = vpop.xlane.xlu0 %6112
  %6114 = vmax.xlane.f32.xlu0 %v6021
  %v6115 = vpop.xlane.xlu0 %6114
  %6116 = vmax.xlane.f32.xlu0 %v6026
  %v6117 = vpop.xlane.xlu0 %6116
  %6118 = vmax.xlane.f32.xlu0 %v6029
  %v6119 = vpop.xlane.xlu0 %6118
  %6120 = vmax.xlane.f32.xlu0 %v6034
  %v6121 = vpop.xlane.xlu0 %6120
  %6122 = vmax.xlane.f32.xlu0 %v6037
  %v6123 = vpop.xlane.xlu0 %6122
  %6124 = vmax.xlane.f32.xlu0 %v6042
  %v6125 = vpop.xlane.xlu0 %6124
  %6126 = vmax.xlane.f32.xlu0 %v6045
  %v6127 = vpop.xlane.xlu0 %6126
  %6128 = vmax.xlane.f32.xlu0 %v6050
  %v6129 = vpop.xlane.xlu0 %6128
  %6130 = vmax.xlane.f32.xlu0 %v6053
  %v6131 = vpop.xlane.xlu0 %6130
  %6132 = vmax.xlane.f32.xlu0 %v6058
  %v6133 = vpop.xlane.xlu0 %6132
  %6134 = vmax.xlane.f32.xlu0 %v6061
  %v6135 = vpop.xlane.xlu0 %6134
  %6136 = vmax.xlane.f32.xlu0 %v6066
  %v6137 = vpop.xlane.xlu0 %6136
  %6138 = vmax.xlane.f32.xlu0 %v6069
  %v6139 = vpop.xlane.xlu0 %6138
  %6140 = vmax.xlane.f32.xlu0 %v6074
  %v6141 = vpop.xlane.xlu0 %6140
  %6142 = vmax.xlane.f32.xlu0 %v6077
  %v6143 = vpop.xlane.xlu0 %6142
  %v6144 = vsub.f32 %v5833, %v6081
  %v6145 = vsub.f32 %v5836, %v6083
  %v6146 = vsub.f32 %v5841, %v6085
  %v6147 = vsub.f32 %v5844, %v6087
  %v6148 = vsub.f32 %v5849, %v6089
  %v6149 = vsub.f32 %v5852, %v6091
  %v6150 = vsub.f32 %v5857, %v6093
  %v6151 = vsub.f32 %v5860, %v6095
  %v6152 = vsub.f32 %v5865, %v6097
  %v6153 = vsub.f32 %v5868, %v6099
  %v6154 = vsub.f32 %v5873, %v6101
  %v6155 = vsub.f32 %v5876, %v6103
  %v6156 = vsub.f32 %v5881, %v6105
  %v6157 = vsub.f32 %v5884, %v6107
  %v6158 = vsub.f32 %v5889, %v6109
  %v6159 = vsub.f32 %v5892, %v6111
  %v6160 = vsub.f32 %v6018, %v6113
  %v6161 = vsub.f32 %v6021, %v6115
  %v6162 = vsub.f32 %v6026, %v6117
  %v6163 = vsub.f32 %v6029, %v6119
  %v6164 = vsub.f32 %v6034, %v6121
  %v6165 = vsub.f32 %v6037, %v6123
  %v6166 = vsub.f32 %v6042, %v6125
  %v6167 = vsub.f32 %v6045, %v6127
  %v6168 = vsub.f32 %v6050, %v6129
  %v6169 = vsub.f32 %v6053, %v6131
  %v6170 = vsub.f32 %v6058, %v6133
  %v6171 = vsub.f32 %v6061, %v6135
  %v6172 = vsub.f32 %v6066, %v6137
  %v6173 = vsub.f32 %v6069, %v6139
  %v6174 = vsub.f32 %v6074, %v6141
  %v6175 = vsub.f32 %v6077, %v6143
  %v6176 = vmul.f32 %v6144, 1.442695
  %v6177 = vpow.pop %v6176
  %v6178 = vmul.f32 %v6145, 1.442695
  %v6179 = vpow.pop %v6178
  %v6180 = vmul.f32 %v6146, 1.442695
  %v6181 = vpow.pop %v6180
  %v6182 = vmul.f32 %v6147, 1.442695
  %v6183 = vpow.pop %v6182
  %v6184 = vmul.f32 %v6148, 1.442695
  %v6185 = vpow.pop %v6184
  %v6186 = vmul.f32 %v6149, 1.442695
  %v6187 = vpow.pop %v6186
  %v6188 = vmul.f32 %v6150, 1.442695
  %v6189 = vpow.pop %v6188
  %v6190 = vmul.f32 %v6151, 1.442695
  %v6191 = vpow.pop %v6190
  %v6192 = vmul.f32 %v6152, 1.442695
  %v6193 = vpow.pop %v6192
  %v6194 = vmul.f32 %v6153, 1.442695
  %v6195 = vpow.pop %v6194
  %v6196 = vmul.f32 %v6154, 1.442695
  %v6197 = vpow.pop %v6196
  %v6198 = vmul.f32 %v6155, 1.442695
  %v6199 = vpow.pop %v6198
  %v6200 = vmul.f32 %v6156, 1.442695
  %v6201 = vpow.pop %v6200
  %v6202 = vmul.f32 %v6157, 1.442695
  %v6203 = vpow.pop %v6202
  %v6204 = vmul.f32 %v6158, 1.442695
  %v6205 = vpow.pop %v6204
  %v6206 = vmul.f32 %v6159, 1.442695
  %v6207 = vpow.pop %v6206
  %v6208 = vmul.f32 %v6160, 1.442695
  %v6209 = vpow.pop %v6208
  %v6210 = vmul.f32 %v6161, 1.442695
  %v6211 = vpow.pop %v6210
  %v6212 = vmul.f32 %v6162, 1.442695
  %v6213 = vpow.pop %v6212
  %v6214 = vmul.f32 %v6163, 1.442695
  %v6215 = vpow.pop %v6214
  %v6216 = vmul.f32 %v6164, 1.442695
  %v6217 = vpow.pop %v6216
  %v6218 = vmul.f32 %v6165, 1.442695
  %v6219 = vpow.pop %v6218
  %v6220 = vmul.f32 %v6166, 1.442695
  %v6221 = vpow.pop %v6220
  %v6222 = vmul.f32 %v6167, 1.442695
  %v6223 = vpow.pop %v6222
  %v6224 = vmul.f32 %v6168, 1.442695
  %v6225 = vpow.pop %v6224
  %v6226 = vmul.f32 %v6169, 1.442695
  %v6227 = vpow.pop %v6226
  %v6228 = vmul.f32 %v6170, 1.442695
  %v6229 = vpow.pop %v6228
  %v6230 = vmul.f32 %v6171, 1.442695
  %v6231 = vpow.pop %v6230
  %v6232 = vmul.f32 %v6172, 1.442695
  %v6233 = vpow.pop %v6232
  %v6234 = vmul.f32 %v6173, 1.442695
  %v6235 = vpow.pop %v6234
  %v6236 = vmul.f32 %v6174, 1.442695
  %v6237 = vpow.pop %v6236
  %v6238 = vmul.f32 %v6175, 1.442695
  %v6239 = vpow.pop %v6238
  %6240 = vadd.xlane.f32.xlu0 %v6177
  %v6241 = vpop.xlane.xlu0 %6240
  %6242 = vadd.xlane.f32.xlu0 %v6179
  %v6243 = vpop.xlane.xlu0 %6242
  %6244 = vadd.xlane.f32.xlu0 %v6181
  %v6245 = vpop.xlane.xlu0 %6244
  %6246 = vadd.xlane.f32.xlu0 %v6183
  %v6247 = vpop.xlane.xlu0 %6246
  %6248 = vadd.xlane.f32.xlu0 %v6185
  %v6249 = vpop.xlane.xlu0 %6248
  %6250 = vadd.xlane.f32.xlu0 %v6187
  %v6251 = vpop.xlane.xlu0 %6250
  %6252 = vadd.xlane.f32.xlu0 %v6189
  %v6253 = vpop.xlane.xlu0 %6252
  %6254 = vadd.xlane.f32.xlu0 %v6191
  %v6255 = vpop.xlane.xlu0 %6254
  %6256 = vadd.xlane.f32.xlu0 %v6193
  %v6257 = vpop.xlane.xlu0 %6256
  %6258 = vadd.xlane.f32.xlu0 %v6195
  %v6259 = vpop.xlane.xlu0 %6258
  %6260 = vadd.xlane.f32.xlu0 %v6197
  %v6261 = vpop.xlane.xlu0 %6260
  %6262 = vadd.xlane.f32.xlu0 %v6199
  %v6263 = vpop.xlane.xlu0 %6262
  %6264 = vadd.xlane.f32.xlu0 %v6201
  %v6265 = vpop.xlane.xlu0 %6264
  %6266 = vadd.xlane.f32.xlu0 %v6203
  %v6267 = vpop.xlane.xlu0 %6266
  %6268 = vadd.xlane.f32.xlu0 %v6205
  %v6269 = vpop.xlane.xlu0 %6268
  %6270 = vadd.xlane.f32.xlu0 %v6207
  %v6271 = vpop.xlane.xlu0 %6270
  %6272 = vadd.xlane.f32.xlu0 %v6209
  %v6273 = vpop.xlane.xlu0 %6272
  %6274 = vadd.xlane.f32.xlu0 %v6211
  %v6275 = vpop.xlane.xlu0 %6274
  %6276 = vadd.xlane.f32.xlu0 %v6213
  %v6277 = vpop.xlane.xlu0 %6276
  %6278 = vadd.xlane.f32.xlu0 %v6215
  %v6279 = vpop.xlane.xlu0 %6278
  %6280 = vadd.xlane.f32.xlu0 %v6217
  %v6281 = vpop.xlane.xlu0 %6280
  %6282 = vadd.xlane.f32.xlu0 %v6219
  %v6283 = vpop.xlane.xlu0 %6282
  %6284 = vadd.xlane.f32.xlu0 %v6221
  %v6285 = vpop.xlane.xlu0 %6284
  %6286 = vadd.xlane.f32.xlu0 %v6223
  %v6287 = vpop.xlane.xlu0 %6286
  %6288 = vadd.xlane.f32.xlu0 %v6225
  %v6289 = vpop.xlane.xlu0 %6288
  %6290 = vadd.xlane.f32.xlu0 %v6227
  %v6291 = vpop.xlane.xlu0 %6290
  %6292 = vadd.xlane.f32.xlu0 %v6229
  %v6293 = vpop.xlane.xlu0 %6292
  %6294 = vadd.xlane.f32.xlu0 %v6231
  %v6295 = vpop.xlane.xlu0 %6294
  %6296 = vadd.xlane.f32.xlu0 %v6233
  %v6297 = vpop.xlane.xlu0 %6296
  %6298 = vadd.xlane.f32.xlu0 %v6235
  %v6299 = vpop.xlane.xlu0 %6298
  %6300 = vadd.xlane.f32.xlu0 %v6237
  %v6301 = vpop.xlane.xlu0 %6300
  %6302 = vadd.xlane.f32.xlu0 %v6239
  %v6303 = vpop.xlane.xlu0 %6302
  %v6304 = vrcp.pop %v6241
  %v6305 = vrcp.pop %v6243
  %v6306 = vrcp.pop %v6245
  %v6307 = vrcp.pop %v6247
  %v6308 = vrcp.pop %v6249
  %v6309 = vrcp.pop %v6251
  %v6310 = vrcp.pop %v6253
  %v6311 = vrcp.pop %v6255
  %v6312 = vrcp.pop %v6257
  %v6313 = vrcp.pop %v6259
  %v6314 = vrcp.pop %v6261
  %v6315 = vrcp.pop %v6263
  %v6316 = vrcp.pop %v6265
  %v6317 = vrcp.pop %v6267
  %v6318 = vrcp.pop %v6269
  %v6319 = vrcp.pop %v6271
  %v6320 = vrcp.pop %v6273
  %v6321 = vrcp.pop %v6275
  %v6322 = vrcp.pop %v6277
  %v6323 = vrcp.pop %v6279
  %v6324 = vrcp.pop %v6281
  %v6325 = vrcp.pop %v6283
  %v6326 = vrcp.pop %v6285
  %v6327 = vrcp.pop %v6287
  %v6328 = vrcp.pop %v6289
  %v6329 = vrcp.pop %v6291
  %v6330 = vrcp.pop %v6293
  %v6331 = vrcp.pop %v6295
  %v6332 = vrcp.pop %v6297
  %v6333 = vrcp.pop %v6299
  %v6334 = vrcp.pop %v6301
  %v6335 = vrcp.pop %v6303
  %v6336 = vmul.f32 %v6177, %v6304
  %v6337 = vmul.f32 %v6179, %v6305
  %v6338 = vmul.f32 %v6181, %v6306
  %v6339 = vmul.f32 %v6183, %v6307
  %v6340 = vmul.f32 %v6185, %v6308
  %v6341 = vmul.f32 %v6187, %v6309
  %v6342 = vmul.f32 %v6189, %v6310
  %v6343 = vmul.f32 %v6191, %v6311
  %v6344 = vmul.f32 %v6193, %v6312
  %v6345 = vmul.f32 %v6195, %v6313
  %v6346 = vmul.f32 %v6197, %v6314
  %v6347 = vmul.f32 %v6199, %v6315
  %v6348 = vmul.f32 %v6201, %v6316
  %v6349 = vmul.f32 %v6203, %v6317
  %v6350 = vmul.f32 %v6205, %v6318
  %v6351 = vmul.f32 %v6207, %v6319
  %v6352 = vmul.f32 %v6209, %v6320
  %v6353 = vmul.f32 %v6211, %v6321
  %v6354 = vmul.f32 %v6213, %v6322
  %v6355 = vmul.f32 %v6215, %v6323
  %v6356 = vmul.f32 %v6217, %v6324
  %v6357 = vmul.f32 %v6219, %v6325
  %v6358 = vmul.f32 %v6221, %v6326
  %v6359 = vmul.f32 %v6223, %v6327
  %v6360 = vmul.f32 %v6225, %v6328
  %v6361 = vmul.f32 %v6227, %v6329
  %v6362 = vmul.f32 %v6229, %v6330
  %v6363 = vmul.f32 %v6231, %v6331
  %v6364 = vmul.f32 %v6233, %v6332
  %v6365 = vmul.f32 %v6235, %v6333
  %v6366 = vmul.f32 %v6237, %v6334
  %v6367 = vmul.f32 %v6239, %v6335
  %v6368 = vpack.c.bf16 %v6337, %v6336
  %v6369 = vpack.c.bf16 %v6339, %v6338
  %v6370 = vpack.c.bf16 %v6341, %v6340
  %v6371 = vpack.c.bf16 %v6343, %v6342
  %v6372 = vpack.c.bf16 %v6345, %v6344
  %v6373 = vpack.c.bf16 %v6347, %v6346
  %v6374 = vpack.c.bf16 %v6349, %v6348
  %v6375 = vpack.c.bf16 %v6351, %v6350
  %v6376 = vpack.c.bf16 %v6353, %v6352
  %v6377 = vpack.c.bf16 %v6355, %v6354
  %v6378 = vpack.c.bf16 %v6357, %v6356
  %v6379 = vpack.c.bf16 %v6359, %v6358
  %v6380 = vpack.c.bf16 %v6361, %v6360
  %v6381 = vpack.c.bf16 %v6363, %v6362
  %v6382 = vpack.c.bf16 %v6365, %v6364
  %v6383 = vpack.c.bf16 %v6367, %v6366
  %6384 = vrot.lane.b32.xlu0 %v2006, 32
  %v6385 = vpop.permute.xlu0 %6384
  %6386 = vrot.lane.b32.xlu0 %v2007, 32
  %v6387 = vpop.permute.xlu0 %6386
  %6388 = vrot.lane.b32.xlu0 %v2008, 32
  %v6389 = vpop.permute.xlu0 %6388
  %6390 = vrot.lane.b32.xlu0 %v2009, 32
  %v6391 = vpop.permute.xlu0 %6390
  %6392 = vrot.lane.b32.xlu0 %v2010, 32
  %v6393 = vpop.permute.xlu0 %6392
  %6394 = vrot.lane.b32.xlu0 %v2011, 32
  %v6395 = vpop.permute.xlu0 %6394
  %6396 = vrot.lane.b32.xlu0 %v2012, 32
  %v6397 = vpop.permute.xlu0 %6396
  %6398 = vrot.lane.b32.xlu0 %v2013, 32
  %v6399 = vpop.permute.xlu0 %6398
  %6408 = vmatprep.subr.bf16.mxu0 0
  %6409 = vmatpush1.bf16.msra.mxu0 %v6399
  %6410 = vmatprep.subr.bf16.mxu0 0
  %6411 = vmatpush1.bf16.msra.mxu0 %v6397
  %6412 = vmatprep.subr.bf16.mxu0 0
  %6413 = vmatpush1.bf16.msra.mxu0 %v6395
  %6414 = vmatprep.subr.bf16.mxu0 0
  %6415 = vmatpush1.bf16.msra.mxu0 %v6393
  %6416 = vmatprep.subr.bf16.mxu0 0
  %6417 = vmatpush1.bf16.msra.mxu0 %v6391
  %6418 = vmatprep.subr.bf16.mxu0 0
  %6419 = vmatpush1.bf16.msra.mxu0 %v6389
  %6420 = vmatprep.subr.bf16.mxu0 0
  %6421 = vmatpush1.bf16.msra.mxu0 %v6387
  %6422 = vmatprep.subr.bf16.mxu0 0
  %6423 = vmatpush1.bf16.msra.mxu0 %v6385
  %6424 = vmatprep.subr.bf16.mxu0 0
  %6425 = vmatpush2.bf16.msra.mxu0 0
  %6426 = vmatprep.subr.bf16.mxu0 0
  %6427 = vmatpush2.bf16.msra.mxu0 0
  %6428 = vmatprep.subr.bf16.mxu0 0
  %6429 = vmatpush2.bf16.msra.mxu0 0
  %6430 = vmatprep.subr.bf16.mxu0 0
  %6431 = vmatpush2.bf16.msra.mxu0 0
  %6432 = vmatprep.subr.bf16.mxu0 0
  %6433 = vmatpush2.bf16.msra.mxu0 0
  %6434 = vmatprep.subr.bf16.mxu0 0
  %6435 = vmatpush2.bf16.msra.mxu0 0
  %6436 = vmatprep.subr.bf16.mxu0 0
  %6437 = vmatpush2.bf16.msra.mxu0 0
  %6438 = vmatprep.subr.bf16.mxu0 0
  %6439 = vmatpush2.bf16.msra.mxu0 0
  %6440 = vmatprep.mubr.bf16.mxu0 0
  %6441 = vmatmul.mubr.bf16.gmra.mxu0 %v6368
  %v6442 = vpop.f32.mrf.mxu0
  %v6443 = vadd.f32 0.0, %v6442
  %v6444 = vpop.f32.mrf.mxu0
  %v6445 = vpop.f32.mrf.mxu0
  %v6446 = vadd.f32 0.0, %v6445
  %v6447 = vpop.f32.mrf.mxu0
  %6448 = vmatprep.mubr.bf16.mxu0 0
  %6449 = vmatmul.mubr.bf16.gmra.mxu0 %v6369
  %v6450 = vpop.f32.mrf.mxu0
  %v6451 = vadd.f32 0.0, %v6450
  %v6452 = vpop.f32.mrf.mxu0
  %v6453 = vpop.f32.mrf.mxu0
  %v6454 = vadd.f32 0.0, %v6453
  %v6455 = vpop.f32.mrf.mxu0
  %6456 = vmatprep.mubr.bf16.mxu0 0
  %6457 = vmatmul.mubr.bf16.gmra.mxu0 %v6370
  %v6458 = vpop.f32.mrf.mxu0
  %v6459 = vadd.f32 0.0, %v6458
  %v6460 = vpop.f32.mrf.mxu0
  %v6461 = vpop.f32.mrf.mxu0
  %v6462 = vadd.f32 0.0, %v6461
  %v6463 = vpop.f32.mrf.mxu0
  %6464 = vmatprep.mubr.bf16.mxu0 0
  %6465 = vmatmul.mubr.bf16.gmra.mxu0 %v6371
  %v6466 = vpop.f32.mrf.mxu0
  %v6467 = vadd.f32 0.0, %v6466
  %v6468 = vpop.f32.mrf.mxu0
  %v6469 = vpop.f32.mrf.mxu0
  %v6470 = vadd.f32 0.0, %v6469
  %v6471 = vpop.f32.mrf.mxu0
  %6472 = vmatprep.mubr.bf16.mxu0 0
  %6473 = vmatmul.mubr.bf16.gmra.mxu0 %v6372
  %v6474 = vpop.f32.mrf.mxu0
  %v6475 = vadd.f32 0.0, %v6474
  %v6476 = vpop.f32.mrf.mxu0
  %v6477 = vpop.f32.mrf.mxu0
  %v6478 = vadd.f32 0.0, %v6477
  %v6479 = vpop.f32.mrf.mxu0
  %6480 = vmatprep.mubr.bf16.mxu0 0
  %6481 = vmatmul.mubr.bf16.gmra.mxu0 %v6373
  %v6482 = vpop.f32.mrf.mxu0
  %v6483 = vadd.f32 0.0, %v6482
  %v6484 = vpop.f32.mrf.mxu0
  %v6485 = vpop.f32.mrf.mxu0
  %v6486 = vadd.f32 0.0, %v6485
  %v6487 = vpop.f32.mrf.mxu0
  %6488 = vmatprep.mubr.bf16.mxu0 0
  %6489 = vmatmul.mubr.bf16.gmra.mxu0 %v6374
  %v6490 = vpop.f32.mrf.mxu0
  %v6491 = vadd.f32 0.0, %v6490
  %v6492 = vpop.f32.mrf.mxu0
  %v6493 = vpop.f32.mrf.mxu0
  %v6494 = vadd.f32 0.0, %v6493
  %v6495 = vpop.f32.mrf.mxu0
  %6496 = vmatprep.mubr.bf16.mxu0 0
  %6497 = vmatmul.mubr.bf16.gmra.mxu0 %v6375
  %v6498 = vpop.f32.mrf.mxu0
  %v6499 = vadd.f32 0.0, %v6498
  %v6500 = vpop.f32.mrf.mxu0
  %v6501 = vpop.f32.mrf.mxu0
  %v6502 = vadd.f32 0.0, %v6501
  %v6503 = vpop.f32.mrf.mxu0
  %6504 = vdwg.mxu0
  %6505 = vrot.lane.b32.xlu0 %v2014, 32
  %v6506 = vpop.permute.xlu0 %6505
  %6507 = vrot.lane.b32.xlu0 %v2015, 32
  %v6508 = vpop.permute.xlu0 %6507
  %6509 = vrot.lane.b32.xlu0 %v2016, 32
  %v6510 = vpop.permute.xlu0 %6509
  %6511 = vrot.lane.b32.xlu0 %v2017, 32
  %v6512 = vpop.permute.xlu0 %6511
  %6513 = vrot.lane.b32.xlu0 %v2018, 32
  %v6514 = vpop.permute.xlu0 %6513
  %6515 = vrot.lane.b32.xlu0 %v2019, 32
  %v6516 = vpop.permute.xlu0 %6515
  %6517 = vrot.lane.b32.xlu0 %v2020, 32
  %v6518 = vpop.permute.xlu0 %6517
  %6519 = vrot.lane.b32.xlu0 %v2021, 32
  %v6520 = vpop.permute.xlu0 %6519
  %6529 = vmatprep.subr.bf16.mxu0 0
  %6530 = vmatpush1.bf16.msra.mxu0 %v6520
  %6531 = vmatprep.subr.bf16.mxu0 0
  %6532 = vmatpush1.bf16.msra.mxu0 %v6518
  %6533 = vmatprep.subr.bf16.mxu0 0
  %6534 = vmatpush1.bf16.msra.mxu0 %v6516
  %6535 = vmatprep.subr.bf16.mxu0 0
  %6536 = vmatpush1.bf16.msra.mxu0 %v6514
  %6537 = vmatprep.subr.bf16.mxu0 0
  %6538 = vmatpush1.bf16.msra.mxu0 %v6512
  %6539 = vmatprep.subr.bf16.mxu0 0
  %6540 = vmatpush1.bf16.msra.mxu0 %v6510
  %6541 = vmatprep.subr.bf16.mxu0 0
  %6542 = vmatpush1.bf16.msra.mxu0 %v6508
  %6543 = vmatprep.subr.bf16.mxu0 0
  %6544 = vmatpush1.bf16.msra.mxu0 %v6506
  %6545 = vmatprep.subr.bf16.mxu0 0
  %6546 = vmatpush2.bf16.msra.mxu0 0
  %6547 = vmatprep.subr.bf16.mxu0 0
  %6548 = vmatpush2.bf16.msra.mxu0 0
  %6549 = vmatprep.subr.bf16.mxu0 0
  %6550 = vmatpush2.bf16.msra.mxu0 0
  %6551 = vmatprep.subr.bf16.mxu0 0
  %6552 = vmatpush2.bf16.msra.mxu0 0
  %6553 = vmatprep.subr.bf16.mxu0 0
  %6554 = vmatpush2.bf16.msra.mxu0 0
  %6555 = vmatprep.subr.bf16.mxu0 0
  %6556 = vmatpush2.bf16.msra.mxu0 0
  %6557 = vmatprep.subr.bf16.mxu0 0
  %6558 = vmatpush2.bf16.msra.mxu0 0
  %6559 = vmatprep.subr.bf16.mxu0 0
  %6560 = vmatpush2.bf16.msra.mxu0 0
  %6561 = vmatprep.mubr.bf16.mxu0 0
  %6562 = vmatmul.mubr.bf16.gmra.mxu0 %v6376
  %v6563 = vpop.f32.mrf.mxu0
  %v6564 = vadd.f32 0.0, %v6563
  %v6565 = vpop.f32.mrf.mxu0
  %v6566 = vpop.f32.mrf.mxu0
  %v6567 = vadd.f32 0.0, %v6566
  %v6568 = vpop.f32.mrf.mxu0
  %6569 = vmatprep.mubr.bf16.mxu0 0
  %6570 = vmatmul.mubr.bf16.gmra.mxu0 %v6377
  %v6571 = vpop.f32.mrf.mxu0
  %v6572 = vadd.f32 0.0, %v6571
  %v6573 = vpop.f32.mrf.mxu0
  %v6574 = vpop.f32.mrf.mxu0
  %v6575 = vadd.f32 0.0, %v6574
  %v6576 = vpop.f32.mrf.mxu0
  %6577 = vmatprep.mubr.bf16.mxu0 0
  %6578 = vmatmul.mubr.bf16.gmra.mxu0 %v6378
  %v6579 = vpop.f32.mrf.mxu0
  %v6580 = vadd.f32 0.0, %v6579
  %v6581 = vpop.f32.mrf.mxu0
  %v6582 = vpop.f32.mrf.mxu0
  %v6583 = vadd.f32 0.0, %v6582
  %v6584 = vpop.f32.mrf.mxu0
  %6585 = vmatprep.mubr.bf16.mxu0 0
  %6586 = vmatmul.mubr.bf16.gmra.mxu0 %v6379
  %v6587 = vpop.f32.mrf.mxu0
  %v6588 = vadd.f32 0.0, %v6587
  %v6589 = vpop.f32.mrf.mxu0
  %v6590 = vpop.f32.mrf.mxu0
  %v6591 = vadd.f32 0.0, %v6590
  %v6592 = vpop.f32.mrf.mxu0
  %6593 = vmatprep.mubr.bf16.mxu0 0
  %6594 = vmatmul.mubr.bf16.gmra.mxu0 %v6380
  %v6595 = vpop.f32.mrf.mxu0
  %v6596 = vadd.f32 0.0, %v6595
  %v6597 = vpop.f32.mrf.mxu0
  %v6598 = vpop.f32.mrf.mxu0
  %v6599 = vadd.f32 0.0, %v6598
  %v6600 = vpop.f32.mrf.mxu0
  %6601 = vmatprep.mubr.bf16.mxu0 0
  %6602 = vmatmul.mubr.bf16.gmra.mxu0 %v6381
  %v6603 = vpop.f32.mrf.mxu0
  %v6604 = vadd.f32 0.0, %v6603
  %v6605 = vpop.f32.mrf.mxu0
  %v6606 = vpop.f32.mrf.mxu0
  %v6607 = vadd.f32 0.0, %v6606
  %v6608 = vpop.f32.mrf.mxu0
  %6609 = vmatprep.mubr.bf16.mxu0 0
  %6610 = vmatmul.mubr.bf16.gmra.mxu0 %v6382
  %v6611 = vpop.f32.mrf.mxu0
  %v6612 = vadd.f32 0.0, %v6611
  %v6613 = vpop.f32.mrf.mxu0
  %v6614 = vpop.f32.mrf.mxu0
  %v6615 = vadd.f32 0.0, %v6614
  %v6616 = vpop.f32.mrf.mxu0
  %6617 = vmatprep.mubr.bf16.mxu0 0
  %6618 = vmatmul.mubr.bf16.gmra.mxu0 %v6383
  %v6619 = vpop.f32.mrf.mxu0
  %v6620 = vadd.f32 0.0, %v6619
  %v6621 = vpop.f32.mrf.mxu0
  %v6622 = vpop.f32.mrf.mxu0
  %v6623 = vadd.f32 0.0, %v6622
  %v6624 = vpop.f32.mrf.mxu0
  %6625 = vdwg.mxu0
  %v6626 = vpack.c.bf16 %v6446, %v6443
  %v6627 = vpack.c.bf16 %v6454, %v6451
  %v6628 = vpack.c.bf16 %v6462, %v6459
  %v6629 = vpack.c.bf16 %v6470, %v6467
  %v6630 = vpack.c.bf16 %v6478, %v6475
  %v6631 = vpack.c.bf16 %v6486, %v6483
  %v6632 = vpack.c.bf16 %v6494, %v6491
  %v6633 = vpack.c.bf16 %v6502, %v6499
  %v6634 = vpack.c.bf16 %v6567, %v6564
  %v6635 = vpack.c.bf16 %v6575, %v6572
  %v6636 = vpack.c.bf16 %v6583, %v6580
  %v6637 = vpack.c.bf16 %v6591, %v6588
  %v6638 = vpack.c.bf16 %v6599, %v6596
  %v6639 = vpack.c.bf16 %v6607, %v6604
  %v6640 = vpack.c.bf16 %v6615, %v6612
  %v6641 = vpack.c.bf16 %v6623, %v6620
  %v6642 = vld [vmem:[%s6 + $0x60] sm:$0xff]
  %v6643 = vld [vmem:[%s6 + $0x68] sm:$0xff]
  %v6644 = vld [vmem:[%s6 + $0x70] sm:$0xff]
  %v6645 = vld [vmem:[%s6 + $0x78] sm:$0xff]
  %v6650 = vunpack.c.l.b16 %v6642
  %v6651 = vunpack.c.h.b16 %v6642
  %v6652 = vunpack.c.l.b16 %v6643
  %v6653 = vunpack.c.h.b16 %v6643
  %v6654 = vunpack.c.l.b16 %v6644
  %v6655 = vunpack.c.h.b16 %v6644
  %v6656 = vunpack.c.l.b16 %v6645
  %v6657 = vunpack.c.h.b16 %v6645
  %v6658 = vpack.c.b16 %v6652, %v6650
  %v6659 = vpack.c.b16 %v6653, %v6651
  %v6660 = vpack.c.b16 %v6656, %v6654
  %v6661 = vpack.c.b16 %v6657, %v6655
  %v6667 = vsel %vm2046, %v6626, 0
  %v6670 = vsel %vm2046, %v6627, 0
  %v6673 = vsel %vm2046, %v6628, 0
  %v6676 = vsel %vm2046, %v6629, 0
  %v6679 = vsel %vm2046, %v6630, 0
  %v6682 = vsel %vm2046, %v6631, 0
  %v6685 = vsel %vm2046, %v6632, 0
  %v6688 = vsel %vm2046, %v6633, 0
  %v6691 = vsel %vm2046, %v6634, 0
  %v6694 = vsel %vm2046, %v6635, 0
  %v6697 = vsel %vm2046, %v6636, 0
  %v6700 = vsel %vm2046, %v6637, 0
  %v6703 = vsel %vm2046, %v6638, 0
  %v6706 = vsel %vm2046, %v6639, 0
  %v6709 = vsel %vm2046, %v6640, 0
  %v6712 = vsel %vm2046, %v6641, 0
  %6714 = vmatprep.subr.bf16.mxu0 0
  %6715 = vmatpush1.bf16.msra.mxu0 0
  %6716 = vmatprep.subr.bf16.mxu0 0
  %6717 = vmatpush1.bf16.msra.mxu0 0
  %6718 = vmatprep.subr.bf16.mxu0 0
  %6719 = vmatpush1.bf16.msra.mxu0 0
  %6720 = vmatprep.subr.bf16.mxu0 0
  %6721 = vmatpush1.bf16.msra.mxu0 0
  %6722 = vmatprep.subr.bf16.mxu0 0
  %6723 = vmatpush1.bf16.msra.mxu0 0
  %6724 = vmatprep.subr.bf16.mxu0 0
  %6725 = vmatpush1.bf16.msra.mxu0 0
  %6726 = vmatprep.subr.bf16.mxu0 %v6661
  %6727 = vmatpush1.bf16.msra.mxu0 %v6660
  %6728 = vmatprep.subr.bf16.mxu0 %v6659
  %6729 = vmatpush1.bf16.msra.mxu0 %v6658
  %6730 = vmatprep.subr.bf16.mxu0 0
  %6731 = vmatpush2.bf16.msra.mxu0 0
  %6732 = vmatprep.subr.bf16.mxu0 0
  %6733 = vmatpush2.bf16.msra.mxu0 0
  %6734 = vmatprep.subr.bf16.mxu0 0
  %6735 = vmatpush2.bf16.msra.mxu0 0
  %6736 = vmatprep.subr.bf16.mxu0 0
  %6737 = vmatpush2.bf16.msra.mxu0 0
  %6738 = vmatprep.subr.bf16.mxu0 0
  %6739 = vmatpush2.bf16.msra.mxu0 0
  %6740 = vmatprep.subr.bf16.mxu0 0
  %6741 = vmatpush2.bf16.msra.mxu0 0
  %6742 = vmatprep.subr.bf16.mxu0 0
  %6743 = vmatpush2.bf16.msra.mxu0 0
  %6744 = vmatprep.subr.bf16.mxu0 0
  %6745 = vmatpush2.bf16.msra.mxu0 0
  %6746 = vmatprep.mubr.bf16.mxu0 0
  %6747 = vmatmul.mubr.bf16.gmra.mxu0 %v6667
  %v6748 = vpop.f32.mrf.mxu0
  %v6749 = vadd.f32 0.0, %v6748
  %v6750 = vpop.f32.mrf.mxu0
  %v6751 = vadd.f32 0.0, %v6750
  %v6752 = vpop.f32.mrf.mxu0
  %v6753 = vadd.f32 0.0, %v6752
  %v6754 = vpop.f32.mrf.mxu0
  %v6755 = vadd.f32 0.0, %v6754
  %6756 = vmatprep.mubr.bf16.mxu0 0
  %6757 = vmatmul.mubr.bf16.gmra.mxu0 %v6670
  %v6758 = vpop.f32.mrf.mxu0
  %v6759 = vadd.f32 0.0, %v6758
  %v6760 = vpop.f32.mrf.mxu0
  %v6761 = vadd.f32 0.0, %v6760
  %v6762 = vpop.f32.mrf.mxu0
  %v6763 = vadd.f32 0.0, %v6762
  %v6764 = vpop.f32.mrf.mxu0
  %v6765 = vadd.f32 0.0, %v6764
  %6766 = vmatprep.mubr.bf16.mxu0 0
  %6767 = vmatmul.mubr.bf16.gmra.mxu0 %v6673
  %v6768 = vpop.f32.mrf.mxu0
  %v6769 = vadd.f32 0.0, %v6768
  %v6770 = vpop.f32.mrf.mxu0
  %v6771 = vadd.f32 0.0, %v6770
  %v6772 = vpop.f32.mrf.mxu0
  %v6773 = vadd.f32 0.0, %v6772
  %v6774 = vpop.f32.mrf.mxu0
  %v6775 = vadd.f32 0.0, %v6774
  %6776 = vmatprep.mubr.bf16.mxu0 0
  %6777 = vmatmul.mubr.bf16.gmra.mxu0 %v6676
  %v6778 = vpop.f32.mrf.mxu0
  %v6779 = vadd.f32 0.0, %v6778
  %v6780 = vpop.f32.mrf.mxu0
  %v6781 = vadd.f32 0.0, %v6780
  %v6782 = vpop.f32.mrf.mxu0
  %v6783 = vadd.f32 0.0, %v6782
  %v6784 = vpop.f32.mrf.mxu0
  %v6785 = vadd.f32 0.0, %v6784
  %6786 = vmatprep.mubr.bf16.mxu0 0
  %6787 = vmatmul.mubr.bf16.gmra.mxu0 %v6679
  %v6788 = vpop.f32.mrf.mxu0
  %v6789 = vadd.f32 0.0, %v6788
  %v6790 = vpop.f32.mrf.mxu0
  %v6791 = vadd.f32 0.0, %v6790
  %v6792 = vpop.f32.mrf.mxu0
  %v6793 = vadd.f32 0.0, %v6792
  %v6794 = vpop.f32.mrf.mxu0
  %v6795 = vadd.f32 0.0, %v6794
  %6796 = vmatprep.mubr.bf16.mxu0 0
  %6797 = vmatmul.mubr.bf16.gmra.mxu0 %v6682
  %v6798 = vpop.f32.mrf.mxu0
  %v6799 = vadd.f32 0.0, %v6798
  %v6800 = vpop.f32.mrf.mxu0
  %v6801 = vadd.f32 0.0, %v6800
  %v6802 = vpop.f32.mrf.mxu0
  %v6803 = vadd.f32 0.0, %v6802
  %v6804 = vpop.f32.mrf.mxu0
  %v6805 = vadd.f32 0.0, %v6804
  %6806 = vmatprep.mubr.bf16.mxu0 0
  %6807 = vmatmul.mubr.bf16.gmra.mxu0 %v6685
  %v6808 = vpop.f32.mrf.mxu0
  %v6809 = vadd.f32 0.0, %v6808
  %v6810 = vpop.f32.mrf.mxu0
  %v6811 = vadd.f32 0.0, %v6810
  %v6812 = vpop.f32.mrf.mxu0
  %v6813 = vadd.f32 0.0, %v6812
  %v6814 = vpop.f32.mrf.mxu0
  %v6815 = vadd.f32 0.0, %v6814
  %6816 = vmatprep.mubr.bf16.mxu0 0
  %6817 = vmatmul.mubr.bf16.gmra.mxu0 %v6688
  %v6818 = vpop.f32.mrf.mxu0
  %v6819 = vadd.f32 0.0, %v6818
  %v6820 = vpop.f32.mrf.mxu0
  %v6821 = vadd.f32 0.0, %v6820
  %v6822 = vpop.f32.mrf.mxu0
  %v6823 = vadd.f32 0.0, %v6822
  %v6824 = vpop.f32.mrf.mxu0
  %v6825 = vadd.f32 0.0, %v6824
  %6826 = vmatprep.mubr.bf16.mxu0 0
  %6827 = vmatmul.mubr.bf16.gmra.mxu0 %v6691
  %v6828 = vpop.f32.mrf.mxu0
  %v6829 = vadd.f32 0.0, %v6828
  %v6830 = vpop.f32.mrf.mxu0
  %v6831 = vadd.f32 0.0, %v6830
  %v6832 = vpop.f32.mrf.mxu0
  %v6833 = vadd.f32 0.0, %v6832
  %v6834 = vpop.f32.mrf.mxu0
  %v6835 = vadd.f32 0.0, %v6834
  %6836 = vmatprep.mubr.bf16.mxu0 0
  %6837 = vmatmul.mubr.bf16.gmra.mxu0 %v6694
  %v6838 = vpop.f32.mrf.mxu0
  %v6839 = vadd.f32 0.0, %v6838
  %v6840 = vpop.f32.mrf.mxu0
  %v6841 = vadd.f32 0.0, %v6840
  %v6842 = vpop.f32.mrf.mxu0
  %v6843 = vadd.f32 0.0, %v6842
  %v6844 = vpop.f32.mrf.mxu0
  %v6845 = vadd.f32 0.0, %v6844
  %6846 = vmatprep.mubr.bf16.mxu0 0
  %6847 = vmatmul.mubr.bf16.gmra.mxu0 %v6697
  %v6848 = vpop.f32.mrf.mxu0
  %v6849 = vadd.f32 0.0, %v6848
  %v6850 = vpop.f32.mrf.mxu0
  %v6851 = vadd.f32 0.0, %v6850
  %v6852 = vpop.f32.mrf.mxu0
  %v6853 = vadd.f32 0.0, %v6852
  %v6854 = vpop.f32.mrf.mxu0
  %v6855 = vadd.f32 0.0, %v6854
  %6856 = vmatprep.mubr.bf16.mxu0 0
  %6857 = vmatmul.mubr.bf16.gmra.mxu0 %v6700
  %v6858 = vpop.f32.mrf.mxu0
  %v6859 = vadd.f32 0.0, %v6858
  %v6860 = vpop.f32.mrf.mxu0
  %v6861 = vadd.f32 0.0, %v6860
  %v6862 = vpop.f32.mrf.mxu0
  %v6863 = vadd.f32 0.0, %v6862
  %v6864 = vpop.f32.mrf.mxu0
  %v6865 = vadd.f32 0.0, %v6864
  %6866 = vmatprep.mubr.bf16.mxu0 0
  %6867 = vmatmul.mubr.bf16.gmra.mxu0 %v6703
  %v6868 = vpop.f32.mrf.mxu0
  %v6869 = vadd.f32 0.0, %v6868
  %v6870 = vpop.f32.mrf.mxu0
  %v6871 = vadd.f32 0.0, %v6870
  %v6872 = vpop.f32.mrf.mxu0
  %v6873 = vadd.f32 0.0, %v6872
  %v6874 = vpop.f32.mrf.mxu0
  %v6875 = vadd.f32 0.0, %v6874
  %6876 = vmatprep.mubr.bf16.mxu0 0
  %6877 = vmatmul.mubr.bf16.gmra.mxu0 %v6706
  %v6878 = vpop.f32.mrf.mxu0
  %v6879 = vadd.f32 0.0, %v6878
  %v6880 = vpop.f32.mrf.mxu0
  %v6881 = vadd.f32 0.0, %v6880
  %v6882 = vpop.f32.mrf.mxu0
  %v6883 = vadd.f32 0.0, %v6882
  %v6884 = vpop.f32.mrf.mxu0
  %v6885 = vadd.f32 0.0, %v6884
  %6886 = vmatprep.mubr.bf16.mxu0 0
  %6887 = vmatmul.mubr.bf16.gmra.mxu0 %v6709
  %v6888 = vpop.f32.mrf.mxu0
  %v6889 = vadd.f32 0.0, %v6888
  %v6890 = vpop.f32.mrf.mxu0
  %v6891 = vadd.f32 0.0, %v6890
  %v6892 = vpop.f32.mrf.mxu0
  %v6893 = vadd.f32 0.0, %v6892
  %v6894 = vpop.f32.mrf.mxu0
  %v6895 = vadd.f32 0.0, %v6894
  %6896 = vmatprep.mubr.bf16.mxu0 0
  %6897 = vmatmul.mubr.bf16.gmra.mxu0 %v6712
  %v6898 = vpop.f32.mrf.mxu0
  %v6899 = vadd.f32 0.0, %v6898
  %v6900 = vpop.f32.mrf.mxu0
  %v6901 = vadd.f32 0.0, %v6900
  %v6902 = vpop.f32.mrf.mxu0
  %v6903 = vadd.f32 0.0, %v6902
  %v6904 = vpop.f32.mrf.mxu0
  %v6905 = vadd.f32 0.0, %v6904
  %6906 = vdwg.mxu0
  %v6907 = vadd.f32 %v5646, %v6749
  %v6908 = vadd.f32 %v5647, %v6751
  %v6909 = vadd.f32 %v5648, %v6753
  %v6910 = vadd.f32 %v5649, %v6755
  %v6911 = vadd.f32 %v5650, %v6759
  %v6912 = vadd.f32 %v5651, %v6761
  %v6913 = vadd.f32 %v5652, %v6763
  %v6914 = vadd.f32 %v5653, %v6765
  %v6915 = vadd.f32 %v5654, %v6769
  %v6916 = vadd.f32 %v5655, %v6771
  %v6917 = vadd.f32 %v5656, %v6773
  %v6918 = vadd.f32 %v5657, %v6775
  %v6919 = vadd.f32 %v5658, %v6779
  %v6920 = vadd.f32 %v5659, %v6781
  %v6921 = vadd.f32 %v5660, %v6783
  %v6922 = vadd.f32 %v5661, %v6785
  %v6923 = vadd.f32 %v5662, %v6789
  %v6924 = vadd.f32 %v5663, %v6791
  %v6925 = vadd.f32 %v5664, %v6793
  %v6926 = vadd.f32 %v5665, %v6795
  %v6927 = vadd.f32 %v5666, %v6799
  %v6928 = vadd.f32 %v5667, %v6801
  %v6929 = vadd.f32 %v5668, %v6803
  %v6930 = vadd.f32 %v5669, %v6805
  %v6931 = vadd.f32 %v5670, %v6809
  %v6932 = vadd.f32 %v5671, %v6811
  %v6933 = vadd.f32 %v5672, %v6813
  %v6934 = vadd.f32 %v5673, %v6815
  %v6935 = vadd.f32 %v5674, %v6819
  %v6936 = vadd.f32 %v5675, %v6821
  %v6937 = vadd.f32 %v5676, %v6823
  %v6938 = vadd.f32 %v5677, %v6825
  %v6939 = vadd.f32 %v5678, %v6829
  %v6940 = vadd.f32 %v5679, %v6831
  %v6941 = vadd.f32 %v5680, %v6833
  %v6942 = vadd.f32 %v5681, %v6835
  %v6943 = vadd.f32 %v5682, %v6839
  %v6944 = vadd.f32 %v5683, %v6841
  %v6945 = vadd.f32 %v5684, %v6843
  %v6946 = vadd.f32 %v5685, %v6845
  %v6947 = vadd.f32 %v5686, %v6849
  %v6948 = vadd.f32 %v5687, %v6851
  %v6949 = vadd.f32 %v5688, %v6853
  %v6950 = vadd.f32 %v5689, %v6855
  %v6951 = vadd.f32 %v5690, %v6859
  %v6952 = vadd.f32 %v5691, %v6861
  %v6953 = vadd.f32 %v5692, %v6863
  %v6954 = vadd.f32 %v5693, %v6865
  %v6955 = vadd.f32 %v5694, %v6869
  %v6956 = vadd.f32 %v5695, %v6871
  %v6957 = vadd.f32 %v5696, %v6873
  %v6958 = vadd.f32 %v5697, %v6875
  %v6959 = vadd.f32 %v5698, %v6879
  %v6960 = vadd.f32 %v5699, %v6881
  %v6961 = vadd.f32 %v5700, %v6883
  %v6962 = vadd.f32 %v5701, %v6885
  %v6963 = vadd.f32 %v5702, %v6889
  %v6964 = vadd.f32 %v5703, %v6891
  %v6965 = vadd.f32 %v5704, %v6893
  %v6966 = vadd.f32 %v5705, %v6895
  %v6967 = vadd.f32 %v5706, %v6899
  %v6968 = vadd.f32 %v5707, %v6901
  %v6969 = vadd.f32 %v5708, %v6903
  %v6970 = vadd.f32 %v5709, %v6905
  %v6971 = vpack.c.bf16 %v1850, %v1848
  %v6972 = vpack.c.bf16 %v1854, %v1852
  %v6973 = vpack.c.bf16 %v1858, %v1856
  %v6974 = vpack.c.bf16 %v1862, %v1860
  %v6975 = vpack.c.bf16 %v1866, %v1864
  %v6976 = vpack.c.bf16 %v1870, %v1868
  %v6977 = vpack.c.bf16 %v1874, %v1872
  %v6978 = vpack.c.bf16 %v1878, %v1876
  %v6979 = vpack.c.bf16 %v1882, %v1880
  %v6980 = vpack.c.bf16 %v1886, %v1884
  %v6981 = vpack.c.bf16 %v1890, %v1888
  %v6982 = vpack.c.bf16 %v1894, %v1892
  %v6983 = vpack.c.bf16 %v1898, %v1896
  %v6984 = vpack.c.bf16 %v1902, %v1900
  %v6985 = vpack.c.bf16 %v1906, %v1904
  %v6986 = vpack.c.bf16 %v1910, %v1908
  %v6987 = vpack.c.bf16 %v1724, %v1721
  %v6988 = vpack.c.bf16 %v1732, %v1729
  %v6989 = vpack.c.bf16 %v1740, %v1737
  %v6990 = vpack.c.bf16 %v1748, %v1745
  %v6991 = vpack.c.bf16 %v1756, %v1753
  %v6992 = vpack.c.bf16 %v1764, %v1761
  %v6993 = vpack.c.bf16 %v1772, %v1769
  %v6994 = vpack.c.bf16 %v1780, %v1777
  %v6995 = vpack.c.bf16 %v1788, %v1785
  %v6996 = vpack.c.bf16 %v1796, %v1793
  %v6997 = vpack.c.bf16 %v1804, %v1801
  %v6998 = vpack.c.bf16 %v1812, %v1809
  %v6999 = vpack.c.bf16 %v1820, %v1817
  %v7000 = vpack.c.bf16 %v1828, %v1825
  %v7001 = vpack.c.bf16 %v1836, %v1833
  %v7002 = vpack.c.bf16 %v1844, %v1841
  %7003 = vrot.lane.b32.xlu0 %v4481, 64
  %v7004 = vpop.permute.xlu0 %7003
  %7005 = vrot.lane.b32.xlu0 %v4482, 64
  %v7006 = vpop.permute.xlu0 %7005
  %7007 = vrot.lane.b32.xlu0 %v4483, 64
  %v7008 = vpop.permute.xlu0 %7007
  %7009 = vrot.lane.b32.xlu0 %v4484, 64
  %v7010 = vpop.permute.xlu0 %7009
  %7011 = vrot.lane.b32.xlu0 %v4485, 64
  %v7012 = vpop.permute.xlu0 %7011
  %7013 = vrot.lane.b32.xlu0 %v4486, 64
  %v7014 = vpop.permute.xlu0 %7013
  %7015 = vrot.lane.b32.xlu0 %v4487, 64
  %v7016 = vpop.permute.xlu0 %7015
  %7017 = vrot.lane.b32.xlu0 %v4488, 64
  %v7018 = vpop.permute.xlu0 %7017
  %v7020 = vsel %vm2046, %v6971, 0
  %v7023 = vsel %vm2046, %v6972, 0
  %v7026 = vsel %vm2046, %v6973, 0
  %v7029 = vsel %vm2046, %v6974, 0
  %v7032 = vsel %vm2046, %v6975, 0
  %v7035 = vsel %vm2046, %v6976, 0
  %v7038 = vsel %vm2046, %v6977, 0
  %v7041 = vsel %vm2046, %v6978, 0
  %v7044 = vsel %vm2046, %v7004, 0
  %v7047 = vsel %vm2046, %v7006, 0
  %v7050 = vsel %vm2046, %v7008, 0
  %v7053 = vsel %vm2046, %v7010, 0
  %v7056 = vsel %vm2046, %v7012, 0
  %v7059 = vsel %vm2046, %v7014, 0
  %v7062 = vsel %vm2046, %v7016, 0
  %v7065 = vsel %vm2046, %v7018, 0
  %7067 = vmatprep.subr.bf16.mxu0 0
  %7068 = vmatpush1.bf16.xpose.msra.mxu0 %v7065
  %7069 = vmatprep.subr.bf16.mxu0 0
  %7070 = vmatpush1.bf16.xpose.msra.mxu0 %v7062
  %7071 = vmatprep.subr.bf16.mxu0 0
  %7072 = vmatpush1.bf16.xpose.msra.mxu0 %v7059
  %7073 = vmatprep.subr.bf16.mxu0 0
  %7074 = vmatpush1.bf16.xpose.msra.mxu0 %v7056
  %7075 = vmatprep.subr.bf16.mxu0 0
  %7076 = vmatpush1.bf16.xpose.msra.mxu0 %v7053
  %7077 = vmatprep.subr.bf16.mxu0 0
  %7078 = vmatpush1.bf16.xpose.msra.mxu0 %v7050
  %7079 = vmatprep.subr.bf16.mxu0 0
  %7080 = vmatpush1.bf16.xpose.msra.mxu0 %v7047
  %7081 = vmatprep.subr.bf16.mxu0 0
  %7082 = vmatpush1.bf16.xpose.msra.mxu0 %v7044
  %7083 = vmatprep.subr.bf16.mxu0 0
  %7084 = vmatpush2.bf16.xpose.msra.mxu0 0
  %7085 = vmatprep.subr.bf16.mxu0 0
  %7086 = vmatpush2.bf16.xpose.msra.mxu0 0
  %7087 = vmatprep.subr.bf16.mxu0 0
  %7088 = vmatpush2.bf16.xpose.msra.mxu0 0
  %7089 = vmatprep.subr.bf16.mxu0 0
  %7090 = vmatpush2.bf16.xpose.msra.mxu0 0
  %7091 = vmatprep.subr.bf16.mxu0 0
  %7092 = vmatpush2.bf16.xpose.msra.mxu0 0
  %7093 = vmatprep.subr.bf16.mxu0 0
  %7094 = vmatpush2.bf16.xpose.msra.mxu0 0
  %7095 = vmatprep.subr.bf16.mxu0 0
  %7096 = vmatpush2.bf16.xpose.msra.mxu0 0
  %7097 = vmatprep.subr.bf16.mxu0 0
  %7098 = vmatpush2.bf16.xpose.msra.mxu0 0
  %7099 = vmatprep.mubr.bf16.mxu0 0
  %7100 = vmatmul.mubr.bf16.gmra.mxu0 %v7020
  %v7101 = vpop.f32.mrf.mxu0
  %v7102 = vadd.f32 %v1946, %v7101
  %v7103 = vpop.f32.mrf.mxu0
  %v7104 = vpop.f32.mrf.mxu0
  %v7105 = vadd.f32 %v1947, %v7104
  %v7106 = vpop.f32.mrf.mxu0
  %7107 = vmatprep.mubr.bf16.mxu0 0
  %7108 = vmatmul.mubr.bf16.gmra.mxu0 %v7023
  %v7109 = vpop.f32.mrf.mxu0
  %v7110 = vadd.f32 %v1948, %v7109
  %v7111 = vpop.f32.mrf.mxu0
  %v7112 = vpop.f32.mrf.mxu0
  %v7113 = vadd.f32 %v1949, %v7112
  %v7114 = vpop.f32.mrf.mxu0
  %7115 = vmatprep.mubr.bf16.mxu0 0
  %7116 = vmatmul.mubr.bf16.gmra.mxu0 %v7026
  %v7117 = vpop.f32.mrf.mxu0
  %v7118 = vadd.f32 %v1950, %v7117
  %v7119 = vpop.f32.mrf.mxu0
  %v7120 = vpop.f32.mrf.mxu0
  %v7121 = vadd.f32 %v1951, %v7120
  %v7122 = vpop.f32.mrf.mxu0
  %7123 = vmatprep.mubr.bf16.mxu0 0
  %7124 = vmatmul.mubr.bf16.gmra.mxu0 %v7029
  %v7125 = vpop.f32.mrf.mxu0
  %v7126 = vadd.f32 %v1952, %v7125
  %v7127 = vpop.f32.mrf.mxu0
  %v7128 = vpop.f32.mrf.mxu0
  %v7129 = vadd.f32 %v1953, %v7128
  %v7130 = vpop.f32.mrf.mxu0
  %7131 = vmatprep.mubr.bf16.mxu0 0
  %7132 = vmatmul.mubr.bf16.gmra.mxu0 %v7032
  %v7133 = vpop.f32.mrf.mxu0
  %v7134 = vadd.f32 %v1954, %v7133
  %v7135 = vpop.f32.mrf.mxu0
  %v7136 = vpop.f32.mrf.mxu0
  %v7137 = vadd.f32 %v1955, %v7136
  %v7138 = vpop.f32.mrf.mxu0
  %7139 = vmatprep.mubr.bf16.mxu0 0
  %7140 = vmatmul.mubr.bf16.gmra.mxu0 %v7035
  %v7141 = vpop.f32.mrf.mxu0
  %v7142 = vadd.f32 %v1956, %v7141
  %v7143 = vpop.f32.mrf.mxu0
  %v7144 = vpop.f32.mrf.mxu0
  %v7145 = vadd.f32 %v1957, %v7144
  %v7146 = vpop.f32.mrf.mxu0
  %7147 = vmatprep.mubr.bf16.mxu0 0
  %7148 = vmatmul.mubr.bf16.gmra.mxu0 %v7038
  %v7149 = vpop.f32.mrf.mxu0
  %v7150 = vadd.f32 %v1958, %v7149
  %v7151 = vpop.f32.mrf.mxu0
  %v7152 = vpop.f32.mrf.mxu0
  %v7153 = vadd.f32 %v1959, %v7152
  %v7154 = vpop.f32.mrf.mxu0
  %7155 = vmatprep.mubr.bf16.mxu0 0
  %7156 = vmatmul.mubr.bf16.gmra.mxu0 %v7041
  %v7157 = vpop.f32.mrf.mxu0
  %v7158 = vadd.f32 %v1960, %v7157
  %v7159 = vpop.f32.mrf.mxu0
  %v7160 = vpop.f32.mrf.mxu0
  %v7161 = vadd.f32 %v1961, %v7160
  %v7162 = vpop.f32.mrf.mxu0
  %7163 = vdwg.mxu0
  %7164 = vrot.lane.b32.xlu0 %v4489, 64
  %v7165 = vpop.permute.xlu0 %7164
  %7166 = vrot.lane.b32.xlu0 %v4490, 64
  %v7167 = vpop.permute.xlu0 %7166
  %7168 = vrot.lane.b32.xlu0 %v4491, 64
  %v7169 = vpop.permute.xlu0 %7168
  %7170 = vrot.lane.b32.xlu0 %v4492, 64
  %v7171 = vpop.permute.xlu0 %7170
  %7172 = vrot.lane.b32.xlu0 %v4493, 64
  %v7173 = vpop.permute.xlu0 %7172
  %7174 = vrot.lane.b32.xlu0 %v4494, 64
  %v7175 = vpop.permute.xlu0 %7174
  %7176 = vrot.lane.b32.xlu0 %v4495, 64
  %v7177 = vpop.permute.xlu0 %7176
  %7178 = vrot.lane.b32.xlu0 %v4496, 64
  %v7179 = vpop.permute.xlu0 %7178
  %v7181 = vsel %vm2046, %v6979, 0
  %v7184 = vsel %vm2046, %v6980, 0
  %v7187 = vsel %vm2046, %v6981, 0
  %v7190 = vsel %vm2046, %v6982, 0
  %v7193 = vsel %vm2046, %v6983, 0
  %v7196 = vsel %vm2046, %v6984, 0
  %v7199 = vsel %vm2046, %v6985, 0
  %v7202 = vsel %vm2046, %v6986, 0
  %v7205 = vsel %vm2046, %v7165, 0
  %v7208 = vsel %vm2046, %v7167, 0
  %v7211 = vsel %vm2046, %v7169, 0
  %v7214 = vsel %vm2046, %v7171, 0
  %v7217 = vsel %vm2046, %v7173, 0
  %v7220 = vsel %vm2046, %v7175, 0
  %v7223 = vsel %vm2046, %v7177, 0
  %v7226 = vsel %vm2046, %v7179, 0
  %7228 = vmatprep.subr.bf16.mxu0 0
  %7229 = vmatpush1.bf16.xpose.msra.mxu0 %v7226
  %7230 = vmatprep.subr.bf16.mxu0 0
  %7231 = vmatpush1.bf16.xpose.msra.mxu0 %v7223
  %7232 = vmatprep.subr.bf16.mxu0 0
  %7233 = vmatpush1.bf16.xpose.msra.mxu0 %v7220
  %7234 = vmatprep.subr.bf16.mxu0 0
  %7235 = vmatpush1.bf16.xpose.msra.mxu0 %v7217
  %7236 = vmatprep.subr.bf16.mxu0 0
  %7237 = vmatpush1.bf16.xpose.msra.mxu0 %v7214
  %7238 = vmatprep.subr.bf16.mxu0 0
  %7239 = vmatpush1.bf16.xpose.msra.mxu0 %v7211
  %7240 = vmatprep.subr.bf16.mxu0 0
  %7241 = vmatpush1.bf16.xpose.msra.mxu0 %v7208
  %7242 = vmatprep.subr.bf16.mxu0 0
  %7243 = vmatpush1.bf16.xpose.msra.mxu0 %v7205
  %7244 = vmatprep.subr.bf16.mxu0 0
  %7245 = vmatpush2.bf16.xpose.msra.mxu0 0
  %7246 = vmatprep.subr.bf16.mxu0 0
  %7247 = vmatpush2.bf16.xpose.msra.mxu0 0
  %7248 = vmatprep.subr.bf16.mxu0 0
  %7249 = vmatpush2.bf16.xpose.msra.mxu0 0
  %7250 = vmatprep.subr.bf16.mxu0 0
  %7251 = vmatpush2.bf16.xpose.msra.mxu0 0
  %7252 = vmatprep.subr.bf16.mxu0 0
  %7253 = vmatpush2.bf16.xpose.msra.mxu0 0
  %7254 = vmatprep.subr.bf16.mxu0 0
  %7255 = vmatpush2.bf16.xpose.msra.mxu0 0
  %7256 = vmatprep.subr.bf16.mxu0 0
  %7257 = vmatpush2.bf16.xpose.msra.mxu0 0
  %7258 = vmatprep.subr.bf16.mxu0 0
  %7259 = vmatpush2.bf16.xpose.msra.mxu0 0
  %7260 = vmatprep.mubr.bf16.mxu0 0
  %7261 = vmatmul.mubr.bf16.gmra.mxu0 %v7181
  %v7262 = vpop.f32.mrf.mxu0
  %v7263 = vadd.f32 %v1946, %v7262
  %v7264 = vpop.f32.mrf.mxu0
  %v7265 = vpop.f32.mrf.mxu0
  %v7266 = vadd.f32 %v1947, %v7265
  %v7267 = vpop.f32.mrf.mxu0
  %7268 = vmatprep.mubr.bf16.mxu0 0
  %7269 = vmatmul.mubr.bf16.gmra.mxu0 %v7184
  %v7270 = vpop.f32.mrf.mxu0
  %v7271 = vadd.f32 %v1948, %v7270
  %v7272 = vpop.f32.mrf.mxu0
  %v7273 = vpop.f32.mrf.mxu0
  %v7274 = vadd.f32 %v1949, %v7273
  %v7275 = vpop.f32.mrf.mxu0
  %7276 = vmatprep.mubr.bf16.mxu0 0
  %7277 = vmatmul.mubr.bf16.gmra.mxu0 %v7187
  %v7278 = vpop.f32.mrf.mxu0
  %v7279 = vadd.f32 %v1950, %v7278
  %v7280 = vpop.f32.mrf.mxu0
  %v7281 = vpop.f32.mrf.mxu0
  %v7282 = vadd.f32 %v1951, %v7281
  %v7283 = vpop.f32.mrf.mxu0
  %7284 = vmatprep.mubr.bf16.mxu0 0
  %7285 = vmatmul.mubr.bf16.gmra.mxu0 %v7190
  %v7286 = vpop.f32.mrf.mxu0
  %v7287 = vadd.f32 %v1952, %v7286
  %v7288 = vpop.f32.mrf.mxu0
  %v7289 = vpop.f32.mrf.mxu0
  %v7290 = vadd.f32 %v1953, %v7289
  %v7291 = vpop.f32.mrf.mxu0
  %7292 = vmatprep.mubr.bf16.mxu0 0
  %7293 = vmatmul.mubr.bf16.gmra.mxu0 %v7193
  %v7294 = vpop.f32.mrf.mxu0
  %v7295 = vadd.f32 %v1954, %v7294
  %v7296 = vpop.f32.mrf.mxu0
  %v7297 = vpop.f32.mrf.mxu0
  %v7298 = vadd.f32 %v1955, %v7297
  %v7299 = vpop.f32.mrf.mxu0
  %7300 = vmatprep.mubr.bf16.mxu0 0
  %7301 = vmatmul.mubr.bf16.gmra.mxu0 %v7196
  %v7302 = vpop.f32.mrf.mxu0
  %v7303 = vadd.f32 %v1956, %v7302
  %v7304 = vpop.f32.mrf.mxu0
  %v7305 = vpop.f32.mrf.mxu0
  %v7306 = vadd.f32 %v1957, %v7305
  %v7307 = vpop.f32.mrf.mxu0
  %7308 = vmatprep.mubr.bf16.mxu0 0
  %7309 = vmatmul.mubr.bf16.gmra.mxu0 %v7199
  %v7310 = vpop.f32.mrf.mxu0
  %v7311 = vadd.f32 %v1958, %v7310
  %v7312 = vpop.f32.mrf.mxu0
  %v7313 = vpop.f32.mrf.mxu0
  %v7314 = vadd.f32 %v1959, %v7313
  %v7315 = vpop.f32.mrf.mxu0
  %7316 = vmatprep.mubr.bf16.mxu0 0
  %7317 = vmatmul.mubr.bf16.gmra.mxu0 %v7202
  %v7318 = vpop.f32.mrf.mxu0
  %v7319 = vadd.f32 %v1960, %v7318
  %v7320 = vpop.f32.mrf.mxu0
  %v7321 = vpop.f32.mrf.mxu0
  %v7322 = vadd.f32 %v1961, %v7321
  %v7323 = vpop.f32.mrf.mxu0
  %7324 = vdwg.mxu0
  %7325 = vmax.xlane.f32.xlu0 %v7102
  %v7326 = vpop.xlane.xlu0 %7325
  %7327 = vmax.xlane.f32.xlu0 %v7105
  %v7328 = vpop.xlane.xlu0 %7327
  %7329 = vmax.xlane.f32.xlu0 %v7110
  %v7330 = vpop.xlane.xlu0 %7329
  %7331 = vmax.xlane.f32.xlu0 %v7113
  %v7332 = vpop.xlane.xlu0 %7331
  %7333 = vmax.xlane.f32.xlu0 %v7118
  %v7334 = vpop.xlane.xlu0 %7333
  %7335 = vmax.xlane.f32.xlu0 %v7121
  %v7336 = vpop.xlane.xlu0 %7335
  %7337 = vmax.xlane.f32.xlu0 %v7126
  %v7338 = vpop.xlane.xlu0 %7337
  %7339 = vmax.xlane.f32.xlu0 %v7129
  %v7340 = vpop.xlane.xlu0 %7339
  %7341 = vmax.xlane.f32.xlu0 %v7134
  %v7342 = vpop.xlane.xlu0 %7341
  %7343 = vmax.xlane.f32.xlu0 %v7137
  %v7344 = vpop.xlane.xlu0 %7343
  %7345 = vmax.xlane.f32.xlu0 %v7142
  %v7346 = vpop.xlane.xlu0 %7345
  %7347 = vmax.xlane.f32.xlu0 %v7145
  %v7348 = vpop.xlane.xlu0 %7347
  %7349 = vmax.xlane.f32.xlu0 %v7150
  %v7350 = vpop.xlane.xlu0 %7349
  %7351 = vmax.xlane.f32.xlu0 %v7153
  %v7352 = vpop.xlane.xlu0 %7351
  %7353 = vmax.xlane.f32.xlu0 %v7158
  %v7354 = vpop.xlane.xlu0 %7353
  %7355 = vmax.xlane.f32.xlu0 %v7161
  %v7356 = vpop.xlane.xlu0 %7355
  %7357 = vmax.xlane.f32.xlu0 %v7263
  %v7358 = vpop.xlane.xlu0 %7357
  %7359 = vmax.xlane.f32.xlu0 %v7266
  %v7360 = vpop.xlane.xlu0 %7359
  %7361 = vmax.xlane.f32.xlu0 %v7271
  %v7362 = vpop.xlane.xlu0 %7361
  %7363 = vmax.xlane.f32.xlu0 %v7274
  %v7364 = vpop.xlane.xlu0 %7363
  %7365 = vmax.xlane.f32.xlu0 %v7279
  %v7366 = vpop.xlane.xlu0 %7365
  %7367 = vmax.xlane.f32.xlu0 %v7282
  %v7368 = vpop.xlane.xlu0 %7367
  %7369 = vmax.xlane.f32.xlu0 %v7287
  %v7370 = vpop.xlane.xlu0 %7369
  %7371 = vmax.xlane.f32.xlu0 %v7290
  %v7372 = vpop.xlane.xlu0 %7371
  %7373 = vmax.xlane.f32.xlu0 %v7295
  %v7374 = vpop.xlane.xlu0 %7373
  %7375 = vmax.xlane.f32.xlu0 %v7298
  %v7376 = vpop.xlane.xlu0 %7375
  %7377 = vmax.xlane.f32.xlu0 %v7303
  %v7378 = vpop.xlane.xlu0 %7377
  %7379 = vmax.xlane.f32.xlu0 %v7306
  %v7380 = vpop.xlane.xlu0 %7379
  %7381 = vmax.xlane.f32.xlu0 %v7311
  %v7382 = vpop.xlane.xlu0 %7381
  %7383 = vmax.xlane.f32.xlu0 %v7314
  %v7384 = vpop.xlane.xlu0 %7383
  %7385 = vmax.xlane.f32.xlu0 %v7319
  %v7386 = vpop.xlane.xlu0 %7385
  %7387 = vmax.xlane.f32.xlu0 %v7322
  %v7388 = vpop.xlane.xlu0 %7387
  %v7389 = vsub.f32 %v7102, %v7326
  %v7390 = vsub.f32 %v7105, %v7328
  %v7391 = vsub.f32 %v7110, %v7330
  %v7392 = vsub.f32 %v7113, %v7332
  %v7393 = vsub.f32 %v7118, %v7334
  %v7394 = vsub.f32 %v7121, %v7336
  %v7395 = vsub.f32 %v7126, %v7338
  %v7396 = vsub.f32 %v7129, %v7340
  %v7397 = vsub.f32 %v7134, %v7342
  %v7398 = vsub.f32 %v7137, %v7344
  %v7399 = vsub.f32 %v7142, %v7346
  %v7400 = vsub.f32 %v7145, %v7348
  %v7401 = vsub.f32 %v7150, %v7350
  %v7402 = vsub.f32 %v7153, %v7352
  %v7403 = vsub.f32 %v7158, %v7354
  %v7404 = vsub.f32 %v7161, %v7356
  %v7405 = vsub.f32 %v7263, %v7358
  %v7406 = vsub.f32 %v7266, %v7360
  %v7407 = vsub.f32 %v7271, %v7362
  %v7408 = vsub.f32 %v7274, %v7364
  %v7409 = vsub.f32 %v7279, %v7366
  %v7410 = vsub.f32 %v7282, %v7368
  %v7411 = vsub.f32 %v7287, %v7370
  %v7412 = vsub.f32 %v7290, %v7372
  %v7413 = vsub.f32 %v7295, %v7374
  %v7414 = vsub.f32 %v7298, %v7376
  %v7415 = vsub.f32 %v7303, %v7378
  %v7416 = vsub.f32 %v7306, %v7380
  %v7417 = vsub.f32 %v7311, %v7382
  %v7418 = vsub.f32 %v7314, %v7384
  %v7419 = vsub.f32 %v7319, %v7386
  %v7420 = vsub.f32 %v7322, %v7388
  %v7421 = vmul.f32 %v7389, 1.442695
  %v7422 = vpow.pop %v7421
  %v7423 = vmul.f32 %v7390, 1.442695
  %v7424 = vpow.pop %v7423
  %v7425 = vmul.f32 %v7391, 1.442695
  %v7426 = vpow.pop %v7425
  %v7427 = vmul.f32 %v7392, 1.442695
  %v7428 = vpow.pop %v7427
  %v7429 = vmul.f32 %v7393, 1.442695
  %v7430 = vpow.pop %v7429
  %v7431 = vmul.f32 %v7394, 1.442695
  %v7432 = vpow.pop %v7431
  %v7433 = vmul.f32 %v7395, 1.442695
  %v7434 = vpow.pop %v7433
  %v7435 = vmul.f32 %v7396, 1.442695
  %v7436 = vpow.pop %v7435
  %v7437 = vmul.f32 %v7397, 1.442695
  %v7438 = vpow.pop %v7437
  %v7439 = vmul.f32 %v7398, 1.442695
  %v7440 = vpow.pop %v7439
  %v7441 = vmul.f32 %v7399, 1.442695
  %v7442 = vpow.pop %v7441
  %v7443 = vmul.f32 %v7400, 1.442695
  %v7444 = vpow.pop %v7443
  %v7445 = vmul.f32 %v7401, 1.442695
  %v7446 = vpow.pop %v7445
  %v7447 = vmul.f32 %v7402, 1.442695
  %v7448 = vpow.pop %v7447
  %v7449 = vmul.f32 %v7403, 1.442695
  %v7450 = vpow.pop %v7449
  %v7451 = vmul.f32 %v7404, 1.442695
  %v7452 = vpow.pop %v7451
  %v7453 = vmul.f32 %v7405, 1.442695
  %v7454 = vpow.pop %v7453
  %v7455 = vmul.f32 %v7406, 1.442695
  %v7456 = vpow.pop %v7455
  %v7457 = vmul.f32 %v7407, 1.442695
  %v7458 = vpow.pop %v7457
  %v7459 = vmul.f32 %v7408, 1.442695
  %v7460 = vpow.pop %v7459
  %v7461 = vmul.f32 %v7409, 1.442695
  %v7462 = vpow.pop %v7461
  %v7463 = vmul.f32 %v7410, 1.442695
  %v7464 = vpow.pop %v7463
  %v7465 = vmul.f32 %v7411, 1.442695
  %v7466 = vpow.pop %v7465
  %v7467 = vmul.f32 %v7412, 1.442695
  %v7468 = vpow.pop %v7467
  %v7469 = vmul.f32 %v7413, 1.442695
  %v7470 = vpow.pop %v7469
  %v7471 = vmul.f32 %v7414, 1.442695
  %v7472 = vpow.pop %v7471
  %v7473 = vmul.f32 %v7415, 1.442695
  %v7474 = vpow.pop %v7473
  %v7475 = vmul.f32 %v7416, 1.442695
  %v7476 = vpow.pop %v7475
  %v7477 = vmul.f32 %v7417, 1.442695
  %v7478 = vpow.pop %v7477
  %v7479 = vmul.f32 %v7418, 1.442695
  %v7480 = vpow.pop %v7479
  %v7481 = vmul.f32 %v7419, 1.442695
  %v7482 = vpow.pop %v7481
  %v7483 = vmul.f32 %v7420, 1.442695
  %v7484 = vpow.pop %v7483
  %7485 = vadd.xlane.f32.xlu0 %v7422
  %v7486 = vpop.xlane.xlu0 %7485
  %7487 = vadd.xlane.f32.xlu0 %v7424
  %v7488 = vpop.xlane.xlu0 %7487
  %7489 = vadd.xlane.f32.xlu0 %v7426
  %v7490 = vpop.xlane.xlu0 %7489
  %7491 = vadd.xlane.f32.xlu0 %v7428
  %v7492 = vpop.xlane.xlu0 %7491
  %7493 = vadd.xlane.f32.xlu0 %v7430
  %v7494 = vpop.xlane.xlu0 %7493
  %7495 = vadd.xlane.f32.xlu0 %v7432
  %v7496 = vpop.xlane.xlu0 %7495
  %7497 = vadd.xlane.f32.xlu0 %v7434
  %v7498 = vpop.xlane.xlu0 %7497
  %7499 = vadd.xlane.f32.xlu0 %v7436
  %v7500 = vpop.xlane.xlu0 %7499
  %7501 = vadd.xlane.f32.xlu0 %v7438
  %v7502 = vpop.xlane.xlu0 %7501
  %7503 = vadd.xlane.f32.xlu0 %v7440
  %v7504 = vpop.xlane.xlu0 %7503
  %7505 = vadd.xlane.f32.xlu0 %v7442
  %v7506 = vpop.xlane.xlu0 %7505
  %7507 = vadd.xlane.f32.xlu0 %v7444
  %v7508 = vpop.xlane.xlu0 %7507
  %7509 = vadd.xlane.f32.xlu0 %v7446
  %v7510 = vpop.xlane.xlu0 %7509
  %7511 = vadd.xlane.f32.xlu0 %v7448
  %v7512 = vpop.xlane.xlu0 %7511
  %7513 = vadd.xlane.f32.xlu0 %v7450
  %v7514 = vpop.xlane.xlu0 %7513
  %7515 = vadd.xlane.f32.xlu0 %v7452
  %v7516 = vpop.xlane.xlu0 %7515
  %7517 = vadd.xlane.f32.xlu0 %v7454
  %v7518 = vpop.xlane.xlu0 %7517
  %7519 = vadd.xlane.f32.xlu0 %v7456
  %v7520 = vpop.xlane.xlu0 %7519
  %7521 = vadd.xlane.f32.xlu0 %v7458
  %v7522 = vpop.xlane.xlu0 %7521
  %7523 = vadd.xlane.f32.xlu0 %v7460
  %v7524 = vpop.xlane.xlu0 %7523
  %7525 = vadd.xlane.f32.xlu0 %v7462
  %v7526 = vpop.xlane.xlu0 %7525
  %7527 = vadd.xlane.f32.xlu0 %v7464
  %v7528 = vpop.xlane.xlu0 %7527
  %7529 = vadd.xlane.f32.xlu0 %v7466
  %v7530 = vpop.xlane.xlu0 %7529
  %7531 = vadd.xlane.f32.xlu0 %v7468
  %v7532 = vpop.xlane.xlu0 %7531
  %7533 = vadd.xlane.f32.xlu0 %v7470
  %v7534 = vpop.xlane.xlu0 %7533
  %7535 = vadd.xlane.f32.xlu0 %v7472
  %v7536 = vpop.xlane.xlu0 %7535
  %7537 = vadd.xlane.f32.xlu0 %v7474
  %v7538 = vpop.xlane.xlu0 %7537
  %7539 = vadd.xlane.f32.xlu0 %v7476
  %v7540 = vpop.xlane.xlu0 %7539
  %7541 = vadd.xlane.f32.xlu0 %v7478
  %v7542 = vpop.xlane.xlu0 %7541
  %7543 = vadd.xlane.f32.xlu0 %v7480
  %v7544 = vpop.xlane.xlu0 %7543
  %7545 = vadd.xlane.f32.xlu0 %v7482
  %v7546 = vpop.xlane.xlu0 %7545
  %7547 = vadd.xlane.f32.xlu0 %v7484
  %v7548 = vpop.xlane.xlu0 %7547
  %v7549 = vrcp.pop %v7486
  %v7550 = vrcp.pop %v7488
  %v7551 = vrcp.pop %v7490
  %v7552 = vrcp.pop %v7492
  %v7553 = vrcp.pop %v7494
  %v7554 = vrcp.pop %v7496
  %v7555 = vrcp.pop %v7498
  %v7556 = vrcp.pop %v7500
  %v7557 = vrcp.pop %v7502
  %v7558 = vrcp.pop %v7504
  %v7559 = vrcp.pop %v7506
  %v7560 = vrcp.pop %v7508
  %v7561 = vrcp.pop %v7510
  %v7562 = vrcp.pop %v7512
  %v7563 = vrcp.pop %v7514
  %v7564 = vrcp.pop %v7516
  %v7565 = vrcp.pop %v7518
  %v7566 = vrcp.pop %v7520
  %v7567 = vrcp.pop %v7522
  %v7568 = vrcp.pop %v7524
  %v7569 = vrcp.pop %v7526
  %v7570 = vrcp.pop %v7528
  %v7571 = vrcp.pop %v7530
  %v7572 = vrcp.pop %v7532
  %v7573 = vrcp.pop %v7534
  %v7574 = vrcp.pop %v7536
  %v7575 = vrcp.pop %v7538
  %v7576 = vrcp.pop %v7540
  %v7577 = vrcp.pop %v7542
  %v7578 = vrcp.pop %v7544
  %v7579 = vrcp.pop %v7546
  %v7580 = vrcp.pop %v7548
  %v7581 = vmul.f32 %v7422, %v7549
  %v7582 = vmul.f32 %v7424, %v7550
  %v7583 = vmul.f32 %v7426, %v7551
  %v7584 = vmul.f32 %v7428, %v7552
  %v7585 = vmul.f32 %v7430, %v7553
  %v7586 = vmul.f32 %v7432, %v7554
  %v7587 = vmul.f32 %v7434, %v7555
  %v7588 = vmul.f32 %v7436, %v7556
  %v7589 = vmul.f32 %v7438, %v7557
  %v7590 = vmul.f32 %v7440, %v7558
  %v7591 = vmul.f32 %v7442, %v7559
  %v7592 = vmul.f32 %v7444, %v7560
  %v7593 = vmul.f32 %v7446, %v7561
  %v7594 = vmul.f32 %v7448, %v7562
  %v7595 = vmul.f32 %v7450, %v7563
  %v7596 = vmul.f32 %v7452, %v7564
  %v7597 = vmul.f32 %v7454, %v7565
  %v7598 = vmul.f32 %v7456, %v7566
  %v7599 = vmul.f32 %v7458, %v7567
  %v7600 = vmul.f32 %v7460, %v7568
  %v7601 = vmul.f32 %v7462, %v7569
  %v7602 = vmul.f32 %v7464, %v7570
  %v7603 = vmul.f32 %v7466, %v7571
  %v7604 = vmul.f32 %v7468, %v7572
  %v7605 = vmul.f32 %v7470, %v7573
  %v7606 = vmul.f32 %v7472, %v7574
  %v7607 = vmul.f32 %v7474, %v7575
  %v7608 = vmul.f32 %v7476, %v7576
  %v7609 = vmul.f32 %v7478, %v7577
  %v7610 = vmul.f32 %v7480, %v7578
  %v7611 = vmul.f32 %v7482, %v7579
  %v7612 = vmul.f32 %v7484, %v7580
  %v7613 = vpack.c.bf16 %v7582, %v7581
  %v7614 = vpack.c.bf16 %v7584, %v7583
  %v7615 = vpack.c.bf16 %v7586, %v7585
  %v7616 = vpack.c.bf16 %v7588, %v7587
  %v7617 = vpack.c.bf16 %v7590, %v7589
  %v7618 = vpack.c.bf16 %v7592, %v7591
  %v7619 = vpack.c.bf16 %v7594, %v7593
  %v7620 = vpack.c.bf16 %v7596, %v7595
  %v7621 = vpack.c.bf16 %v7598, %v7597
  %v7622 = vpack.c.bf16 %v7600, %v7599
  %v7623 = vpack.c.bf16 %v7602, %v7601
  %v7624 = vpack.c.bf16 %v7604, %v7603
  %v7625 = vpack.c.bf16 %v7606, %v7605
  %v7626 = vpack.c.bf16 %v7608, %v7607
  %v7627 = vpack.c.bf16 %v7610, %v7609
  %v7628 = vpack.c.bf16 %v7612, %v7611
  %7629 = vmatprep.subr.bf16.mxu0 0
  %7630 = vmatpush1.bf16.msra.mxu0 %v6994
  %7631 = vmatprep.subr.bf16.mxu0 0
  %7632 = vmatpush1.bf16.msra.mxu0 %v6993
  %7633 = vmatprep.subr.bf16.mxu0 0
  %7634 = vmatpush1.bf16.msra.mxu0 %v6992
  %7635 = vmatprep.subr.bf16.mxu0 0
  %7636 = vmatpush1.bf16.msra.mxu0 %v6991
  %7637 = vmatprep.subr.bf16.mxu0 0
  %7638 = vmatpush1.bf16.msra.mxu0 %v6990
  %7639 = vmatprep.subr.bf16.mxu0 0
  %7640 = vmatpush1.bf16.msra.mxu0 %v6989
  %7641 = vmatprep.subr.bf16.mxu0 0
  %7642 = vmatpush1.bf16.msra.mxu0 %v6988
  %7643 = vmatprep.subr.bf16.mxu0 0
  %7644 = vmatpush1.bf16.msra.mxu0 %v6987
  %7645 = vmatprep.subr.bf16.mxu0 0
  %7646 = vmatpush2.bf16.msra.mxu0 0
  %7647 = vmatprep.subr.bf16.mxu0 0
  %7648 = vmatpush2.bf16.msra.mxu0 0
  %7649 = vmatprep.subr.bf16.mxu0 0
  %7650 = vmatpush2.bf16.msra.mxu0 0
  %7651 = vmatprep.subr.bf16.mxu0 0
  %7652 = vmatpush2.bf16.msra.mxu0 0
  %7653 = vmatprep.subr.bf16.mxu0 0
  %7654 = vmatpush2.bf16.msra.mxu0 0
  %7655 = vmatprep.subr.bf16.mxu0 0
  %7656 = vmatpush2.bf16.msra.mxu0 0
  %7657 = vmatprep.subr.bf16.mxu0 0
  %7658 = vmatpush2.bf16.msra.mxu0 0
  %7659 = vmatprep.subr.bf16.mxu0 0
  %7660 = vmatpush2.bf16.msra.mxu0 0
  %7661 = vmatprep.mubr.bf16.mxu0 0
  %7662 = vmatmul.mubr.bf16.gmra.mxu0 %v7613
  %v7663 = vpop.f32.mrf.mxu0
  %v7664 = vadd.f32 0.0, %v7663
  %v7665 = vpop.f32.mrf.mxu0
  %v7666 = vpop.f32.mrf.mxu0
  %v7667 = vadd.f32 0.0, %v7666
  %v7668 = vpop.f32.mrf.mxu0
  %7669 = vmatprep.mubr.bf16.mxu0 0
  %7670 = vmatmul.mubr.bf16.gmra.mxu0 %v7614
  %v7671 = vpop.f32.mrf.mxu0
  %v7672 = vadd.f32 0.0, %v7671
  %v7673 = vpop.f32.mrf.mxu0
  %v7674 = vpop.f32.mrf.mxu0
  %v7675 = vadd.f32 0.0, %v7674
  %v7676 = vpop.f32.mrf.mxu0
  %7677 = vmatprep.mubr.bf16.mxu0 0
  %7678 = vmatmul.mubr.bf16.gmra.mxu0 %v7615
  %v7679 = vpop.f32.mrf.mxu0
  %v7680 = vadd.f32 0.0, %v7679
  %v7681 = vpop.f32.mrf.mxu0
  %v7682 = vpop.f32.mrf.mxu0
  %v7683 = vadd.f32 0.0, %v7682
  %v7684 = vpop.f32.mrf.mxu0
  %7685 = vmatprep.mubr.bf16.mxu0 0
  %7686 = vmatmul.mubr.bf16.gmra.mxu0 %v7616
  %v7687 = vpop.f32.mrf.mxu0
  %v7688 = vadd.f32 0.0, %v7687
  %v7689 = vpop.f32.mrf.mxu0
  %v7690 = vpop.f32.mrf.mxu0
  %v7691 = vadd.f32 0.0, %v7690
  %v7692 = vpop.f32.mrf.mxu0
  %7693 = vmatprep.mubr.bf16.mxu0 0
  %7694 = vmatmul.mubr.bf16.gmra.mxu0 %v7617
  %v7695 = vpop.f32.mrf.mxu0
  %v7696 = vadd.f32 0.0, %v7695
  %v7697 = vpop.f32.mrf.mxu0
  %v7698 = vpop.f32.mrf.mxu0
  %v7699 = vadd.f32 0.0, %v7698
  %v7700 = vpop.f32.mrf.mxu0
  %7701 = vmatprep.mubr.bf16.mxu0 0
  %7702 = vmatmul.mubr.bf16.gmra.mxu0 %v7618
  %v7703 = vpop.f32.mrf.mxu0
  %v7704 = vadd.f32 0.0, %v7703
  %v7705 = vpop.f32.mrf.mxu0
  %v7706 = vpop.f32.mrf.mxu0
  %v7707 = vadd.f32 0.0, %v7706
  %v7708 = vpop.f32.mrf.mxu0
  %7709 = vmatprep.mubr.bf16.mxu0 0
  %7710 = vmatmul.mubr.bf16.gmra.mxu0 %v7619
  %v7711 = vpop.f32.mrf.mxu0
  %v7712 = vadd.f32 0.0, %v7711
  %v7713 = vpop.f32.mrf.mxu0
  %v7714 = vpop.f32.mrf.mxu0
  %v7715 = vadd.f32 0.0, %v7714
  %v7716 = vpop.f32.mrf.mxu0
  %7717 = vmatprep.mubr.bf16.mxu0 0
  %7718 = vmatmul.mubr.bf16.gmra.mxu0 %v7620
  %v7719 = vpop.f32.mrf.mxu0
  %v7720 = vadd.f32 0.0, %v7719
  %v7721 = vpop.f32.mrf.mxu0
  %v7722 = vpop.f32.mrf.mxu0
  %v7723 = vadd.f32 0.0, %v7722
  %v7724 = vpop.f32.mrf.mxu0
  %7725 = vdwg.mxu0
  %7726 = vmatprep.subr.bf16.mxu0 0
  %7727 = vmatpush1.bf16.msra.mxu0 %v7002
  %7728 = vmatprep.subr.bf16.mxu0 0
  %7729 = vmatpush1.bf16.msra.mxu0 %v7001
  %7730 = vmatprep.subr.bf16.mxu0 0
  %7731 = vmatpush1.bf16.msra.mxu0 %v7000
  %7732 = vmatprep.subr.bf16.mxu0 0
  %7733 = vmatpush1.bf16.msra.mxu0 %v6999
  %7734 = vmatprep.subr.bf16.mxu0 0
  %7735 = vmatpush1.bf16.msra.mxu0 %v6998
  %7736 = vmatprep.subr.bf16.mxu0 0
  %7737 = vmatpush1.bf16.msra.mxu0 %v6997
  %7738 = vmatprep.subr.bf16.mxu0 0
  %7739 = vmatpush1.bf16.msra.mxu0 %v6996
  %7740 = vmatprep.subr.bf16.mxu0 0
  %7741 = vmatpush1.bf16.msra.mxu0 %v6995
  %7742 = vmatprep.subr.bf16.mxu0 0
  %7743 = vmatpush2.bf16.msra.mxu0 0
  %7744 = vmatprep.subr.bf16.mxu0 0
  %7745 = vmatpush2.bf16.msra.mxu0 0
  %7746 = vmatprep.subr.bf16.mxu0 0
  %7747 = vmatpush2.bf16.msra.mxu0 0
  %7748 = vmatprep.subr.bf16.mxu0 0
  %7749 = vmatpush2.bf16.msra.mxu0 0
  %7750 = vmatprep.subr.bf16.mxu0 0
  %7751 = vmatpush2.bf16.msra.mxu0 0
  %7752 = vmatprep.subr.bf16.mxu0 0
  %7753 = vmatpush2.bf16.msra.mxu0 0
  %7754 = vmatprep.subr.bf16.mxu0 0
  %7755 = vmatpush2.bf16.msra.mxu0 0
  %7756 = vmatprep.subr.bf16.mxu0 0
  %7757 = vmatpush2.bf16.msra.mxu0 0
  %7758 = vmatprep.mubr.bf16.mxu0 0
  %7759 = vmatmul.mubr.bf16.gmra.mxu0 %v7621
  %v7760 = vpop.f32.mrf.mxu0
  %v7761 = vadd.f32 0.0, %v7760
  %v7762 = vpop.f32.mrf.mxu0
  %v7763 = vpop.f32.mrf.mxu0
  %v7764 = vadd.f32 0.0, %v7763
  %v7765 = vpop.f32.mrf.mxu0
  %7766 = vmatprep.mubr.bf16.mxu0 0
  %7767 = vmatmul.mubr.bf16.gmra.mxu0 %v7622
  %v7768 = vpop.f32.mrf.mxu0
  %v7769 = vadd.f32 0.0, %v7768
  %v7770 = vpop.f32.mrf.mxu0
  %v7771 = vpop.f32.mrf.mxu0
  %v7772 = vadd.f32 0.0, %v7771
  %v7773 = vpop.f32.mrf.mxu0
  %7774 = vmatprep.mubr.bf16.mxu0 0
  %7775 = vmatmul.mubr.bf16.gmra.mxu0 %v7623
  %v7776 = vpop.f32.mrf.mxu0
  %v7777 = vadd.f32 0.0, %v7776
  %v7778 = vpop.f32.mrf.mxu0
  %v7779 = vpop.f32.mrf.mxu0
  %v7780 = vadd.f32 0.0, %v7779
  %v7781 = vpop.f32.mrf.mxu0
  %7782 = vmatprep.mubr.bf16.mxu0 0
  %7783 = vmatmul.mubr.bf16.gmra.mxu0 %v7624
  %v7784 = vpop.f32.mrf.mxu0
  %v7785 = vadd.f32 0.0, %v7784
  %v7786 = vpop.f32.mrf.mxu0
  %v7787 = vpop.f32.mrf.mxu0
  %v7788 = vadd.f32 0.0, %v7787
  %v7789 = vpop.f32.mrf.mxu0
  %7790 = vmatprep.mubr.bf16.mxu0 0
  %7791 = vmatmul.mubr.bf16.gmra.mxu0 %v7625
  %v7792 = vpop.f32.mrf.mxu0
  %v7793 = vadd.f32 0.0, %v7792
  %v7794 = vpop.f32.mrf.mxu0
  %v7795 = vpop.f32.mrf.mxu0
  %v7796 = vadd.f32 0.0, %v7795
  %v7797 = vpop.f32.mrf.mxu0
  %7798 = vmatprep.mubr.bf16.mxu0 0
  %7799 = vmatmul.mubr.bf16.gmra.mxu0 %v7626
  %v7800 = vpop.f32.mrf.mxu0
  %v7801 = vadd.f32 0.0, %v7800
  %v7802 = vpop.f32.mrf.mxu0
  %v7803 = vpop.f32.mrf.mxu0
  %v7804 = vadd.f32 0.0, %v7803
  %v7805 = vpop.f32.mrf.mxu0
  %7806 = vmatprep.mubr.bf16.mxu0 0
  %7807 = vmatmul.mubr.bf16.gmra.mxu0 %v7627
  %v7808 = vpop.f32.mrf.mxu0
  %v7809 = vadd.f32 0.0, %v7808
  %v7810 = vpop.f32.mrf.mxu0
  %v7811 = vpop.f32.mrf.mxu0
  %v7812 = vadd.f32 0.0, %v7811
  %v7813 = vpop.f32.mrf.mxu0
  %7814 = vmatprep.mubr.bf16.mxu0 0
  %7815 = vmatmul.mubr.bf16.gmra.mxu0 %v7628
  %v7816 = vpop.f32.mrf.mxu0
  %v7817 = vadd.f32 0.0, %v7816
  %v7818 = vpop.f32.mrf.mxu0
  %v7819 = vpop.f32.mrf.mxu0
  %v7820 = vadd.f32 0.0, %v7819
  %v7821 = vpop.f32.mrf.mxu0
  %7822 = vdwg.mxu0
  %v7823 = vpack.c.bf16 %v7667, %v7664
  %v7824 = vpack.c.bf16 %v7675, %v7672
  %v7825 = vpack.c.bf16 %v7683, %v7680
  %v7826 = vpack.c.bf16 %v7691, %v7688
  %v7827 = vpack.c.bf16 %v7699, %v7696
  %v7828 = vpack.c.bf16 %v7707, %v7704
  %v7829 = vpack.c.bf16 %v7715, %v7712
  %v7830 = vpack.c.bf16 %v7723, %v7720
  %v7831 = vpack.c.bf16 %v7764, %v7761
  %v7832 = vpack.c.bf16 %v7772, %v7769
  %v7833 = vpack.c.bf16 %v7780, %v7777
  %v7834 = vpack.c.bf16 %v7788, %v7785
  %v7835 = vpack.c.bf16 %v7796, %v7793
  %v7836 = vpack.c.bf16 %v7804, %v7801
  %v7837 = vpack.c.bf16 %v7812, %v7809
  %v7838 = vpack.c.bf16 %v7820, %v7817
  %v7839 = vld [vmem:[%s6 + $0x80] sm:$0xff]
  %v7840 = vld [vmem:[%s6 + $0x88] sm:$0xff]
  %v7841 = vld [vmem:[%s6 + $0x90] sm:$0xff]
  %v7842 = vld [vmem:[%s6 + $0x98] sm:$0xff]
  %v7847 = vunpack.c.l.b16 %v7839
  %v7848 = vunpack.c.h.b16 %v7839
  %v7849 = vunpack.c.l.b16 %v7840
  %v7850 = vunpack.c.h.b16 %v7840
  %v7851 = vunpack.c.l.b16 %v7841
  %v7852 = vunpack.c.h.b16 %v7841
  %v7853 = vunpack.c.l.b16 %v7842
  %v7854 = vunpack.c.h.b16 %v7842
  %v7855 = vpack.c.b16 %v7849, %v7847
  %v7856 = vpack.c.b16 %v7850, %v7848
  %v7857 = vpack.c.b16 %v7853, %v7851
  %v7858 = vpack.c.b16 %v7854, %v7852
  %v7864 = vsel %vm2046, %v7823, 0
  %v7867 = vsel %vm2046, %v7824, 0
  %v7870 = vsel %vm2046, %v7825, 0
  %v7873 = vsel %vm2046, %v7826, 0
  %v7876 = vsel %vm2046, %v7827, 0
  %v7879 = vsel %vm2046, %v7828, 0
  %v7882 = vsel %vm2046, %v7829, 0
  %v7885 = vsel %vm2046, %v7830, 0
  %v7888 = vsel %vm2046, %v7831, 0
  %v7891 = vsel %vm2046, %v7832, 0
  %v7894 = vsel %vm2046, %v7833, 0
  %v7897 = vsel %vm2046, %v7834, 0
  %v7900 = vsel %vm2046, %v7835, 0
  %v7903 = vsel %vm2046, %v7836, 0
  %v7906 = vsel %vm2046, %v7837, 0
  %v7909 = vsel %vm2046, %v7838, 0
  %7911 = vmatprep.subr.bf16.mxu0 0
  %7912 = vmatpush1.bf16.msra.mxu0 0
  %7913 = vmatprep.subr.bf16.mxu0 0
  %7914 = vmatpush1.bf16.msra.mxu0 0
  %7915 = vmatprep.subr.bf16.mxu0 0
  %7916 = vmatpush1.bf16.msra.mxu0 0
  %7917 = vmatprep.subr.bf16.mxu0 0
  %7918 = vmatpush1.bf16.msra.mxu0 0
  %7919 = vmatprep.subr.bf16.mxu0 0
  %7920 = vmatpush1.bf16.msra.mxu0 0
  %7921 = vmatprep.subr.bf16.mxu0 0
  %7922 = vmatpush1.bf16.msra.mxu0 0
  %7923 = vmatprep.subr.bf16.mxu0 %v7858
  %7924 = vmatpush1.bf16.msra.mxu0 %v7857
  %7925 = vmatprep.subr.bf16.mxu0 %v7856
  %7926 = vmatpush1.bf16.msra.mxu0 %v7855
  %7927 = vmatprep.subr.bf16.mxu0 0
  %7928 = vmatpush2.bf16.msra.mxu0 0
  %7929 = vmatprep.subr.bf16.mxu0 0
  %7930 = vmatpush2.bf16.msra.mxu0 0
  %7931 = vmatprep.subr.bf16.mxu0 0
  %7932 = vmatpush2.bf16.msra.mxu0 0
  %7933 = vmatprep.subr.bf16.mxu0 0
  %7934 = vmatpush2.bf16.msra.mxu0 0
  %7935 = vmatprep.subr.bf16.mxu0 0
  %7936 = vmatpush2.bf16.msra.mxu0 0
  %7937 = vmatprep.subr.bf16.mxu0 0
  %7938 = vmatpush2.bf16.msra.mxu0 0
  %7939 = vmatprep.subr.bf16.mxu0 0
  %7940 = vmatpush2.bf16.msra.mxu0 0
  %7941 = vmatprep.subr.bf16.mxu0 0
  %7942 = vmatpush2.bf16.msra.mxu0 0
  %7943 = vmatprep.mubr.bf16.mxu0 0
  %7944 = vmatmul.mubr.bf16.gmra.mxu0 %v7864
  %v7945 = vpop.f32.mrf.mxu0
  %v7946 = vadd.f32 0.0, %v7945
  %v7947 = vpop.f32.mrf.mxu0
  %v7948 = vadd.f32 0.0, %v7947
  %v7949 = vpop.f32.mrf.mxu0
  %v7950 = vadd.f32 0.0, %v7949
  %v7951 = vpop.f32.mrf.mxu0
  %v7952 = vadd.f32 0.0, %v7951
  %7953 = vmatprep.mubr.bf16.mxu0 0
  %7954 = vmatmul.mubr.bf16.gmra.mxu0 %v7867
  %v7955 = vpop.f32.mrf.mxu0
  %v7956 = vadd.f32 0.0, %v7955
  %v7957 = vpop.f32.mrf.mxu0
  %v7958 = vadd.f32 0.0, %v7957
  %v7959 = vpop.f32.mrf.mxu0
  %v7960 = vadd.f32 0.0, %v7959
  %v7961 = vpop.f32.mrf.mxu0
  %v7962 = vadd.f32 0.0, %v7961
  %7963 = vmatprep.mubr.bf16.mxu0 0
  %7964 = vmatmul.mubr.bf16.gmra.mxu0 %v7870
  %v7965 = vpop.f32.mrf.mxu0
  %v7966 = vadd.f32 0.0, %v7965
  %v7967 = vpop.f32.mrf.mxu0
  %v7968 = vadd.f32 0.0, %v7967
  %v7969 = vpop.f32.mrf.mxu0
  %v7970 = vadd.f32 0.0, %v7969
  %v7971 = vpop.f32.mrf.mxu0
  %v7972 = vadd.f32 0.0, %v7971
  %7973 = vmatprep.mubr.bf16.mxu0 0
  %7974 = vmatmul.mubr.bf16.gmra.mxu0 %v7873
  %v7975 = vpop.f32.mrf.mxu0
  %v7976 = vadd.f32 0.0, %v7975
  %v7977 = vpop.f32.mrf.mxu0
  %v7978 = vadd.f32 0.0, %v7977
  %v7979 = vpop.f32.mrf.mxu0
  %v7980 = vadd.f32 0.0, %v7979
  %v7981 = vpop.f32.mrf.mxu0
  %v7982 = vadd.f32 0.0, %v7981
  %7983 = vmatprep.mubr.bf16.mxu0 0
  %7984 = vmatmul.mubr.bf16.gmra.mxu0 %v7876
  %v7985 = vpop.f32.mrf.mxu0
  %v7986 = vadd.f32 0.0, %v7985
  %v7987 = vpop.f32.mrf.mxu0
  %v7988 = vadd.f32 0.0, %v7987
  %v7989 = vpop.f32.mrf.mxu0
  %v7990 = vadd.f32 0.0, %v7989
  %v7991 = vpop.f32.mrf.mxu0
  %v7992 = vadd.f32 0.0, %v7991
  %7993 = vmatprep.mubr.bf16.mxu0 0
  %7994 = vmatmul.mubr.bf16.gmra.mxu0 %v7879
  %v7995 = vpop.f32.mrf.mxu0
  %v7996 = vadd.f32 0.0, %v7995
  %v7997 = vpop.f32.mrf.mxu0
  %v7998 = vadd.f32 0.0, %v7997
  %v7999 = vpop.f32.mrf.mxu0
  %v8000 = vadd.f32 0.0, %v7999
  %v8001 = vpop.f32.mrf.mxu0
  %v8002 = vadd.f32 0.0, %v8001
  %8003 = vmatprep.mubr.bf16.mxu0 0
  %8004 = vmatmul.mubr.bf16.gmra.mxu0 %v7882
  %v8005 = vpop.f32.mrf.mxu0
  %v8006 = vadd.f32 0.0, %v8005
  %v8007 = vpop.f32.mrf.mxu0
  %v8008 = vadd.f32 0.0, %v8007
  %v8009 = vpop.f32.mrf.mxu0
  %v8010 = vadd.f32 0.0, %v8009
  %v8011 = vpop.f32.mrf.mxu0
  %v8012 = vadd.f32 0.0, %v8011
  %8013 = vmatprep.mubr.bf16.mxu0 0
  %8014 = vmatmul.mubr.bf16.gmra.mxu0 %v7885
  %v8015 = vpop.f32.mrf.mxu0
  %v8016 = vadd.f32 0.0, %v8015
  %v8017 = vpop.f32.mrf.mxu0
  %v8018 = vadd.f32 0.0, %v8017
  %v8019 = vpop.f32.mrf.mxu0
  %v8020 = vadd.f32 0.0, %v8019
  %v8021 = vpop.f32.mrf.mxu0
  %v8022 = vadd.f32 0.0, %v8021
  %8023 = vmatprep.mubr.bf16.mxu0 0
  %8024 = vmatmul.mubr.bf16.gmra.mxu0 %v7888
  %v8025 = vpop.f32.mrf.mxu0
  %v8026 = vadd.f32 0.0, %v8025
  %v8027 = vpop.f32.mrf.mxu0
  %v8028 = vadd.f32 0.0, %v8027
  %v8029 = vpop.f32.mrf.mxu0
  %v8030 = vadd.f32 0.0, %v8029
  %v8031 = vpop.f32.mrf.mxu0
  %v8032 = vadd.f32 0.0, %v8031
  %8033 = vmatprep.mubr.bf16.mxu0 0
  %8034 = vmatmul.mubr.bf16.gmra.mxu0 %v7891
  %v8035 = vpop.f32.mrf.mxu0
  %v8036 = vadd.f32 0.0, %v8035
  %v8037 = vpop.f32.mrf.mxu0
  %v8038 = vadd.f32 0.0, %v8037
  %v8039 = vpop.f32.mrf.mxu0
  %v8040 = vadd.f32 0.0, %v8039
  %v8041 = vpop.f32.mrf.mxu0
  %v8042 = vadd.f32 0.0, %v8041
  %8043 = vmatprep.mubr.bf16.mxu0 0
  %8044 = vmatmul.mubr.bf16.gmra.mxu0 %v7894
  %v8045 = vpop.f32.mrf.mxu0
  %v8046 = vadd.f32 0.0, %v8045
  %v8047 = vpop.f32.mrf.mxu0
  %v8048 = vadd.f32 0.0, %v8047
  %v8049 = vpop.f32.mrf.mxu0
  %v8050 = vadd.f32 0.0, %v8049
  %v8051 = vpop.f32.mrf.mxu0
  %v8052 = vadd.f32 0.0, %v8051
  %8053 = vmatprep.mubr.bf16.mxu0 0
  %8054 = vmatmul.mubr.bf16.gmra.mxu0 %v7897
  %v8055 = vpop.f32.mrf.mxu0
  %v8056 = vadd.f32 0.0, %v8055
  %v8057 = vpop.f32.mrf.mxu0
  %v8058 = vadd.f32 0.0, %v8057
  %v8059 = vpop.f32.mrf.mxu0
  %v8060 = vadd.f32 0.0, %v8059
  %v8061 = vpop.f32.mrf.mxu0
  %v8062 = vadd.f32 0.0, %v8061
  %8063 = vmatprep.mubr.bf16.mxu0 0
  %8064 = vmatmul.mubr.bf16.gmra.mxu0 %v7900
  %v8065 = vpop.f32.mrf.mxu0
  %v8066 = vadd.f32 0.0, %v8065
  %v8067 = vpop.f32.mrf.mxu0
  %v8068 = vadd.f32 0.0, %v8067
  %v8069 = vpop.f32.mrf.mxu0
  %v8070 = vadd.f32 0.0, %v8069
  %v8071 = vpop.f32.mrf.mxu0
  %v8072 = vadd.f32 0.0, %v8071
  %8073 = vmatprep.mubr.bf16.mxu0 0
  %8074 = vmatmul.mubr.bf16.gmra.mxu0 %v7903
  %v8075 = vpop.f32.mrf.mxu0
  %v8076 = vadd.f32 0.0, %v8075
  %v8077 = vpop.f32.mrf.mxu0
  %v8078 = vadd.f32 0.0, %v8077
  %v8079 = vpop.f32.mrf.mxu0
  %v8080 = vadd.f32 0.0, %v8079
  %v8081 = vpop.f32.mrf.mxu0
  %v8082 = vadd.f32 0.0, %v8081
  %8083 = vmatprep.mubr.bf16.mxu0 0
  %8084 = vmatmul.mubr.bf16.gmra.mxu0 %v7906
  %v8085 = vpop.f32.mrf.mxu0
  %v8086 = vadd.f32 0.0, %v8085
  %v8087 = vpop.f32.mrf.mxu0
  %v8088 = vadd.f32 0.0, %v8087
  %v8089 = vpop.f32.mrf.mxu0
  %v8090 = vadd.f32 0.0, %v8089
  %v8091 = vpop.f32.mrf.mxu0
  %v8092 = vadd.f32 0.0, %v8091
  %8093 = vmatprep.mubr.bf16.mxu0 0
  %8094 = vmatmul.mubr.bf16.gmra.mxu0 %v7909
  %v8095 = vpop.f32.mrf.mxu0
  %v8096 = vadd.f32 0.0, %v8095
  %v8097 = vpop.f32.mrf.mxu0
  %v8098 = vadd.f32 0.0, %v8097
  %v8099 = vpop.f32.mrf.mxu0
  %v8100 = vadd.f32 0.0, %v8099
  %v8101 = vpop.f32.mrf.mxu0
  %v8102 = vadd.f32 0.0, %v8101
  %8103 = vdwg.mxu0
  %v8104 = vadd.f32 %v6907, %v7946
  %v8105 = vadd.f32 %v6908, %v7948
  %v8106 = vadd.f32 %v6909, %v7950
  %v8107 = vadd.f32 %v6910, %v7952
  %v8108 = vadd.f32 %v6911, %v7956
  %v8109 = vadd.f32 %v6912, %v7958
  %v8110 = vadd.f32 %v6913, %v7960
  %v8111 = vadd.f32 %v6914, %v7962
  %v8112 = vadd.f32 %v6915, %v7966
  %v8113 = vadd.f32 %v6916, %v7968
  %v8114 = vadd.f32 %v6917, %v7970
  %v8115 = vadd.f32 %v6918, %v7972
  %v8116 = vadd.f32 %v6919, %v7976
  %v8117 = vadd.f32 %v6920, %v7978
  %v8118 = vadd.f32 %v6921, %v7980
  %v8119 = vadd.f32 %v6922, %v7982
  %v8120 = vadd.f32 %v6923, %v7986
  %v8121 = vadd.f32 %v6924, %v7988
  %v8122 = vadd.f32 %v6925, %v7990
  %v8123 = vadd.f32 %v6926, %v7992
  %v8124 = vadd.f32 %v6927, %v7996
  %v8125 = vadd.f32 %v6928, %v7998
  %v8126 = vadd.f32 %v6929, %v8000
  %v8127 = vadd.f32 %v6930, %v8002
  %v8128 = vadd.f32 %v6931, %v8006
  %v8129 = vadd.f32 %v6932, %v8008
  %v8130 = vadd.f32 %v6933, %v8010
  %v8131 = vadd.f32 %v6934, %v8012
  %v8132 = vadd.f32 %v6935, %v8016
  %v8133 = vadd.f32 %v6936, %v8018
  %v8134 = vadd.f32 %v6937, %v8020
  %v8135 = vadd.f32 %v6938, %v8022
  %v8136 = vadd.f32 %v6939, %v8026
  %v8137 = vadd.f32 %v6940, %v8028
  %v8138 = vadd.f32 %v6941, %v8030
  %v8139 = vadd.f32 %v6942, %v8032
  %v8140 = vadd.f32 %v6943, %v8036
  %v8141 = vadd.f32 %v6944, %v8038
  %v8142 = vadd.f32 %v6945, %v8040
  %v8143 = vadd.f32 %v6946, %v8042
  %v8144 = vadd.f32 %v6947, %v8046
  %v8145 = vadd.f32 %v6948, %v8048
  %v8146 = vadd.f32 %v6949, %v8050
  %v8147 = vadd.f32 %v6950, %v8052
  %v8148 = vadd.f32 %v6951, %v8056
  %v8149 = vadd.f32 %v6952, %v8058
  %v8150 = vadd.f32 %v6953, %v8060
  %v8151 = vadd.f32 %v6954, %v8062
  %v8152 = vadd.f32 %v6955, %v8066
  %v8153 = vadd.f32 %v6956, %v8068
  %v8154 = vadd.f32 %v6957, %v8070
  %v8155 = vadd.f32 %v6958, %v8072
  %v8156 = vadd.f32 %v6959, %v8076
  %v8157 = vadd.f32 %v6960, %v8078
  %v8158 = vadd.f32 %v6961, %v8080
  %v8159 = vadd.f32 %v6962, %v8082
  %v8160 = vadd.f32 %v6963, %v8086
  %v8161 = vadd.f32 %v6964, %v8088
  %v8162 = vadd.f32 %v6965, %v8090
  %v8163 = vadd.f32 %v6966, %v8092
  %v8164 = vadd.f32 %v6967, %v8096
  %v8165 = vadd.f32 %v6968, %v8098
  %v8166 = vadd.f32 %v6969, %v8100
  %v8167 = vadd.f32 %v6970, %v8102
  %8176 = vrot.lane.b32.xlu0 %v6971, 96
  %v8177 = vpop.permute.xlu0 %8176
  %8178 = vrot.lane.b32.xlu0 %v6972, 96
  %v8179 = vpop.permute.xlu0 %8178
  %8180 = vrot.lane.b32.xlu0 %v6973, 96
  %v8181 = vpop.permute.xlu0 %8180
  %8182 = vrot.lane.b32.xlu0 %v6974, 96
  %v8183 = vpop.permute.xlu0 %8182
  %8184 = vrot.lane.b32.xlu0 %v6975, 96
  %v8185 = vpop.permute.xlu0 %8184
  %8186 = vrot.lane.b32.xlu0 %v6976, 96
  %v8187 = vpop.permute.xlu0 %8186
  %8188 = vrot.lane.b32.xlu0 %v6977, 96
  %v8189 = vpop.permute.xlu0 %8188
  %8190 = vrot.lane.b32.xlu0 %v6978, 96
  %v8191 = vpop.permute.xlu0 %8190
  %8192 = vrot.lane.b32.xlu0 %v4481, 32
  %v8193 = vpop.permute.xlu0 %8192
  %8194 = vrot.lane.b32.xlu0 %v4482, 32
  %v8195 = vpop.permute.xlu0 %8194
  %8196 = vrot.lane.b32.xlu0 %v4483, 32
  %v8197 = vpop.permute.xlu0 %8196
  %8198 = vrot.lane.b32.xlu0 %v4484, 32
  %v8199 = vpop.permute.xlu0 %8198
  %8200 = vrot.lane.b32.xlu0 %v4485, 32
  %v8201 = vpop.permute.xlu0 %8200
  %8202 = vrot.lane.b32.xlu0 %v4486, 32
  %v8203 = vpop.permute.xlu0 %8202
  %8204 = vrot.lane.b32.xlu0 %v4487, 32
  %v8205 = vpop.permute.xlu0 %8204
  %8206 = vrot.lane.b32.xlu0 %v4488, 32
  %v8207 = vpop.permute.xlu0 %8206
  %v8209 = vsel %vm2046, %v8177, 0
  %v8212 = vsel %vm2046, %v8179, 0
  %v8215 = vsel %vm2046, %v8181, 0
  %v8218 = vsel %vm2046, %v8183, 0
  %v8221 = vsel %vm2046, %v8185, 0
  %v8224 = vsel %vm2046, %v8187, 0
  %v8227 = vsel %vm2046, %v8189, 0
  %v8230 = vsel %vm2046, %v8191, 0
  %v8233 = vsel %vm2046, %v8193, 0
  %v8236 = vsel %vm2046, %v8195, 0
  %v8239 = vsel %vm2046, %v8197, 0
  %v8242 = vsel %vm2046, %v8199, 0
  %v8245 = vsel %vm2046, %v8201, 0
  %v8248 = vsel %vm2046, %v8203, 0
  %v8251 = vsel %vm2046, %v8205, 0
  %v8254 = vsel %vm2046, %v8207, 0
  %8256 = vmatprep.subr.bf16.mxu0 0
  %8257 = vmatpush1.bf16.xpose.msra.mxu0 %v8254
  %8258 = vmatprep.subr.bf16.mxu0 0
  %8259 = vmatpush1.bf16.xpose.msra.mxu0 %v8251
  %8260 = vmatprep.subr.bf16.mxu0 0
  %8261 = vmatpush1.bf16.xpose.msra.mxu0 %v8248
  %8262 = vmatprep.subr.bf16.mxu0 0
  %8263 = vmatpush1.bf16.xpose.msra.mxu0 %v8245
  %8264 = vmatprep.subr.bf16.mxu0 0
  %8265 = vmatpush1.bf16.xpose.msra.mxu0 %v8242
  %8266 = vmatprep.subr.bf16.mxu0 0
  %8267 = vmatpush1.bf16.xpose.msra.mxu0 %v8239
  %8268 = vmatprep.subr.bf16.mxu0 0
  %8269 = vmatpush1.bf16.xpose.msra.mxu0 %v8236
  %8270 = vmatprep.subr.bf16.mxu0 0
  %8271 = vmatpush1.bf16.xpose.msra.mxu0 %v8233
  %8272 = vmatprep.subr.bf16.mxu0 0
  %8273 = vmatpush2.bf16.xpose.msra.mxu0 0
  %8274 = vmatprep.subr.bf16.mxu0 0
  %8275 = vmatpush2.bf16.xpose.msra.mxu0 0
  %8276 = vmatprep.subr.bf16.mxu0 0
  %8277 = vmatpush2.bf16.xpose.msra.mxu0 0
  %8278 = vmatprep.subr.bf16.mxu0 0
  %8279 = vmatpush2.bf16.xpose.msra.mxu0 0
  %8280 = vmatprep.subr.bf16.mxu0 0
  %8281 = vmatpush2.bf16.xpose.msra.mxu0 0
  %8282 = vmatprep.subr.bf16.mxu0 0
  %8283 = vmatpush2.bf16.xpose.msra.mxu0 0
  %8284 = vmatprep.subr.bf16.mxu0 0
  %8285 = vmatpush2.bf16.xpose.msra.mxu0 0
  %8286 = vmatprep.subr.bf16.mxu0 0
  %8287 = vmatpush2.bf16.xpose.msra.mxu0 0
  %8288 = vmatprep.mubr.bf16.mxu0 0
  %8289 = vmatmul.mubr.bf16.gmra.mxu0 %v8209
  %v8290 = vpop.f32.mrf.mxu0
  %v8291 = vadd.f32 %v1946, %v8290
  %v8292 = vpop.f32.mrf.mxu0
  %v8293 = vpop.f32.mrf.mxu0
  %v8294 = vadd.f32 %v1947, %v8293
  %v8295 = vpop.f32.mrf.mxu0
  %8296 = vmatprep.mubr.bf16.mxu0 0
  %8297 = vmatmul.mubr.bf16.gmra.mxu0 %v8212
  %v8298 = vpop.f32.mrf.mxu0
  %v8299 = vadd.f32 %v1948, %v8298
  %v8300 = vpop.f32.mrf.mxu0
  %v8301 = vpop.f32.mrf.mxu0
  %v8302 = vadd.f32 %v1949, %v8301
  %v8303 = vpop.f32.mrf.mxu0
  %8304 = vmatprep.mubr.bf16.mxu0 0
  %8305 = vmatmul.mubr.bf16.gmra.mxu0 %v8215
  %v8306 = vpop.f32.mrf.mxu0
  %v8307 = vadd.f32 %v1950, %v8306
  %v8308 = vpop.f32.mrf.mxu0
  %v8309 = vpop.f32.mrf.mxu0
  %v8310 = vadd.f32 %v1951, %v8309
  %v8311 = vpop.f32.mrf.mxu0
  %8312 = vmatprep.mubr.bf16.mxu0 0
  %8313 = vmatmul.mubr.bf16.gmra.mxu0 %v8218
  %v8314 = vpop.f32.mrf.mxu0
  %v8315 = vadd.f32 %v1952, %v8314
  %v8316 = vpop.f32.mrf.mxu0
  %v8317 = vpop.f32.mrf.mxu0
  %v8318 = vadd.f32 %v1953, %v8317
  %v8319 = vpop.f32.mrf.mxu0
  %8320 = vmatprep.mubr.bf16.mxu0 0
  %8321 = vmatmul.mubr.bf16.gmra.mxu0 %v8221
  %v8322 = vpop.f32.mrf.mxu0
  %v8323 = vadd.f32 %v1954, %v8322
  %v8324 = vpop.f32.mrf.mxu0
  %v8325 = vpop.f32.mrf.mxu0
  %v8326 = vadd.f32 %v1955, %v8325
  %v8327 = vpop.f32.mrf.mxu0
  %8328 = vmatprep.mubr.bf16.mxu0 0
  %8329 = vmatmul.mubr.bf16.gmra.mxu0 %v8224
  %v8330 = vpop.f32.mrf.mxu0
  %v8331 = vadd.f32 %v1956, %v8330
  %v8332 = vpop.f32.mrf.mxu0
  %v8333 = vpop.f32.mrf.mxu0
  %v8334 = vadd.f32 %v1957, %v8333
  %v8335 = vpop.f32.mrf.mxu0
  %8336 = vmatprep.mubr.bf16.mxu0 0
  %8337 = vmatmul.mubr.bf16.gmra.mxu0 %v8227
  %v8338 = vpop.f32.mrf.mxu0
  %v8339 = vadd.f32 %v1958, %v8338
  %v8340 = vpop.f32.mrf.mxu0
  %v8341 = vpop.f32.mrf.mxu0
  %v8342 = vadd.f32 %v1959, %v8341
  %v8343 = vpop.f32.mrf.mxu0
  %8344 = vmatprep.mubr.bf16.mxu0 0
  %8345 = vmatmul.mubr.bf16.gmra.mxu0 %v8230
  %v8346 = vpop.f32.mrf.mxu0
  %v8347 = vadd.f32 %v1960, %v8346
  %v8348 = vpop.f32.mrf.mxu0
  %v8349 = vpop.f32.mrf.mxu0
  %v8350 = vadd.f32 %v1961, %v8349
  %v8351 = vpop.f32.mrf.mxu0
  %8352 = vdwg.mxu0
  %8361 = vrot.lane.b32.xlu0 %v6979, 96
  %v8362 = vpop.permute.xlu0 %8361
  %8363 = vrot.lane.b32.xlu0 %v6980, 96
  %v8364 = vpop.permute.xlu0 %8363
  %8365 = vrot.lane.b32.xlu0 %v6981, 96
  %v8366 = vpop.permute.xlu0 %8365
  %8367 = vrot.lane.b32.xlu0 %v6982, 96
  %v8368 = vpop.permute.xlu0 %8367
  %8369 = vrot.lane.b32.xlu0 %v6983, 96
  %v8370 = vpop.permute.xlu0 %8369
  %8371 = vrot.lane.b32.xlu0 %v6984, 96
  %v8372 = vpop.permute.xlu0 %8371
  %8373 = vrot.lane.b32.xlu0 %v6985, 96
  %v8374 = vpop.permute.xlu0 %8373
  %8375 = vrot.lane.b32.xlu0 %v6986, 96
  %v8376 = vpop.permute.xlu0 %8375
  %8377 = vrot.lane.b32.xlu0 %v4489, 32
  %v8378 = vpop.permute.xlu0 %8377
  %8379 = vrot.lane.b32.xlu0 %v4490, 32
  %v8380 = vpop.permute.xlu0 %8379
  %8381 = vrot.lane.b32.xlu0 %v4491, 32
  %v8382 = vpop.permute.xlu0 %8381
  %8383 = vrot.lane.b32.xlu0 %v4492, 32
  %v8384 = vpop.permute.xlu0 %8383
  %8385 = vrot.lane.b32.xlu0 %v4493, 32
  %v8386 = vpop.permute.xlu0 %8385
  %8387 = vrot.lane.b32.xlu0 %v4494, 32
  %v8388 = vpop.permute.xlu0 %8387
  %8389 = vrot.lane.b32.xlu0 %v4495, 32
  %v8390 = vpop.permute.xlu0 %8389
  %8391 = vrot.lane.b32.xlu0 %v4496, 32
  %v8392 = vpop.permute.xlu0 %8391
  %v8394 = vsel %vm2046, %v8362, 0
  %v8397 = vsel %vm2046, %v8364, 0
  %v8400 = vsel %vm2046, %v8366, 0
  %v8403 = vsel %vm2046, %v8368, 0
  %v8406 = vsel %vm2046, %v8370, 0
  %v8409 = vsel %vm2046, %v8372, 0
  %v8412 = vsel %vm2046, %v8374, 0
  %v8415 = vsel %vm2046, %v8376, 0
  %v8418 = vsel %vm2046, %v8378, 0
  %v8421 = vsel %vm2046, %v8380, 0
  %v8424 = vsel %vm2046, %v8382, 0
  %v8427 = vsel %vm2046, %v8384, 0
  %v8430 = vsel %vm2046, %v8386, 0
  %v8433 = vsel %vm2046, %v8388, 0
  %v8436 = vsel %vm2046, %v8390, 0
  %v8439 = vsel %vm2046, %v8392, 0
  %8441 = vmatprep.subr.bf16.mxu0 0
  %8442 = vmatpush1.bf16.xpose.msra.mxu0 %v8439
  %8443 = vmatprep.subr.bf16.mxu0 0
  %8444 = vmatpush1.bf16.xpose.msra.mxu0 %v8436
  %8445 = vmatprep.subr.bf16.mxu0 0
  %8446 = vmatpush1.bf16.xpose.msra.mxu0 %v8433
  %8447 = vmatprep.subr.bf16.mxu0 0
  %8448 = vmatpush1.bf16.xpose.msra.mxu0 %v8430
  %8449 = vmatprep.subr.bf16.mxu0 0
  %8450 = vmatpush1.bf16.xpose.msra.mxu0 %v8427
  %8451 = vmatprep.subr.bf16.mxu0 0
  %8452 = vmatpush1.bf16.xpose.msra.mxu0 %v8424
  %8453 = vmatprep.subr.bf16.mxu0 0
  %8454 = vmatpush1.bf16.xpose.msra.mxu0 %v8421
  %8455 = vmatprep.subr.bf16.mxu0 0
  %8456 = vmatpush1.bf16.xpose.msra.mxu0 %v8418
  %8457 = vmatprep.subr.bf16.mxu0 0
  %8458 = vmatpush2.bf16.xpose.msra.mxu0 0
  %8459 = vmatprep.subr.bf16.mxu0 0
  %8460 = vmatpush2.bf16.xpose.msra.mxu0 0
  %8461 = vmatprep.subr.bf16.mxu0 0
  %8462 = vmatpush2.bf16.xpose.msra.mxu0 0
  %8463 = vmatprep.subr.bf16.mxu0 0
  %8464 = vmatpush2.bf16.xpose.msra.mxu0 0
  %8465 = vmatprep.subr.bf16.mxu0 0
  %8466 = vmatpush2.bf16.xpose.msra.mxu0 0
  %8467 = vmatprep.subr.bf16.mxu0 0
  %8468 = vmatpush2.bf16.xpose.msra.mxu0 0
  %8469 = vmatprep.subr.bf16.mxu0 0
  %8470 = vmatpush2.bf16.xpose.msra.mxu0 0
  %8471 = vmatprep.subr.bf16.mxu0 0
  %8472 = vmatpush2.bf16.xpose.msra.mxu0 0
  %8473 = vmatprep.mubr.bf16.mxu0 0
  %8474 = vmatmul.mubr.bf16.gmra.mxu0 %v8394
  %v8475 = vpop.f32.mrf.mxu0
  %v8476 = vadd.f32 %v1946, %v8475
  %v8477 = vpop.f32.mrf.mxu0
  %v8478 = vpop.f32.mrf.mxu0
  %v8479 = vadd.f32 %v1947, %v8478
  %v8480 = vpop.f32.mrf.mxu0
  %8481 = vmatprep.mubr.bf16.mxu0 0
  %8482 = vmatmul.mubr.bf16.gmra.mxu0 %v8397
  %v8483 = vpop.f32.mrf.mxu0
  %v8484 = vadd.f32 %v1948, %v8483
  %v8485 = vpop.f32.mrf.mxu0
  %v8486 = vpop.f32.mrf.mxu0
  %v8487 = vadd.f32 %v1949, %v8486
  %v8488 = vpop.f32.mrf.mxu0
  %8489 = vmatprep.mubr.bf16.mxu0 0
  %8490 = vmatmul.mubr.bf16.gmra.mxu0 %v8400
  %v8491 = vpop.f32.mrf.mxu0
  %v8492 = vadd.f32 %v1950, %v8491
  %v8493 = vpop.f32.mrf.mxu0
  %v8494 = vpop.f32.mrf.mxu0
  %v8495 = vadd.f32 %v1951, %v8494
  %v8496 = vpop.f32.mrf.mxu0
  %8497 = vmatprep.mubr.bf16.mxu0 0
  %8498 = vmatmul.mubr.bf16.gmra.mxu0 %v8403
  %v8499 = vpop.f32.mrf.mxu0
  %v8500 = vadd.f32 %v1952, %v8499
  %v8501 = vpop.f32.mrf.mxu0
  %v8502 = vpop.f32.mrf.mxu0
  %v8503 = vadd.f32 %v1953, %v8502
  %v8504 = vpop.f32.mrf.mxu0
  %8505 = vmatprep.mubr.bf16.mxu0 0
  %8506 = vmatmul.mubr.bf16.gmra.mxu0 %v8406
  %v8507 = vpop.f32.mrf.mxu0
  %v8508 = vadd.f32 %v1954, %v8507
  %v8509 = vpop.f32.mrf.mxu0
  %v8510 = vpop.f32.mrf.mxu0
  %v8511 = vadd.f32 %v1955, %v8510
  %v8512 = vpop.f32.mrf.mxu0
  %8513 = vmatprep.mubr.bf16.mxu0 0
  %8514 = vmatmul.mubr.bf16.gmra.mxu0 %v8409
  %v8515 = vpop.f32.mrf.mxu0
  %v8516 = vadd.f32 %v1956, %v8515
  %v8517 = vpop.f32.mrf.mxu0
  %v8518 = vpop.f32.mrf.mxu0
  %v8519 = vadd.f32 %v1957, %v8518
  %v8520 = vpop.f32.mrf.mxu0
  %8521 = vmatprep.mubr.bf16.mxu0 0
  %8522 = vmatmul.mubr.bf16.gmra.mxu0 %v8412
  %v8523 = vpop.f32.mrf.mxu0
  %v8524 = vadd.f32 %v1958, %v8523
  %v8525 = vpop.f32.mrf.mxu0
  %v8526 = vpop.f32.mrf.mxu0
  %v8527 = vadd.f32 %v1959, %v8526
  %v8528 = vpop.f32.mrf.mxu0
  %8529 = vmatprep.mubr.bf16.mxu0 0
  %8530 = vmatmul.mubr.bf16.gmra.mxu0 %v8415
  %v8531 = vpop.f32.mrf.mxu0
  %v8532 = vadd.f32 %v1960, %v8531
  %v8533 = vpop.f32.mrf.mxu0
  %v8534 = vpop.f32.mrf.mxu0
  %v8535 = vadd.f32 %v1961, %v8534
  %v8536 = vpop.f32.mrf.mxu0
  %8537 = vdwg.mxu0
  %8538 = vmax.xlane.f32.xlu0 %v8291
  %v8539 = vpop.xlane.xlu0 %8538
  %8540 = vmax.xlane.f32.xlu0 %v8294
  %v8541 = vpop.xlane.xlu0 %8540
  %8542 = vmax.xlane.f32.xlu0 %v8299
  %v8543 = vpop.xlane.xlu0 %8542
  %8544 = vmax.xlane.f32.xlu0 %v8302
  %v8545 = vpop.xlane.xlu0 %8544
  %8546 = vmax.xlane.f32.xlu0 %v8307
  %v8547 = vpop.xlane.xlu0 %8546
  %8548 = vmax.xlane.f32.xlu0 %v8310
  %v8549 = vpop.xlane.xlu0 %8548
  %8550 = vmax.xlane.f32.xlu0 %v8315
  %v8551 = vpop.xlane.xlu0 %8550
  %8552 = vmax.xlane.f32.xlu0 %v8318
  %v8553 = vpop.xlane.xlu0 %8552
  %8554 = vmax.xlane.f32.xlu0 %v8323
  %v8555 = vpop.xlane.xlu0 %8554
  %8556 = vmax.xlane.f32.xlu0 %v8326
  %v8557 = vpop.xlane.xlu0 %8556
  %8558 = vmax.xlane.f32.xlu0 %v8331
  %v8559 = vpop.xlane.xlu0 %8558
  %8560 = vmax.xlane.f32.xlu0 %v8334
  %v8561 = vpop.xlane.xlu0 %8560
  %8562 = vmax.xlane.f32.xlu0 %v8339
  %v8563 = vpop.xlane.xlu0 %8562
  %8564 = vmax.xlane.f32.xlu0 %v8342
  %v8565 = vpop.xlane.xlu0 %8564
  %8566 = vmax.xlane.f32.xlu0 %v8347
  %v8567 = vpop.xlane.xlu0 %8566
  %8568 = vmax.xlane.f32.xlu0 %v8350
  %v8569 = vpop.xlane.xlu0 %8568
  %8570 = vmax.xlane.f32.xlu0 %v8476
  %v8571 = vpop.xlane.xlu0 %8570
  %8572 = vmax.xlane.f32.xlu0 %v8479
  %v8573 = vpop.xlane.xlu0 %8572
  %8574 = vmax.xlane.f32.xlu0 %v8484
  %v8575 = vpop.xlane.xlu0 %8574
  %8576 = vmax.xlane.f32.xlu0 %v8487
  %v8577 = vpop.xlane.xlu0 %8576
  %8578 = vmax.xlane.f32.xlu0 %v8492
  %v8579 = vpop.xlane.xlu0 %8578
  %8580 = vmax.xlane.f32.xlu0 %v8495
  %v8581 = vpop.xlane.xlu0 %8580
  %8582 = vmax.xlane.f32.xlu0 %v8500
  %v8583 = vpop.xlane.xlu0 %8582
  %8584 = vmax.xlane.f32.xlu0 %v8503
  %v8585 = vpop.xlane.xlu0 %8584
  %8586 = vmax.xlane.f32.xlu0 %v8508
  %v8587 = vpop.xlane.xlu0 %8586
  %8588 = vmax.xlane.f32.xlu0 %v8511
  %v8589 = vpop.xlane.xlu0 %8588
  %8590 = vmax.xlane.f32.xlu0 %v8516
  %v8591 = vpop.xlane.xlu0 %8590
  %8592 = vmax.xlane.f32.xlu0 %v8519
  %v8593 = vpop.xlane.xlu0 %8592
  %8594 = vmax.xlane.f32.xlu0 %v8524
  %v8595 = vpop.xlane.xlu0 %8594
  %8596 = vmax.xlane.f32.xlu0 %v8527
  %v8597 = vpop.xlane.xlu0 %8596
  %8598 = vmax.xlane.f32.xlu0 %v8532
  %v8599 = vpop.xlane.xlu0 %8598
  %8600 = vmax.xlane.f32.xlu0 %v8535
  %v8601 = vpop.xlane.xlu0 %8600
  %v8602 = vsub.f32 %v8291, %v8539
  %v8603 = vsub.f32 %v8294, %v8541
  %v8604 = vsub.f32 %v8299, %v8543
  %v8605 = vsub.f32 %v8302, %v8545
  %v8606 = vsub.f32 %v8307, %v8547
  %v8607 = vsub.f32 %v8310, %v8549
  %v8608 = vsub.f32 %v8315, %v8551
  %v8609 = vsub.f32 %v8318, %v8553
  %v8610 = vsub.f32 %v8323, %v8555
  %v8611 = vsub.f32 %v8326, %v8557
  %v8612 = vsub.f32 %v8331, %v8559
  %v8613 = vsub.f32 %v8334, %v8561
  %v8614 = vsub.f32 %v8339, %v8563
  %v8615 = vsub.f32 %v8342, %v8565
  %v8616 = vsub.f32 %v8347, %v8567
  %v8617 = vsub.f32 %v8350, %v8569
  %v8618 = vsub.f32 %v8476, %v8571
  %v8619 = vsub.f32 %v8479, %v8573
  %v8620 = vsub.f32 %v8484, %v8575
  %v8621 = vsub.f32 %v8487, %v8577
  %v8622 = vsub.f32 %v8492, %v8579
  %v8623 = vsub.f32 %v8495, %v8581
  %v8624 = vsub.f32 %v8500, %v8583
  %v8625 = vsub.f32 %v8503, %v8585
  %v8626 = vsub.f32 %v8508, %v8587
  %v8627 = vsub.f32 %v8511, %v8589
  %v8628 = vsub.f32 %v8516, %v8591
  %v8629 = vsub.f32 %v8519, %v8593
  %v8630 = vsub.f32 %v8524, %v8595
  %v8631 = vsub.f32 %v8527, %v8597
  %v8632 = vsub.f32 %v8532, %v8599
  %v8633 = vsub.f32 %v8535, %v8601
  %v8634 = vmul.f32 %v8602, 1.442695
  %v8635 = vpow.pop %v8634
  %v8636 = vmul.f32 %v8603, 1.442695
  %v8637 = vpow.pop %v8636
  %v8638 = vmul.f32 %v8604, 1.442695
  %v8639 = vpow.pop %v8638
  %v8640 = vmul.f32 %v8605, 1.442695
  %v8641 = vpow.pop %v8640
  %v8642 = vmul.f32 %v8606, 1.442695
  %v8643 = vpow.pop %v8642
  %v8644 = vmul.f32 %v8607, 1.442695
  %v8645 = vpow.pop %v8644
  %v8646 = vmul.f32 %v8608, 1.442695
  %v8647 = vpow.pop %v8646
  %v8648 = vmul.f32 %v8609, 1.442695
  %v8649 = vpow.pop %v8648
  %v8650 = vmul.f32 %v8610, 1.442695
  %v8651 = vpow.pop %v8650
  %v8652 = vmul.f32 %v8611, 1.442695
  %v8653 = vpow.pop %v8652
  %v8654 = vmul.f32 %v8612, 1.442695
  %v8655 = vpow.pop %v8654
  %v8656 = vmul.f32 %v8613, 1.442695
  %v8657 = vpow.pop %v8656
  %v8658 = vmul.f32 %v8614, 1.442695
  %v8659 = vpow.pop %v8658
  %v8660 = vmul.f32 %v8615, 1.442695
  %v8661 = vpow.pop %v8660
  %v8662 = vmul.f32 %v8616, 1.442695
  %v8663 = vpow.pop %v8662
  %v8664 = vmul.f32 %v8617, 1.442695
  %v8665 = vpow.pop %v8664
  %v8666 = vmul.f32 %v8618, 1.442695
  %v8667 = vpow.pop %v8666
  %v8668 = vmul.f32 %v8619, 1.442695
  %v8669 = vpow.pop %v8668
  %v8670 = vmul.f32 %v8620, 1.442695
  %v8671 = vpow.pop %v8670
  %v8672 = vmul.f32 %v8621, 1.442695
  %v8673 = vpow.pop %v8672
  %v8674 = vmul.f32 %v8622, 1.442695
  %v8675 = vpow.pop %v8674
  %v8676 = vmul.f32 %v8623, 1.442695
  %v8677 = vpow.pop %v8676
  %v8678 = vmul.f32 %v8624, 1.442695
  %v8679 = vpow.pop %v8678
  %v8680 = vmul.f32 %v8625, 1.442695
  %v8681 = vpow.pop %v8680
  %v8682 = vmul.f32 %v8626, 1.442695
  %v8683 = vpow.pop %v8682
  %v8684 = vmul.f32 %v8627, 1.442695
  %v8685 = vpow.pop %v8684
  %v8686 = vmul.f32 %v8628, 1.442695
  %v8687 = vpow.pop %v8686
  %v8688 = vmul.f32 %v8629, 1.442695
  %v8689 = vpow.pop %v8688
  %v8690 = vmul.f32 %v8630, 1.442695
  %v8691 = vpow.pop %v8690
  %v8692 = vmul.f32 %v8631, 1.442695
  %v8693 = vpow.pop %v8692
  %v8694 = vmul.f32 %v8632, 1.442695
  %v8695 = vpow.pop %v8694
  %v8696 = vmul.f32 %v8633, 1.442695
  %v8697 = vpow.pop %v8696
  %8698 = vadd.xlane.f32.xlu0 %v8635
  %v8699 = vpop.xlane.xlu0 %8698
  %8700 = vadd.xlane.f32.xlu0 %v8637
  %v8701 = vpop.xlane.xlu0 %8700
  %8702 = vadd.xlane.f32.xlu0 %v8639
  %v8703 = vpop.xlane.xlu0 %8702
  %8704 = vadd.xlane.f32.xlu0 %v8641
  %v8705 = vpop.xlane.xlu0 %8704
  %8706 = vadd.xlane.f32.xlu0 %v8643
  %v8707 = vpop.xlane.xlu0 %8706
  %8708 = vadd.xlane.f32.xlu0 %v8645
  %v8709 = vpop.xlane.xlu0 %8708
  %8710 = vadd.xlane.f32.xlu0 %v8647
  %v8711 = vpop.xlane.xlu0 %8710
  %8712 = vadd.xlane.f32.xlu0 %v8649
  %v8713 = vpop.xlane.xlu0 %8712
  %8714 = vadd.xlane.f32.xlu0 %v8651
  %v8715 = vpop.xlane.xlu0 %8714
  %8716 = vadd.xlane.f32.xlu0 %v8653
  %v8717 = vpop.xlane.xlu0 %8716
  %8718 = vadd.xlane.f32.xlu0 %v8655
  %v8719 = vpop.xlane.xlu0 %8718
  %8720 = vadd.xlane.f32.xlu0 %v8657
  %v8721 = vpop.xlane.xlu0 %8720
  %8722 = vadd.xlane.f32.xlu0 %v8659
  %v8723 = vpop.xlane.xlu0 %8722
  %8724 = vadd.xlane.f32.xlu0 %v8661
  %v8725 = vpop.xlane.xlu0 %8724
  %8726 = vadd.xlane.f32.xlu0 %v8663
  %v8727 = vpop.xlane.xlu0 %8726
  %8728 = vadd.xlane.f32.xlu0 %v8665
  %v8729 = vpop.xlane.xlu0 %8728
  %8730 = vadd.xlane.f32.xlu0 %v8667
  %v8731 = vpop.xlane.xlu0 %8730
  %8732 = vadd.xlane.f32.xlu0 %v8669
  %v8733 = vpop.xlane.xlu0 %8732
  %8734 = vadd.xlane.f32.xlu0 %v8671
  %v8735 = vpop.xlane.xlu0 %8734
  %8736 = vadd.xlane.f32.xlu0 %v8673
  %v8737 = vpop.xlane.xlu0 %8736
  %8738 = vadd.xlane.f32.xlu0 %v8675
  %v8739 = vpop.xlane.xlu0 %8738
  %8740 = vadd.xlane.f32.xlu0 %v8677
  %v8741 = vpop.xlane.xlu0 %8740
  %8742 = vadd.xlane.f32.xlu0 %v8679
  %v8743 = vpop.xlane.xlu0 %8742
  %8744 = vadd.xlane.f32.xlu0 %v8681
  %v8745 = vpop.xlane.xlu0 %8744
  %8746 = vadd.xlane.f32.xlu0 %v8683
  %v8747 = vpop.xlane.xlu0 %8746
  %8748 = vadd.xlane.f32.xlu0 %v8685
  %v8749 = vpop.xlane.xlu0 %8748
  %8750 = vadd.xlane.f32.xlu0 %v8687
  %v8751 = vpop.xlane.xlu0 %8750
  %8752 = vadd.xlane.f32.xlu0 %v8689
  %v8753 = vpop.xlane.xlu0 %8752
  %8754 = vadd.xlane.f32.xlu0 %v8691
  %v8755 = vpop.xlane.xlu0 %8754
  %8756 = vadd.xlane.f32.xlu0 %v8693
  %v8757 = vpop.xlane.xlu0 %8756
  %8758 = vadd.xlane.f32.xlu0 %v8695
  %v8759 = vpop.xlane.xlu0 %8758
  %8760 = vadd.xlane.f32.xlu0 %v8697
  %v8761 = vpop.xlane.xlu0 %8760
  %v8762 = vrcp.pop %v8699
  %v8763 = vrcp.pop %v8701
  %v8764 = vrcp.pop %v8703
  %v8765 = vrcp.pop %v8705
  %v8766 = vrcp.pop %v8707
  %v8767 = vrcp.pop %v8709
  %v8768 = vrcp.pop %v8711
  %v8769 = vrcp.pop %v8713
  %v8770 = vrcp.pop %v8715
  %v8771 = vrcp.pop %v8717
  %v8772 = vrcp.pop %v8719
  %v8773 = vrcp.pop %v8721
  %v8774 = vrcp.pop %v8723
  %v8775 = vrcp.pop %v8725
  %v8776 = vrcp.pop %v8727
  %v8777 = vrcp.pop %v8729
  %v8778 = vrcp.pop %v8731
  %v8779 = vrcp.pop %v8733
  %v8780 = vrcp.pop %v8735
  %v8781 = vrcp.pop %v8737
  %v8782 = vrcp.pop %v8739
  %v8783 = vrcp.pop %v8741
  %v8784 = vrcp.pop %v8743
  %v8785 = vrcp.pop %v8745
  %v8786 = vrcp.pop %v8747
  %v8787 = vrcp.pop %v8749
  %v8788 = vrcp.pop %v8751
  %v8789 = vrcp.pop %v8753
  %v8790 = vrcp.pop %v8755
  %v8791 = vrcp.pop %v8757
  %v8792 = vrcp.pop %v8759
  %v8793 = vrcp.pop %v8761
  %v8794 = vmul.f32 %v8635, %v8762
  %v8795 = vmul.f32 %v8637, %v8763
  %v8796 = vmul.f32 %v8639, %v8764
  %v8797 = vmul.f32 %v8641, %v8765
  %v8798 = vmul.f32 %v8643, %v8766
  %v8799 = vmul.f32 %v8645, %v8767
  %v8800 = vmul.f32 %v8647, %v8768
  %v8801 = vmul.f32 %v8649, %v8769
  %v8802 = vmul.f32 %v8651, %v8770
  %v8803 = vmul.f32 %v8653, %v8771
  %v8804 = vmul.f32 %v8655, %v8772
  %v8805 = vmul.f32 %v8657, %v8773
  %v8806 = vmul.f32 %v8659, %v8774
  %v8807 = vmul.f32 %v8661, %v8775
  %v8808 = vmul.f32 %v8663, %v8776
  %v8809 = vmul.f32 %v8665, %v8777
  %v8810 = vmul.f32 %v8667, %v8778
  %v8811 = vmul.f32 %v8669, %v8779
  %v8812 = vmul.f32 %v8671, %v8780
  %v8813 = vmul.f32 %v8673, %v8781
  %v8814 = vmul.f32 %v8675, %v8782
  %v8815 = vmul.f32 %v8677, %v8783
  %v8816 = vmul.f32 %v8679, %v8784
  %v8817 = vmul.f32 %v8681, %v8785
  %v8818 = vmul.f32 %v8683, %v8786
  %v8819 = vmul.f32 %v8685, %v8787
  %v8820 = vmul.f32 %v8687, %v8788
  %v8821 = vmul.f32 %v8689, %v8789
  %v8822 = vmul.f32 %v8691, %v8790
  %v8823 = vmul.f32 %v8693, %v8791
  %v8824 = vmul.f32 %v8695, %v8792
  %v8825 = vmul.f32 %v8697, %v8793
  %v8826 = vpack.c.bf16 %v8795, %v8794
  %v8827 = vpack.c.bf16 %v8797, %v8796
  %v8828 = vpack.c.bf16 %v8799, %v8798
  %v8829 = vpack.c.bf16 %v8801, %v8800
  %v8830 = vpack.c.bf16 %v8803, %v8802
  %v8831 = vpack.c.bf16 %v8805, %v8804
  %v8832 = vpack.c.bf16 %v8807, %v8806
  %v8833 = vpack.c.bf16 %v8809, %v8808
  %v8834 = vpack.c.bf16 %v8811, %v8810
  %v8835 = vpack.c.bf16 %v8813, %v8812
  %v8836 = vpack.c.bf16 %v8815, %v8814
  %v8837 = vpack.c.bf16 %v8817, %v8816
  %v8838 = vpack.c.bf16 %v8819, %v8818
  %v8839 = vpack.c.bf16 %v8821, %v8820
  %v8840 = vpack.c.bf16 %v8823, %v8822
  %v8841 = vpack.c.bf16 %v8825, %v8824
  %8850 = vrot.lane.b32.xlu0 %v6987, 96
  %v8851 = vpop.permute.xlu0 %8850
  %8852 = vrot.lane.b32.xlu0 %v6988, 96
  %v8853 = vpop.permute.xlu0 %8852
  %8854 = vrot.lane.b32.xlu0 %v6989, 96
  %v8855 = vpop.permute.xlu0 %8854
  %8856 = vrot.lane.b32.xlu0 %v6990, 96
  %v8857 = vpop.permute.xlu0 %8856
  %8858 = vrot.lane.b32.xlu0 %v6991, 96
  %v8859 = vpop.permute.xlu0 %8858
  %8860 = vrot.lane.b32.xlu0 %v6992, 96
  %v8861 = vpop.permute.xlu0 %8860
  %8862 = vrot.lane.b32.xlu0 %v6993, 96
  %v8863 = vpop.permute.xlu0 %8862
  %8864 = vrot.lane.b32.xlu0 %v6994, 96
  %v8865 = vpop.permute.xlu0 %8864
  %8874 = vmatprep.subr.bf16.mxu0 0
  %8875 = vmatpush1.bf16.msra.mxu0 %v8865
  %8876 = vmatprep.subr.bf16.mxu0 0
  %8877 = vmatpush1.bf16.msra.mxu0 %v8863
  %8878 = vmatprep.subr.bf16.mxu0 0
  %8879 = vmatpush1.bf16.msra.mxu0 %v8861
  %8880 = vmatprep.subr.bf16.mxu0 0
  %8881 = vmatpush1.bf16.msra.mxu0 %v8859
  %8882 = vmatprep.subr.bf16.mxu0 0
  %8883 = vmatpush1.bf16.msra.mxu0 %v8857
  %8884 = vmatprep.subr.bf16.mxu0 0
  %8885 = vmatpush1.bf16.msra.mxu0 %v8855
  %8886 = vmatprep.subr.bf16.mxu0 0
  %8887 = vmatpush1.bf16.msra.mxu0 %v8853
  %8888 = vmatprep.subr.bf16.mxu0 0
  %8889 = vmatpush1.bf16.msra.mxu0 %v8851
  %8890 = vmatprep.subr.bf16.mxu0 0
  %8891 = vmatpush2.bf16.msra.mxu0 0
  %8892 = vmatprep.subr.bf16.mxu0 0
  %8893 = vmatpush2.bf16.msra.mxu0 0
  %8894 = vmatprep.subr.bf16.mxu0 0
  %8895 = vmatpush2.bf16.msra.mxu0 0
  %8896 = vmatprep.subr.bf16.mxu0 0
  %8897 = vmatpush2.bf16.msra.mxu0 0
  %8898 = vmatprep.subr.bf16.mxu0 0
  %8899 = vmatpush2.bf16.msra.mxu0 0
  %8900 = vmatprep.subr.bf16.mxu0 0
  %8901 = vmatpush2.bf16.msra.mxu0 0
  %8902 = vmatprep.subr.bf16.mxu0 0
  %8903 = vmatpush2.bf16.msra.mxu0 0
  %8904 = vmatprep.subr.bf16.mxu0 0
  %8905 = vmatpush2.bf16.msra.mxu0 0
  %8906 = vmatprep.mubr.bf16.mxu0 0
  %8907 = vmatmul.mubr.bf16.gmra.mxu0 %v8826
  %v8908 = vpop.f32.mrf.mxu0
  %v8909 = vadd.f32 0.0, %v8908
  %v8910 = vpop.f32.mrf.mxu0
  %v8911 = vpop.f32.mrf.mxu0
  %v8912 = vadd.f32 0.0, %v8911
  %v8913 = vpop.f32.mrf.mxu0
  %8914 = vmatprep.mubr.bf16.mxu0 0
  %8915 = vmatmul.mubr.bf16.gmra.mxu0 %v8827
  %v8916 = vpop.f32.mrf.mxu0
  %v8917 = vadd.f32 0.0, %v8916
  %v8918 = vpop.f32.mrf.mxu0
  %v8919 = vpop.f32.mrf.mxu0
  %v8920 = vadd.f32 0.0, %v8919
  %v8921 = vpop.f32.mrf.mxu0
  %8922 = vmatprep.mubr.bf16.mxu0 0
  %8923 = vmatmul.mubr.bf16.gmra.mxu0 %v8828
  %v8924 = vpop.f32.mrf.mxu0
  %v8925 = vadd.f32 0.0, %v8924
  %v8926 = vpop.f32.mrf.mxu0
  %v8927 = vpop.f32.mrf.mxu0
  %v8928 = vadd.f32 0.0, %v8927
  %v8929 = vpop.f32.mrf.mxu0
  %8930 = vmatprep.mubr.bf16.mxu0 0
  %8931 = vmatmul.mubr.bf16.gmra.mxu0 %v8829
  %v8932 = vpop.f32.mrf.mxu0
  %v8933 = vadd.f32 0.0, %v8932
  %v8934 = vpop.f32.mrf.mxu0
  %v8935 = vpop.f32.mrf.mxu0
  %v8936 = vadd.f32 0.0, %v8935
  %v8937 = vpop.f32.mrf.mxu0
  %8938 = vmatprep.mubr.bf16.mxu0 0
  %8939 = vmatmul.mubr.bf16.gmra.mxu0 %v8830
  %v8940 = vpop.f32.mrf.mxu0
  %v8941 = vadd.f32 0.0, %v8940
  %v8942 = vpop.f32.mrf.mxu0
  %v8943 = vpop.f32.mrf.mxu0
  %v8944 = vadd.f32 0.0, %v8943
  %v8945 = vpop.f32.mrf.mxu0
  %8946 = vmatprep.mubr.bf16.mxu0 0
  %8947 = vmatmul.mubr.bf16.gmra.mxu0 %v8831
  %v8948 = vpop.f32.mrf.mxu0
  %v8949 = vadd.f32 0.0, %v8948
  %v8950 = vpop.f32.mrf.mxu0
  %v8951 = vpop.f32.mrf.mxu0
  %v8952 = vadd.f32 0.0, %v8951
  %v8953 = vpop.f32.mrf.mxu0
  %8954 = vmatprep.mubr.bf16.mxu0 0
  %8955 = vmatmul.mubr.bf16.gmra.mxu0 %v8832
  %v8956 = vpop.f32.mrf.mxu0
  %v8957 = vadd.f32 0.0, %v8956
  %v8958 = vpop.f32.mrf.mxu0
  %v8959 = vpop.f32.mrf.mxu0
  %v8960 = vadd.f32 0.0, %v8959
  %v8961 = vpop.f32.mrf.mxu0
  %8962 = vmatprep.mubr.bf16.mxu0 0
  %8963 = vmatmul.mubr.bf16.gmra.mxu0 %v8833
  %v8964 = vpop.f32.mrf.mxu0
  %v8965 = vadd.f32 0.0, %v8964
  %v8966 = vpop.f32.mrf.mxu0
  %v8967 = vpop.f32.mrf.mxu0
  %v8968 = vadd.f32 0.0, %v8967
  %v8969 = vpop.f32.mrf.mxu0
  %8970 = vdwg.mxu0
  %8979 = vrot.lane.b32.xlu0 %v6995, 96
  %v8980 = vpop.permute.xlu0 %8979
  %8981 = vrot.lane.b32.xlu0 %v6996, 96
  %v8982 = vpop.permute.xlu0 %8981
  %8983 = vrot.lane.b32.xlu0 %v6997, 96
  %v8984 = vpop.permute.xlu0 %8983
  %8985 = vrot.lane.b32.xlu0 %v6998, 96
  %v8986 = vpop.permute.xlu0 %8985
  %8987 = vrot.lane.b32.xlu0 %v6999, 96
  %v8988 = vpop.permute.xlu0 %8987
  %8989 = vrot.lane.b32.xlu0 %v7000, 96
  %v8990 = vpop.permute.xlu0 %8989
  %8991 = vrot.lane.b32.xlu0 %v7001, 96
  %v8992 = vpop.permute.xlu0 %8991
  %8993 = vrot.lane.b32.xlu0 %v7002, 96
  %v8994 = vpop.permute.xlu0 %8993
  %9003 = vmatprep.subr.bf16.mxu0 0
  %9004 = vmatpush1.bf16.msra.mxu0 %v8994
  %9005 = vmatprep.subr.bf16.mxu0 0
  %9006 = vmatpush1.bf16.msra.mxu0 %v8992
  %9007 = vmatprep.subr.bf16.mxu0 0
  %9008 = vmatpush1.bf16.msra.mxu0 %v8990
  %9009 = vmatprep.subr.bf16.mxu0 0
  %9010 = vmatpush1.bf16.msra.mxu0 %v8988
  %9011 = vmatprep.subr.bf16.mxu0 0
  %9012 = vmatpush1.bf16.msra.mxu0 %v8986
  %9013 = vmatprep.subr.bf16.mxu0 0
  %9014 = vmatpush1.bf16.msra.mxu0 %v8984
  %9015 = vmatprep.subr.bf16.mxu0 0
  %9016 = vmatpush1.bf16.msra.mxu0 %v8982
  %9017 = vmatprep.subr.bf16.mxu0 0
  %9018 = vmatpush1.bf16.msra.mxu0 %v8980
  %9019 = vmatprep.subr.bf16.mxu0 0
  %9020 = vmatpush2.bf16.msra.mxu0 0
  %9021 = vmatprep.subr.bf16.mxu0 0
  %9022 = vmatpush2.bf16.msra.mxu0 0
  %9023 = vmatprep.subr.bf16.mxu0 0
  %9024 = vmatpush2.bf16.msra.mxu0 0
  %9025 = vmatprep.subr.bf16.mxu0 0
  %9026 = vmatpush2.bf16.msra.mxu0 0
  %9027 = vmatprep.subr.bf16.mxu0 0
  %9028 = vmatpush2.bf16.msra.mxu0 0
  %9029 = vmatprep.subr.bf16.mxu0 0
  %9030 = vmatpush2.bf16.msra.mxu0 0
  %9031 = vmatprep.subr.bf16.mxu0 0
  %9032 = vmatpush2.bf16.msra.mxu0 0
  %9033 = vmatprep.subr.bf16.mxu0 0
  %9034 = vmatpush2.bf16.msra.mxu0 0
  %9035 = vmatprep.mubr.bf16.mxu0 0
  %9036 = vmatmul.mubr.bf16.gmra.mxu0 %v8834
  %v9037 = vpop.f32.mrf.mxu0
  %v9038 = vadd.f32 0.0, %v9037
  %v9039 = vpop.f32.mrf.mxu0
  %v9040 = vpop.f32.mrf.mxu0
  %v9041 = vadd.f32 0.0, %v9040
  %v9042 = vpop.f32.mrf.mxu0
  %9043 = vmatprep.mubr.bf16.mxu0 0
  %9044 = vmatmul.mubr.bf16.gmra.mxu0 %v8835
  %v9045 = vpop.f32.mrf.mxu0
  %v9046 = vadd.f32 0.0, %v9045
  %v9047 = vpop.f32.mrf.mxu0
  %v9048 = vpop.f32.mrf.mxu0
  %v9049 = vadd.f32 0.0, %v9048
  %v9050 = vpop.f32.mrf.mxu0
  %9051 = vmatprep.mubr.bf16.mxu0 0
  %9052 = vmatmul.mubr.bf16.gmra.mxu0 %v8836
  %v9053 = vpop.f32.mrf.mxu0
  %v9054 = vadd.f32 0.0, %v9053
  %v9055 = vpop.f32.mrf.mxu0
  %v9056 = vpop.f32.mrf.mxu0
  %v9057 = vadd.f32 0.0, %v9056
  %v9058 = vpop.f32.mrf.mxu0
  %9059 = vmatprep.mubr.bf16.mxu0 0
  %9060 = vmatmul.mubr.bf16.gmra.mxu0 %v8837
  %v9061 = vpop.f32.mrf.mxu0
  %v9062 = vadd.f32 0.0, %v9061
  %v9063 = vpop.f32.mrf.mxu0
  %v9064 = vpop.f32.mrf.mxu0
  %v9065 = vadd.f32 0.0, %v9064
  %v9066 = vpop.f32.mrf.mxu0
  %9067 = vmatprep.mubr.bf16.mxu0 0
  %9068 = vmatmul.mubr.bf16.gmra.mxu0 %v8838
  %v9069 = vpop.f32.mrf.mxu0
  %v9070 = vadd.f32 0.0, %v9069
  %v9071 = vpop.f32.mrf.mxu0
  %v9072 = vpop.f32.mrf.mxu0
  %v9073 = vadd.f32 0.0, %v9072
  %v9074 = vpop.f32.mrf.mxu0
  %9075 = vmatprep.mubr.bf16.mxu0 0
  %9076 = vmatmul.mubr.bf16.gmra.mxu0 %v8839
  %v9077 = vpop.f32.mrf.mxu0
  %v9078 = vadd.f32 0.0, %v9077
  %v9079 = vpop.f32.mrf.mxu0
  %v9080 = vpop.f32.mrf.mxu0
  %v9081 = vadd.f32 0.0, %v9080
  %v9082 = vpop.f32.mrf.mxu0
  %9083 = vmatprep.mubr.bf16.mxu0 0
  %9084 = vmatmul.mubr.bf16.gmra.mxu0 %v8840
  %v9085 = vpop.f32.mrf.mxu0
  %v9086 = vadd.f32 0.0, %v9085
  %v9087 = vpop.f32.mrf.mxu0
  %v9088 = vpop.f32.mrf.mxu0
  %v9089 = vadd.f32 0.0, %v9088
  %v9090 = vpop.f32.mrf.mxu0
  %9091 = vmatprep.mubr.bf16.mxu0 0
  %9092 = vmatmul.mubr.bf16.gmra.mxu0 %v8841
  %v9093 = vpop.f32.mrf.mxu0
  %v9094 = vadd.f32 0.0, %v9093
  %v9095 = vpop.f32.mrf.mxu0
  %v9096 = vpop.f32.mrf.mxu0
  %v9097 = vadd.f32 0.0, %v9096
  %v9098 = vpop.f32.mrf.mxu0
  %9099 = vdwg.mxu0
  %v9100 = vpack.c.bf16 %v8912, %v8909
  %v9101 = vpack.c.bf16 %v8920, %v8917
  %v9102 = vpack.c.bf16 %v8928, %v8925
  %v9103 = vpack.c.bf16 %v8936, %v8933
  %v9104 = vpack.c.bf16 %v8944, %v8941
  %v9105 = vpack.c.bf16 %v8952, %v8949
  %v9106 = vpack.c.bf16 %v8960, %v8957
  %v9107 = vpack.c.bf16 %v8968, %v8965
  %v9108 = vpack.c.bf16 %v9041, %v9038
  %v9109 = vpack.c.bf16 %v9049, %v9046
  %v9110 = vpack.c.bf16 %v9057, %v9054
  %v9111 = vpack.c.bf16 %v9065, %v9062
  %v9112 = vpack.c.bf16 %v9073, %v9070
  %v9113 = vpack.c.bf16 %v9081, %v9078
  %v9114 = vpack.c.bf16 %v9089, %v9086
  %v9115 = vpack.c.bf16 %v9097, %v9094
  %v9116 = vld [vmem:[%s6 + $0xa0] sm:$0xff]
  %v9117 = vld [vmem:[%s6 + $0xa8] sm:$0xff]
  %v9118 = vld [vmem:[%s6 + $0xb0] sm:$0xff]
  %v9119 = vld [vmem:[%s6 + $0xb8] sm:$0xff]
  %v9124 = vunpack.c.l.b16 %v9116
  %v9125 = vunpack.c.h.b16 %v9116
  %v9126 = vunpack.c.l.b16 %v9117
  %v9127 = vunpack.c.h.b16 %v9117
  %v9128 = vunpack.c.l.b16 %v9118
  %v9129 = vunpack.c.h.b16 %v9118
  %v9130 = vunpack.c.l.b16 %v9119
  %v9131 = vunpack.c.h.b16 %v9119
  %v9132 = vpack.c.b16 %v9126, %v9124
  %v9133 = vpack.c.b16 %v9127, %v9125
  %v9134 = vpack.c.b16 %v9130, %v9128
  %v9135 = vpack.c.b16 %v9131, %v9129
  %v9141 = vsel %vm2046, %v9100, 0
  %v9144 = vsel %vm2046, %v9101, 0
  %v9147 = vsel %vm2046, %v9102, 0
  %v9150 = vsel %vm2046, %v9103, 0
  %v9153 = vsel %vm2046, %v9104, 0
  %v9156 = vsel %vm2046, %v9105, 0
  %v9159 = vsel %vm2046, %v9106, 0
  %v9162 = vsel %vm2046, %v9107, 0
  %v9165 = vsel %vm2046, %v9108, 0
  %v9168 = vsel %vm2046, %v9109, 0
  %v9171 = vsel %vm2046, %v9110, 0
  %v9174 = vsel %vm2046, %v9111, 0
  %v9177 = vsel %vm2046, %v9112, 0
  %v9180 = vsel %vm2046, %v9113, 0
  %v9183 = vsel %vm2046, %v9114, 0
  %v9186 = vsel %vm2046, %v9115, 0
  %9188 = vmatprep.subr.bf16.mxu0 0
  %9189 = vmatpush1.bf16.msra.mxu0 0
  %9190 = vmatprep.subr.bf16.mxu0 0
  %9191 = vmatpush1.bf16.msra.mxu0 0
  %9192 = vmatprep.subr.bf16.mxu0 0
  %9193 = vmatpush1.bf16.msra.mxu0 0
  %9194 = vmatprep.subr.bf16.mxu0 0
  %9195 = vmatpush1.bf16.msra.mxu0 0
  %9196 = vmatprep.subr.bf16.mxu0 0
  %9197 = vmatpush1.bf16.msra.mxu0 0
  %9198 = vmatprep.subr.bf16.mxu0 0
  %9199 = vmatpush1.bf16.msra.mxu0 0
  %9200 = vmatprep.subr.bf16.mxu0 %v9135
  %9201 = vmatpush1.bf16.msra.mxu0 %v9134
  %9202 = vmatprep.subr.bf16.mxu0 %v9133
  %9203 = vmatpush1.bf16.msra.mxu0 %v9132
  %9204 = vmatprep.subr.bf16.mxu0 0
  %9205 = vmatpush2.bf16.msra.mxu0 0
  %9206 = vmatprep.subr.bf16.mxu0 0
  %9207 = vmatpush2.bf16.msra.mxu0 0
  %9208 = vmatprep.subr.bf16.mxu0 0
  %9209 = vmatpush2.bf16.msra.mxu0 0
  %9210 = vmatprep.subr.bf16.mxu0 0
  %9211 = vmatpush2.bf16.msra.mxu0 0
  %9212 = vmatprep.subr.bf16.mxu0 0
  %9213 = vmatpush2.bf16.msra.mxu0 0
  %9214 = vmatprep.subr.bf16.mxu0 0
  %9215 = vmatpush2.bf16.msra.mxu0 0
  %9216 = vmatprep.subr.bf16.mxu0 0
  %9217 = vmatpush2.bf16.msra.mxu0 0
  %9218 = vmatprep.subr.bf16.mxu0 0
  %9219 = vmatpush2.bf16.msra.mxu0 0
  %9220 = vmatprep.mubr.bf16.mxu0 0
  %9221 = vmatmul.mubr.bf16.gmra.mxu0 %v9141
  %v9222 = vpop.f32.mrf.mxu0
  %v9223 = vadd.f32 0.0, %v9222
  %v9224 = vpop.f32.mrf.mxu0
  %v9225 = vadd.f32 0.0, %v9224
  %v9226 = vpop.f32.mrf.mxu0
  %v9227 = vadd.f32 0.0, %v9226
  %v9228 = vpop.f32.mrf.mxu0
  %v9229 = vadd.f32 0.0, %v9228
  %9230 = vmatprep.mubr.bf16.mxu0 0
  %9231 = vmatmul.mubr.bf16.gmra.mxu0 %v9144
  %v9232 = vpop.f32.mrf.mxu0
  %v9233 = vadd.f32 0.0, %v9232
  %v9234 = vpop.f32.mrf.mxu0
  %v9235 = vadd.f32 0.0, %v9234
  %v9236 = vpop.f32.mrf.mxu0
  %v9237 = vadd.f32 0.0, %v9236
  %v9238 = vpop.f32.mrf.mxu0
  %v9239 = vadd.f32 0.0, %v9238
  %9240 = vmatprep.mubr.bf16.mxu0 0
  %9241 = vmatmul.mubr.bf16.gmra.mxu0 %v9147
  %v9242 = vpop.f32.mrf.mxu0
  %v9243 = vadd.f32 0.0, %v9242
  %v9244 = vpop.f32.mrf.mxu0
  %v9245 = vadd.f32 0.0, %v9244
  %v9246 = vpop.f32.mrf.mxu0
  %v9247 = vadd.f32 0.0, %v9246
  %v9248 = vpop.f32.mrf.mxu0
  %v9249 = vadd.f32 0.0, %v9248
  %9250 = vmatprep.mubr.bf16.mxu0 0
  %9251 = vmatmul.mubr.bf16.gmra.mxu0 %v9150
  %v9252 = vpop.f32.mrf.mxu0
  %v9253 = vadd.f32 0.0, %v9252
  %v9254 = vpop.f32.mrf.mxu0
  %v9255 = vadd.f32 0.0, %v9254
  %v9256 = vpop.f32.mrf.mxu0
  %v9257 = vadd.f32 0.0, %v9256
  %v9258 = vpop.f32.mrf.mxu0
  %v9259 = vadd.f32 0.0, %v9258
  %9260 = vmatprep.mubr.bf16.mxu0 0
  %9261 = vmatmul.mubr.bf16.gmra.mxu0 %v9153
  %v9262 = vpop.f32.mrf.mxu0
  %v9263 = vadd.f32 0.0, %v9262
  %v9264 = vpop.f32.mrf.mxu0
  %v9265 = vadd.f32 0.0, %v9264
  %v9266 = vpop.f32.mrf.mxu0
  %v9267 = vadd.f32 0.0, %v9266
  %v9268 = vpop.f32.mrf.mxu0
  %v9269 = vadd.f32 0.0, %v9268
  %9270 = vmatprep.mubr.bf16.mxu0 0
  %9271 = vmatmul.mubr.bf16.gmra.mxu0 %v9156
  %v9272 = vpop.f32.mrf.mxu0
  %v9273 = vadd.f32 0.0, %v9272
  %v9274 = vpop.f32.mrf.mxu0
  %v9275 = vadd.f32 0.0, %v9274
  %v9276 = vpop.f32.mrf.mxu0
  %v9277 = vadd.f32 0.0, %v9276
  %v9278 = vpop.f32.mrf.mxu0
  %v9279 = vadd.f32 0.0, %v9278
  %9280 = vmatprep.mubr.bf16.mxu0 0
  %9281 = vmatmul.mubr.bf16.gmra.mxu0 %v9159
  %v9282 = vpop.f32.mrf.mxu0
  %v9283 = vadd.f32 0.0, %v9282
  %v9284 = vpop.f32.mrf.mxu0
  %v9285 = vadd.f32 0.0, %v9284
  %v9286 = vpop.f32.mrf.mxu0
  %v9287 = vadd.f32 0.0, %v9286
  %v9288 = vpop.f32.mrf.mxu0
  %v9289 = vadd.f32 0.0, %v9288
  %9290 = vmatprep.mubr.bf16.mxu0 0
  %9291 = vmatmul.mubr.bf16.gmra.mxu0 %v9162
  %v9292 = vpop.f32.mrf.mxu0
  %v9293 = vadd.f32 0.0, %v9292
  %v9294 = vpop.f32.mrf.mxu0
  %v9295 = vadd.f32 0.0, %v9294
  %v9296 = vpop.f32.mrf.mxu0
  %v9297 = vadd.f32 0.0, %v9296
  %v9298 = vpop.f32.mrf.mxu0
  %v9299 = vadd.f32 0.0, %v9298
  %9300 = vmatprep.mubr.bf16.mxu0 0
  %9301 = vmatmul.mubr.bf16.gmra.mxu0 %v9165
  %v9302 = vpop.f32.mrf.mxu0
  %v9303 = vadd.f32 0.0, %v9302
  %v9304 = vpop.f32.mrf.mxu0
  %v9305 = vadd.f32 0.0, %v9304
  %v9306 = vpop.f32.mrf.mxu0
  %v9307 = vadd.f32 0.0, %v9306
  %v9308 = vpop.f32.mrf.mxu0
  %v9309 = vadd.f32 0.0, %v9308
  %9310 = vmatprep.mubr.bf16.mxu0 0
  %9311 = vmatmul.mubr.bf16.gmra.mxu0 %v9168
  %v9312 = vpop.f32.mrf.mxu0
  %v9313 = vadd.f32 0.0, %v9312
  %v9314 = vpop.f32.mrf.mxu0
  %v9315 = vadd.f32 0.0, %v9314
  %v9316 = vpop.f32.mrf.mxu0
  %v9317 = vadd.f32 0.0, %v9316
  %v9318 = vpop.f32.mrf.mxu0
  %v9319 = vadd.f32 0.0, %v9318
  %9320 = vmatprep.mubr.bf16.mxu0 0
  %9321 = vmatmul.mubr.bf16.gmra.mxu0 %v9171
  %v9322 = vpop.f32.mrf.mxu0
  %v9323 = vadd.f32 0.0, %v9322
  %v9324 = vpop.f32.mrf.mxu0
  %v9325 = vadd.f32 0.0, %v9324
  %v9326 = vpop.f32.mrf.mxu0
  %v9327 = vadd.f32 0.0, %v9326
  %v9328 = vpop.f32.mrf.mxu0
  %v9329 = vadd.f32 0.0, %v9328
  %9330 = vmatprep.mubr.bf16.mxu0 0
  %9331 = vmatmul.mubr.bf16.gmra.mxu0 %v9174
  %v9332 = vpop.f32.mrf.mxu0
  %v9333 = vadd.f32 0.0, %v9332
  %v9334 = vpop.f32.mrf.mxu0
  %v9335 = vadd.f32 0.0, %v9334
  %v9336 = vpop.f32.mrf.mxu0
  %v9337 = vadd.f32 0.0, %v9336
  %v9338 = vpop.f32.mrf.mxu0
  %v9339 = vadd.f32 0.0, %v9338
  %9340 = vmatprep.mubr.bf16.mxu0 0
  %9341 = vmatmul.mubr.bf16.gmra.mxu0 %v9177
  %v9342 = vpop.f32.mrf.mxu0
  %v9343 = vadd.f32 0.0, %v9342
  %v9344 = vpop.f32.mrf.mxu0
  %v9345 = vadd.f32 0.0, %v9344
  %v9346 = vpop.f32.mrf.mxu0
  %v9347 = vadd.f32 0.0, %v9346
  %v9348 = vpop.f32.mrf.mxu0
  %v9349 = vadd.f32 0.0, %v9348
  %9350 = vmatprep.mubr.bf16.mxu0 0
  %9351 = vmatmul.mubr.bf16.gmra.mxu0 %v9180
  %v9352 = vpop.f32.mrf.mxu0
  %v9353 = vadd.f32 0.0, %v9352
  %v9354 = vpop.f32.mrf.mxu0
  %v9355 = vadd.f32 0.0, %v9354
  %v9356 = vpop.f32.mrf.mxu0
  %v9357 = vadd.f32 0.0, %v9356
  %v9358 = vpop.f32.mrf.mxu0
  %v9359 = vadd.f32 0.0, %v9358
  %9360 = vmatprep.mubr.bf16.mxu0 0
  %9361 = vmatmul.mubr.bf16.gmra.mxu0 %v9183
  %v9362 = vpop.f32.mrf.mxu0
  %v9363 = vadd.f32 0.0, %v9362
  %v9364 = vpop.f32.mrf.mxu0
  %v9365 = vadd.f32 0.0, %v9364
  %v9366 = vpop.f32.mrf.mxu0
  %v9367 = vadd.f32 0.0, %v9366
  %v9368 = vpop.f32.mrf.mxu0
  %v9369 = vadd.f32 0.0, %v9368
  %9370 = vmatprep.mubr.bf16.mxu0 0
  %9371 = vmatmul.mubr.bf16.gmra.mxu0 %v9186
  %v9372 = vpop.f32.mrf.mxu0
  %v9373 = vadd.f32 0.0, %v9372
  %v9374 = vpop.f32.mrf.mxu0
  %v9375 = vadd.f32 0.0, %v9374
  %v9376 = vpop.f32.mrf.mxu0
  %v9377 = vadd.f32 0.0, %v9376
  %v9378 = vpop.f32.mrf.mxu0
  %v9379 = vadd.f32 0.0, %v9378
  %9380 = vdwg.mxu0
  %v9381 = vadd.f32 %v8104, %v9223
  %v9382 = vadd.f32 %v8105, %v9225
  %v9383 = vadd.f32 %v8106, %v9227
  %v9384 = vadd.f32 %v8107, %v9229
  %v9385 = vadd.f32 %v8108, %v9233
  %v9386 = vadd.f32 %v8109, %v9235
  %v9387 = vadd.f32 %v8110, %v9237
  %v9388 = vadd.f32 %v8111, %v9239
  %v9389 = vadd.f32 %v8112, %v9243
  %v9390 = vadd.f32 %v8113, %v9245
  %v9391 = vadd.f32 %v8114, %v9247
  %v9392 = vadd.f32 %v8115, %v9249
  %v9393 = vadd.f32 %v8116, %v9253
  %v9394 = vadd.f32 %v8117, %v9255
  %v9395 = vadd.f32 %v8118, %v9257
  %v9396 = vadd.f32 %v8119, %v9259
  %v9397 = vadd.f32 %v8120, %v9263
  %v9398 = vadd.f32 %v8121, %v9265
  %v9399 = vadd.f32 %v8122, %v9267
  %v9400 = vadd.f32 %v8123, %v9269
  %v9401 = vadd.f32 %v8124, %v9273
  %v9402 = vadd.f32 %v8125, %v9275
  %v9403 = vadd.f32 %v8126, %v9277
  %v9404 = vadd.f32 %v8127, %v9279
  %v9405 = vadd.f32 %v8128, %v9283
  %v9406 = vadd.f32 %v8129, %v9285
  %v9407 = vadd.f32 %v8130, %v9287
  %v9408 = vadd.f32 %v8131, %v9289
  %v9409 = vadd.f32 %v8132, %v9293
  %v9410 = vadd.f32 %v8133, %v9295
  %v9411 = vadd.f32 %v8134, %v9297
  %v9412 = vadd.f32 %v8135, %v9299
  %v9413 = vadd.f32 %v8136, %v9303
  %v9414 = vadd.f32 %v8137, %v9305
  %v9415 = vadd.f32 %v8138, %v9307
  %v9416 = vadd.f32 %v8139, %v9309
  %v9417 = vadd.f32 %v8140, %v9313
  %v9418 = vadd.f32 %v8141, %v9315
  %v9419 = vadd.f32 %v8142, %v9317
  %v9420 = vadd.f32 %v8143, %v9319
  %v9421 = vadd.f32 %v8144, %v9323
  %v9422 = vadd.f32 %v8145, %v9325
  %v9423 = vadd.f32 %v8146, %v9327
  %v9424 = vadd.f32 %v8147, %v9329
  %v9425 = vadd.f32 %v8148, %v9333
  %v9426 = vadd.f32 %v8149, %v9335
  %v9427 = vadd.f32 %v8150, %v9337
  %v9428 = vadd.f32 %v8151, %v9339
  %v9429 = vadd.f32 %v8152, %v9343
  %v9430 = vadd.f32 %v8153, %v9345
  %v9431 = vadd.f32 %v8154, %v9347
  %v9432 = vadd.f32 %v8155, %v9349
  %v9433 = vadd.f32 %v8156, %v9353
  %v9434 = vadd.f32 %v8157, %v9355
  %v9435 = vadd.f32 %v8158, %v9357
  %v9436 = vadd.f32 %v8159, %v9359
  %v9437 = vadd.f32 %v8160, %v9363
  %v9438 = vadd.f32 %v8161, %v9365
  %v9439 = vadd.f32 %v8162, %v9367
  %v9440 = vadd.f32 %v8163, %v9369
  %v9441 = vadd.f32 %v8164, %v9373
  %v9442 = vadd.f32 %v8165, %v9375
  %v9443 = vadd.f32 %v8166, %v9377
  %v9444 = vadd.f32 %v8167, %v9379
  %v9445 = vadd.f32 %v772, %v9381
  %v9446 = vadd.f32 %v773, %v9382
  %v9447 = vadd.f32 %v774, %v9383
  %v9448 = vadd.f32 %v775, %v9384
  %v9449 = vadd.f32 %v776, %v9385
  %v9450 = vadd.f32 %v777, %v9386
  %v9451 = vadd.f32 %v778, %v9387
  %v9452 = vadd.f32 %v779, %v9388
  %v9453 = vadd.f32 %v780, %v9389
  %v9454 = vadd.f32 %v781, %v9390
  %v9455 = vadd.f32 %v782, %v9391
  %v9456 = vadd.f32 %v783, %v9392
  %v9457 = vadd.f32 %v784, %v9393
  %v9458 = vadd.f32 %v785, %v9394
  %v9459 = vadd.f32 %v786, %v9395
  %v9460 = vadd.f32 %v787, %v9396
  %v9461 = vadd.f32 %v788, %v9397
  %v9462 = vadd.f32 %v789, %v9398
  %v9463 = vadd.f32 %v790, %v9399
  %v9464 = vadd.f32 %v791, %v9400
  %v9465 = vadd.f32 %v792, %v9401
  %v9466 = vadd.f32 %v793, %v9402
  %v9467 = vadd.f32 %v794, %v9403
  %v9468 = vadd.f32 %v795, %v9404
  %v9469 = vadd.f32 %v796, %v9405
  %v9470 = vadd.f32 %v797, %v9406
  %v9471 = vadd.f32 %v798, %v9407
  %v9472 = vadd.f32 %v799, %v9408
  %v9473 = vadd.f32 %v800, %v9409
  %v9474 = vadd.f32 %v801, %v9410
  %v9475 = vadd.f32 %v802, %v9411
  %v9476 = vadd.f32 %v803, %v9412
  %v9477 = vadd.f32 %v804, %v9413
  %v9478 = vadd.f32 %v805, %v9414
  %v9479 = vadd.f32 %v806, %v9415
  %v9480 = vadd.f32 %v807, %v9416
  %v9481 = vadd.f32 %v808, %v9417
  %v9482 = vadd.f32 %v809, %v9418
  %v9483 = vadd.f32 %v810, %v9419
  %v9484 = vadd.f32 %v811, %v9420
  %v9485 = vadd.f32 %v812, %v9421
  %v9486 = vadd.f32 %v813, %v9422
  %v9487 = vadd.f32 %v814, %v9423
  %v9488 = vadd.f32 %v815, %v9424
  %v9489 = vadd.f32 %v816, %v9425
  %v9490 = vadd.f32 %v817, %v9426
  %v9491 = vadd.f32 %v818, %v9427
  %v9492 = vadd.f32 %v819, %v9428
  %v9493 = vadd.f32 %v820, %v9429
  %v9494 = vadd.f32 %v821, %v9430
  %v9495 = vadd.f32 %v822, %v9431
  %v9496 = vadd.f32 %v823, %v9432
  %v9497 = vadd.f32 %v824, %v9433
  %v9498 = vadd.f32 %v825, %v9434
  %v9499 = vadd.f32 %v826, %v9435
  %v9500 = vadd.f32 %v827, %v9436
  %v9501 = vadd.f32 %v828, %v9437
  %v9502 = vadd.f32 %v829, %v9438
  %v9503 = vadd.f32 %v830, %v9439
  %v9504 = vadd.f32 %v831, %v9440
  %v9505 = vadd.f32 %v832, %v9441
  %v9506 = vadd.f32 %v833, %v9442
  %v9507 = vadd.f32 %v834, %v9443
  %v9508 = vadd.f32 %v835, %v9444
  %v9509 = vld [vmem:[%s3] sm:$0x3]
  %v9510 = vld [vmem:[%s4] sm:$0x3]
  %v9511 = vsel %vm108, %v9446, 0.0
  %v9512 = vadd.f32 %v9445, %v9511
  %9513 = vadd.xlane.f32.xlu0 %v9512
  %v9514 = vpop.xlane.xlu0 %9513
  %v9515 = vsel %vm108, %v9448, 0.0
  %v9516 = vadd.f32 %v9447, %v9515
  %9517 = vadd.xlane.f32.xlu0 %v9516
  %v9518 = vpop.xlane.xlu0 %9517
  %v9519 = vsel %vm108, %v9450, 0.0
  %v9520 = vadd.f32 %v9449, %v9519
  %9521 = vadd.xlane.f32.xlu0 %v9520
  %v9522 = vpop.xlane.xlu0 %9521
  %v9523 = vsel %vm108, %v9452, 0.0
  %v9524 = vadd.f32 %v9451, %v9523
  %9525 = vadd.xlane.f32.xlu0 %v9524
  %v9526 = vpop.xlane.xlu0 %9525
  %v9527 = vsel %vm108, %v9454, 0.0
  %v9528 = vadd.f32 %v9453, %v9527
  %9529 = vadd.xlane.f32.xlu0 %v9528
  %v9530 = vpop.xlane.xlu0 %9529
  %v9531 = vsel %vm108, %v9456, 0.0
  %v9532 = vadd.f32 %v9455, %v9531
  %9533 = vadd.xlane.f32.xlu0 %v9532
  %v9534 = vpop.xlane.xlu0 %9533
  %v9535 = vsel %vm108, %v9458, 0.0
  %v9536 = vadd.f32 %v9457, %v9535
  %9537 = vadd.xlane.f32.xlu0 %v9536
  %v9538 = vpop.xlane.xlu0 %9537
  %v9539 = vsel %vm108, %v9460, 0.0
  %v9540 = vadd.f32 %v9459, %v9539
  %9541 = vadd.xlane.f32.xlu0 %v9540
  %v9542 = vpop.xlane.xlu0 %9541
  %v9543 = vsel %vm108, %v9462, 0.0
  %v9544 = vadd.f32 %v9461, %v9543
  %9545 = vadd.xlane.f32.xlu0 %v9544
  %v9546 = vpop.xlane.xlu0 %9545
  %v9547 = vsel %vm108, %v9464, 0.0
  %v9548 = vadd.f32 %v9463, %v9547
  %9549 = vadd.xlane.f32.xlu0 %v9548
  %v9550 = vpop.xlane.xlu0 %9549
  %v9551 = vsel %vm108, %v9466, 0.0
  %v9552 = vadd.f32 %v9465, %v9551
  %9553 = vadd.xlane.f32.xlu0 %v9552
  %v9554 = vpop.xlane.xlu0 %9553
  %v9555 = vsel %vm108, %v9468, 0.0
  %v9556 = vadd.f32 %v9467, %v9555
  %9557 = vadd.xlane.f32.xlu0 %v9556
  %v9558 = vpop.xlane.xlu0 %9557
  %v9559 = vsel %vm108, %v9470, 0.0
  %v9560 = vadd.f32 %v9469, %v9559
  %9561 = vadd.xlane.f32.xlu0 %v9560
  %v9562 = vpop.xlane.xlu0 %9561
  %v9563 = vsel %vm108, %v9472, 0.0
  %v9564 = vadd.f32 %v9471, %v9563
  %9565 = vadd.xlane.f32.xlu0 %v9564
  %v9566 = vpop.xlane.xlu0 %9565
  %v9567 = vsel %vm108, %v9474, 0.0
  %v9568 = vadd.f32 %v9473, %v9567
  %9569 = vadd.xlane.f32.xlu0 %v9568
  %v9570 = vpop.xlane.xlu0 %9569
  %v9571 = vsel %vm108, %v9476, 0.0
  %v9572 = vadd.f32 %v9475, %v9571
  %9573 = vadd.xlane.f32.xlu0 %v9572
  %v9574 = vpop.xlane.xlu0 %9573
  %v9575 = vsel %vm108, %v9478, 0.0
  %v9576 = vadd.f32 %v9477, %v9575
  %9577 = vadd.xlane.f32.xlu0 %v9576
  %v9578 = vpop.xlane.xlu0 %9577
  %v9579 = vsel %vm108, %v9480, 0.0
  %v9580 = vadd.f32 %v9479, %v9579
  %9581 = vadd.xlane.f32.xlu0 %v9580
  %v9582 = vpop.xlane.xlu0 %9581
  %v9583 = vsel %vm108, %v9482, 0.0
  %v9584 = vadd.f32 %v9481, %v9583
  %9585 = vadd.xlane.f32.xlu0 %v9584
  %v9586 = vpop.xlane.xlu0 %9585
  %v9587 = vsel %vm108, %v9484, 0.0
  %v9588 = vadd.f32 %v9483, %v9587
  %9589 = vadd.xlane.f32.xlu0 %v9588
  %v9590 = vpop.xlane.xlu0 %9589
  %v9591 = vsel %vm108, %v9486, 0.0
  %v9592 = vadd.f32 %v9485, %v9591
  %9593 = vadd.xlane.f32.xlu0 %v9592
  %v9594 = vpop.xlane.xlu0 %9593
  %v9595 = vsel %vm108, %v9488, 0.0
  %v9596 = vadd.f32 %v9487, %v9595
  %9597 = vadd.xlane.f32.xlu0 %v9596
  %v9598 = vpop.xlane.xlu0 %9597
  %v9599 = vsel %vm108, %v9490, 0.0
  %v9600 = vadd.f32 %v9489, %v9599
  %9601 = vadd.xlane.f32.xlu0 %v9600
  %v9602 = vpop.xlane.xlu0 %9601
  %v9603 = vsel %vm108, %v9492, 0.0
  %v9604 = vadd.f32 %v9491, %v9603
  %9605 = vadd.xlane.f32.xlu0 %v9604
  %v9606 = vpop.xlane.xlu0 %9605
  %v9607 = vsel %vm108, %v9494, 0.0
  %v9608 = vadd.f32 %v9493, %v9607
  %9609 = vadd.xlane.f32.xlu0 %v9608
  %v9610 = vpop.xlane.xlu0 %9609
  %v9611 = vsel %vm108, %v9496, 0.0
  %v9612 = vadd.f32 %v9495, %v9611
  %9613 = vadd.xlane.f32.xlu0 %v9612
  %v9614 = vpop.xlane.xlu0 %9613
  %v9615 = vsel %vm108, %v9498, 0.0
  %v9616 = vadd.f32 %v9497, %v9615
  %9617 = vadd.xlane.f32.xlu0 %v9616
  %v9618 = vpop.xlane.xlu0 %9617
  %v9619 = vsel %vm108, %v9500, 0.0
  %v9620 = vadd.f32 %v9499, %v9619
  %9621 = vadd.xlane.f32.xlu0 %v9620
  %v9622 = vpop.xlane.xlu0 %9621
  %v9623 = vsel %vm108, %v9502, 0.0
  %v9624 = vadd.f32 %v9501, %v9623
  %9625 = vadd.xlane.f32.xlu0 %v9624
  %v9626 = vpop.xlane.xlu0 %9625
  %v9627 = vsel %vm108, %v9504, 0.0
  %v9628 = vadd.f32 %v9503, %v9627
  %9629 = vadd.xlane.f32.xlu0 %v9628
  %v9630 = vpop.xlane.xlu0 %9629
  %v9631 = vsel %vm108, %v9506, 0.0
  %v9632 = vadd.f32 %v9505, %v9631
  %9633 = vadd.xlane.f32.xlu0 %v9632
  %v9634 = vpop.xlane.xlu0 %9633
  %v9635 = vsel %vm108, %v9508, 0.0
  %v9636 = vadd.f32 %v9507, %v9635
  %9637 = vadd.xlane.f32.xlu0 %v9636
  %v9638 = vpop.xlane.xlu0 %9637
  %v9639 = vmul.f32 %v9514, %v237
  %v9640 = vmul.f32 %v9518, %v237
  %v9641 = vmul.f32 %v9522, %v237
  %v9642 = vmul.f32 %v9526, %v237
  %v9643 = vmul.f32 %v9530, %v237
  %v9644 = vmul.f32 %v9534, %v237
  %v9645 = vmul.f32 %v9538, %v237
  %v9646 = vmul.f32 %v9542, %v237
  %v9647 = vmul.f32 %v9546, %v237
  %v9648 = vmul.f32 %v9550, %v237
  %v9649 = vmul.f32 %v9554, %v237
  %v9650 = vmul.f32 %v9558, %v237
  %v9651 = vmul.f32 %v9562, %v237
  %v9652 = vmul.f32 %v9566, %v237
  %v9653 = vmul.f32 %v9570, %v237
  %v9654 = vmul.f32 %v9574, %v237
  %v9655 = vmul.f32 %v9578, %v237
  %v9656 = vmul.f32 %v9582, %v237
  %v9657 = vmul.f32 %v9586, %v237
  %v9658 = vmul.f32 %v9590, %v237
  %v9659 = vmul.f32 %v9594, %v237
  %v9660 = vmul.f32 %v9598, %v237
  %v9661 = vmul.f32 %v9602, %v237
  %v9662 = vmul.f32 %v9606, %v237
  %v9663 = vmul.f32 %v9610, %v237
  %v9664 = vmul.f32 %v9614, %v237
  %v9665 = vmul.f32 %v9618, %v237
  %v9666 = vmul.f32 %v9622, %v237
  %v9667 = vmul.f32 %v9626, %v237
  %v9668 = vmul.f32 %v9630, %v237
  %v9669 = vmul.f32 %v9634, %v237
  %v9670 = vmul.f32 %v9638, %v237
  %v9671 = vsub.f32 %v9445, %v9639
  %v9672 = vsub.f32 %v9446, %v9639
  %v9673 = vsub.f32 %v9447, %v9640
  %v9674 = vsub.f32 %v9448, %v9640
  %v9675 = vsub.f32 %v9449, %v9641
  %v9676 = vsub.f32 %v9450, %v9641
  %v9677 = vsub.f32 %v9451, %v9642
  %v9678 = vsub.f32 %v9452, %v9642
  %v9679 = vsub.f32 %v9453, %v9643
  %v9680 = vsub.f32 %v9454, %v9643
  %v9681 = vsub.f32 %v9455, %v9644
  %v9682 = vsub.f32 %v9456, %v9644
  %v9683 = vsub.f32 %v9457, %v9645
  %v9684 = vsub.f32 %v9458, %v9645
  %v9685 = vsub.f32 %v9459, %v9646
  %v9686 = vsub.f32 %v9460, %v9646
  %v9687 = vsub.f32 %v9461, %v9647
  %v9688 = vsub.f32 %v9462, %v9647
  %v9689 = vsub.f32 %v9463, %v9648
  %v9690 = vsub.f32 %v9464, %v9648
  %v9691 = vsub.f32 %v9465, %v9649
  %v9692 = vsub.f32 %v9466, %v9649
  %v9693 = vsub.f32 %v9467, %v9650
  %v9694 = vsub.f32 %v9468, %v9650
  %v9695 = vsub.f32 %v9469, %v9651
  %v9696 = vsub.f32 %v9470, %v9651
  %v9697 = vsub.f32 %v9471, %v9652
  %v9698 = vsub.f32 %v9472, %v9652
  %v9699 = vsub.f32 %v9473, %v9653
  %v9700 = vsub.f32 %v9474, %v9653
  %v9701 = vsub.f32 %v9475, %v9654
  %v9702 = vsub.f32 %v9476, %v9654
  %v9703 = vsub.f32 %v9477, %v9655
  %v9704 = vsub.f32 %v9478, %v9655
  %v9705 = vsub.f32 %v9479, %v9656
  %v9706 = vsub.f32 %v9480, %v9656
  %v9707 = vsub.f32 %v9481, %v9657
  %v9708 = vsub.f32 %v9482, %v9657
  %v9709 = vsub.f32 %v9483, %v9658
  %v9710 = vsub.f32 %v9484, %v9658
  %v9711 = vsub.f32 %v9485, %v9659
  %v9712 = vsub.f32 %v9486, %v9659
  %v9713 = vsub.f32 %v9487, %v9660
  %v9714 = vsub.f32 %v9488, %v9660
  %v9715 = vsub.f32 %v9489, %v9661
  %v9716 = vsub.f32 %v9490, %v9661
  %v9717 = vsub.f32 %v9491, %v9662
  %v9718 = vsub.f32 %v9492, %v9662
  %v9719 = vsub.f32 %v9493, %v9663
  %v9720 = vsub.f32 %v9494, %v9663
  %v9721 = vsub.f32 %v9495, %v9664
  %v9722 = vsub.f32 %v9496, %v9664
  %v9723 = vsub.f32 %v9497, %v9665
  %v9724 = vsub.f32 %v9498, %v9665
  %v9725 = vsub.f32 %v9499, %v9666
  %v9726 = vsub.f32 %v9500, %v9666
  %v9727 = vsub.f32 %v9501, %v9667
  %v9728 = vsub.f32 %v9502, %v9667
  %v9729 = vsub.f32 %v9503, %v9668
  %v9730 = vsub.f32 %v9504, %v9668
  %v9731 = vsub.f32 %v9505, %v9669
  %v9732 = vsub.f32 %v9506, %v9669
  %v9733 = vsub.f32 %v9507, %v9670
  %v9734 = vsub.f32 %v9508, %v9670
  %v9735 = vmul.f32 %v9671, %v9671
  %v9736 = vmul.f32 %v9672, %v9672
  %v9737 = vmul.f32 %v9673, %v9673
  %v9738 = vmul.f32 %v9674, %v9674
  %v9739 = vmul.f32 %v9675, %v9675
  %v9740 = vmul.f32 %v9676, %v9676
  %v9741 = vmul.f32 %v9677, %v9677
  %v9742 = vmul.f32 %v9678, %v9678
  %v9743 = vmul.f32 %v9679, %v9679
  %v9744 = vmul.f32 %v9680, %v9680
  %v9745 = vmul.f32 %v9681, %v9681
  %v9746 = vmul.f32 %v9682, %v9682
  %v9747 = vmul.f32 %v9683, %v9683
  %v9748 = vmul.f32 %v9684, %v9684
  %v9749 = vmul.f32 %v9685, %v9685
  %v9750 = vmul.f32 %v9686, %v9686
  %v9751 = vmul.f32 %v9687, %v9687
  %v9752 = vmul.f32 %v9688, %v9688
  %v9753 = vmul.f32 %v9689, %v9689
  %v9754 = vmul.f32 %v9690, %v9690
  %v9755 = vmul.f32 %v9691, %v9691
  %v9756 = vmul.f32 %v9692, %v9692
  %v9757 = vmul.f32 %v9693, %v9693
  %v9758 = vmul.f32 %v9694, %v9694
  %v9759 = vmul.f32 %v9695, %v9695
  %v9760 = vmul.f32 %v9696, %v9696
  %v9761 = vmul.f32 %v9697, %v9697
  %v9762 = vmul.f32 %v9698, %v9698
  %v9763 = vmul.f32 %v9699, %v9699
  %v9764 = vmul.f32 %v9700, %v9700
  %v9765 = vmul.f32 %v9701, %v9701
  %v9766 = vmul.f32 %v9702, %v9702
  %v9767 = vmul.f32 %v9703, %v9703
  %v9768 = vmul.f32 %v9704, %v9704
  %v9769 = vmul.f32 %v9705, %v9705
  %v9770 = vmul.f32 %v9706, %v9706
  %v9771 = vmul.f32 %v9707, %v9707
  %v9772 = vmul.f32 %v9708, %v9708
  %v9773 = vmul.f32 %v9709, %v9709
  %v9774 = vmul.f32 %v9710, %v9710
  %v9775 = vmul.f32 %v9711, %v9711
  %v9776 = vmul.f32 %v9712, %v9712
  %v9777 = vmul.f32 %v9713, %v9713
  %v9778 = vmul.f32 %v9714, %v9714
  %v9779 = vmul.f32 %v9715, %v9715
  %v9780 = vmul.f32 %v9716, %v9716
  %v9781 = vmul.f32 %v9717, %v9717
  %v9782 = vmul.f32 %v9718, %v9718
  %v9783 = vmul.f32 %v9719, %v9719
  %v9784 = vmul.f32 %v9720, %v9720
  %v9785 = vmul.f32 %v9721, %v9721
  %v9786 = vmul.f32 %v9722, %v9722
  %v9787 = vmul.f32 %v9723, %v9723
  %v9788 = vmul.f32 %v9724, %v9724
  %v9789 = vmul.f32 %v9725, %v9725
  %v9790 = vmul.f32 %v9726, %v9726
  %v9791 = vmul.f32 %v9727, %v9727
  %v9792 = vmul.f32 %v9728, %v9728
  %v9793 = vmul.f32 %v9729, %v9729
  %v9794 = vmul.f32 %v9730, %v9730
  %v9795 = vmul.f32 %v9731, %v9731
  %v9796 = vmul.f32 %v9732, %v9732
  %v9797 = vmul.f32 %v9733, %v9733
  %v9798 = vmul.f32 %v9734, %v9734
  %v9799 = vsel %vm108, %v9736, 0.0
  %v9800 = vadd.f32 %v9735, %v9799
  %9801 = vadd.xlane.f32.xlu0 %v9800
  %v9802 = vpop.xlane.xlu0 %9801
  %v9803 = vsel %vm108, %v9738, 0.0
  %v9804 = vadd.f32 %v9737, %v9803
  %9805 = vadd.xlane.f32.xlu0 %v9804
  %v9806 = vpop.xlane.xlu0 %9805
  %v9807 = vsel %vm108, %v9740, 0.0
  %v9808 = vadd.f32 %v9739, %v9807
  %9809 = vadd.xlane.f32.xlu0 %v9808
  %v9810 = vpop.xlane.xlu0 %9809
  %v9811 = vsel %vm108, %v9742, 0.0
  %v9812 = vadd.f32 %v9741, %v9811
  %9813 = vadd.xlane.f32.xlu0 %v9812
  %v9814 = vpop.xlane.xlu0 %9813
  %v9815 = vsel %vm108, %v9744, 0.0
  %v9816 = vadd.f32 %v9743, %v9815
  %9817 = vadd.xlane.f32.xlu0 %v9816
  %v9818 = vpop.xlane.xlu0 %9817
  %v9819 = vsel %vm108, %v9746, 0.0
  %v9820 = vadd.f32 %v9745, %v9819
  %9821 = vadd.xlane.f32.xlu0 %v9820
  %v9822 = vpop.xlane.xlu0 %9821
  %v9823 = vsel %vm108, %v9748, 0.0
  %v9824 = vadd.f32 %v9747, %v9823
  %9825 = vadd.xlane.f32.xlu0 %v9824
  %v9826 = vpop.xlane.xlu0 %9825
  %v9827 = vsel %vm108, %v9750, 0.0
  %v9828 = vadd.f32 %v9749, %v9827
  %9829 = vadd.xlane.f32.xlu0 %v9828
  %v9830 = vpop.xlane.xlu0 %9829
  %v9831 = vsel %vm108, %v9752, 0.0
  %v9832 = vadd.f32 %v9751, %v9831
  %9833 = vadd.xlane.f32.xlu0 %v9832
  %v9834 = vpop.xlane.xlu0 %9833
  %v9835 = vsel %vm108, %v9754, 0.0
  %v9836 = vadd.f32 %v9753, %v9835
  %9837 = vadd.xlane.f32.xlu0 %v9836
  %v9838 = vpop.xlane.xlu0 %9837
  %v9839 = vsel %vm108, %v9756, 0.0
  %v9840 = vadd.f32 %v9755, %v9839
  %9841 = vadd.xlane.f32.xlu0 %v9840
  %v9842 = vpop.xlane.xlu0 %9841
  %v9843 = vsel %vm108, %v9758, 0.0
  %v9844 = vadd.f32 %v9757, %v9843
  %9845 = vadd.xlane.f32.xlu0 %v9844
  %v9846 = vpop.xlane.xlu0 %9845
  %v9847 = vsel %vm108, %v9760, 0.0
  %v9848 = vadd.f32 %v9759, %v9847
  %9849 = vadd.xlane.f32.xlu0 %v9848
  %v9850 = vpop.xlane.xlu0 %9849
  %v9851 = vsel %vm108, %v9762, 0.0
  %v9852 = vadd.f32 %v9761, %v9851
  %9853 = vadd.xlane.f32.xlu0 %v9852
  %v9854 = vpop.xlane.xlu0 %9853
  %v9855 = vsel %vm108, %v9764, 0.0
  %v9856 = vadd.f32 %v9763, %v9855
  %9857 = vadd.xlane.f32.xlu0 %v9856
  %v9858 = vpop.xlane.xlu0 %9857
  %v9859 = vsel %vm108, %v9766, 0.0
  %v9860 = vadd.f32 %v9765, %v9859
  %9861 = vadd.xlane.f32.xlu0 %v9860
  %v9862 = vpop.xlane.xlu0 %9861
  %v9863 = vsel %vm108, %v9768, 0.0
  %v9864 = vadd.f32 %v9767, %v9863
  %9865 = vadd.xlane.f32.xlu0 %v9864
  %v9866 = vpop.xlane.xlu0 %9865
  %v9867 = vsel %vm108, %v9770, 0.0
  %v9868 = vadd.f32 %v9769, %v9867
  %9869 = vadd.xlane.f32.xlu0 %v9868
  %v9870 = vpop.xlane.xlu0 %9869
  %v9871 = vsel %vm108, %v9772, 0.0
  %v9872 = vadd.f32 %v9771, %v9871
  %9873 = vadd.xlane.f32.xlu0 %v9872
  %v9874 = vpop.xlane.xlu0 %9873
  %v9875 = vsel %vm108, %v9774, 0.0
  %v9876 = vadd.f32 %v9773, %v9875
  %9877 = vadd.xlane.f32.xlu0 %v9876
  %v9878 = vpop.xlane.xlu0 %9877
  %v9879 = vsel %vm108, %v9776, 0.0
  %v9880 = vadd.f32 %v9775, %v9879
  %9881 = vadd.xlane.f32.xlu0 %v9880
  %v9882 = vpop.xlane.xlu0 %9881
  %v9883 = vsel %vm108, %v9778, 0.0
  %v9884 = vadd.f32 %v9777, %v9883
  %9885 = vadd.xlane.f32.xlu0 %v9884
  %v9886 = vpop.xlane.xlu0 %9885
  %v9887 = vsel %vm108, %v9780, 0.0
  %v9888 = vadd.f32 %v9779, %v9887
  %9889 = vadd.xlane.f32.xlu0 %v9888
  %v9890 = vpop.xlane.xlu0 %9889
  %v9891 = vsel %vm108, %v9782, 0.0
  %v9892 = vadd.f32 %v9781, %v9891
  %9893 = vadd.xlane.f32.xlu0 %v9892
  %v9894 = vpop.xlane.xlu0 %9893
  %v9895 = vsel %vm108, %v9784, 0.0
  %v9896 = vadd.f32 %v9783, %v9895
  %9897 = vadd.xlane.f32.xlu0 %v9896
  %v9898 = vpop.xlane.xlu0 %9897
  %v9899 = vsel %vm108, %v9786, 0.0
  %v9900 = vadd.f32 %v9785, %v9899
  %9901 = vadd.xlane.f32.xlu0 %v9900
  %v9902 = vpop.xlane.xlu0 %9901
  %v9903 = vsel %vm108, %v9788, 0.0
  %v9904 = vadd.f32 %v9787, %v9903
  %9905 = vadd.xlane.f32.xlu0 %v9904
  %v9906 = vpop.xlane.xlu0 %9905
  %v9907 = vsel %vm108, %v9790, 0.0
  %v9908 = vadd.f32 %v9789, %v9907
  %9909 = vadd.xlane.f32.xlu0 %v9908
  %v9910 = vpop.xlane.xlu0 %9909
  %v9911 = vsel %vm108, %v9792, 0.0
  %v9912 = vadd.f32 %v9791, %v9911
  %9913 = vadd.xlane.f32.xlu0 %v9912
  %v9914 = vpop.xlane.xlu0 %9913
  %v9915 = vsel %vm108, %v9794, 0.0
  %v9916 = vadd.f32 %v9793, %v9915
  %9917 = vadd.xlane.f32.xlu0 %v9916
  %v9918 = vpop.xlane.xlu0 %9917
  %v9919 = vsel %vm108, %v9796, 0.0
  %v9920 = vadd.f32 %v9795, %v9919
  %9921 = vadd.xlane.f32.xlu0 %v9920
  %v9922 = vpop.xlane.xlu0 %9921
  %v9923 = vsel %vm108, %v9798, 0.0
  %v9924 = vadd.f32 %v9797, %v9923
  %9925 = vadd.xlane.f32.xlu0 %v9924
  %v9926 = vpop.xlane.xlu0 %9925
  %v9927 = vmul.f32 %v9802, %v237
  %v9928 = vmul.f32 %v9806, %v237
  %v9929 = vmul.f32 %v9810, %v237
  %v9930 = vmul.f32 %v9814, %v237
  %v9931 = vmul.f32 %v9818, %v237
  %v9932 = vmul.f32 %v9822, %v237
  %v9933 = vmul.f32 %v9826, %v237
  %v9934 = vmul.f32 %v9830, %v237
  %v9935 = vmul.f32 %v9834, %v237
  %v9936 = vmul.f32 %v9838, %v237
  %v9937 = vmul.f32 %v9842, %v237
  %v9938 = vmul.f32 %v9846, %v237
  %v9939 = vmul.f32 %v9850, %v237
  %v9940 = vmul.f32 %v9854, %v237
  %v9941 = vmul.f32 %v9858, %v237
  %v9942 = vmul.f32 %v9862, %v237
  %v9943 = vmul.f32 %v9866, %v237
  %v9944 = vmul.f32 %v9870, %v237
  %v9945 = vmul.f32 %v9874, %v237
  %v9946 = vmul.f32 %v9878, %v237
  %v9947 = vmul.f32 %v9882, %v237
  %v9948 = vmul.f32 %v9886, %v237
  %v9949 = vmul.f32 %v9890, %v237
  %v9950 = vmul.f32 %v9894, %v237
  %v9951 = vmul.f32 %v9898, %v237
  %v9952 = vmul.f32 %v9902, %v237
  %v9953 = vmul.f32 %v9906, %v237
  %v9954 = vmul.f32 %v9910, %v237
  %v9955 = vmul.f32 %v9914, %v237
  %v9956 = vmul.f32 %v9918, %v237
  %v9957 = vmul.f32 %v9922, %v237
  %v9958 = vmul.f32 %v9926, %v237
  %v9959 = vadd.f32 %v9927, 1e-05
  %v9960 = vadd.f32 %v9928, 1e-05
  %v9961 = vadd.f32 %v9929, 1e-05
  %v9962 = vadd.f32 %v9930, 1e-05
  %v9963 = vadd.f32 %v9931, 1e-05
  %v9964 = vadd.f32 %v9932, 1e-05
  %v9965 = vadd.f32 %v9933, 1e-05
  %v9966 = vadd.f32 %v9934, 1e-05
  %v9967 = vadd.f32 %v9935, 1e-05
  %v9968 = vadd.f32 %v9936, 1e-05
  %v9969 = vadd.f32 %v9937, 1e-05
  %v9970 = vadd.f32 %v9938, 1e-05
  %v9971 = vadd.f32 %v9939, 1e-05
  %v9972 = vadd.f32 %v9940, 1e-05
  %v9973 = vadd.f32 %v9941, 1e-05
  %v9974 = vadd.f32 %v9942, 1e-05
  %v9975 = vadd.f32 %v9943, 1e-05
  %v9976 = vadd.f32 %v9944, 1e-05
  %v9977 = vadd.f32 %v9945, 1e-05
  %v9978 = vadd.f32 %v9946, 1e-05
  %v9979 = vadd.f32 %v9947, 1e-05
  %v9980 = vadd.f32 %v9948, 1e-05
  %v9981 = vadd.f32 %v9949, 1e-05
  %v9982 = vadd.f32 %v9950, 1e-05
  %v9983 = vadd.f32 %v9951, 1e-05
  %v9984 = vadd.f32 %v9952, 1e-05
  %v9985 = vadd.f32 %v9953, 1e-05
  %v9986 = vadd.f32 %v9954, 1e-05
  %v9987 = vadd.f32 %v9955, 1e-05
  %v9988 = vadd.f32 %v9956, 1e-05
  %v9989 = vadd.f32 %v9957, 1e-05
  %v9990 = vadd.f32 %v9958, 1e-05
  %v9991 = vrsqrt.pop %v9959
  %v9992 = vrsqrt.pop %v9960
  %v9993 = vrsqrt.pop %v9961
  %v9994 = vrsqrt.pop %v9962
  %v9995 = vrsqrt.pop %v9963
  %v9996 = vrsqrt.pop %v9964
  %v9997 = vrsqrt.pop %v9965
  %v9998 = vrsqrt.pop %v9966
  %v9999 = vrsqrt.pop %v9967
  %v10000 = vrsqrt.pop %v9968
  %v10001 = vrsqrt.pop %v9969
  %v10002 = vrsqrt.pop %v9970
  %v10003 = vrsqrt.pop %v9971
  %v10004 = vrsqrt.pop %v9972
  %v10005 = vrsqrt.pop %v9973
  %v10006 = vrsqrt.pop %v9974
  %v10007 = vrsqrt.pop %v9975
  %v10008 = vrsqrt.pop %v9976
  %v10009 = vrsqrt.pop %v9977
  %v10010 = vrsqrt.pop %v9978
  %v10011 = vrsqrt.pop %v9979
  %v10012 = vrsqrt.pop %v9980
  %v10013 = vrsqrt.pop %v9981
  %v10014 = vrsqrt.pop %v9982
  %v10015 = vrsqrt.pop %v9983
  %v10016 = vrsqrt.pop %v9984
  %v10017 = vrsqrt.pop %v9985
  %v10018 = vrsqrt.pop %v9986
  %v10019 = vrsqrt.pop %v9987
  %v10020 = vrsqrt.pop %v9988
  %v10021 = vrsqrt.pop %v9989
  %v10022 = vrsqrt.pop %v9990
  %v10023 = vmul.f32 %v9671, %v9991
  %v10024 = vmul.f32 %v9672, %v9991
  %v10025 = vmul.f32 %v9673, %v9992
  %v10026 = vmul.f32 %v9674, %v9992
  %v10027 = vmul.f32 %v9675, %v9993
  %v10028 = vmul.f32 %v9676, %v9993
  %v10029 = vmul.f32 %v9677, %v9994
  %v10030 = vmul.f32 %v9678, %v9994
  %v10031 = vmul.f32 %v9679, %v9995
  %v10032 = vmul.f32 %v9680, %v9995
  %v10033 = vmul.f32 %v9681, %v9996
  %v10034 = vmul.f32 %v9682, %v9996
  %v10035 = vmul.f32 %v9683, %v9997
  %v10036 = vmul.f32 %v9684, %v9997
  %v10037 = vmul.f32 %v9685, %v9998
  %v10038 = vmul.f32 %v9686, %v9998
  %v10039 = vmul.f32 %v9687, %v9999
  %v10040 = vmul.f32 %v9688, %v9999
  %v10041 = vmul.f32 %v9689, %v10000
  %v10042 = vmul.f32 %v9690, %v10000
  %v10043 = vmul.f32 %v9691, %v10001
  %v10044 = vmul.f32 %v9692, %v10001
  %v10045 = vmul.f32 %v9693, %v10002
  %v10046 = vmul.f32 %v9694, %v10002
  %v10047 = vmul.f32 %v9695, %v10003
  %v10048 = vmul.f32 %v9696, %v10003
  %v10049 = vmul.f32 %v9697, %v10004
  %v10050 = vmul.f32 %v9698, %v10004
  %v10051 = vmul.f32 %v9699, %v10005
  %v10052 = vmul.f32 %v9700, %v10005
  %v10053 = vmul.f32 %v9701, %v10006
  %v10054 = vmul.f32 %v9702, %v10006
  %v10055 = vmul.f32 %v9703, %v10007
  %v10056 = vmul.f32 %v9704, %v10007
  %v10057 = vmul.f32 %v9705, %v10008
  %v10058 = vmul.f32 %v9706, %v10008
  %v10059 = vmul.f32 %v9707, %v10009
  %v10060 = vmul.f32 %v9708, %v10009
  %v10061 = vmul.f32 %v9709, %v10010
  %v10062 = vmul.f32 %v9710, %v10010
  %v10063 = vmul.f32 %v9711, %v10011
  %v10064 = vmul.f32 %v9712, %v10011
  %v10065 = vmul.f32 %v9713, %v10012
  %v10066 = vmul.f32 %v9714, %v10012
  %v10067 = vmul.f32 %v9715, %v10013
  %v10068 = vmul.f32 %v9716, %v10013
  %v10069 = vmul.f32 %v9717, %v10014
  %v10070 = vmul.f32 %v9718, %v10014
  %v10071 = vmul.f32 %v9719, %v10015
  %v10072 = vmul.f32 %v9720, %v10015
  %v10073 = vmul.f32 %v9721, %v10016
  %v10074 = vmul.f32 %v9722, %v10016
  %v10075 = vmul.f32 %v9723, %v10017
  %v10076 = vmul.f32 %v9724, %v10017
  %v10077 = vmul.f32 %v9725, %v10018
  %v10078 = vmul.f32 %v9726, %v10018
  %v10079 = vmul.f32 %v9727, %v10019
  %v10080 = vmul.f32 %v9728, %v10019
  %v10081 = vmul.f32 %v9729, %v10020
  %v10082 = vmul.f32 %v9730, %v10020
  %v10083 = vmul.f32 %v9731, %v10021
  %v10084 = vmul.f32 %v9732, %v10021
  %v10085 = vmul.f32 %v9733, %v10022
  %v10086 = vmul.f32 %v9734, %v10022
  %v10088 = vlaneseq
  %v10089 = vshrl.u32 %v10088, 7
  %v10090 = vsub.s32 0, %v10089
  %v10091 = vrot.slane %v9509, %v10090
  %v10092 = vlaneseq
  %v10093 = vshrl.u32 %v10092, 7
  %v10094 = vsub.s32 1, %v10093
  %v10095 = vrot.slane %v9509, %v10094
  %v10098 = vmul.f32 %v10023, %v10091
  %v10099 = vmul.f32 %v10024, %v10095
  %v10100 = vmul.f32 %v10025, %v10091
  %v10101 = vmul.f32 %v10026, %v10095
  %v10102 = vmul.f32 %v10027, %v10091
  %v10103 = vmul.f32 %v10028, %v10095
  %v10104 = vmul.f32 %v10029, %v10091
  %v10105 = vmul.f32 %v10030, %v10095
  %v10106 = vmul.f32 %v10031, %v10091
  %v10107 = vmul.f32 %v10032, %v10095
  %v10108 = vmul.f32 %v10033, %v10091
  %v10109 = vmul.f32 %v10034, %v10095
  %v10110 = vmul.f32 %v10035, %v10091
  %v10111 = vmul.f32 %v10036, %v10095
  %v10112 = vmul.f32 %v10037, %v10091
  %v10113 = vmul.f32 %v10038, %v10095
  %v10114 = vmul.f32 %v10039, %v10091
  %v10115 = vmul.f32 %v10040, %v10095
  %v10116 = vmul.f32 %v10041, %v10091
  %v10117 = vmul.f32 %v10042, %v10095
  %v10118 = vmul.f32 %v10043, %v10091
  %v10119 = vmul.f32 %v10044, %v10095
  %v10120 = vmul.f32 %v10045, %v10091
  %v10121 = vmul.f32 %v10046, %v10095
  %v10122 = vmul.f32 %v10047, %v10091
  %v10123 = vmul.f32 %v10048, %v10095
  %v10124 = vmul.f32 %v10049, %v10091
  %v10125 = vmul.f32 %v10050, %v10095
  %v10126 = vmul.f32 %v10051, %v10091
  %v10127 = vmul.f32 %v10052, %v10095
  %v10128 = vmul.f32 %v10053, %v10091
  %v10129 = vmul.f32 %v10054, %v10095
  %v10130 = vmul.f32 %v10055, %v10091
  %v10131 = vmul.f32 %v10056, %v10095
  %v10132 = vmul.f32 %v10057, %v10091
  %v10133 = vmul.f32 %v10058, %v10095
  %v10134 = vmul.f32 %v10059, %v10091
  %v10135 = vmul.f32 %v10060, %v10095
  %v10136 = vmul.f32 %v10061, %v10091
  %v10137 = vmul.f32 %v10062, %v10095
  %v10138 = vmul.f32 %v10063, %v10091
  %v10139 = vmul.f32 %v10064, %v10095
  %v10140 = vmul.f32 %v10065, %v10091
  %v10141 = vmul.f32 %v10066, %v10095
  %v10142 = vmul.f32 %v10067, %v10091
  %v10143 = vmul.f32 %v10068, %v10095
  %v10144 = vmul.f32 %v10069, %v10091
  %v10145 = vmul.f32 %v10070, %v10095
  %v10146 = vmul.f32 %v10071, %v10091
  %v10147 = vmul.f32 %v10072, %v10095
  %v10148 = vmul.f32 %v10073, %v10091
  %v10149 = vmul.f32 %v10074, %v10095
  %v10150 = vmul.f32 %v10075, %v10091
  %v10151 = vmul.f32 %v10076, %v10095
  %v10152 = vmul.f32 %v10077, %v10091
  %v10153 = vmul.f32 %v10078, %v10095
  %v10154 = vmul.f32 %v10079, %v10091
  %v10155 = vmul.f32 %v10080, %v10095
  %v10156 = vmul.f32 %v10081, %v10091
  %v10157 = vmul.f32 %v10082, %v10095
  %v10158 = vmul.f32 %v10083, %v10091
  %v10159 = vmul.f32 %v10084, %v10095
  %v10160 = vmul.f32 %v10085, %v10091
  %v10161 = vmul.f32 %v10086, %v10095
  %v10163 = vlaneseq
  %v10164 = vshrl.u32 %v10163, 7
  %v10165 = vsub.s32 0, %v10164
  %v10166 = vrot.slane %v9510, %v10165
  %v10167 = vlaneseq
  %v10168 = vshrl.u32 %v10167, 7
  %v10169 = vsub.s32 1, %v10168
  %v10170 = vrot.slane %v9510, %v10169
  %v10173 = vadd.f32 %v10098, %v10166
  %v10174 = vadd.f32 %v10099, %v10170
  %v10175 = vadd.f32 %v10100, %v10166
  %v10176 = vadd.f32 %v10101, %v10170
  %v10177 = vadd.f32 %v10102, %v10166
  %v10178 = vadd.f32 %v10103, %v10170
  %v10179 = vadd.f32 %v10104, %v10166
  %v10180 = vadd.f32 %v10105, %v10170
  %v10181 = vadd.f32 %v10106, %v10166
  %v10182 = vadd.f32 %v10107, %v10170
  %v10183 = vadd.f32 %v10108, %v10166
  %v10184 = vadd.f32 %v10109, %v10170
  %v10185 = vadd.f32 %v10110, %v10166
  %v10186 = vadd.f32 %v10111, %v10170
  %v10187 = vadd.f32 %v10112, %v10166
  %v10188 = vadd.f32 %v10113, %v10170
  %v10189 = vadd.f32 %v10114, %v10166
  %v10190 = vadd.f32 %v10115, %v10170
  %v10191 = vadd.f32 %v10116, %v10166
  %v10192 = vadd.f32 %v10117, %v10170
  %v10193 = vadd.f32 %v10118, %v10166
  %v10194 = vadd.f32 %v10119, %v10170
  %v10195 = vadd.f32 %v10120, %v10166
  %v10196 = vadd.f32 %v10121, %v10170
  %v10197 = vadd.f32 %v10122, %v10166
  %v10198 = vadd.f32 %v10123, %v10170
  %v10199 = vadd.f32 %v10124, %v10166
  %v10200 = vadd.f32 %v10125, %v10170
  %v10201 = vadd.f32 %v10126, %v10166
  %v10202 = vadd.f32 %v10127, %v10170
  %v10203 = vadd.f32 %v10128, %v10166
  %v10204 = vadd.f32 %v10129, %v10170
  %v10205 = vadd.f32 %v10130, %v10166
  %v10206 = vadd.f32 %v10131, %v10170
  %v10207 = vadd.f32 %v10132, %v10166
  %v10208 = vadd.f32 %v10133, %v10170
  %v10209 = vadd.f32 %v10134, %v10166
  %v10210 = vadd.f32 %v10135, %v10170
  %v10211 = vadd.f32 %v10136, %v10166
  %v10212 = vadd.f32 %v10137, %v10170
  %v10213 = vadd.f32 %v10138, %v10166
  %v10214 = vadd.f32 %v10139, %v10170
  %v10215 = vadd.f32 %v10140, %v10166
  %v10216 = vadd.f32 %v10141, %v10170
  %v10217 = vadd.f32 %v10142, %v10166
  %v10218 = vadd.f32 %v10143, %v10170
  %v10219 = vadd.f32 %v10144, %v10166
  %v10220 = vadd.f32 %v10145, %v10170
  %v10221 = vadd.f32 %v10146, %v10166
  %v10222 = vadd.f32 %v10147, %v10170
  %v10223 = vadd.f32 %v10148, %v10166
  %v10224 = vadd.f32 %v10149, %v10170
  %v10225 = vadd.f32 %v10150, %v10166
  %v10226 = vadd.f32 %v10151, %v10170
  %v10227 = vadd.f32 %v10152, %v10166
  %v10228 = vadd.f32 %v10153, %v10170
  %v10229 = vadd.f32 %v10154, %v10166
  %v10230 = vadd.f32 %v10155, %v10170
  %v10231 = vadd.f32 %v10156, %v10166
  %v10232 = vadd.f32 %v10157, %v10170
  %v10233 = vadd.f32 %v10158, %v10166
  %v10234 = vadd.f32 %v10159, %v10170
  %v10235 = vadd.f32 %v10160, %v10166
  %v10236 = vadd.f32 %v10161, %v10170
  %v10237 = vpack.c.bf16 %v10175, %v10173
  %v10238 = vpack.c.bf16 %v10176, %v10174
  %v10239 = vpack.c.bf16 %v10179, %v10177
  %v10240 = vpack.c.bf16 %v10180, %v10178
  %v10241 = vpack.c.bf16 %v10183, %v10181
  %v10242 = vpack.c.bf16 %v10184, %v10182
  %v10243 = vpack.c.bf16 %v10187, %v10185
  %v10244 = vpack.c.bf16 %v10188, %v10186
  %v10245 = vpack.c.bf16 %v10191, %v10189
  %v10246 = vpack.c.bf16 %v10192, %v10190
  %v10247 = vpack.c.bf16 %v10195, %v10193
  %v10248 = vpack.c.bf16 %v10196, %v10194
  %v10249 = vpack.c.bf16 %v10199, %v10197
  %v10250 = vpack.c.bf16 %v10200, %v10198
  %v10251 = vpack.c.bf16 %v10203, %v10201
  %v10252 = vpack.c.bf16 %v10204, %v10202
  %v10253 = vpack.c.bf16 %v10207, %v10205
  %v10254 = vpack.c.bf16 %v10208, %v10206
  %v10255 = vpack.c.bf16 %v10211, %v10209
  %v10256 = vpack.c.bf16 %v10212, %v10210
  %v10257 = vpack.c.bf16 %v10215, %v10213
  %v10258 = vpack.c.bf16 %v10216, %v10214
  %v10259 = vpack.c.bf16 %v10219, %v10217
  %v10260 = vpack.c.bf16 %v10220, %v10218
  %v10261 = vpack.c.bf16 %v10223, %v10221
  %v10262 = vpack.c.bf16 %v10224, %v10222
  %v10263 = vpack.c.bf16 %v10227, %v10225
  %v10264 = vpack.c.bf16 %v10228, %v10226
  %v10265 = vpack.c.bf16 %v10231, %v10229
  %v10266 = vpack.c.bf16 %v10232, %v10230
  %v10267 = vpack.c.bf16 %v10235, %v10233
  %v10268 = vpack.c.bf16 %v10236, %v10234
  %v10269 = vld [vmem:[%s8] sm:$0xff]
  %v10270 = vld [vmem:[%s8 + $0x8] sm:$0xff]
  %v10271 = vld [vmem:[%s8 + $0x10] sm:$0xff]
  %v10272 = vld [vmem:[%s8 + $0x18] sm:$0xff]
  %v10273 = vld [vmem:[%s8 + $0x20] sm:$0xff]
  %v10274 = vld [vmem:[%s8 + $0x28] sm:$0xff]
  %v10275 = vld [vmem:[%s8 + $0x30] sm:$0xff]
  %v10276 = vld [vmem:[%s8 + $0x38] sm:$0xff]
  %v10277 = vld [vmem:[%s8 + $0x40] sm:$0xff]
  %v10278 = vld [vmem:[%s8 + $0x48] sm:$0xff]
  %v10279 = vld [vmem:[%s8 + $0x50] sm:$0xff]
  %v10280 = vld [vmem:[%s8 + $0x58] sm:$0xff]
  %v10281 = vld [vmem:[%s8 + $0x60] sm:$0xff]
  %v10282 = vld [vmem:[%s8 + $0x68] sm:$0xff]
  %v10283 = vld [vmem:[%s8 + $0x70] sm:$0xff]
  %v10284 = vld [vmem:[%s8 + $0x78] sm:$0xff]
  %v10285 = vld [vmem:[%s8 + $0x80] sm:$0xff]
  %v10286 = vld [vmem:[%s8 + $0x88] sm:$0xff]
  %v10287 = vld [vmem:[%s8 + $0x90] sm:$0xff]
  %v10288 = vld [vmem:[%s8 + $0x98] sm:$0xff]
  %v10289 = vld [vmem:[%s8 + $0xa0] sm:$0xff]
  %v10290 = vld [vmem:[%s8 + $0xa8] sm:$0xff]
  %v10291 = vld [vmem:[%s8 + $0xb0] sm:$0xff]
  %v10292 = vld [vmem:[%s8 + $0xb8] sm:$0xff]
  %v10293 = vld [vmem:[%s8 + $0xc0] sm:$0xff]
  %v10294 = vld [vmem:[%s8 + $0xc8] sm:$0xff]
  %v10295 = vld [vmem:[%s8 + $0xd0] sm:$0xff]
  %v10296 = vld [vmem:[%s8 + $0xd8] sm:$0xff]
  %v10297 = vld [vmem:[%s8 + $0xe0] sm:$0xff]
  %v10298 = vld [vmem:[%s8 + $0xe8] sm:$0xff]
  %v10299 = vld [vmem:[%s8 + $0xf0] sm:$0xff]
  %v10300 = vld [vmem:[%s8 + $0xf8] sm:$0xff]
  %v10301 = vld [vmem:[%s8 + $0x100] sm:$0xff]
  %v10302 = vld [vmem:[%s8 + $0x108] sm:$0xff]
  %v10303 = vld [vmem:[%s8 + $0x110] sm:$0xff]
  %v10304 = vld [vmem:[%s8 + $0x118] sm:$0xff]
  %v10305 = vld [vmem:[%s8 + $0x120] sm:$0xff]
  %v10306 = vld [vmem:[%s8 + $0x128] sm:$0xff]
  %v10307 = vld [vmem:[%s8 + $0x130] sm:$0xff]
  %v10308 = vld [vmem:[%s8 + $0x138] sm:$0xff]
  %v10309 = vld [vmem:[%s8 + $0x140] sm:$0xff]
  %v10310 = vld [vmem:[%s8 + $0x148] sm:$0xff]
  %v10311 = vld [vmem:[%s8 + $0x150] sm:$0xff]
  %v10312 = vld [vmem:[%s8 + $0x158] sm:$0xff]
  %v10313 = vld [vmem:[%s8 + $0x160] sm:$0xff]
  %v10314 = vld [vmem:[%s8 + $0x168] sm:$0xff]
  %v10315 = vld [vmem:[%s8 + $0x170] sm:$0xff]
  %v10316 = vld [vmem:[%s8 + $0x178] sm:$0xff]
  %v10317 = vld [vmem:[%s8 + $0x180] sm:$0xff]
  %v10318 = vld [vmem:[%s8 + $0x188] sm:$0xff]
  %v10319 = vld [vmem:[%s8 + $0x190] sm:$0xff]
  %v10320 = vld [vmem:[%s8 + $0x198] sm:$0xff]
  %v10321 = vld [vmem:[%s8 + $0x1a0] sm:$0xff]
  %v10322 = vld [vmem:[%s8 + $0x1a8] sm:$0xff]
  %v10323 = vld [vmem:[%s8 + $0x1b0] sm:$0xff]
  %v10324 = vld [vmem:[%s8 + $0x1b8] sm:$0xff]
  %v10325 = vld [vmem:[%s8 + $0x1c0] sm:$0xff]
  %v10326 = vld [vmem:[%s8 + $0x1c8] sm:$0xff]
  %v10327 = vld [vmem:[%s8 + $0x1d0] sm:$0xff]
  %v10328 = vld [vmem:[%s8 + $0x1d8] sm:$0xff]
  %v10329 = vld [vmem:[%s8 + $0x1e0] sm:$0xff]
  %v10330 = vld [vmem:[%s8 + $0x1e8] sm:$0xff]
  %v10331 = vld [vmem:[%s8 + $0x1f0] sm:$0xff]
  %v10332 = vld [vmem:[%s8 + $0x1f8] sm:$0xff]
  %v10333 = vld [vmem:[%s8 + $0x200] sm:$0xff]
  %v10334 = vld [vmem:[%s8 + $0x208] sm:$0xff]
  %v10335 = vld [vmem:[%s8 + $0x210] sm:$0xff]
  %v10336 = vld [vmem:[%s8 + $0x218] sm:$0xff]
  %v10337 = vld [vmem:[%s8 + $0x220] sm:$0xff]
  %v10338 = vld [vmem:[%s8 + $0x228] sm:$0xff]
  %v10339 = vld [vmem:[%s8 + $0x230] sm:$0xff]
  %v10340 = vld [vmem:[%s8 + $0x238] sm:$0xff]
  %v10341 = vld [vmem:[%s9] sm:$0x3f]
  %v10343 = vlaneseq
  %v10344 = vshrl.u32 %v10343, 7
  %v10345 = vsub.s32 0, %v10344
  %v10346 = vrot.slane %v10341, %v10345
  %v10347 = vlaneseq
  %v10348 = vshrl.u32 %v10347, 7
  %v10349 = vsub.s32 1, %v10348
  %v10350 = vrot.slane %v10341, %v10349
  %v10351 = vlaneseq
  %v10352 = vshrl.u32 %v10351, 7
  %v10353 = vsub.s32 2, %v10352
  %v10354 = vrot.slane %v10341, %v10353
  %v10355 = vlaneseq
  %v10356 = vshrl.u32 %v10355, 7
  %v10357 = vsub.s32 3, %v10356
  %v10358 = vrot.slane %v10341, %v10357
  %v10359 = vlaneseq
  %v10360 = vshrl.u32 %v10359, 7
  %v10361 = vsub.s32 4, %v10360
  %v10362 = vrot.slane %v10341, %v10361
  %v10363 = vlaneseq
  %v10364 = vshrl.u32 %v10363, 7
  %v10365 = vsub.s32 5, %v10364
  %v10366 = vrot.slane %v10341, %v10365
  %v10445 = vunpack.c.l.b16 %v10269
  %v10446 = vunpack.c.h.b16 %v10269
  %v10447 = vunpack.c.l.b16 %v10270
  %v10448 = vunpack.c.h.b16 %v10270
  %v10449 = vunpack.c.l.b16 %v10271
  %v10450 = vunpack.c.h.b16 %v10271
  %v10451 = vunpack.c.l.b16 %v10272
  %v10452 = vunpack.c.h.b16 %v10272
  %v10453 = vunpack.c.l.b16 %v10273
  %v10454 = vunpack.c.h.b16 %v10273
  %v10455 = vunpack.c.l.b16 %v10274
  %v10456 = vunpack.c.h.b16 %v10274
  %v10457 = vunpack.c.l.b16 %v10275
  %v10458 = vunpack.c.h.b16 %v10275
  %v10459 = vunpack.c.l.b16 %v10276
  %v10460 = vunpack.c.h.b16 %v10276
  %v10461 = vunpack.c.l.b16 %v10277
  %v10462 = vunpack.c.h.b16 %v10277
  %v10463 = vunpack.c.l.b16 %v10278
  %v10464 = vunpack.c.h.b16 %v10278
  %v10465 = vunpack.c.l.b16 %v10279
  %v10466 = vunpack.c.h.b16 %v10279
  %v10467 = vunpack.c.l.b16 %v10280
  %v10468 = vunpack.c.h.b16 %v10280
  %v10469 = vunpack.c.l.b16 %v10281
  %v10470 = vunpack.c.h.b16 %v10281
  %v10471 = vunpack.c.l.b16 %v10282
  %v10472 = vunpack.c.h.b16 %v10282
  %v10473 = vunpack.c.l.b16 %v10283
  %v10474 = vunpack.c.h.b16 %v10283
  %v10475 = vunpack.c.l.b16 %v10284
  %v10476 = vunpack.c.h.b16 %v10284
  %v10477 = vunpack.c.l.b16 %v10285
  %v10478 = vunpack.c.h.b16 %v10285
  %v10479 = vunpack.c.l.b16 %v10286
  %v10480 = vunpack.c.h.b16 %v10286
  %v10481 = vunpack.c.l.b16 %v10287
  %v10482 = vunpack.c.h.b16 %v10287
  %v10483 = vunpack.c.l.b16 %v10288
  %v10484 = vunpack.c.h.b16 %v10288
  %v10485 = vunpack.c.l.b16 %v10289
  %v10486 = vunpack.c.h.b16 %v10289
  %v10487 = vunpack.c.l.b16 %v10290
  %v10488 = vunpack.c.h.b16 %v10290
  %v10489 = vunpack.c.l.b16 %v10291
  %v10490 = vunpack.c.h.b16 %v10291
  %v10491 = vunpack.c.l.b16 %v10292
  %v10492 = vunpack.c.h.b16 %v10292
  %v10493 = vunpack.c.l.b16 %v10293
  %v10494 = vunpack.c.h.b16 %v10293
  %v10495 = vunpack.c.l.b16 %v10294
  %v10496 = vunpack.c.h.b16 %v10294
  %v10497 = vunpack.c.l.b16 %v10295
  %v10498 = vunpack.c.h.b16 %v10295
  %v10499 = vunpack.c.l.b16 %v10296
  %v10500 = vunpack.c.h.b16 %v10296
  %v10501 = vunpack.c.l.b16 %v10297
  %v10502 = vunpack.c.h.b16 %v10297
  %v10503 = vunpack.c.l.b16 %v10298
  %v10504 = vunpack.c.h.b16 %v10298
  %v10505 = vunpack.c.l.b16 %v10299
  %v10506 = vunpack.c.h.b16 %v10299
  %v10507 = vunpack.c.l.b16 %v10300
  %v10508 = vunpack.c.h.b16 %v10300
  %v10509 = vunpack.c.l.b16 %v10301
  %v10510 = vunpack.c.h.b16 %v10301
  %v10511 = vunpack.c.l.b16 %v10302
  %v10512 = vunpack.c.h.b16 %v10302
  %v10513 = vunpack.c.l.b16 %v10303
  %v10514 = vunpack.c.h.b16 %v10303
  %v10515 = vunpack.c.l.b16 %v10304
  %v10516 = vunpack.c.h.b16 %v10304
  %v10517 = vunpack.c.l.b16 %v10305
  %v10518 = vunpack.c.h.b16 %v10305
  %v10519 = vunpack.c.l.b16 %v10306
  %v10520 = vunpack.c.h.b16 %v10306
  %v10521 = vunpack.c.l.b16 %v10307
  %v10522 = vunpack.c.h.b16 %v10307
  %v10523 = vunpack.c.l.b16 %v10308
  %v10524 = vunpack.c.h.b16 %v10308
  %v10525 = vunpack.c.l.b16 %v10309
  %v10526 = vunpack.c.h.b16 %v10309
  %v10527 = vunpack.c.l.b16 %v10310
  %v10528 = vunpack.c.h.b16 %v10310
  %v10529 = vunpack.c.l.b16 %v10311
  %v10530 = vunpack.c.h.b16 %v10311
  %v10531 = vunpack.c.l.b16 %v10312
  %v10532 = vunpack.c.h.b16 %v10312
  %v10533 = vunpack.c.l.b16 %v10313
  %v10534 = vunpack.c.h.b16 %v10313
  %v10535 = vunpack.c.l.b16 %v10314
  %v10536 = vunpack.c.h.b16 %v10314
  %v10537 = vunpack.c.l.b16 %v10315
  %v10538 = vunpack.c.h.b16 %v10315
  %v10539 = vunpack.c.l.b16 %v10316
  %v10540 = vunpack.c.h.b16 %v10316
  %v10541 = vunpack.c.l.b16 %v10317
  %v10542 = vunpack.c.h.b16 %v10317
  %v10543 = vunpack.c.l.b16 %v10318
  %v10544 = vunpack.c.h.b16 %v10318
  %v10545 = vunpack.c.l.b16 %v10319
  %v10546 = vunpack.c.h.b16 %v10319
  %v10547 = vunpack.c.l.b16 %v10320
  %v10548 = vunpack.c.h.b16 %v10320
  %v10549 = vunpack.c.l.b16 %v10321
  %v10550 = vunpack.c.h.b16 %v10321
  %v10551 = vunpack.c.l.b16 %v10322
  %v10552 = vunpack.c.h.b16 %v10322
  %v10553 = vunpack.c.l.b16 %v10323
  %v10554 = vunpack.c.h.b16 %v10323
  %v10555 = vunpack.c.l.b16 %v10324
  %v10556 = vunpack.c.h.b16 %v10324
  %v10557 = vunpack.c.l.b16 %v10325
  %v10558 = vunpack.c.h.b16 %v10325
  %v10559 = vunpack.c.l.b16 %v10326
  %v10560 = vunpack.c.h.b16 %v10326
  %v10561 = vunpack.c.l.b16 %v10327
  %v10562 = vunpack.c.h.b16 %v10327
  %v10563 = vunpack.c.l.b16 %v10328
  %v10564 = vunpack.c.h.b16 %v10328
  %v10565 = vunpack.c.l.b16 %v10329
  %v10566 = vunpack.c.h.b16 %v10329
  %v10567 = vunpack.c.l.b16 %v10330
  %v10568 = vunpack.c.h.b16 %v10330
  %v10569 = vunpack.c.l.b16 %v10331
  %v10570 = vunpack.c.h.b16 %v10331
  %v10571 = vunpack.c.l.b16 %v10332
  %v10572 = vunpack.c.h.b16 %v10332
  %v10573 = vunpack.c.l.b16 %v10333
  %v10574 = vunpack.c.h.b16 %v10333
  %v10575 = vunpack.c.l.b16 %v10334
  %v10576 = vunpack.c.h.b16 %v10334
  %v10577 = vunpack.c.l.b16 %v10335
  %v10578 = vunpack.c.h.b16 %v10335
  %v10579 = vunpack.c.l.b16 %v10336
  %v10580 = vunpack.c.h.b16 %v10336
  %v10581 = vunpack.c.l.b16 %v10337
  %v10582 = vunpack.c.h.b16 %v10337
  %v10583 = vunpack.c.l.b16 %v10338
  %v10584 = vunpack.c.h.b16 %v10338
  %v10585 = vunpack.c.l.b16 %v10339
  %v10586 = vunpack.c.h.b16 %v10339
  %v10587 = vunpack.c.l.b16 %v10340
  %v10588 = vunpack.c.h.b16 %v10340
  %v10589 = vpack.c.b16 %v10451, %v10445
  %v10590 = vpack.c.b16 %v10452, %v10446
  %v10591 = vpack.c.b16 %v10453, %v10447
  %v10592 = vpack.c.b16 %v10454, %v10448
  %v10593 = vpack.c.b16 %v10455, %v10449
  %v10594 = vpack.c.b16 %v10456, %v10450
  %v10595 = vpack.c.b16 %v10463, %v10457
  %v10596 = vpack.c.b16 %v10464, %v10458
  %v10597 = vpack.c.b16 %v10465, %v10459
  %v10598 = vpack.c.b16 %v10466, %v10460
  %v10599 = vpack.c.b16 %v10467, %v10461
  %v10600 = vpack.c.b16 %v10468, %v10462
  %v10601 = vpack.c.b16 %v10475, %v10469
  %v10602 = vpack.c.b16 %v10476, %v10470
  %v10603 = vpack.c.b16 %v10477, %v10471
  %v10604 = vpack.c.b16 %v10478, %v10472
  %v10605 = vpack.c.b16 %v10479, %v10473
  %v10606 = vpack.c.b16 %v10480, %v10474
  %v10607 = vpack.c.b16 %v10487, %v10481
  %v10608 = vpack.c.b16 %v10488, %v10482
  %v10609 = vpack.c.b16 %v10489, %v10483
  %v10610 = vpack.c.b16 %v10490, %v10484
  %v10611 = vpack.c.b16 %v10491, %v10485
  %v10612 = vpack.c.b16 %v10492, %v10486
  %v10613 = vpack.c.b16 %v10499, %v10493
  %v10614 = vpack.c.b16 %v10500, %v10494
  %v10615 = vpack.c.b16 %v10501, %v10495
  %v10616 = vpack.c.b16 %v10502, %v10496
  %v10617 = vpack.c.b16 %v10503, %v10497
  %v10618 = vpack.c.b16 %v10504, %v10498
  %v10619 = vpack.c.b16 %v10511, %v10505
  %v10620 = vpack.c.b16 %v10512, %v10506
  %v10621 = vpack.c.b16 %v10513, %v10507
  %v10622 = vpack.c.b16 %v10514, %v10508
  %v10623 = vpack.c.b16 %v10515, %v10509
  %v10624 = vpack.c.b16 %v10516, %v10510
  %v10625 = vpack.c.b16 %v10523, %v10517
  %v10626 = vpack.c.b16 %v10524, %v10518
  %v10627 = vpack.c.b16 %v10525, %v10519
  %v10628 = vpack.c.b16 %v10526, %v10520
  %v10629 = vpack.c.b16 %v10527, %v10521
  %v10630 = vpack.c.b16 %v10528, %v10522
  %v10631 = vpack.c.b16 %v10535, %v10529
  %v10632 = vpack.c.b16 %v10536, %v10530
  %v10633 = vpack.c.b16 %v10537, %v10531
  %v10634 = vpack.c.b16 %v10538, %v10532
  %v10635 = vpack.c.b16 %v10539, %v10533
  %v10636 = vpack.c.b16 %v10540, %v10534
  %v10637 = vpack.c.b16 %v10547, %v10541
  %v10638 = vpack.c.b16 %v10548, %v10542
  %v10639 = vpack.c.b16 %v10549, %v10543
  %v10640 = vpack.c.b16 %v10550, %v10544
  %v10641 = vpack.c.b16 %v10551, %v10545
  %v10642 = vpack.c.b16 %v10552, %v10546
  %v10643 = vpack.c.b16 %v10559, %v10553
  %v10644 = vpack.c.b16 %v10560, %v10554
  %v10645 = vpack.c.b16 %v10561, %v10555
  %v10646 = vpack.c.b16 %v10562, %v10556
  %v10647 = vpack.c.b16 %v10563, %v10557
  %v10648 = vpack.c.b16 %v10564, %v10558
  %v10649 = vpack.c.b16 %v10571, %v10565
  %v10650 = vpack.c.b16 %v10572, %v10566
  %v10651 = vpack.c.b16 %v10573, %v10567
  %v10652 = vpack.c.b16 %v10574, %v10568
  %v10653 = vpack.c.b16 %v10575, %v10569
  %v10654 = vpack.c.b16 %v10576, %v10570
  %v10655 = vpack.c.b16 %v10583, %v10577
  %v10656 = vpack.c.b16 %v10584, %v10578
  %v10657 = vpack.c.b16 %v10585, %v10579
  %v10658 = vpack.c.b16 %v10586, %v10580
  %v10659 = vpack.c.b16 %v10587, %v10581
  %v10660 = vpack.c.b16 %v10588, %v10582
  %v10734 = vsel %vm108, %v10238, 0
  %v10737 = vsel %vm108, %v10240, 0
  %v10740 = vsel %vm108, %v10242, 0
  %v10743 = vsel %vm108, %v10244, 0
  %v10746 = vsel %vm108, %v10246, 0
  %v10749 = vsel %vm108, %v10248, 0
  %v10752 = vsel %vm108, %v10250, 0
  %v10755 = vsel %vm108, %v10252, 0
  %v10758 = vsel %vm108, %v10254, 0
  %v10761 = vsel %vm108, %v10256, 0
  %v10764 = vsel %vm108, %v10258, 0
  %v10767 = vsel %vm108, %v10260, 0
  %v10770 = vsel %vm108, %v10262, 0
  %v10773 = vsel %vm108, %v10264, 0
  %v10776 = vsel %vm108, %v10266, 0
  %v10779 = vsel %vm108, %v10268, 0
  %10781 = vmatprep.subr.bf16.mxu0 %v10632
  %10782 = vmatpush1.bf16.msra.mxu0 %v10631
  %10783 = vmatprep.subr.bf16.mxu0 %v10626
  %10784 = vmatpush1.bf16.msra.mxu0 %v10625
  %10785 = vmatprep.subr.bf16.mxu0 %v10620
  %10786 = vmatpush1.bf16.msra.mxu0 %v10619
  %10787 = vmatprep.subr.bf16.mxu0 %v10614
  %10788 = vmatpush1.bf16.msra.mxu0 %v10613
  %10789 = vmatprep.subr.bf16.mxu0 %v10608
  %10790 = vmatpush1.bf16.msra.mxu0 %v10607
  %10791 = vmatprep.subr.bf16.mxu0 %v10602
  %10792 = vmatpush1.bf16.msra.mxu0 %v10601
  %10793 = vmatprep.subr.bf16.mxu0 %v10596
  %10794 = vmatpush1.bf16.msra.mxu0 %v10595
  %10795 = vmatprep.subr.bf16.mxu0 %v10590
  %10796 = vmatpush1.bf16.msra.mxu0 %v10589
  %10797 = vmatprep.subr.bf16.mxu0 0
  %10798 = vmatpush2.bf16.msra.mxu0 0
  %10799 = vmatprep.subr.bf16.mxu0 0
  %10800 = vmatpush2.bf16.msra.mxu0 0
  %10801 = vmatprep.subr.bf16.mxu0 0
  %10802 = vmatpush2.bf16.msra.mxu0 0
  %10803 = vmatprep.subr.bf16.mxu0 0
  %10804 = vmatpush2.bf16.msra.mxu0 0
  %10805 = vmatprep.subr.bf16.mxu0 %v10656
  %10806 = vmatpush2.bf16.msra.mxu0 %v10655
  %10807 = vmatprep.subr.bf16.mxu0 %v10650
  %10808 = vmatpush2.bf16.msra.mxu0 %v10649
  %10809 = vmatprep.subr.bf16.mxu0 %v10644
  %10810 = vmatpush2.bf16.msra.mxu0 %v10643
  %10811 = vmatprep.subr.bf16.mxu0 %v10638
  %10812 = vmatpush2.bf16.msra.mxu0 %v10637
  %10813 = vmatprep.mubr.bf16.mxu0 %v10734
  %10814 = vmatmul.mubr.bf16.gmra.mxu0 %v10237
  %v10815 = vpop.f32.mrf.mxu0
  %v10816 = vadd.f32 %v10346, %v10815
  %v10817 = vpop.f32.mrf.mxu0
  %v10818 = vadd.f32 %v10350, %v10817
  %v10819 = vpop.f32.mrf.mxu0
  %v10820 = vadd.f32 %v10346, %v10819
  %v10821 = vpop.f32.mrf.mxu0
  %v10822 = vadd.f32 %v10350, %v10821
  %10823 = vmatprep.mubr.bf16.mxu0 %v10737
  %10824 = vmatmul.mubr.bf16.gmra.mxu0 %v10239
  %v10825 = vpop.f32.mrf.mxu0
  %v10826 = vadd.f32 %v10346, %v10825
  %v10827 = vpop.f32.mrf.mxu0
  %v10828 = vadd.f32 %v10350, %v10827
  %v10829 = vpop.f32.mrf.mxu0
  %v10830 = vadd.f32 %v10346, %v10829
  %v10831 = vpop.f32.mrf.mxu0
  %v10832 = vadd.f32 %v10350, %v10831
  %10833 = vmatprep.mubr.bf16.mxu0 %v10740
  %10834 = vmatmul.mubr.bf16.gmra.mxu0 %v10241
  %v10835 = vpop.f32.mrf.mxu0
  %v10836 = vadd.f32 %v10346, %v10835
  %v10837 = vpop.f32.mrf.mxu0
  %v10838 = vadd.f32 %v10350, %v10837
  %v10839 = vpop.f32.mrf.mxu0
  %v10840 = vadd.f32 %v10346, %v10839
  %v10841 = vpop.f32.mrf.mxu0
  %v10842 = vadd.f32 %v10350, %v10841
  %10843 = vmatprep.mubr.bf16.mxu0 %v10743
  %10844 = vmatmul.mubr.bf16.gmra.mxu0 %v10243
  %v10845 = vpop.f32.mrf.mxu0
  %v10846 = vadd.f32 %v10346, %v10845
  %v10847 = vpop.f32.mrf.mxu0
  %v10848 = vadd.f32 %v10350, %v10847
  %v10849 = vpop.f32.mrf.mxu0
  %v10850 = vadd.f32 %v10346, %v10849
  %v10851 = vpop.f32.mrf.mxu0
  %v10852 = vadd.f32 %v10350, %v10851
  %10853 = vmatprep.mubr.bf16.mxu0 %v10746
  %10854 = vmatmul.mubr.bf16.gmra.mxu0 %v10245
  %v10855 = vpop.f32.mrf.mxu0
  %v10856 = vadd.f32 %v10346, %v10855
  %v10857 = vpop.f32.mrf.mxu0
  %v10858 = vadd.f32 %v10350, %v10857
  %v10859 = vpop.f32.mrf.mxu0
  %v10860 = vadd.f32 %v10346, %v10859
  %v10861 = vpop.f32.mrf.mxu0
  %v10862 = vadd.f32 %v10350, %v10861
  %10863 = vmatprep.mubr.bf16.mxu0 %v10749
  %10864 = vmatmul.mubr.bf16.gmra.mxu0 %v10247
  %v10865 = vpop.f32.mrf.mxu0
  %v10866 = vadd.f32 %v10346, %v10865
  %v10867 = vpop.f32.mrf.mxu0
  %v10868 = vadd.f32 %v10350, %v10867
  %v10869 = vpop.f32.mrf.mxu0
  %v10870 = vadd.f32 %v10346, %v10869
  %v10871 = vpop.f32.mrf.mxu0
  %v10872 = vadd.f32 %v10350, %v10871
  %10873 = vmatprep.mubr.bf16.mxu0 %v10752
  %10874 = vmatmul.mubr.bf16.gmra.mxu0 %v10249
  %v10875 = vpop.f32.mrf.mxu0
  %v10876 = vadd.f32 %v10346, %v10875
  %v10877 = vpop.f32.mrf.mxu0
  %v10878 = vadd.f32 %v10350, %v10877
  %v10879 = vpop.f32.mrf.mxu0
  %v10880 = vadd.f32 %v10346, %v10879
  %v10881 = vpop.f32.mrf.mxu0
  %v10882 = vadd.f32 %v10350, %v10881
  %10883 = vmatprep.mubr.bf16.mxu0 %v10755
  %10884 = vmatmul.mubr.bf16.gmra.mxu0 %v10251
  %v10885 = vpop.f32.mrf.mxu0
  %v10886 = vadd.f32 %v10346, %v10885
  %v10887 = vpop.f32.mrf.mxu0
  %v10888 = vadd.f32 %v10350, %v10887
  %v10889 = vpop.f32.mrf.mxu0
  %v10890 = vadd.f32 %v10346, %v10889
  %v10891 = vpop.f32.mrf.mxu0
  %v10892 = vadd.f32 %v10350, %v10891
  %10893 = vmatprep.mubr.bf16.mxu0 %v10758
  %10894 = vmatmul.mubr.bf16.gmra.mxu0 %v10253
  %v10895 = vpop.f32.mrf.mxu0
  %v10896 = vadd.f32 %v10346, %v10895
  %v10897 = vpop.f32.mrf.mxu0
  %v10898 = vadd.f32 %v10350, %v10897
  %v10899 = vpop.f32.mrf.mxu0
  %v10900 = vadd.f32 %v10346, %v10899
  %v10901 = vpop.f32.mrf.mxu0
  %v10902 = vadd.f32 %v10350, %v10901
  %10903 = vmatprep.mubr.bf16.mxu0 %v10761
  %10904 = vmatmul.mubr.bf16.gmra.mxu0 %v10255
  %v10905 = vpop.f32.mrf.mxu0
  %v10906 = vadd.f32 %v10346, %v10905
  %v10907 = vpop.f32.mrf.mxu0
  %v10908 = vadd.f32 %v10350, %v10907
  %v10909 = vpop.f32.mrf.mxu0
  %v10910 = vadd.f32 %v10346, %v10909
  %v10911 = vpop.f32.mrf.mxu0
  %v10912 = vadd.f32 %v10350, %v10911
  %10913 = vmatprep.mubr.bf16.mxu0 %v10764
  %10914 = vmatmul.mubr.bf16.gmra.mxu0 %v10257
  %v10915 = vpop.f32.mrf.mxu0
  %v10916 = vadd.f32 %v10346, %v10915
  %v10917 = vpop.f32.mrf.mxu0
  %v10918 = vadd.f32 %v10350, %v10917
  %v10919 = vpop.f32.mrf.mxu0
  %v10920 = vadd.f32 %v10346, %v10919
  %v10921 = vpop.f32.mrf.mxu0
  %v10922 = vadd.f32 %v10350, %v10921
  %10923 = vmatprep.mubr.bf16.mxu0 %v10767
  %10924 = vmatmul.mubr.bf16.gmra.mxu0 %v10259
  %v10925 = vpop.f32.mrf.mxu0
  %v10926 = vadd.f32 %v10346, %v10925
  %v10927 = vpop.f32.mrf.mxu0
  %v10928 = vadd.f32 %v10350, %v10927
  %v10929 = vpop.f32.mrf.mxu0
  %v10930 = vadd.f32 %v10346, %v10929
  %v10931 = vpop.f32.mrf.mxu0
  %v10932 = vadd.f32 %v10350, %v10931
  %10933 = vmatprep.mubr.bf16.mxu0 %v10770
  %10934 = vmatmul.mubr.bf16.gmra.mxu0 %v10261
  %v10935 = vpop.f32.mrf.mxu0
  %v10936 = vadd.f32 %v10346, %v10935
  %v10937 = vpop.f32.mrf.mxu0
  %v10938 = vadd.f32 %v10350, %v10937
  %v10939 = vpop.f32.mrf.mxu0
  %v10940 = vadd.f32 %v10346, %v10939
  %v10941 = vpop.f32.mrf.mxu0
  %v10942 = vadd.f32 %v10350, %v10941
  %10943 = vmatprep.mubr.bf16.mxu0 %v10773
  %10944 = vmatmul.mubr.bf16.gmra.mxu0 %v10263
  %v10945 = vpop.f32.mrf.mxu0
  %v10946 = vadd.f32 %v10346, %v10945
  %v10947 = vpop.f32.mrf.mxu0
  %v10948 = vadd.f32 %v10350, %v10947
  %v10949 = vpop.f32.mrf.mxu0
  %v10950 = vadd.f32 %v10346, %v10949
  %v10951 = vpop.f32.mrf.mxu0
  %v10952 = vadd.f32 %v10350, %v10951
  %10953 = vmatprep.mubr.bf16.mxu0 %v10776
  %10954 = vmatmul.mubr.bf16.gmra.mxu0 %v10265
  %v10955 = vpop.f32.mrf.mxu0
  %v10956 = vadd.f32 %v10346, %v10955
  %v10957 = vpop.f32.mrf.mxu0
  %v10958 = vadd.f32 %v10350, %v10957
  %v10959 = vpop.f32.mrf.mxu0
  %v10960 = vadd.f32 %v10346, %v10959
  %v10961 = vpop.f32.mrf.mxu0
  %v10962 = vadd.f32 %v10350, %v10961
  %10963 = vmatprep.mubr.bf16.mxu0 %v10779
  %10964 = vmatmul.mubr.bf16.gmra.mxu0 %v10267
  %v10965 = vpop.f32.mrf.mxu0
  %v10966 = vadd.f32 %v10346, %v10965
  %v10967 = vpop.f32.mrf.mxu0
  %v10968 = vadd.f32 %v10350, %v10967
  %v10969 = vpop.f32.mrf.mxu0
  %v10970 = vadd.f32 %v10346, %v10969
  %v10971 = vpop.f32.mrf.mxu0
  %v10972 = vadd.f32 %v10350, %v10971
  %10973 = vdwg.mxu0
  %10974 = vmatprep.subr.bf16.mxu0 %v10634
  %10975 = vmatpush1.bf16.msra.mxu0 %v10633
  %10976 = vmatprep.subr.bf16.mxu0 %v10628
  %10977 = vmatpush1.bf16.msra.mxu0 %v10627
  %10978 = vmatprep.subr.bf16.mxu0 %v10622
  %10979 = vmatpush1.bf16.msra.mxu0 %v10621
  %10980 = vmatprep.subr.bf16.mxu0 %v10616
  %10981 = vmatpush1.bf16.msra.mxu0 %v10615
  %10982 = vmatprep.subr.bf16.mxu0 %v10610
  %10983 = vmatpush1.bf16.msra.mxu0 %v10609
  %10984 = vmatprep.subr.bf16.mxu0 %v10604
  %10985 = vmatpush1.bf16.msra.mxu0 %v10603
  %10986 = vmatprep.subr.bf16.mxu0 %v10598
  %10987 = vmatpush1.bf16.msra.mxu0 %v10597
  %10988 = vmatprep.subr.bf16.mxu0 %v10592
  %10989 = vmatpush1.bf16.msra.mxu0 %v10591
  %10990 = vmatprep.subr.bf16.mxu0 0
  %10991 = vmatpush2.bf16.msra.mxu0 0
  %10992 = vmatprep.subr.bf16.mxu0 0
  %10993 = vmatpush2.bf16.msra.mxu0 0
  %10994 = vmatprep.subr.bf16.mxu0 0
  %10995 = vmatpush2.bf16.msra.mxu0 0
  %10996 = vmatprep.subr.bf16.mxu0 0
  %10997 = vmatpush2.bf16.msra.mxu0 0
  %10998 = vmatprep.subr.bf16.mxu0 %v10658
  %10999 = vmatpush2.bf16.msra.mxu0 %v10657
  %11000 = vmatprep.subr.bf16.mxu0 %v10652
  %11001 = vmatpush2.bf16.msra.mxu0 %v10651
  %11002 = vmatprep.subr.bf16.mxu0 %v10646
  %11003 = vmatpush2.bf16.msra.mxu0 %v10645
  %11004 = vmatprep.subr.bf16.mxu0 %v10640
  %11005 = vmatpush2.bf16.msra.mxu0 %v10639
  %11006 = vmatprep.mubr.bf16.mxu0 %v10734
  %11007 = vmatmul.mubr.bf16.gmra.mxu0 %v10237
  %v11008 = vpop.f32.mrf.mxu0
  %v11009 = vadd.f32 %v10354, %v11008
  %v11010 = vpop.f32.mrf.mxu0
  %v11011 = vadd.f32 %v10358, %v11010
  %v11012 = vpop.f32.mrf.mxu0
  %v11013 = vadd.f32 %v10354, %v11012
  %v11014 = vpop.f32.mrf.mxu0
  %v11015 = vadd.f32 %v10358, %v11014
  %11016 = vmatprep.mubr.bf16.mxu0 %v10737
  %11017 = vmatmul.mubr.bf16.gmra.mxu0 %v10239
  %v11018 = vpop.f32.mrf.mxu0
  %v11019 = vadd.f32 %v10354, %v11018
  %v11020 = vpop.f32.mrf.mxu0
  %v11021 = vadd.f32 %v10358, %v11020
  %v11022 = vpop.f32.mrf.mxu0
  %v11023 = vadd.f32 %v10354, %v11022
  %v11024 = vpop.f32.mrf.mxu0
  %v11025 = vadd.f32 %v10358, %v11024
  %11026 = vmatprep.mubr.bf16.mxu0 %v10740
  %11027 = vmatmul.mubr.bf16.gmra.mxu0 %v10241
  %v11028 = vpop.f32.mrf.mxu0
  %v11029 = vadd.f32 %v10354, %v11028
  %v11030 = vpop.f32.mrf.mxu0
  %v11031 = vadd.f32 %v10358, %v11030
  %v11032 = vpop.f32.mrf.mxu0
  %v11033 = vadd.f32 %v10354, %v11032
  %v11034 = vpop.f32.mrf.mxu0
  %v11035 = vadd.f32 %v10358, %v11034
  %11036 = vmatprep.mubr.bf16.mxu0 %v10743
  %11037 = vmatmul.mubr.bf16.gmra.mxu0 %v10243
  %v11038 = vpop.f32.mrf.mxu0
  %v11039 = vadd.f32 %v10354, %v11038
  %v11040 = vpop.f32.mrf.mxu0
  %v11041 = vadd.f32 %v10358, %v11040
  %v11042 = vpop.f32.mrf.mxu0
  %v11043 = vadd.f32 %v10354, %v11042
  %v11044 = vpop.f32.mrf.mxu0
  %v11045 = vadd.f32 %v10358, %v11044
  %11046 = vmatprep.mubr.bf16.mxu0 %v10746
  %11047 = vmatmul.mubr.bf16.gmra.mxu0 %v10245
  %v11048 = vpop.f32.mrf.mxu0
  %v11049 = vadd.f32 %v10354, %v11048
  %v11050 = vpop.f32.mrf.mxu0
  %v11051 = vadd.f32 %v10358, %v11050
  %v11052 = vpop.f32.mrf.mxu0
  %v11053 = vadd.f32 %v10354, %v11052
  %v11054 = vpop.f32.mrf.mxu0
  %v11055 = vadd.f32 %v10358, %v11054
  %11056 = vmatprep.mubr.bf16.mxu0 %v10749
  %11057 = vmatmul.mubr.bf16.gmra.mxu0 %v10247
  %v11058 = vpop.f32.mrf.mxu0
  %v11059 = vadd.f32 %v10354, %v11058
  %v11060 = vpop.f32.mrf.mxu0
  %v11061 = vadd.f32 %v10358, %v11060
  %v11062 = vpop.f32.mrf.mxu0
  %v11063 = vadd.f32 %v10354, %v11062
  %v11064 = vpop.f32.mrf.mxu0
  %v11065 = vadd.f32 %v10358, %v11064
  %11066 = vmatprep.mubr.bf16.mxu0 %v10752
  %11067 = vmatmul.mubr.bf16.gmra.mxu0 %v10249
  %v11068 = vpop.f32.mrf.mxu0
  %v11069 = vadd.f32 %v10354, %v11068
  %v11070 = vpop.f32.mrf.mxu0
  %v11071 = vadd.f32 %v10358, %v11070
  %v11072 = vpop.f32.mrf.mxu0
  %v11073 = vadd.f32 %v10354, %v11072
  %v11074 = vpop.f32.mrf.mxu0
  %v11075 = vadd.f32 %v10358, %v11074
  %11076 = vmatprep.mubr.bf16.mxu0 %v10755
  %11077 = vmatmul.mubr.bf16.gmra.mxu0 %v10251
  %v11078 = vpop.f32.mrf.mxu0
  %v11079 = vadd.f32 %v10354, %v11078
  %v11080 = vpop.f32.mrf.mxu0
  %v11081 = vadd.f32 %v10358, %v11080
  %v11082 = vpop.f32.mrf.mxu0
  %v11083 = vadd.f32 %v10354, %v11082
  %v11084 = vpop.f32.mrf.mxu0
  %v11085 = vadd.f32 %v10358, %v11084
  %11086 = vmatprep.mubr.bf16.mxu0 %v10758
  %11087 = vmatmul.mubr.bf16.gmra.mxu0 %v10253
  %v11088 = vpop.f32.mrf.mxu0
  %v11089 = vadd.f32 %v10354, %v11088
  %v11090 = vpop.f32.mrf.mxu0
  %v11091 = vadd.f32 %v10358, %v11090
  %v11092 = vpop.f32.mrf.mxu0
  %v11093 = vadd.f32 %v10354, %v11092
  %v11094 = vpop.f32.mrf.mxu0
  %v11095 = vadd.f32 %v10358, %v11094
  %11096 = vmatprep.mubr.bf16.mxu0 %v10761
  %11097 = vmatmul.mubr.bf16.gmra.mxu0 %v10255
  %v11098 = vpop.f32.mrf.mxu0
  %v11099 = vadd.f32 %v10354, %v11098
  %v11100 = vpop.f32.mrf.mxu0
  %v11101 = vadd.f32 %v10358, %v11100
  %v11102 = vpop.f32.mrf.mxu0
  %v11103 = vadd.f32 %v10354, %v11102
  %v11104 = vpop.f32.mrf.mxu0
  %v11105 = vadd.f32 %v10358, %v11104
  %11106 = vmatprep.mubr.bf16.mxu0 %v10764
  %11107 = vmatmul.mubr.bf16.gmra.mxu0 %v10257
  %v11108 = vpop.f32.mrf.mxu0
  %v11109 = vadd.f32 %v10354, %v11108
  %v11110 = vpop.f32.mrf.mxu0
  %v11111 = vadd.f32 %v10358, %v11110
  %v11112 = vpop.f32.mrf.mxu0
  %v11113 = vadd.f32 %v10354, %v11112
  %v11114 = vpop.f32.mrf.mxu0
  %v11115 = vadd.f32 %v10358, %v11114
  %11116 = vmatprep.mubr.bf16.mxu0 %v10767
  %11117 = vmatmul.mubr.bf16.gmra.mxu0 %v10259
  %v11118 = vpop.f32.mrf.mxu0
  %v11119 = vadd.f32 %v10354, %v11118
  %v11120 = vpop.f32.mrf.mxu0
  %v11121 = vadd.f32 %v10358, %v11120
  %v11122 = vpop.f32.mrf.mxu0
  %v11123 = vadd.f32 %v10354, %v11122
  %v11124 = vpop.f32.mrf.mxu0
  %v11125 = vadd.f32 %v10358, %v11124
  %11126 = vmatprep.mubr.bf16.mxu0 %v10770
  %11127 = vmatmul.mubr.bf16.gmra.mxu0 %v10261
  %v11128 = vpop.f32.mrf.mxu0
  %v11129 = vadd.f32 %v10354, %v11128
  %v11130 = vpop.f32.mrf.mxu0
  %v11131 = vadd.f32 %v10358, %v11130
  %v11132 = vpop.f32.mrf.mxu0
  %v11133 = vadd.f32 %v10354, %v11132
  %v11134 = vpop.f32.mrf.mxu0
  %v11135 = vadd.f32 %v10358, %v11134
  %11136 = vmatprep.mubr.bf16.mxu0 %v10773
  %11137 = vmatmul.mubr.bf16.gmra.mxu0 %v10263
  %v11138 = vpop.f32.mrf.mxu0
  %v11139 = vadd.f32 %v10354, %v11138
  %v11140 = vpop.f32.mrf.mxu0
  %v11141 = vadd.f32 %v10358, %v11140
  %v11142 = vpop.f32.mrf.mxu0
  %v11143 = vadd.f32 %v10354, %v11142
  %v11144 = vpop.f32.mrf.mxu0
  %v11145 = vadd.f32 %v10358, %v11144
  %11146 = vmatprep.mubr.bf16.mxu0 %v10776
  %11147 = vmatmul.mubr.bf16.gmra.mxu0 %v10265
  %v11148 = vpop.f32.mrf.mxu0
  %v11149 = vadd.f32 %v10354, %v11148
  %v11150 = vpop.f32.mrf.mxu0
  %v11151 = vadd.f32 %v10358, %v11150
  %v11152 = vpop.f32.mrf.mxu0
  %v11153 = vadd.f32 %v10354, %v11152
  %v11154 = vpop.f32.mrf.mxu0
  %v11155 = vadd.f32 %v10358, %v11154
  %11156 = vmatprep.mubr.bf16.mxu0 %v10779
  %11157 = vmatmul.mubr.bf16.gmra.mxu0 %v10267
  %v11158 = vpop.f32.mrf.mxu0
  %v11159 = vadd.f32 %v10354, %v11158
  %v11160 = vpop.f32.mrf.mxu0
  %v11161 = vadd.f32 %v10358, %v11160
  %v11162 = vpop.f32.mrf.mxu0
  %v11163 = vadd.f32 %v10354, %v11162
  %v11164 = vpop.f32.mrf.mxu0
  %v11165 = vadd.f32 %v10358, %v11164
  %11166 = vdwg.mxu0
  %11167 = vmatprep.subr.bf16.mxu0 %v10636
  %11168 = vmatpush1.bf16.msra.mxu0 %v10635
  %11169 = vmatprep.subr.bf16.mxu0 %v10630
  %11170 = vmatpush1.bf16.msra.mxu0 %v10629
  %11171 = vmatprep.subr.bf16.mxu0 %v10624
  %11172 = vmatpush1.bf16.msra.mxu0 %v10623
  %11173 = vmatprep.subr.bf16.mxu0 %v10618
  %11174 = vmatpush1.bf16.msra.mxu0 %v10617
  %11175 = vmatprep.subr.bf16.mxu0 %v10612
  %11176 = vmatpush1.bf16.msra.mxu0 %v10611
  %11177 = vmatprep.subr.bf16.mxu0 %v10606
  %11178 = vmatpush1.bf16.msra.mxu0 %v10605
  %11179 = vmatprep.subr.bf16.mxu0 %v10600
  %11180 = vmatpush1.bf16.msra.mxu0 %v10599
  %11181 = vmatprep.subr.bf16.mxu0 %v10594
  %11182 = vmatpush1.bf16.msra.mxu0 %v10593
  %11183 = vmatprep.subr.bf16.mxu0 0
  %11184 = vmatpush2.bf16.msra.mxu0 0
  %11185 = vmatprep.subr.bf16.mxu0 0
  %11186 = vmatpush2.bf16.msra.mxu0 0
  %11187 = vmatprep.subr.bf16.mxu0 0
  %11188 = vmatpush2.bf16.msra.mxu0 0
  %11189 = vmatprep.subr.bf16.mxu0 0
  %11190 = vmatpush2.bf16.msra.mxu0 0
  %11191 = vmatprep.subr.bf16.mxu0 %v10660
  %11192 = vmatpush2.bf16.msra.mxu0 %v10659
  %11193 = vmatprep.subr.bf16.mxu0 %v10654
  %11194 = vmatpush2.bf16.msra.mxu0 %v10653
  %11195 = vmatprep.subr.bf16.mxu0 %v10648
  %11196 = vmatpush2.bf16.msra.mxu0 %v10647
  %11197 = vmatprep.subr.bf16.mxu0 %v10642
  %11198 = vmatpush2.bf16.msra.mxu0 %v10641
  %11199 = vmatprep.mubr.bf16.mxu0 %v10734
  %11200 = vmatmul.mubr.bf16.gmra.mxu0 %v10237
  %v11201 = vpop.f32.mrf.mxu0
  %v11202 = vadd.f32 %v10362, %v11201
  %v11203 = vpop.f32.mrf.mxu0
  %v11204 = vadd.f32 %v10366, %v11203
  %v11205 = vpop.f32.mrf.mxu0
  %v11206 = vadd.f32 %v10362, %v11205
  %v11207 = vpop.f32.mrf.mxu0
  %v11208 = vadd.f32 %v10366, %v11207
  %11209 = vmatprep.mubr.bf16.mxu0 %v10737
  %11210 = vmatmul.mubr.bf16.gmra.mxu0 %v10239
  %v11211 = vpop.f32.mrf.mxu0
  %v11212 = vadd.f32 %v10362, %v11211
  %v11213 = vpop.f32.mrf.mxu0
  %v11214 = vadd.f32 %v10366, %v11213
  %v11215 = vpop.f32.mrf.mxu0
  %v11216 = vadd.f32 %v10362, %v11215
  %v11217 = vpop.f32.mrf.mxu0
  %v11218 = vadd.f32 %v10366, %v11217
  %11219 = vmatprep.mubr.bf16.mxu0 %v10740
  %11220 = vmatmul.mubr.bf16.gmra.mxu0 %v10241
  %v11221 = vpop.f32.mrf.mxu0
  %v11222 = vadd.f32 %v10362, %v11221
  %v11223 = vpop.f32.mrf.mxu0
  %v11224 = vadd.f32 %v10366, %v11223
  %v11225 = vpop.f32.mrf.mxu0
  %v11226 = vadd.f32 %v10362, %v11225
  %v11227 = vpop.f32.mrf.mxu0
  %v11228 = vadd.f32 %v10366, %v11227
  %11229 = vmatprep.mubr.bf16.mxu0 %v10743
  %11230 = vmatmul.mubr.bf16.gmra.mxu0 %v10243
  %v11231 = vpop.f32.mrf.mxu0
  %v11232 = vadd.f32 %v10362, %v11231
  %v11233 = vpop.f32.mrf.mxu0
  %v11234 = vadd.f32 %v10366, %v11233
  %v11235 = vpop.f32.mrf.mxu0
  %v11236 = vadd.f32 %v10362, %v11235
  %v11237 = vpop.f32.mrf.mxu0
  %v11238 = vadd.f32 %v10366, %v11237
  %11239 = vmatprep.mubr.bf16.mxu0 %v10746
  %11240 = vmatmul.mubr.bf16.gmra.mxu0 %v10245
  %v11241 = vpop.f32.mrf.mxu0
  %v11242 = vadd.f32 %v10362, %v11241
  %v11243 = vpop.f32.mrf.mxu0
  %v11244 = vadd.f32 %v10366, %v11243
  %v11245 = vpop.f32.mrf.mxu0
  %v11246 = vadd.f32 %v10362, %v11245
  %v11247 = vpop.f32.mrf.mxu0
  %v11248 = vadd.f32 %v10366, %v11247
  %11249 = vmatprep.mubr.bf16.mxu0 %v10749
  %11250 = vmatmul.mubr.bf16.gmra.mxu0 %v10247
  %v11251 = vpop.f32.mrf.mxu0
  %v11252 = vadd.f32 %v10362, %v11251
  %v11253 = vpop.f32.mrf.mxu0
  %v11254 = vadd.f32 %v10366, %v11253
  %v11255 = vpop.f32.mrf.mxu0
  %v11256 = vadd.f32 %v10362, %v11255
  %v11257 = vpop.f32.mrf.mxu0
  %v11258 = vadd.f32 %v10366, %v11257
  %11259 = vmatprep.mubr.bf16.mxu0 %v10752
  %11260 = vmatmul.mubr.bf16.gmra.mxu0 %v10249
  %v11261 = vpop.f32.mrf.mxu0
  %v11262 = vadd.f32 %v10362, %v11261
  %v11263 = vpop.f32.mrf.mxu0
  %v11264 = vadd.f32 %v10366, %v11263
  %v11265 = vpop.f32.mrf.mxu0
  %v11266 = vadd.f32 %v10362, %v11265
  %v11267 = vpop.f32.mrf.mxu0
  %v11268 = vadd.f32 %v10366, %v11267
  %11269 = vmatprep.mubr.bf16.mxu0 %v10755
  %11270 = vmatmul.mubr.bf16.gmra.mxu0 %v10251
  %v11271 = vpop.f32.mrf.mxu0
  %v11272 = vadd.f32 %v10362, %v11271
  %v11273 = vpop.f32.mrf.mxu0
  %v11274 = vadd.f32 %v10366, %v11273
  %v11275 = vpop.f32.mrf.mxu0
  %v11276 = vadd.f32 %v10362, %v11275
  %v11277 = vpop.f32.mrf.mxu0
  %v11278 = vadd.f32 %v10366, %v11277
  %11279 = vmatprep.mubr.bf16.mxu0 %v10758
  %11280 = vmatmul.mubr.bf16.gmra.mxu0 %v10253
  %v11281 = vpop.f32.mrf.mxu0
  %v11282 = vadd.f32 %v10362, %v11281
  %v11283 = vpop.f32.mrf.mxu0
  %v11284 = vadd.f32 %v10366, %v11283
  %v11285 = vpop.f32.mrf.mxu0
  %v11286 = vadd.f32 %v10362, %v11285
  %v11287 = vpop.f32.mrf.mxu0
  %v11288 = vadd.f32 %v10366, %v11287
  %11289 = vmatprep.mubr.bf16.mxu0 %v10761
  %11290 = vmatmul.mubr.bf16.gmra.mxu0 %v10255
  %v11291 = vpop.f32.mrf.mxu0
  %v11292 = vadd.f32 %v10362, %v11291
  %v11293 = vpop.f32.mrf.mxu0
  %v11294 = vadd.f32 %v10366, %v11293
  %v11295 = vpop.f32.mrf.mxu0
  %v11296 = vadd.f32 %v10362, %v11295
  %v11297 = vpop.f32.mrf.mxu0
  %v11298 = vadd.f32 %v10366, %v11297
  %11299 = vmatprep.mubr.bf16.mxu0 %v10764
  %11300 = vmatmul.mubr.bf16.gmra.mxu0 %v10257
  %v11301 = vpop.f32.mrf.mxu0
  %v11302 = vadd.f32 %v10362, %v11301
  %v11303 = vpop.f32.mrf.mxu0
  %v11304 = vadd.f32 %v10366, %v11303
  %v11305 = vpop.f32.mrf.mxu0
  %v11306 = vadd.f32 %v10362, %v11305
  %v11307 = vpop.f32.mrf.mxu0
  %v11308 = vadd.f32 %v10366, %v11307
  %11309 = vmatprep.mubr.bf16.mxu0 %v10767
  %11310 = vmatmul.mubr.bf16.gmra.mxu0 %v10259
  %v11311 = vpop.f32.mrf.mxu0
  %v11312 = vadd.f32 %v10362, %v11311
  %v11313 = vpop.f32.mrf.mxu0
  %v11314 = vadd.f32 %v10366, %v11313
  %v11315 = vpop.f32.mrf.mxu0
  %v11316 = vadd.f32 %v10362, %v11315
  %v11317 = vpop.f32.mrf.mxu0
  %v11318 = vadd.f32 %v10366, %v11317
  %11319 = vmatprep.mubr.bf16.mxu0 %v10770
  %11320 = vmatmul.mubr.bf16.gmra.mxu0 %v10261
  %v11321 = vpop.f32.mrf.mxu0
  %v11322 = vadd.f32 %v10362, %v11321
  %v11323 = vpop.f32.mrf.mxu0
  %v11324 = vadd.f32 %v10366, %v11323
  %v11325 = vpop.f32.mrf.mxu0
  %v11326 = vadd.f32 %v10362, %v11325
  %v11327 = vpop.f32.mrf.mxu0
  %v11328 = vadd.f32 %v10366, %v11327
  %11329 = vmatprep.mubr.bf16.mxu0 %v10773
  %11330 = vmatmul.mubr.bf16.gmra.mxu0 %v10263
  %v11331 = vpop.f32.mrf.mxu0
  %v11332 = vadd.f32 %v10362, %v11331
  %v11333 = vpop.f32.mrf.mxu0
  %v11334 = vadd.f32 %v10366, %v11333
  %v11335 = vpop.f32.mrf.mxu0
  %v11336 = vadd.f32 %v10362, %v11335
  %v11337 = vpop.f32.mrf.mxu0
  %v11338 = vadd.f32 %v10366, %v11337
  %11339 = vmatprep.mubr.bf16.mxu0 %v10776
  %11340 = vmatmul.mubr.bf16.gmra.mxu0 %v10265
  %v11341 = vpop.f32.mrf.mxu0
  %v11342 = vadd.f32 %v10362, %v11341
  %v11343 = vpop.f32.mrf.mxu0
  %v11344 = vadd.f32 %v10366, %v11343
  %v11345 = vpop.f32.mrf.mxu0
  %v11346 = vadd.f32 %v10362, %v11345
  %v11347 = vpop.f32.mrf.mxu0
  %v11348 = vadd.f32 %v10366, %v11347
  %11349 = vmatprep.mubr.bf16.mxu0 %v10779
  %11350 = vmatmul.mubr.bf16.gmra.mxu0 %v10267
  %v11351 = vpop.f32.mrf.mxu0
  %v11352 = vadd.f32 %v10362, %v11351
  %v11353 = vpop.f32.mrf.mxu0
  %v11354 = vadd.f32 %v10366, %v11353
  %v11355 = vpop.f32.mrf.mxu0
  %v11356 = vadd.f32 %v10362, %v11355
  %v11357 = vpop.f32.mrf.mxu0
  %v11358 = vadd.f32 %v10366, %v11357
  %11359 = vdwg.mxu0
  %v11360 = vmax.f32 %v10816, 0.0
  %v11361 = vmax.f32 %v10818, 0.0
  %v11362 = vmax.f32 %v11009, 0.0
  %v11363 = vmax.f32 %v11011, 0.0
  %v11364 = vmax.f32 %v11202, 0.0
  %v11365 = vmax.f32 %v11204, 0.0
  %v11366 = vmax.f32 %v10820, 0.0
  %v11367 = vmax.f32 %v10822, 0.0
  %v11368 = vmax.f32 %v11013, 0.0
  %v11369 = vmax.f32 %v11015, 0.0
  %v11370 = vmax.f32 %v11206, 0.0
  %v11371 = vmax.f32 %v11208, 0.0
  %v11372 = vmax.f32 %v10826, 0.0
  %v11373 = vmax.f32 %v10828, 0.0
  %v11374 = vmax.f32 %v11019, 0.0
  %v11375 = vmax.f32 %v11021, 0.0
  %v11376 = vmax.f32 %v11212, 0.0
  %v11377 = vmax.f32 %v11214, 0.0
  %v11378 = vmax.f32 %v10830, 0.0
  %v11379 = vmax.f32 %v10832, 0.0
  %v11380 = vmax.f32 %v11023, 0.0
  %v11381 = vmax.f32 %v11025, 0.0
  %v11382 = vmax.f32 %v11216, 0.0
  %v11383 = vmax.f32 %v11218, 0.0
  %v11384 = vmax.f32 %v10836, 0.0
  %v11385 = vmax.f32 %v10838, 0.0
  %v11386 = vmax.f32 %v11029, 0.0
  %v11387 = vmax.f32 %v11031, 0.0
  %v11388 = vmax.f32 %v11222, 0.0
  %v11389 = vmax.f32 %v11224, 0.0
  %v11390 = vmax.f32 %v10840, 0.0
  %v11391 = vmax.f32 %v10842, 0.0
  %v11392 = vmax.f32 %v11033, 0.0
  %v11393 = vmax.f32 %v11035, 0.0
  %v11394 = vmax.f32 %v11226, 0.0
  %v11395 = vmax.f32 %v11228, 0.0
  %v11396 = vmax.f32 %v10846, 0.0
  %v11397 = vmax.f32 %v10848, 0.0
  %v11398 = vmax.f32 %v11039, 0.0
  %v11399 = vmax.f32 %v11041, 0.0
  %v11400 = vmax.f32 %v11232, 0.0
  %v11401 = vmax.f32 %v11234, 0.0
  %v11402 = vmax.f32 %v10850, 0.0
  %v11403 = vmax.f32 %v10852, 0.0
  %v11404 = vmax.f32 %v11043, 0.0
  %v11405 = vmax.f32 %v11045, 0.0
  %v11406 = vmax.f32 %v11236, 0.0
  %v11407 = vmax.f32 %v11238, 0.0
  %v11408 = vmax.f32 %v10856, 0.0
  %v11409 = vmax.f32 %v10858, 0.0
  %v11410 = vmax.f32 %v11049, 0.0
  %v11411 = vmax.f32 %v11051, 0.0
  %v11412 = vmax.f32 %v11242, 0.0
  %v11413 = vmax.f32 %v11244, 0.0
  %v11414 = vmax.f32 %v10860, 0.0
  %v11415 = vmax.f32 %v10862, 0.0
  %v11416 = vmax.f32 %v11053, 0.0
  %v11417 = vmax.f32 %v11055, 0.0
  %v11418 = vmax.f32 %v11246, 0.0
  %v11419 = vmax.f32 %v11248, 0.0
  %v11420 = vmax.f32 %v10866, 0.0
  %v11421 = vmax.f32 %v10868, 0.0
  %v11422 = vmax.f32 %v11059, 0.0
  %v11423 = vmax.f32 %v11061, 0.0
  %v11424 = vmax.f32 %v11252, 0.0
  %v11425 = vmax.f32 %v11254, 0.0
  %v11426 = vmax.f32 %v10870, 0.0
  %v11427 = vmax.f32 %v10872, 0.0
  %v11428 = vmax.f32 %v11063, 0.0
  %v11429 = vmax.f32 %v11065, 0.0
  %v11430 = vmax.f32 %v11256, 0.0
  %v11431 = vmax.f32 %v11258, 0.0
  %v11432 = vmax.f32 %v10876, 0.0
  %v11433 = vmax.f32 %v10878, 0.0
  %v11434 = vmax.f32 %v11069, 0.0
  %v11435 = vmax.f32 %v11071, 0.0
  %v11436 = vmax.f32 %v11262, 0.0
  %v11437 = vmax.f32 %v11264, 0.0
  %v11438 = vmax.f32 %v10880, 0.0
  %v11439 = vmax.f32 %v10882, 0.0
  %v11440 = vmax.f32 %v11073, 0.0
  %v11441 = vmax.f32 %v11075, 0.0
  %v11442 = vmax.f32 %v11266, 0.0
  %v11443 = vmax.f32 %v11268, 0.0
  %v11444 = vmax.f32 %v10886, 0.0
  %v11445 = vmax.f32 %v10888, 0.0
  %v11446 = vmax.f32 %v11079, 0.0
  %v11447 = vmax.f32 %v11081, 0.0
  %v11448 = vmax.f32 %v11272, 0.0
  %v11449 = vmax.f32 %v11274, 0.0
  %v11450 = vmax.f32 %v10890, 0.0
  %v11451 = vmax.f32 %v10892, 0.0
  %v11452 = vmax.f32 %v11083, 0.0
  %v11453 = vmax.f32 %v11085, 0.0
  %v11454 = vmax.f32 %v11276, 0.0
  %v11455 = vmax.f32 %v11278, 0.0
  %v11456 = vmax.f32 %v10896, 0.0
  %v11457 = vmax.f32 %v10898, 0.0
  %v11458 = vmax.f32 %v11089, 0.0
  %v11459 = vmax.f32 %v11091, 0.0
  %v11460 = vmax.f32 %v11282, 0.0
  %v11461 = vmax.f32 %v11284, 0.0
  %v11462 = vmax.f32 %v10900, 0.0
  %v11463 = vmax.f32 %v10902, 0.0
  %v11464 = vmax.f32 %v11093, 0.0
  %v11465 = vmax.f32 %v11095, 0.0
  %v11466 = vmax.f32 %v11286, 0.0
  %v11467 = vmax.f32 %v11288, 0.0
  %v11468 = vmax.f32 %v10906, 0.0
  %v11469 = vmax.f32 %v10908, 0.0
  %v11470 = vmax.f32 %v11099, 0.0
  %v11471 = vmax.f32 %v11101, 0.0
  %v11472 = vmax.f32 %v11292, 0.0
  %v11473 = vmax.f32 %v11294, 0.0
  %v11474 = vmax.f32 %v10910, 0.0
  %v11475 = vmax.f32 %v10912, 0.0
  %v11476 = vmax.f32 %v11103, 0.0
  %v11477 = vmax.f32 %v11105, 0.0
  %v11478 = vmax.f32 %v11296, 0.0
  %v11479 = vmax.f32 %v11298, 0.0
  %v11480 = vmax.f32 %v10916, 0.0
  %v11481 = vmax.f32 %v10918, 0.0
  %v11482 = vmax.f32 %v11109, 0.0
  %v11483 = vmax.f32 %v11111, 0.0
  %v11484 = vmax.f32 %v11302, 0.0
  %v11485 = vmax.f32 %v11304, 0.0
  %v11486 = vmax.f32 %v10920, 0.0
  %v11487 = vmax.f32 %v10922, 0.0
  %v11488 = vmax.f32 %v11113, 0.0
  %v11489 = vmax.f32 %v11115, 0.0
  %v11490 = vmax.f32 %v11306, 0.0
  %v11491 = vmax.f32 %v11308, 0.0
  %v11492 = vmax.f32 %v10926, 0.0
  %v11493 = vmax.f32 %v10928, 0.0
  %v11494 = vmax.f32 %v11119, 0.0
  %v11495 = vmax.f32 %v11121, 0.0
  %v11496 = vmax.f32 %v11312, 0.0
  %v11497 = vmax.f32 %v11314, 0.0
  %v11498 = vmax.f32 %v10930, 0.0
  %v11499 = vmax.f32 %v10932, 0.0
  %v11500 = vmax.f32 %v11123, 0.0
  %v11501 = vmax.f32 %v11125, 0.0
  %v11502 = vmax.f32 %v11316, 0.0
  %v11503 = vmax.f32 %v11318, 0.0
  %v11504 = vmax.f32 %v10936, 0.0
  %v11505 = vmax.f32 %v10938, 0.0
  %v11506 = vmax.f32 %v11129, 0.0
  %v11507 = vmax.f32 %v11131, 0.0
  %v11508 = vmax.f32 %v11322, 0.0
  %v11509 = vmax.f32 %v11324, 0.0
  %v11510 = vmax.f32 %v10940, 0.0
  %v11511 = vmax.f32 %v10942, 0.0
  %v11512 = vmax.f32 %v11133, 0.0
  %v11513 = vmax.f32 %v11135, 0.0
  %v11514 = vmax.f32 %v11326, 0.0
  %v11515 = vmax.f32 %v11328, 0.0
  %v11516 = vmax.f32 %v10946, 0.0
  %v11517 = vmax.f32 %v10948, 0.0
  %v11518 = vmax.f32 %v11139, 0.0
  %v11519 = vmax.f32 %v11141, 0.0
  %v11520 = vmax.f32 %v11332, 0.0
  %v11521 = vmax.f32 %v11334, 0.0
  %v11522 = vmax.f32 %v10950, 0.0
  %v11523 = vmax.f32 %v10952, 0.0
  %v11524 = vmax.f32 %v11143, 0.0
  %v11525 = vmax.f32 %v11145, 0.0
  %v11526 = vmax.f32 %v11336, 0.0
  %v11527 = vmax.f32 %v11338, 0.0
  %v11528 = vmax.f32 %v10956, 0.0
  %v11529 = vmax.f32 %v10958, 0.0
  %v11530 = vmax.f32 %v11149, 0.0
  %v11531 = vmax.f32 %v11151, 0.0
  %v11532 = vmax.f32 %v11342, 0.0
  %v11533 = vmax.f32 %v11344, 0.0
  %v11534 = vmax.f32 %v10960, 0.0
  %v11535 = vmax.f32 %v10962, 0.0
  %v11536 = vmax.f32 %v11153, 0.0
  %v11537 = vmax.f32 %v11155, 0.0
  %v11538 = vmax.f32 %v11346, 0.0
  %v11539 = vmax.f32 %v11348, 0.0
  %v11540 = vmax.f32 %v10966, 0.0
  %v11541 = vmax.f32 %v10968, 0.0
  %v11542 = vmax.f32 %v11159, 0.0
  %v11543 = vmax.f32 %v11161, 0.0
  %v11544 = vmax.f32 %v11352, 0.0
  %v11545 = vmax.f32 %v11354, 0.0
  %v11546 = vmax.f32 %v10970, 0.0
  %v11547 = vmax.f32 %v10972, 0.0
  %v11548 = vmax.f32 %v11163, 0.0
  %v11549 = vmax.f32 %v11165, 0.0
  %v11550 = vmax.f32 %v11356, 0.0
  %v11551 = vmax.f32 %v11358, 0.0
  %v11552 = vpack.c.bf16 %v11366, %v11360
  %v11553 = vpack.c.bf16 %v11367, %v11361
  %v11554 = vpack.c.bf16 %v11368, %v11362
  %v11555 = vpack.c.bf16 %v11369, %v11363
  %v11556 = vpack.c.bf16 %v11370, %v11364
  %v11557 = vpack.c.bf16 %v11371, %v11365
  %v11558 = vpack.c.bf16 %v11378, %v11372
  %v11559 = vpack.c.bf16 %v11379, %v11373
  %v11560 = vpack.c.bf16 %v11380, %v11374
  %v11561 = vpack.c.bf16 %v11381, %v11375
  %v11562 = vpack.c.bf16 %v11382, %v11376
  %v11563 = vpack.c.bf16 %v11383, %v11377
  %v11564 = vpack.c.bf16 %v11390, %v11384
  %v11565 = vpack.c.bf16 %v11391, %v11385
  %v11566 = vpack.c.bf16 %v11392, %v11386
  %v11567 = vpack.c.bf16 %v11393, %v11387
  %v11568 = vpack.c.bf16 %v11394, %v11388
  %v11569 = vpack.c.bf16 %v11395, %v11389
  %v11570 = vpack.c.bf16 %v11402, %v11396
  %v11571 = vpack.c.bf16 %v11403, %v11397
  %v11572 = vpack.c.bf16 %v11404, %v11398
  %v11573 = vpack.c.bf16 %v11405, %v11399
  %v11574 = vpack.c.bf16 %v11406, %v11400
  %v11575 = vpack.c.bf16 %v11407, %v11401
  %v11576 = vpack.c.bf16 %v11414, %v11408
  %v11577 = vpack.c.bf16 %v11415, %v11409
  %v11578 = vpack.c.bf16 %v11416, %v11410
  %v11579 = vpack.c.bf16 %v11417, %v11411
  %v11580 = vpack.c.bf16 %v11418, %v11412
  %v11581 = vpack.c.bf16 %v11419, %v11413
  %v11582 = vpack.c.bf16 %v11426, %v11420
  %v11583 = vpack.c.bf16 %v11427, %v11421
  %v11584 = vpack.c.bf16 %v11428, %v11422
  %v11585 = vpack.c.bf16 %v11429, %v11423
  %v11586 = vpack.c.bf16 %v11430, %v11424
  %v11587 = vpack.c.bf16 %v11431, %v11425
  %v11588 = vpack.c.bf16 %v11438, %v11432
  %v11589 = vpack.c.bf16 %v11439, %v11433
  %v11590 = vpack.c.bf16 %v11440, %v11434
  %v11591 = vpack.c.bf16 %v11441, %v11435
  %v11592 = vpack.c.bf16 %v11442, %v11436
  %v11593 = vpack.c.bf16 %v11443, %v11437
  %v11594 = vpack.c.bf16 %v11450, %v11444
  %v11595 = vpack.c.bf16 %v11451, %v11445
  %v11596 = vpack.c.bf16 %v11452, %v11446
  %v11597 = vpack.c.bf16 %v11453, %v11447
  %v11598 = vpack.c.bf16 %v11454, %v11448
  %v11599 = vpack.c.bf16 %v11455, %v11449
  %v11600 = vpack.c.bf16 %v11462, %v11456
  %v11601 = vpack.c.bf16 %v11463, %v11457
  %v11602 = vpack.c.bf16 %v11464, %v11458
  %v11603 = vpack.c.bf16 %v11465, %v11459
  %v11604 = vpack.c.bf16 %v11466, %v11460
  %v11605 = vpack.c.bf16 %v11467, %v11461
  %v11606 = vpack.c.bf16 %v11474, %v11468
  %v11607 = vpack.c.bf16 %v11475, %v11469
  %v11608 = vpack.c.bf16 %v11476, %v11470
  %v11609 = vpack.c.bf16 %v11477, %v11471
  %v11610 = vpack.c.bf16 %v11478, %v11472
  %v11611 = vpack.c.bf16 %v11479, %v11473
  %v11612 = vpack.c.bf16 %v11486, %v11480
  %v11613 = vpack.c.bf16 %v11487, %v11481
  %v11614 = vpack.c.bf16 %v11488, %v11482
  %v11615 = vpack.c.bf16 %v11489, %v11483
  %v11616 = vpack.c.bf16 %v11490, %v11484
  %v11617 = vpack.c.bf16 %v11491, %v11485
  %v11618 = vpack.c.bf16 %v11498, %v11492
  %v11619 = vpack.c.bf16 %v11499, %v11493
  %v11620 = vpack.c.bf16 %v11500, %v11494
  %v11621 = vpack.c.bf16 %v11501, %v11495
  %v11622 = vpack.c.bf16 %v11502, %v11496
  %v11623 = vpack.c.bf16 %v11503, %v11497
  %v11624 = vpack.c.bf16 %v11510, %v11504
  %v11625 = vpack.c.bf16 %v11511, %v11505
  %v11626 = vpack.c.bf16 %v11512, %v11506
  %v11627 = vpack.c.bf16 %v11513, %v11507
  %v11628 = vpack.c.bf16 %v11514, %v11508
  %v11629 = vpack.c.bf16 %v11515, %v11509
  %v11630 = vpack.c.bf16 %v11522, %v11516
  %v11631 = vpack.c.bf16 %v11523, %v11517
  %v11632 = vpack.c.bf16 %v11524, %v11518
  %v11633 = vpack.c.bf16 %v11525, %v11519
  %v11634 = vpack.c.bf16 %v11526, %v11520
  %v11635 = vpack.c.bf16 %v11527, %v11521
  %v11636 = vpack.c.bf16 %v11534, %v11528
  %v11637 = vpack.c.bf16 %v11535, %v11529
  %v11638 = vpack.c.bf16 %v11536, %v11530
  %v11639 = vpack.c.bf16 %v11537, %v11531
  %v11640 = vpack.c.bf16 %v11538, %v11532
  %v11641 = vpack.c.bf16 %v11539, %v11533
  %v11642 = vpack.c.bf16 %v11546, %v11540
  %v11643 = vpack.c.bf16 %v11547, %v11541
  %v11644 = vpack.c.bf16 %v11548, %v11542
  %v11645 = vpack.c.bf16 %v11549, %v11543
  %v11646 = vpack.c.bf16 %v11550, %v11544
  %v11647 = vpack.c.bf16 %v11551, %v11545
  %v11648 = vld [vmem:[%s10] sm:$0xff]
  %v11649 = vld [vmem:[%s10 + $0x8] sm:$0xff]
  %v11650 = vld [vmem:[%s10 + $0x10] sm:$0xff]
  %v11651 = vld [vmem:[%s10 + $0x18] sm:$0xff]
  %v11652 = vld [vmem:[%s10 + $0x20] sm:$0xff]
  %v11653 = vld [vmem:[%s10 + $0x28] sm:$0xff]
  %v11654 = vld [vmem:[%s10 + $0x30] sm:$0xff]
  %v11655 = vld [vmem:[%s10 + $0x38] sm:$0xff]
  %v11656 = vld [vmem:[%s10 + $0x40] sm:$0xff]
  %v11657 = vld [vmem:[%s10 + $0x48] sm:$0xff]
  %v11658 = vld [vmem:[%s10 + $0x50] sm:$0xff]
  %v11659 = vld [vmem:[%s10 + $0x58] sm:$0xff]
  %v11660 = vld [vmem:[%s10 + $0x60] sm:$0xff]
  %v11661 = vld [vmem:[%s10 + $0x68] sm:$0xff]
  %v11662 = vld [vmem:[%s10 + $0x70] sm:$0xff]
  %v11663 = vld [vmem:[%s10 + $0x78] sm:$0xff]
  %v11664 = vld [vmem:[%s10 + $0x80] sm:$0xff]
  %v11665 = vld [vmem:[%s10 + $0x88] sm:$0xff]
  %v11666 = vld [vmem:[%s10 + $0x90] sm:$0xff]
  %v11667 = vld [vmem:[%s10 + $0x98] sm:$0xff]
  %v11668 = vld [vmem:[%s10 + $0xa0] sm:$0xff]
  %v11669 = vld [vmem:[%s10 + $0xa8] sm:$0xff]
  %v11670 = vld [vmem:[%s10 + $0xb0] sm:$0xff]
  %v11671 = vld [vmem:[%s10 + $0xb8] sm:$0xff]
  %v11672 = vld [vmem:[%s10 + $0xc0] sm:$0xff]
  %v11673 = vld [vmem:[%s10 + $0xc8] sm:$0xff]
  %v11674 = vld [vmem:[%s10 + $0xd0] sm:$0xff]
  %v11675 = vld [vmem:[%s10 + $0xd8] sm:$0xff]
  %v11676 = vld [vmem:[%s10 + $0xe0] sm:$0xff]
  %v11677 = vld [vmem:[%s10 + $0xe8] sm:$0xff]
  %v11678 = vld [vmem:[%s10 + $0xf0] sm:$0xff]
  %v11679 = vld [vmem:[%s10 + $0xf8] sm:$0xff]
  %v11680 = vld [vmem:[%s10 + $0x100] sm:$0xff]
  %v11681 = vld [vmem:[%s10 + $0x108] sm:$0xff]
  %v11682 = vld [vmem:[%s10 + $0x110] sm:$0xff]
  %v11683 = vld [vmem:[%s10 + $0x118] sm:$0xff]
  %v11684 = vld [vmem:[%s10 + $0x120] sm:$0xff]
  %v11685 = vld [vmem:[%s10 + $0x128] sm:$0xff]
  %v11686 = vld [vmem:[%s10 + $0x130] sm:$0xff]
  %v11687 = vld [vmem:[%s10 + $0x138] sm:$0xff]
  %v11688 = vld [vmem:[%s10 + $0x140] sm:$0xff]
  %v11689 = vld [vmem:[%s10 + $0x148] sm:$0xff]
  %v11690 = vld [vmem:[%s10 + $0x150] sm:$0xff]
  %v11691 = vld [vmem:[%s10 + $0x158] sm:$0xff]
  %v11692 = vld [vmem:[%s10 + $0x160] sm:$0xff]
  %v11693 = vld [vmem:[%s10 + $0x168] sm:$0xff]
  %v11694 = vld [vmem:[%s10 + $0x170] sm:$0xff]
  %v11695 = vld [vmem:[%s10 + $0x178] sm:$0xff]
  %v11696 = vld [vmem:[%s10 + $0x180] sm:$0xff]
  %v11697 = vld [vmem:[%s10 + $0x188] sm:$0xff]
  %v11698 = vld [vmem:[%s10 + $0x190] sm:$0xff]
  %v11699 = vld [vmem:[%s10 + $0x198] sm:$0xff]
  %v11700 = vld [vmem:[%s10 + $0x1a0] sm:$0xff]
  %v11701 = vld [vmem:[%s10 + $0x1a8] sm:$0xff]
  %v11702 = vld [vmem:[%s10 + $0x1b0] sm:$0xff]
  %v11703 = vld [vmem:[%s10 + $0x1b8] sm:$0xff]
  %v11704 = vld [vmem:[%s10 + $0x1c0] sm:$0xff]
  %v11705 = vld [vmem:[%s10 + $0x1c8] sm:$0xff]
  %v11706 = vld [vmem:[%s10 + $0x1d0] sm:$0xff]
  %v11707 = vld [vmem:[%s10 + $0x1d8] sm:$0xff]
  %v11708 = vld [vmem:[%s10 + $0x1e0] sm:$0xff]
  %v11709 = vld [vmem:[%s10 + $0x1e8] sm:$0xff]
  %v11710 = vld [vmem:[%s10 + $0x1f0] sm:$0xff]
  %v11711 = vld [vmem:[%s10 + $0x1f8] sm:$0xff]
  %v11712 = vld [vmem:[%s10 + $0x200] sm:$0xff]
  %v11713 = vld [vmem:[%s10 + $0x208] sm:$0xff]
  %v11714 = vld [vmem:[%s10 + $0x210] sm:$0xff]
  %v11715 = vld [vmem:[%s10 + $0x218] sm:$0xff]
  %v11716 = vld [vmem:[%s10 + $0x220] sm:$0xff]
  %v11717 = vld [vmem:[%s10 + $0x228] sm:$0xff]
  %v11718 = vld [vmem:[%s10 + $0x230] sm:$0xff]
  %v11719 = vld [vmem:[%s10 + $0x238] sm:$0xff]
  %v11720 = vld [vmem:[%s10 + $0x240] sm:$0xff]
  %v11721 = vld [vmem:[%s10 + $0x248] sm:$0xff]
  %v11722 = vld [vmem:[%s10 + $0x250] sm:$0xff]
  %v11723 = vld [vmem:[%s10 + $0x258] sm:$0xff]
  %v11724 = vld [vmem:[%s10 + $0x260] sm:$0xff]
  %v11725 = vld [vmem:[%s10 + $0x268] sm:$0xff]
  %v11726 = vld [vmem:[%s10 + $0x270] sm:$0xff]
  %v11727 = vld [vmem:[%s10 + $0x278] sm:$0xff]
  %v11728 = vld [vmem:[%s10 + $0x280] sm:$0xff]
  %v11729 = vld [vmem:[%s10 + $0x288] sm:$0xff]
  %v11730 = vld [vmem:[%s10 + $0x290] sm:$0xff]
  %v11731 = vld [vmem:[%s10 + $0x298] sm:$0xff]
  %v11732 = vld [vmem:[%s10 + $0x2a0] sm:$0xff]
  %v11733 = vld [vmem:[%s10 + $0x2a8] sm:$0xff]
  %v11734 = vld [vmem:[%s10 + $0x2b0] sm:$0xff]
  %v11735 = vld [vmem:[%s10 + $0x2b8] sm:$0xff]
  %v11736 = vld [vmem:[%s10 + $0x2c0] sm:$0xff]
  %v11737 = vld [vmem:[%s10 + $0x2c8] sm:$0xff]
  %v11738 = vld [vmem:[%s10 + $0x2d0] sm:$0xff]
  %v11739 = vld [vmem:[%s10 + $0x2d8] sm:$0xff]
  %v11740 = vld [vmem:[%s10 + $0x2e0] sm:$0xff]
  %v11741 = vld [vmem:[%s10 + $0x2e8] sm:$0xff]
  %v11742 = vld [vmem:[%s10 + $0x2f0] sm:$0xff]
  %v11743 = vld [vmem:[%s10 + $0x2f8] sm:$0xff]
  %v11744 = vld [vmem:[%s11] sm:$0x3]
  %v11746 = vlaneseq
  %v11747 = vshrl.u32 %v11746, 7
  %v11748 = vsub.s32 0, %v11747
  %v11749 = vrot.slane %v11744, %v11748
  %v11750 = vlaneseq
  %v11751 = vshrl.u32 %v11750, 7
  %v11752 = vsub.s32 1, %v11751
  %v11753 = vrot.slane %v11744, %v11752
  %v11852 = vunpack.c.l.b16 %v11648
  %v11853 = vunpack.c.h.b16 %v11648
  %v11854 = vunpack.c.l.b16 %v11649
  %v11855 = vunpack.c.h.b16 %v11649
  %v11856 = vunpack.c.l.b16 %v11650
  %v11857 = vunpack.c.h.b16 %v11650
  %v11858 = vunpack.c.l.b16 %v11651
  %v11859 = vunpack.c.h.b16 %v11651
  %v11860 = vunpack.c.l.b16 %v11652
  %v11861 = vunpack.c.h.b16 %v11652
  %v11862 = vunpack.c.l.b16 %v11653
  %v11863 = vunpack.c.h.b16 %v11653
  %v11864 = vunpack.c.l.b16 %v11654
  %v11865 = vunpack.c.h.b16 %v11654
  %v11866 = vunpack.c.l.b16 %v11655
  %v11867 = vunpack.c.h.b16 %v11655
  %v11868 = vunpack.c.l.b16 %v11656
  %v11869 = vunpack.c.h.b16 %v11656
  %v11870 = vunpack.c.l.b16 %v11657
  %v11871 = vunpack.c.h.b16 %v11657
  %v11872 = vunpack.c.l.b16 %v11658
  %v11873 = vunpack.c.h.b16 %v11658
  %v11874 = vunpack.c.l.b16 %v11659
  %v11875 = vunpack.c.h.b16 %v11659
  %v11876 = vunpack.c.l.b16 %v11660
  %v11877 = vunpack.c.h.b16 %v11660
  %v11878 = vunpack.c.l.b16 %v11661
  %v11879 = vunpack.c.h.b16 %v11661
  %v11880 = vunpack.c.l.b16 %v11662
  %v11881 = vunpack.c.h.b16 %v11662
  %v11882 = vunpack.c.l.b16 %v11663
  %v11883 = vunpack.c.h.b16 %v11663
  %v11884 = vunpack.c.l.b16 %v11664
  %v11885 = vunpack.c.h.b16 %v11664
  %v11886 = vunpack.c.l.b16 %v11665
  %v11887 = vunpack.c.h.b16 %v11665
  %v11888 = vunpack.c.l.b16 %v11666
  %v11889 = vunpack.c.h.b16 %v11666
  %v11890 = vunpack.c.l.b16 %v11667
  %v11891 = vunpack.c.h.b16 %v11667
  %v11892 = vunpack.c.l.b16 %v11668
  %v11893 = vunpack.c.h.b16 %v11668
  %v11894 = vunpack.c.l.b16 %v11669
  %v11895 = vunpack.c.h.b16 %v11669
  %v11896 = vunpack.c.l.b16 %v11670
  %v11897 = vunpack.c.h.b16 %v11670
  %v11898 = vunpack.c.l.b16 %v11671
  %v11899 = vunpack.c.h.b16 %v11671
  %v11900 = vunpack.c.l.b16 %v11672
  %v11901 = vunpack.c.h.b16 %v11672
  %v11902 = vunpack.c.l.b16 %v11673
  %v11903 = vunpack.c.h.b16 %v11673
  %v11904 = vunpack.c.l.b16 %v11674
  %v11905 = vunpack.c.h.b16 %v11674
  %v11906 = vunpack.c.l.b16 %v11675
  %v11907 = vunpack.c.h.b16 %v11675
  %v11908 = vunpack.c.l.b16 %v11676
  %v11909 = vunpack.c.h.b16 %v11676
  %v11910 = vunpack.c.l.b16 %v11677
  %v11911 = vunpack.c.h.b16 %v11677
  %v11912 = vunpack.c.l.b16 %v11678
  %v11913 = vunpack.c.h.b16 %v11678
  %v11914 = vunpack.c.l.b16 %v11679
  %v11915 = vunpack.c.h.b16 %v11679
  %v11916 = vunpack.c.l.b16 %v11680
  %v11917 = vunpack.c.h.b16 %v11680
  %v11918 = vunpack.c.l.b16 %v11681
  %v11919 = vunpack.c.h.b16 %v11681
  %v11920 = vunpack.c.l.b16 %v11682
  %v11921 = vunpack.c.h.b16 %v11682
  %v11922 = vunpack.c.l.b16 %v11683
  %v11923 = vunpack.c.h.b16 %v11683
  %v11924 = vunpack.c.l.b16 %v11684
  %v11925 = vunpack.c.h.b16 %v11684
  %v11926 = vunpack.c.l.b16 %v11685
  %v11927 = vunpack.c.h.b16 %v11685
  %v11928 = vunpack.c.l.b16 %v11686
  %v11929 = vunpack.c.h.b16 %v11686
  %v11930 = vunpack.c.l.b16 %v11687
  %v11931 = vunpack.c.h.b16 %v11687
  %v11932 = vunpack.c.l.b16 %v11688
  %v11933 = vunpack.c.h.b16 %v11688
  %v11934 = vunpack.c.l.b16 %v11689
  %v11935 = vunpack.c.h.b16 %v11689
  %v11936 = vunpack.c.l.b16 %v11690
  %v11937 = vunpack.c.h.b16 %v11690
  %v11938 = vunpack.c.l.b16 %v11691
  %v11939 = vunpack.c.h.b16 %v11691
  %v11940 = vunpack.c.l.b16 %v11692
  %v11941 = vunpack.c.h.b16 %v11692
  %v11942 = vunpack.c.l.b16 %v11693
  %v11943 = vunpack.c.h.b16 %v11693
  %v11944 = vunpack.c.l.b16 %v11694
  %v11945 = vunpack.c.h.b16 %v11694
  %v11946 = vunpack.c.l.b16 %v11695
  %v11947 = vunpack.c.h.b16 %v11695
  %v11948 = vunpack.c.l.b16 %v11696
  %v11949 = vunpack.c.h.b16 %v11696
  %v11950 = vunpack.c.l.b16 %v11697
  %v11951 = vunpack.c.h.b16 %v11697
  %v11952 = vunpack.c.l.b16 %v11698
  %v11953 = vunpack.c.h.b16 %v11698
  %v11954 = vunpack.c.l.b16 %v11699
  %v11955 = vunpack.c.h.b16 %v11699
  %v11956 = vunpack.c.l.b16 %v11700
  %v11957 = vunpack.c.h.b16 %v11700
  %v11958 = vunpack.c.l.b16 %v11701
  %v11959 = vunpack.c.h.b16 %v11701
  %v11960 = vunpack.c.l.b16 %v11702
  %v11961 = vunpack.c.h.b16 %v11702
  %v11962 = vunpack.c.l.b16 %v11703
  %v11963 = vunpack.c.h.b16 %v11703
  %v11964 = vunpack.c.l.b16 %v11704
  %v11965 = vunpack.c.h.b16 %v11704
  %v11966 = vunpack.c.l.b16 %v11705
  %v11967 = vunpack.c.h.b16 %v11705
  %v11968 = vunpack.c.l.b16 %v11706
  %v11969 = vunpack.c.h.b16 %v11706
  %v11970 = vunpack.c.l.b16 %v11707
  %v11971 = vunpack.c.h.b16 %v11707
  %v11972 = vunpack.c.l.b16 %v11708
  %v11973 = vunpack.c.h.b16 %v11708
  %v11974 = vunpack.c.l.b16 %v11709
  %v11975 = vunpack.c.h.b16 %v11709
  %v11976 = vunpack.c.l.b16 %v11710
  %v11977 = vunpack.c.h.b16 %v11710
  %v11978 = vunpack.c.l.b16 %v11711
  %v11979 = vunpack.c.h.b16 %v11711
  %v11980 = vunpack.c.l.b16 %v11712
  %v11981 = vunpack.c.h.b16 %v11712
  %v11982 = vunpack.c.l.b16 %v11713
  %v11983 = vunpack.c.h.b16 %v11713
  %v11984 = vunpack.c.l.b16 %v11714
  %v11985 = vunpack.c.h.b16 %v11714
  %v11986 = vunpack.c.l.b16 %v11715
  %v11987 = vunpack.c.h.b16 %v11715
  %v11988 = vunpack.c.l.b16 %v11716
  %v11989 = vunpack.c.h.b16 %v11716
  %v11990 = vunpack.c.l.b16 %v11717
  %v11991 = vunpack.c.h.b16 %v11717
  %v11992 = vunpack.c.l.b16 %v11718
  %v11993 = vunpack.c.h.b16 %v11718
  %v11994 = vunpack.c.l.b16 %v11719
  %v11995 = vunpack.c.h.b16 %v11719
  %v11996 = vunpack.c.l.b16 %v11720
  %v11997 = vunpack.c.h.b16 %v11720
  %v11998 = vunpack.c.l.b16 %v11721
  %v11999 = vunpack.c.h.b16 %v11721
  %v12000 = vunpack.c.l.b16 %v11722
  %v12001 = vunpack.c.h.b16 %v11722
  %v12002 = vunpack.c.l.b16 %v11723
  %v12003 = vunpack.c.h.b16 %v11723
  %v12004 = vunpack.c.l.b16 %v11724
  %v12005 = vunpack.c.h.b16 %v11724
  %v12006 = vunpack.c.l.b16 %v11725
  %v12007 = vunpack.c.h.b16 %v11725
  %v12008 = vunpack.c.l.b16 %v11726
  %v12009 = vunpack.c.h.b16 %v11726
  %v12010 = vunpack.c.l.b16 %v11727
  %v12011 = vunpack.c.h.b16 %v11727
  %v12012 = vunpack.c.l.b16 %v11728
  %v12013 = vunpack.c.h.b16 %v11728
  %v12014 = vunpack.c.l.b16 %v11729
  %v12015 = vunpack.c.h.b16 %v11729
  %v12016 = vunpack.c.l.b16 %v11730
  %v12017 = vunpack.c.h.b16 %v11730
  %v12018 = vunpack.c.l.b16 %v11731
  %v12019 = vunpack.c.h.b16 %v11731
  %v12020 = vunpack.c.l.b16 %v11732
  %v12021 = vunpack.c.h.b16 %v11732
  %v12022 = vunpack.c.l.b16 %v11733
  %v12023 = vunpack.c.h.b16 %v11733
  %v12024 = vunpack.c.l.b16 %v11734
  %v12025 = vunpack.c.h.b16 %v11734
  %v12026 = vunpack.c.l.b16 %v11735
  %v12027 = vunpack.c.h.b16 %v11735
  %v12028 = vunpack.c.l.b16 %v11736
  %v12029 = vunpack.c.h.b16 %v11736
  %v12030 = vunpack.c.l.b16 %v11737
  %v12031 = vunpack.c.h.b16 %v11737
  %v12032 = vunpack.c.l.b16 %v11738
  %v12033 = vunpack.c.h.b16 %v11738
  %v12034 = vunpack.c.l.b16 %v11739
  %v12035 = vunpack.c.h.b16 %v11739
  %v12036 = vunpack.c.l.b16 %v11740
  %v12037 = vunpack.c.h.b16 %v11740
  %v12038 = vunpack.c.l.b16 %v11741
  %v12039 = vunpack.c.h.b16 %v11741
  %v12040 = vunpack.c.l.b16 %v11742
  %v12041 = vunpack.c.h.b16 %v11742
  %v12042 = vunpack.c.l.b16 %v11743
  %v12043 = vunpack.c.h.b16 %v11743
  %v12044 = vpack.c.b16 %v11854, %v11852
  %v12045 = vpack.c.b16 %v11855, %v11853
  %v12046 = vpack.c.b16 %v11858, %v11856
  %v12047 = vpack.c.b16 %v11859, %v11857
  %v12048 = vpack.c.b16 %v11862, %v11860
  %v12049 = vpack.c.b16 %v11863, %v11861
  %v12050 = vpack.c.b16 %v11866, %v11864
  %v12051 = vpack.c.b16 %v11867, %v11865
  %v12052 = vpack.c.b16 %v11870, %v11868
  %v12053 = vpack.c.b16 %v11871, %v11869
  %v12054 = vpack.c.b16 %v11874, %v11872
  %v12055 = vpack.c.b16 %v11875, %v11873
  %v12056 = vpack.c.b16 %v11878, %v11876
  %v12057 = vpack.c.b16 %v11879, %v11877
  %v12058 = vpack.c.b16 %v11882, %v11880
  %v12059 = vpack.c.b16 %v11883, %v11881
  %v12060 = vpack.c.b16 %v11886, %v11884
  %v12061 = vpack.c.b16 %v11887, %v11885
  %v12062 = vpack.c.b16 %v11890, %v11888
  %v12063 = vpack.c.b16 %v11891, %v11889
  %v12064 = vpack.c.b16 %v11894, %v11892
  %v12065 = vpack.c.b16 %v11895, %v11893
  %v12066 = vpack.c.b16 %v11898, %v11896
  %v12067 = vpack.c.b16 %v11899, %v11897
  %v12068 = vpack.c.b16 %v11902, %v11900
  %v12069 = vpack.c.b16 %v11903, %v11901
  %v12070 = vpack.c.b16 %v11906, %v11904
  %v12071 = vpack.c.b16 %v11907, %v11905
  %v12072 = vpack.c.b16 %v11910, %v11908
  %v12073 = vpack.c.b16 %v11911, %v11909
  %v12074 = vpack.c.b16 %v11914, %v11912
  %v12075 = vpack.c.b16 %v11915, %v11913
  %v12076 = vpack.c.b16 %v11918, %v11916
  %v12077 = vpack.c.b16 %v11919, %v11917
  %v12078 = vpack.c.b16 %v11922, %v11920
  %v12079 = vpack.c.b16 %v11923, %v11921
  %v12080 = vpack.c.b16 %v11926, %v11924
  %v12081 = vpack.c.b16 %v11927, %v11925
  %v12082 = vpack.c.b16 %v11930, %v11928
  %v12083 = vpack.c.b16 %v11931, %v11929
  %v12084 = vpack.c.b16 %v11934, %v11932
  %v12085 = vpack.c.b16 %v11935, %v11933
  %v12086 = vpack.c.b16 %v11938, %v11936
  %v12087 = vpack.c.b16 %v11939, %v11937
  %v12088 = vpack.c.b16 %v11942, %v11940
  %v12089 = vpack.c.b16 %v11943, %v11941
  %v12090 = vpack.c.b16 %v11946, %v11944
  %v12091 = vpack.c.b16 %v11947, %v11945
  %v12092 = vpack.c.b16 %v11950, %v11948
  %v12093 = vpack.c.b16 %v11951, %v11949
  %v12094 = vpack.c.b16 %v11954, %v11952
  %v12095 = vpack.c.b16 %v11955, %v11953
  %v12096 = vpack.c.b16 %v11958, %v11956
  %v12097 = vpack.c.b16 %v11959, %v11957
  %v12098 = vpack.c.b16 %v11962, %v11960
  %v12099 = vpack.c.b16 %v11963, %v11961
  %v12100 = vpack.c.b16 %v11966, %v11964
  %v12101 = vpack.c.b16 %v11967, %v11965
  %v12102 = vpack.c.b16 %v11970, %v11968
  %v12103 = vpack.c.b16 %v11971, %v11969
  %v12104 = vpack.c.b16 %v11974, %v11972
  %v12105 = vpack.c.b16 %v11975, %v11973
  %v12106 = vpack.c.b16 %v11978, %v11976
  %v12107 = vpack.c.b16 %v11979, %v11977
  %v12108 = vpack.c.b16 %v11982, %v11980
  %v12109 = vpack.c.b16 %v11983, %v11981
  %v12110 = vpack.c.b16 %v11986, %v11984
  %v12111 = vpack.c.b16 %v11987, %v11985
  %v12112 = vpack.c.b16 %v11990, %v11988
  %v12113 = vpack.c.b16 %v11991, %v11989
  %v12114 = vpack.c.b16 %v11994, %v11992
  %v12115 = vpack.c.b16 %v11995, %v11993
  %v12116 = vpack.c.b16 %v11998, %v11996
  %v12117 = vpack.c.b16 %v11999, %v11997
  %v12118 = vpack.c.b16 %v12002, %v12000
  %v12119 = vpack.c.b16 %v12003, %v12001
  %v12120 = vpack.c.b16 %v12006, %v12004
  %v12121 = vpack.c.b16 %v12007, %v12005
  %v12122 = vpack.c.b16 %v12010, %v12008
  %v12123 = vpack.c.b16 %v12011, %v12009
  %v12124 = vpack.c.b16 %v12014, %v12012
  %v12125 = vpack.c.b16 %v12015, %v12013
  %v12126 = vpack.c.b16 %v12018, %v12016
  %v12127 = vpack.c.b16 %v12019, %v12017
  %v12128 = vpack.c.b16 %v12022, %v12020
  %v12129 = vpack.c.b16 %v12023, %v12021
  %v12130 = vpack.c.b16 %v12026, %v12024
  %v12131 = vpack.c.b16 %v12027, %v12025
  %v12132 = vpack.c.b16 %v12030, %v12028
  %v12133 = vpack.c.b16 %v12031, %v12029
  %v12134 = vpack.c.b16 %v12034, %v12032
  %v12135 = vpack.c.b16 %v12035, %v12033
  %v12136 = vpack.c.b16 %v12038, %v12036
  %v12137 = vpack.c.b16 %v12039, %v12037
  %v12138 = vpack.c.b16 %v12042, %v12040
  %v12139 = vpack.c.b16 %v12043, %v12041
  %12236 = vmatprep.subr.bf16.mxu0 %v12059
  %12237 = vmatpush1.bf16.msra.mxu0 %v12058
  %12238 = vmatprep.subr.bf16.mxu0 %v12057
  %12239 = vmatpush1.bf16.msra.mxu0 %v12056
  %12240 = vmatprep.subr.bf16.mxu0 %v12055
  %12241 = vmatpush1.bf16.msra.mxu0 %v12054
  %12242 = vmatprep.subr.bf16.mxu0 %v12053
  %12243 = vmatpush1.bf16.msra.mxu0 %v12052
  %12244 = vmatprep.subr.bf16.mxu0 %v12051
  %12245 = vmatpush1.bf16.msra.mxu0 %v12050
  %12246 = vmatprep.subr.bf16.mxu0 %v12049
  %12247 = vmatpush1.bf16.msra.mxu0 %v12048
  %12248 = vmatprep.subr.bf16.mxu0 %v12047
  %12249 = vmatpush1.bf16.msra.mxu0 %v12046
  %12250 = vmatprep.subr.bf16.mxu0 %v12045
  %12251 = vmatpush1.bf16.msra.mxu0 %v12044
  %12252 = vmatprep.subr.bf16.mxu0 %v12075
  %12253 = vmatpush2.bf16.msra.mxu0 %v12074
  %12254 = vmatprep.subr.bf16.mxu0 %v12073
  %12255 = vmatpush2.bf16.msra.mxu0 %v12072
  %12256 = vmatprep.subr.bf16.mxu0 %v12071
  %12257 = vmatpush2.bf16.msra.mxu0 %v12070
  %12258 = vmatprep.subr.bf16.mxu0 %v12069
  %12259 = vmatpush2.bf16.msra.mxu0 %v12068
  %12260 = vmatprep.subr.bf16.mxu0 %v12067
  %12261 = vmatpush2.bf16.msra.mxu0 %v12066
  %12262 = vmatprep.subr.bf16.mxu0 %v12065
  %12263 = vmatpush2.bf16.msra.mxu0 %v12064
  %12264 = vmatprep.subr.bf16.mxu0 %v12063
  %12265 = vmatpush2.bf16.msra.mxu0 %v12062
  %12266 = vmatprep.subr.bf16.mxu0 %v12061
  %12267 = vmatpush2.bf16.msra.mxu0 %v12060
  %12268 = vmatprep.mubr.bf16.mxu0 %v11553
  %12269 = vmatmul.mubr.bf16.gmra.mxu0 %v11552
  %v12270 = vpop.f32.mrf.mxu0
  %v12271 = vadd.f32 %v11749, %v12270
  %v12272 = vpop.f32.mrf.mxu0
  %v12273 = vadd.f32 %v11753, %v12272
  %v12274 = vpop.f32.mrf.mxu0
  %v12275 = vadd.f32 %v11749, %v12274
  %v12276 = vpop.f32.mrf.mxu0
  %v12277 = vadd.f32 %v11753, %v12276
  %12278 = vmatprep.mubr.bf16.mxu0 %v11559
  %12279 = vmatmul.mubr.bf16.gmra.mxu0 %v11558
  %v12280 = vpop.f32.mrf.mxu0
  %v12281 = vadd.f32 %v11749, %v12280
  %v12282 = vpop.f32.mrf.mxu0
  %v12283 = vadd.f32 %v11753, %v12282
  %v12284 = vpop.f32.mrf.mxu0
  %v12285 = vadd.f32 %v11749, %v12284
  %v12286 = vpop.f32.mrf.mxu0
  %v12287 = vadd.f32 %v11753, %v12286
  %12288 = vmatprep.mubr.bf16.mxu0 %v11565
  %12289 = vmatmul.mubr.bf16.gmra.mxu0 %v11564
  %v12290 = vpop.f32.mrf.mxu0
  %v12291 = vadd.f32 %v11749, %v12290
  %v12292 = vpop.f32.mrf.mxu0
  %v12293 = vadd.f32 %v11753, %v12292
  %v12294 = vpop.f32.mrf.mxu0
  %v12295 = vadd.f32 %v11749, %v12294
  %v12296 = vpop.f32.mrf.mxu0
  %v12297 = vadd.f32 %v11753, %v12296
  %12298 = vmatprep.mubr.bf16.mxu0 %v11571
  %12299 = vmatmul.mubr.bf16.gmra.mxu0 %v11570
  %v12300 = vpop.f32.mrf.mxu0
  %v12301 = vadd.f32 %v11749, %v12300
  %v12302 = vpop.f32.mrf.mxu0
  %v12303 = vadd.f32 %v11753, %v12302
  %v12304 = vpop.f32.mrf.mxu0
  %v12305 = vadd.f32 %v11749, %v12304
  %v12306 = vpop.f32.mrf.mxu0
  %v12307 = vadd.f32 %v11753, %v12306
  %12308 = vmatprep.mubr.bf16.mxu0 %v11577
  %12309 = vmatmul.mubr.bf16.gmra.mxu0 %v11576
  %v12310 = vpop.f32.mrf.mxu0
  %v12311 = vadd.f32 %v11749, %v12310
  %v12312 = vpop.f32.mrf.mxu0
  %v12313 = vadd.f32 %v11753, %v12312
  %v12314 = vpop.f32.mrf.mxu0
  %v12315 = vadd.f32 %v11749, %v12314
  %v12316 = vpop.f32.mrf.mxu0
  %v12317 = vadd.f32 %v11753, %v12316
  %12318 = vmatprep.mubr.bf16.mxu0 %v11583
  %12319 = vmatmul.mubr.bf16.gmra.mxu0 %v11582
  %v12320 = vpop.f32.mrf.mxu0
  %v12321 = vadd.f32 %v11749, %v12320
  %v12322 = vpop.f32.mrf.mxu0
  %v12323 = vadd.f32 %v11753, %v12322
  %v12324 = vpop.f32.mrf.mxu0
  %v12325 = vadd.f32 %v11749, %v12324
  %v12326 = vpop.f32.mrf.mxu0
  %v12327 = vadd.f32 %v11753, %v12326
  %12328 = vmatprep.mubr.bf16.mxu0 %v11589
  %12329 = vmatmul.mubr.bf16.gmra.mxu0 %v11588
  %v12330 = vpop.f32.mrf.mxu0
  %v12331 = vadd.f32 %v11749, %v12330
  %v12332 = vpop.f32.mrf.mxu0
  %v12333 = vadd.f32 %v11753, %v12332
  %v12334 = vpop.f32.mrf.mxu0
  %v12335 = vadd.f32 %v11749, %v12334
  %v12336 = vpop.f32.mrf.mxu0
  %v12337 = vadd.f32 %v11753, %v12336
  %12338 = vmatprep.mubr.bf16.mxu0 %v11595
  %12339 = vmatmul.mubr.bf16.gmra.mxu0 %v11594
  %v12340 = vpop.f32.mrf.mxu0
  %v12341 = vadd.f32 %v11749, %v12340
  %v12342 = vpop.f32.mrf.mxu0
  %v12343 = vadd.f32 %v11753, %v12342
  %v12344 = vpop.f32.mrf.mxu0
  %v12345 = vadd.f32 %v11749, %v12344
  %v12346 = vpop.f32.mrf.mxu0
  %v12347 = vadd.f32 %v11753, %v12346
  %12348 = vmatprep.mubr.bf16.mxu0 %v11601
  %12349 = vmatmul.mubr.bf16.gmra.mxu0 %v11600
  %v12350 = vpop.f32.mrf.mxu0
  %v12351 = vadd.f32 %v11749, %v12350
  %v12352 = vpop.f32.mrf.mxu0
  %v12353 = vadd.f32 %v11753, %v12352
  %v12354 = vpop.f32.mrf.mxu0
  %v12355 = vadd.f32 %v11749, %v12354
  %v12356 = vpop.f32.mrf.mxu0
  %v12357 = vadd.f32 %v11753, %v12356
  %12358 = vmatprep.mubr.bf16.mxu0 %v11607
  %12359 = vmatmul.mubr.bf16.gmra.mxu0 %v11606
  %v12360 = vpop.f32.mrf.mxu0
  %v12361 = vadd.f32 %v11749, %v12360
  %v12362 = vpop.f32.mrf.mxu0
  %v12363 = vadd.f32 %v11753, %v12362
  %v12364 = vpop.f32.mrf.mxu0
  %v12365 = vadd.f32 %v11749, %v12364
  %v12366 = vpop.f32.mrf.mxu0
  %v12367 = vadd.f32 %v11753, %v12366
  %12368 = vmatprep.mubr.bf16.mxu0 %v11613
  %12369 = vmatmul.mubr.bf16.gmra.mxu0 %v11612
  %v12370 = vpop.f32.mrf.mxu0
  %v12371 = vadd.f32 %v11749, %v12370
  %v12372 = vpop.f32.mrf.mxu0
  %v12373 = vadd.f32 %v11753, %v12372
  %v12374 = vpop.f32.mrf.mxu0
  %v12375 = vadd.f32 %v11749, %v12374
  %v12376 = vpop.f32.mrf.mxu0
  %v12377 = vadd.f32 %v11753, %v12376
  %12378 = vmatprep.mubr.bf16.mxu0 %v11619
  %12379 = vmatmul.mubr.bf16.gmra.mxu0 %v11618
  %v12380 = vpop.f32.mrf.mxu0
  %v12381 = vadd.f32 %v11749, %v12380
  %v12382 = vpop.f32.mrf.mxu0
  %v12383 = vadd.f32 %v11753, %v12382
  %v12384 = vpop.f32.mrf.mxu0
  %v12385 = vadd.f32 %v11749, %v12384
  %v12386 = vpop.f32.mrf.mxu0
  %v12387 = vadd.f32 %v11753, %v12386
  %12388 = vmatprep.mubr.bf16.mxu0 %v11625
  %12389 = vmatmul.mubr.bf16.gmra.mxu0 %v11624
  %v12390 = vpop.f32.mrf.mxu0
  %v12391 = vadd.f32 %v11749, %v12390
  %v12392 = vpop.f32.mrf.mxu0
  %v12393 = vadd.f32 %v11753, %v12392
  %v12394 = vpop.f32.mrf.mxu0
  %v12395 = vadd.f32 %v11749, %v12394
  %v12396 = vpop.f32.mrf.mxu0
  %v12397 = vadd.f32 %v11753, %v12396
  %12398 = vmatprep.mubr.bf16.mxu0 %v11631
  %12399 = vmatmul.mubr.bf16.gmra.mxu0 %v11630
  %v12400 = vpop.f32.mrf.mxu0
  %v12401 = vadd.f32 %v11749, %v12400
  %v12402 = vpop.f32.mrf.mxu0
  %v12403 = vadd.f32 %v11753, %v12402
  %v12404 = vpop.f32.mrf.mxu0
  %v12405 = vadd.f32 %v11749, %v12404
  %v12406 = vpop.f32.mrf.mxu0
  %v12407 = vadd.f32 %v11753, %v12406
  %12408 = vmatprep.mubr.bf16.mxu0 %v11637
  %12409 = vmatmul.mubr.bf16.gmra.mxu0 %v11636
  %v12410 = vpop.f32.mrf.mxu0
  %v12411 = vadd.f32 %v11749, %v12410
  %v12412 = vpop.f32.mrf.mxu0
  %v12413 = vadd.f32 %v11753, %v12412
  %v12414 = vpop.f32.mrf.mxu0
  %v12415 = vadd.f32 %v11749, %v12414
  %v12416 = vpop.f32.mrf.mxu0
  %v12417 = vadd.f32 %v11753, %v12416
  %12418 = vmatprep.mubr.bf16.mxu0 %v11643
  %12419 = vmatmul.mubr.bf16.gmra.mxu0 %v11642
  %v12420 = vpop.f32.mrf.mxu0
  %v12421 = vadd.f32 %v11749, %v12420
  %v12422 = vpop.f32.mrf.mxu0
  %v12423 = vadd.f32 %v11753, %v12422
  %v12424 = vpop.f32.mrf.mxu0
  %v12425 = vadd.f32 %v11749, %v12424
  %v12426 = vpop.f32.mrf.mxu0
  %v12427 = vadd.f32 %v11753, %v12426
  %12428 = vdwg.mxu0
  %12429 = vmatprep.subr.bf16.mxu0 %v12091
  %12430 = vmatpush1.bf16.msra.mxu0 %v12090
  %12431 = vmatprep.subr.bf16.mxu0 %v12089
  %12432 = vmatpush1.bf16.msra.mxu0 %v12088
  %12433 = vmatprep.subr.bf16.mxu0 %v12087
  %12434 = vmatpush1.bf16.msra.mxu0 %v12086
  %12435 = vmatprep.subr.bf16.mxu0 %v12085
  %12436 = vmatpush1.bf16.msra.mxu0 %v12084
  %12437 = vmatprep.subr.bf16.mxu0 %v12083
  %12438 = vmatpush1.bf16.msra.mxu0 %v12082
  %12439 = vmatprep.subr.bf16.mxu0 %v12081
  %12440 = vmatpush1.bf16.msra.mxu0 %v12080
  %12441 = vmatprep.subr.bf16.mxu0 %v12079
  %12442 = vmatpush1.bf16.msra.mxu0 %v12078
  %12443 = vmatprep.subr.bf16.mxu0 %v12077
  %12444 = vmatpush1.bf16.msra.mxu0 %v12076
  %12445 = vmatprep.subr.bf16.mxu0 %v12107
  %12446 = vmatpush2.bf16.msra.mxu0 %v12106
  %12447 = vmatprep.subr.bf16.mxu0 %v12105
  %12448 = vmatpush2.bf16.msra.mxu0 %v12104
  %12449 = vmatprep.subr.bf16.mxu0 %v12103
  %12450 = vmatpush2.bf16.msra.mxu0 %v12102
  %12451 = vmatprep.subr.bf16.mxu0 %v12101
  %12452 = vmatpush2.bf16.msra.mxu0 %v12100
  %12453 = vmatprep.subr.bf16.mxu0 %v12099
  %12454 = vmatpush2.bf16.msra.mxu0 %v12098
  %12455 = vmatprep.subr.bf16.mxu0 %v12097
  %12456 = vmatpush2.bf16.msra.mxu0 %v12096
  %12457 = vmatprep.subr.bf16.mxu0 %v12095
  %12458 = vmatpush2.bf16.msra.mxu0 %v12094
  %12459 = vmatprep.subr.bf16.mxu0 %v12093
  %12460 = vmatpush2.bf16.msra.mxu0 %v12092
  %12461 = vmatprep.mubr.bf16.mxu0 %v11555
  %12462 = vmatmul.mubr.bf16.gmra.mxu0 %v11554
  %v12463 = vpop.f32.mrf.mxu0
  %v12464 = vadd.f32 %v12271, %v12463
  %v12465 = vpop.f32.mrf.mxu0
  %v12466 = vadd.f32 %v12273, %v12465
  %v12467 = vpop.f32.mrf.mxu0
  %v12468 = vadd.f32 %v12275, %v12467
  %v12469 = vpop.f32.mrf.mxu0
  %v12470 = vadd.f32 %v12277, %v12469
  %12471 = vmatprep.mubr.bf16.mxu0 %v11561
  %12472 = vmatmul.mubr.bf16.gmra.mxu0 %v11560
  %v12473 = vpop.f32.mrf.mxu0
  %v12474 = vadd.f32 %v12281, %v12473
  %v12475 = vpop.f32.mrf.mxu0
  %v12476 = vadd.f32 %v12283, %v12475
  %v12477 = vpop.f32.mrf.mxu0
  %v12478 = vadd.f32 %v12285, %v12477
  %v12479 = vpop.f32.mrf.mxu0
  %v12480 = vadd.f32 %v12287, %v12479
  %12481 = vmatprep.mubr.bf16.mxu0 %v11567
  %12482 = vmatmul.mubr.bf16.gmra.mxu0 %v11566
  %v12483 = vpop.f32.mrf.mxu0
  %v12484 = vadd.f32 %v12291, %v12483
  %v12485 = vpop.f32.mrf.mxu0
  %v12486 = vadd.f32 %v12293, %v12485
  %v12487 = vpop.f32.mrf.mxu0
  %v12488 = vadd.f32 %v12295, %v12487
  %v12489 = vpop.f32.mrf.mxu0
  %v12490 = vadd.f32 %v12297, %v12489
  %12491 = vmatprep.mubr.bf16.mxu0 %v11573
  %12492 = vmatmul.mubr.bf16.gmra.mxu0 %v11572
  %v12493 = vpop.f32.mrf.mxu0
  %v12494 = vadd.f32 %v12301, %v12493
  %v12495 = vpop.f32.mrf.mxu0
  %v12496 = vadd.f32 %v12303, %v12495
  %v12497 = vpop.f32.mrf.mxu0
  %v12498 = vadd.f32 %v12305, %v12497
  %v12499 = vpop.f32.mrf.mxu0
  %v12500 = vadd.f32 %v12307, %v12499
  %12501 = vmatprep.mubr.bf16.mxu0 %v11579
  %12502 = vmatmul.mubr.bf16.gmra.mxu0 %v11578
  %v12503 = vpop.f32.mrf.mxu0
  %v12504 = vadd.f32 %v12311, %v12503
  %v12505 = vpop.f32.mrf.mxu0
  %v12506 = vadd.f32 %v12313, %v12505
  %v12507 = vpop.f32.mrf.mxu0
  %v12508 = vadd.f32 %v12315, %v12507
  %v12509 = vpop.f32.mrf.mxu0
  %v12510 = vadd.f32 %v12317, %v12509
  %12511 = vmatprep.mubr.bf16.mxu0 %v11585
  %12512 = vmatmul.mubr.bf16.gmra.mxu0 %v11584
  %v12513 = vpop.f32.mrf.mxu0
  %v12514 = vadd.f32 %v12321, %v12513
  %v12515 = vpop.f32.mrf.mxu0
  %v12516 = vadd.f32 %v12323, %v12515
  %v12517 = vpop.f32.mrf.mxu0
  %v12518 = vadd.f32 %v12325, %v12517
  %v12519 = vpop.f32.mrf.mxu0
  %v12520 = vadd.f32 %v12327, %v12519
  %12521 = vmatprep.mubr.bf16.mxu0 %v11591
  %12522 = vmatmul.mubr.bf16.gmra.mxu0 %v11590
  %v12523 = vpop.f32.mrf.mxu0
  %v12524 = vadd.f32 %v12331, %v12523
  %v12525 = vpop.f32.mrf.mxu0
  %v12526 = vadd.f32 %v12333, %v12525
  %v12527 = vpop.f32.mrf.mxu0
  %v12528 = vadd.f32 %v12335, %v12527
  %v12529 = vpop.f32.mrf.mxu0
  %v12530 = vadd.f32 %v12337, %v12529
  %12531 = vmatprep.mubr.bf16.mxu0 %v11597
  %12532 = vmatmul.mubr.bf16.gmra.mxu0 %v11596
  %v12533 = vpop.f32.mrf.mxu0
  %v12534 = vadd.f32 %v12341, %v12533
  %v12535 = vpop.f32.mrf.mxu0
  %v12536 = vadd.f32 %v12343, %v12535
  %v12537 = vpop.f32.mrf.mxu0
  %v12538 = vadd.f32 %v12345, %v12537
  %v12539 = vpop.f32.mrf.mxu0
  %v12540 = vadd.f32 %v12347, %v12539
  %12541 = vmatprep.mubr.bf16.mxu0 %v11603
  %12542 = vmatmul.mubr.bf16.gmra.mxu0 %v11602
  %v12543 = vpop.f32.mrf.mxu0
  %v12544 = vadd.f32 %v12351, %v12543
  %v12545 = vpop.f32.mrf.mxu0
  %v12546 = vadd.f32 %v12353, %v12545
  %v12547 = vpop.f32.mrf.mxu0
  %v12548 = vadd.f32 %v12355, %v12547
  %v12549 = vpop.f32.mrf.mxu0
  %v12550 = vadd.f32 %v12357, %v12549
  %12551 = vmatprep.mubr.bf16.mxu0 %v11609
  %12552 = vmatmul.mubr.bf16.gmra.mxu0 %v11608
  %v12553 = vpop.f32.mrf.mxu0
  %v12554 = vadd.f32 %v12361, %v12553
  %v12555 = vpop.f32.mrf.mxu0
  %v12556 = vadd.f32 %v12363, %v12555
  %v12557 = vpop.f32.mrf.mxu0
  %v12558 = vadd.f32 %v12365, %v12557
  %v12559 = vpop.f32.mrf.mxu0
  %v12560 = vadd.f32 %v12367, %v12559
  %12561 = vmatprep.mubr.bf16.mxu0 %v11615
  %12562 = vmatmul.mubr.bf16.gmra.mxu0 %v11614
  %v12563 = vpop.f32.mrf.mxu0
  %v12564 = vadd.f32 %v12371, %v12563
  %v12565 = vpop.f32.mrf.mxu0
  %v12566 = vadd.f32 %v12373, %v12565
  %v12567 = vpop.f32.mrf.mxu0
  %v12568 = vadd.f32 %v12375, %v12567
  %v12569 = vpop.f32.mrf.mxu0
  %v12570 = vadd.f32 %v12377, %v12569
  %12571 = vmatprep.mubr.bf16.mxu0 %v11621
  %12572 = vmatmul.mubr.bf16.gmra.mxu0 %v11620
  %v12573 = vpop.f32.mrf.mxu0
  %v12574 = vadd.f32 %v12381, %v12573
  %v12575 = vpop.f32.mrf.mxu0
  %v12576 = vadd.f32 %v12383, %v12575
  %v12577 = vpop.f32.mrf.mxu0
  %v12578 = vadd.f32 %v12385, %v12577
  %v12579 = vpop.f32.mrf.mxu0
  %v12580 = vadd.f32 %v12387, %v12579
  %12581 = vmatprep.mubr.bf16.mxu0 %v11627
  %12582 = vmatmul.mubr.bf16.gmra.mxu0 %v11626
  %v12583 = vpop.f32.mrf.mxu0
  %v12584 = vadd.f32 %v12391, %v12583
  %v12585 = vpop.f32.mrf.mxu0
  %v12586 = vadd.f32 %v12393, %v12585
  %v12587 = vpop.f32.mrf.mxu0
  %v12588 = vadd.f32 %v12395, %v12587
  %v12589 = vpop.f32.mrf.mxu0
  %v12590 = vadd.f32 %v12397, %v12589
  %12591 = vmatprep.mubr.bf16.mxu0 %v11633
  %12592 = vmatmul.mubr.bf16.gmra.mxu0 %v11632
  %v12593 = vpop.f32.mrf.mxu0
  %v12594 = vadd.f32 %v12401, %v12593
  %v12595 = vpop.f32.mrf.mxu0
  %v12596 = vadd.f32 %v12403, %v12595
  %v12597 = vpop.f32.mrf.mxu0
  %v12598 = vadd.f32 %v12405, %v12597
  %v12599 = vpop.f32.mrf.mxu0
  %v12600 = vadd.f32 %v12407, %v12599
  %12601 = vmatprep.mubr.bf16.mxu0 %v11639
  %12602 = vmatmul.mubr.bf16.gmra.mxu0 %v11638
  %v12603 = vpop.f32.mrf.mxu0
  %v12604 = vadd.f32 %v12411, %v12603
  %v12605 = vpop.f32.mrf.mxu0
  %v12606 = vadd.f32 %v12413, %v12605
  %v12607 = vpop.f32.mrf.mxu0
  %v12608 = vadd.f32 %v12415, %v12607
  %v12609 = vpop.f32.mrf.mxu0
  %v12610 = vadd.f32 %v12417, %v12609
  %12611 = vmatprep.mubr.bf16.mxu0 %v11645
  %12612 = vmatmul.mubr.bf16.gmra.mxu0 %v11644
  %v12613 = vpop.f32.mrf.mxu0
  %v12614 = vadd.f32 %v12421, %v12613
  %v12615 = vpop.f32.mrf.mxu0
  %v12616 = vadd.f32 %v12423, %v12615
  %v12617 = vpop.f32.mrf.mxu0
  %v12618 = vadd.f32 %v12425, %v12617
  %v12619 = vpop.f32.mrf.mxu0
  %v12620 = vadd.f32 %v12427, %v12619
  %12621 = vdwg.mxu0
  %12622 = vmatprep.subr.bf16.mxu0 %v12123
  %12623 = vmatpush1.bf16.msra.mxu0 %v12122
  %12624 = vmatprep.subr.bf16.mxu0 %v12121
  %12625 = vmatpush1.bf16.msra.mxu0 %v12120
  %12626 = vmatprep.subr.bf16.mxu0 %v12119
  %12627 = vmatpush1.bf16.msra.mxu0 %v12118
  %12628 = vmatprep.subr.bf16.mxu0 %v12117
  %12629 = vmatpush1.bf16.msra.mxu0 %v12116
  %12630 = vmatprep.subr.bf16.mxu0 %v12115
  %12631 = vmatpush1.bf16.msra.mxu0 %v12114
  %12632 = vmatprep.subr.bf16.mxu0 %v12113
  %12633 = vmatpush1.bf16.msra.mxu0 %v12112
  %12634 = vmatprep.subr.bf16.mxu0 %v12111
  %12635 = vmatpush1.bf16.msra.mxu0 %v12110
  %12636 = vmatprep.subr.bf16.mxu0 %v12109
  %12637 = vmatpush1.bf16.msra.mxu0 %v12108
  %12638 = vmatprep.subr.bf16.mxu0 %v12139
  %12639 = vmatpush2.bf16.msra.mxu0 %v12138
  %12640 = vmatprep.subr.bf16.mxu0 %v12137
  %12641 = vmatpush2.bf16.msra.mxu0 %v12136
  %12642 = vmatprep.subr.bf16.mxu0 %v12135
  %12643 = vmatpush2.bf16.msra.mxu0 %v12134
  %12644 = vmatprep.subr.bf16.mxu0 %v12133
  %12645 = vmatpush2.bf16.msra.mxu0 %v12132
  %12646 = vmatprep.subr.bf16.mxu0 %v12131
  %12647 = vmatpush2.bf16.msra.mxu0 %v12130
  %12648 = vmatprep.subr.bf16.mxu0 %v12129
  %12649 = vmatpush2.bf16.msra.mxu0 %v12128
  %12650 = vmatprep.subr.bf16.mxu0 %v12127
  %12651 = vmatpush2.bf16.msra.mxu0 %v12126
  %12652 = vmatprep.subr.bf16.mxu0 %v12125
  %12653 = vmatpush2.bf16.msra.mxu0 %v12124
  %12654 = vmatprep.mubr.bf16.mxu0 %v11557
  %12655 = vmatmul.mubr.bf16.gmra.mxu0 %v11556
  %v12656 = vpop.f32.mrf.mxu0
  %v12657 = vadd.f32 %v12464, %v12656
  %v12658 = vpop.f32.mrf.mxu0
  %v12659 = vadd.f32 %v12466, %v12658
  %v12660 = vpop.f32.mrf.mxu0
  %v12661 = vadd.f32 %v12468, %v12660
  %v12662 = vpop.f32.mrf.mxu0
  %v12663 = vadd.f32 %v12470, %v12662
  %12664 = vmatprep.mubr.bf16.mxu0 %v11563
  %12665 = vmatmul.mubr.bf16.gmra.mxu0 %v11562
  %v12666 = vpop.f32.mrf.mxu0
  %v12667 = vadd.f32 %v12474, %v12666
  %v12668 = vpop.f32.mrf.mxu0
  %v12669 = vadd.f32 %v12476, %v12668
  %v12670 = vpop.f32.mrf.mxu0
  %v12671 = vadd.f32 %v12478, %v12670
  %v12672 = vpop.f32.mrf.mxu0
  %v12673 = vadd.f32 %v12480, %v12672
  %12674 = vmatprep.mubr.bf16.mxu0 %v11569
  %12675 = vmatmul.mubr.bf16.gmra.mxu0 %v11568
  %v12676 = vpop.f32.mrf.mxu0
  %v12677 = vadd.f32 %v12484, %v12676
  %v12678 = vpop.f32.mrf.mxu0
  %v12679 = vadd.f32 %v12486, %v12678
  %v12680 = vpop.f32.mrf.mxu0
  %v12681 = vadd.f32 %v12488, %v12680
  %v12682 = vpop.f32.mrf.mxu0
  %v12683 = vadd.f32 %v12490, %v12682
  %12684 = vmatprep.mubr.bf16.mxu0 %v11575
  %12685 = vmatmul.mubr.bf16.gmra.mxu0 %v11574
  %v12686 = vpop.f32.mrf.mxu0
  %v12687 = vadd.f32 %v12494, %v12686
  %v12688 = vpop.f32.mrf.mxu0
  %v12689 = vadd.f32 %v12496, %v12688
  %v12690 = vpop.f32.mrf.mxu0
  %v12691 = vadd.f32 %v12498, %v12690
  %v12692 = vpop.f32.mrf.mxu0
  %v12693 = vadd.f32 %v12500, %v12692
  %12694 = vmatprep.mubr.bf16.mxu0 %v11581
  %12695 = vmatmul.mubr.bf16.gmra.mxu0 %v11580
  %v12696 = vpop.f32.mrf.mxu0
  %v12697 = vadd.f32 %v12504, %v12696
  %v12698 = vpop.f32.mrf.mxu0
  %v12699 = vadd.f32 %v12506, %v12698
  %v12700 = vpop.f32.mrf.mxu0
  %v12701 = vadd.f32 %v12508, %v12700
  %v12702 = vpop.f32.mrf.mxu0
  %v12703 = vadd.f32 %v12510, %v12702
  %12704 = vmatprep.mubr.bf16.mxu0 %v11587
  %12705 = vmatmul.mubr.bf16.gmra.mxu0 %v11586
  %v12706 = vpop.f32.mrf.mxu0
  %v12707 = vadd.f32 %v12514, %v12706
  %v12708 = vpop.f32.mrf.mxu0
  %v12709 = vadd.f32 %v12516, %v12708
  %v12710 = vpop.f32.mrf.mxu0
  %v12711 = vadd.f32 %v12518, %v12710
  %v12712 = vpop.f32.mrf.mxu0
  %v12713 = vadd.f32 %v12520, %v12712
  %12714 = vmatprep.mubr.bf16.mxu0 %v11593
  %12715 = vmatmul.mubr.bf16.gmra.mxu0 %v11592
  %v12716 = vpop.f32.mrf.mxu0
  %v12717 = vadd.f32 %v12524, %v12716
  %v12718 = vpop.f32.mrf.mxu0
  %v12719 = vadd.f32 %v12526, %v12718
  %v12720 = vpop.f32.mrf.mxu0
  %v12721 = vadd.f32 %v12528, %v12720
  %v12722 = vpop.f32.mrf.mxu0
  %v12723 = vadd.f32 %v12530, %v12722
  %12724 = vmatprep.mubr.bf16.mxu0 %v11599
  %12725 = vmatmul.mubr.bf16.gmra.mxu0 %v11598
  %v12726 = vpop.f32.mrf.mxu0
  %v12727 = vadd.f32 %v12534, %v12726
  %v12728 = vpop.f32.mrf.mxu0
  %v12729 = vadd.f32 %v12536, %v12728
  %v12730 = vpop.f32.mrf.mxu0
  %v12731 = vadd.f32 %v12538, %v12730
  %v12732 = vpop.f32.mrf.mxu0
  %v12733 = vadd.f32 %v12540, %v12732
  %12734 = vmatprep.mubr.bf16.mxu0 %v11605
  %12735 = vmatmul.mubr.bf16.gmra.mxu0 %v11604
  %v12736 = vpop.f32.mrf.mxu0
  %v12737 = vadd.f32 %v12544, %v12736
  %v12738 = vpop.f32.mrf.mxu0
  %v12739 = vadd.f32 %v12546, %v12738
  %v12740 = vpop.f32.mrf.mxu0
  %v12741 = vadd.f32 %v12548, %v12740
  %v12742 = vpop.f32.mrf.mxu0
  %v12743 = vadd.f32 %v12550, %v12742
  %12744 = vmatprep.mubr.bf16.mxu0 %v11611
  %12745 = vmatmul.mubr.bf16.gmra.mxu0 %v11610
  %v12746 = vpop.f32.mrf.mxu0
  %v12747 = vadd.f32 %v12554, %v12746
  %v12748 = vpop.f32.mrf.mxu0
  %v12749 = vadd.f32 %v12556, %v12748
  %v12750 = vpop.f32.mrf.mxu0
  %v12751 = vadd.f32 %v12558, %v12750
  %v12752 = vpop.f32.mrf.mxu0
  %v12753 = vadd.f32 %v12560, %v12752
  %12754 = vmatprep.mubr.bf16.mxu0 %v11617
  %12755 = vmatmul.mubr.bf16.gmra.mxu0 %v11616
  %v12756 = vpop.f32.mrf.mxu0
  %v12757 = vadd.f32 %v12564, %v12756
  %v12758 = vpop.f32.mrf.mxu0
  %v12759 = vadd.f32 %v12566, %v12758
  %v12760 = vpop.f32.mrf.mxu0
  %v12761 = vadd.f32 %v12568, %v12760
  %v12762 = vpop.f32.mrf.mxu0
  %v12763 = vadd.f32 %v12570, %v12762
  %12764 = vmatprep.mubr.bf16.mxu0 %v11623
  %12765 = vmatmul.mubr.bf16.gmra.mxu0 %v11622
  %v12766 = vpop.f32.mrf.mxu0
  %v12767 = vadd.f32 %v12574, %v12766
  %v12768 = vpop.f32.mrf.mxu0
  %v12769 = vadd.f32 %v12576, %v12768
  %v12770 = vpop.f32.mrf.mxu0
  %v12771 = vadd.f32 %v12578, %v12770
  %v12772 = vpop.f32.mrf.mxu0
  %v12773 = vadd.f32 %v12580, %v12772
  %12774 = vmatprep.mubr.bf16.mxu0 %v11629
  %12775 = vmatmul.mubr.bf16.gmra.mxu0 %v11628
  %v12776 = vpop.f32.mrf.mxu0
  %v12777 = vadd.f32 %v12584, %v12776
  %v12778 = vpop.f32.mrf.mxu0
  %v12779 = vadd.f32 %v12586, %v12778
  %v12780 = vpop.f32.mrf.mxu0
  %v12781 = vadd.f32 %v12588, %v12780
  %v12782 = vpop.f32.mrf.mxu0
  %v12783 = vadd.f32 %v12590, %v12782
  %12784 = vmatprep.mubr.bf16.mxu0 %v11635
  %12785 = vmatmul.mubr.bf16.gmra.mxu0 %v11634
  %v12786 = vpop.f32.mrf.mxu0
  %v12787 = vadd.f32 %v12594, %v12786
  %v12788 = vpop.f32.mrf.mxu0
  %v12789 = vadd.f32 %v12596, %v12788
  %v12790 = vpop.f32.mrf.mxu0
  %v12791 = vadd.f32 %v12598, %v12790
  %v12792 = vpop.f32.mrf.mxu0
  %v12793 = vadd.f32 %v12600, %v12792
  %12794 = vmatprep.mubr.bf16.mxu0 %v11641
  %12795 = vmatmul.mubr.bf16.gmra.mxu0 %v11640
  %v12796 = vpop.f32.mrf.mxu0
  %v12797 = vadd.f32 %v12604, %v12796
  %v12798 = vpop.f32.mrf.mxu0
  %v12799 = vadd.f32 %v12606, %v12798
  %v12800 = vpop.f32.mrf.mxu0
  %v12801 = vadd.f32 %v12608, %v12800
  %v12802 = vpop.f32.mrf.mxu0
  %v12803 = vadd.f32 %v12610, %v12802
  %12804 = vmatprep.mubr.bf16.mxu0 %v11647
  %12805 = vmatmul.mubr.bf16.gmra.mxu0 %v11646
  %v12806 = vpop.f32.mrf.mxu0
  %v12807 = vadd.f32 %v12614, %v12806
  %v12808 = vpop.f32.mrf.mxu0
  %v12809 = vadd.f32 %v12616, %v12808
  %v12810 = vpop.f32.mrf.mxu0
  %v12811 = vadd.f32 %v12618, %v12810
  %v12812 = vpop.f32.mrf.mxu0
  %v12813 = vadd.f32 %v12620, %v12812
  %12814 = vdwg.mxu0
  %v12815 = vadd.f32 %v10173, %v12657
  %v12816 = vadd.f32 %v10174, %v12659
  %v12817 = vadd.f32 %v10175, %v12661
  %v12818 = vadd.f32 %v10176, %v12663
  %v12819 = vadd.f32 %v10177, %v12667
  %v12820 = vadd.f32 %v10178, %v12669
  %v12821 = vadd.f32 %v10179, %v12671
  %v12822 = vadd.f32 %v10180, %v12673
  %v12823 = vadd.f32 %v10181, %v12677
  %v12824 = vadd.f32 %v10182, %v12679
  %v12825 = vadd.f32 %v10183, %v12681
  %v12826 = vadd.f32 %v10184, %v12683
  %v12827 = vadd.f32 %v10185, %v12687
  %v12828 = vadd.f32 %v10186, %v12689
  %v12829 = vadd.f32 %v10187, %v12691
  %v12830 = vadd.f32 %v10188, %v12693
  %v12831 = vadd.f32 %v10189, %v12697
  %v12832 = vadd.f32 %v10190, %v12699
  %v12833 = vadd.f32 %v10191, %v12701
  %v12834 = vadd.f32 %v10192, %v12703
  %v12835 = vadd.f32 %v10193, %v12707
  %v12836 = vadd.f32 %v10194, %v12709
  %v12837 = vadd.f32 %v10195, %v12711
  %v12838 = vadd.f32 %v10196, %v12713
  %v12839 = vadd.f32 %v10197, %v12717
  %v12840 = vadd.f32 %v10198, %v12719
  %v12841 = vadd.f32 %v10199, %v12721
  %v12842 = vadd.f32 %v10200, %v12723
  %v12843 = vadd.f32 %v10201, %v12727
  %v12844 = vadd.f32 %v10202, %v12729
  %v12845 = vadd.f32 %v10203, %v12731
  %v12846 = vadd.f32 %v10204, %v12733
  %v12847 = vadd.f32 %v10205, %v12737
  %v12848 = vadd.f32 %v10206, %v12739
  %v12849 = vadd.f32 %v10207, %v12741
  %v12850 = vadd.f32 %v10208, %v12743
  %v12851 = vadd.f32 %v10209, %v12747
  %v12852 = vadd.f32 %v10210, %v12749
  %v12853 = vadd.f32 %v10211, %v12751
  %v12854 = vadd.f32 %v10212, %v12753
  %v12855 = vadd.f32 %v10213, %v12757
  %v12856 = vadd.f32 %v10214, %v12759
  %v12857 = vadd.f32 %v10215, %v12761
  %v12858 = vadd.f32 %v10216, %v12763
  %v12859 = vadd.f32 %v10217, %v12767
  %v12860 = vadd.f32 %v10218, %v12769
  %v12861 = vadd.f32 %v10219, %v12771
  %v12862 = vadd.f32 %v10220, %v12773
  %v12863 = vadd.f32 %v10221, %v12777
  %v12864 = vadd.f32 %v10222, %v12779
  %v12865 = vadd.f32 %v10223, %v12781
  %v12866 = vadd.f32 %v10224, %v12783
  %v12867 = vadd.f32 %v10225, %v12787
  %v12868 = vadd.f32 %v10226, %v12789
  %v12869 = vadd.f32 %v10227, %v12791
  %v12870 = vadd.f32 %v10228, %v12793
  %v12871 = vadd.f32 %v10229, %v12797
  %v12872 = vadd.f32 %v10230, %v12799
  %v12873 = vadd.f32 %v10231, %v12801
  %v12874 = vadd.f32 %v10232, %v12803
  %v12875 = vadd.f32 %v10233, %v12807
  %v12876 = vadd.f32 %v10234, %v12809
  %v12877 = vadd.f32 %v10235, %v12811
  %v12878 = vadd.f32 %v10236, %v12813
  %12879 = vst [vmem:[%s12] sm:$0xff] %v12815
  %12880 = vst.msk [vmem:[%s12 + $0x8] sm:$0xff] %vm108, %v12816
  %12881 = vst [vmem:[%s12 + $0x10] sm:$0xff] %v12817
  %12882 = vst.msk [vmem:[%s12 + $0x18] sm:$0xff] %vm108, %v12818
  %12883 = vst [vmem:[%s12 + $0x20] sm:$0xff] %v12819
  %12884 = vst.msk [vmem:[%s12 + $0x28] sm:$0xff] %vm108, %v12820
  %12885 = vst [vmem:[%s12 + $0x30] sm:$0xff] %v12821
  %12886 = vst.msk [vmem:[%s12 + $0x38] sm:$0xff] %vm108, %v12822
  %12887 = vst [vmem:[%s12 + $0x40] sm:$0xff] %v12823
  %12888 = vst.msk [vmem:[%s12 + $0x48] sm:$0xff] %vm108, %v12824
  %12889 = vst [vmem:[%s12 + $0x50] sm:$0xff] %v12825
  %12890 = vst.msk [vmem:[%s12 + $0x58] sm:$0xff] %vm108, %v12826
  %12891 = vst [vmem:[%s12 + $0x60] sm:$0xff] %v12827
  %12892 = vst.msk [vmem:[%s12 + $0x68] sm:$0xff] %vm108, %v12828
  %12893 = vst [vmem:[%s12 + $0x70] sm:$0xff] %v12829
  %12894 = vst.msk [vmem:[%s12 + $0x78] sm:$0xff] %vm108, %v12830
  %12895 = vst [vmem:[%s12 + $0x80] sm:$0xff] %v12831
  %12896 = vst.msk [vmem:[%s12 + $0x88] sm:$0xff] %vm108, %v12832
  %12897 = vst [vmem:[%s12 + $0x90] sm:$0xff] %v12833
  %12898 = vst.msk [vmem:[%s12 + $0x98] sm:$0xff] %vm108, %v12834
  %12899 = vst [vmem:[%s12 + $0xa0] sm:$0xff] %v12835
  %12900 = vst.msk [vmem:[%s12 + $0xa8] sm:$0xff] %vm108, %v12836
  %12901 = vst [vmem:[%s12 + $0xb0] sm:$0xff] %v12837
  %12902 = vst.msk [vmem:[%s12 + $0xb8] sm:$0xff] %vm108, %v12838
  %12903 = vst [vmem:[%s12 + $0xc0] sm:$0xff] %v12839
  %12904 = vst.msk [vmem:[%s12 + $0xc8] sm:$0xff] %vm108, %v12840
  %12905 = vst [vmem:[%s12 + $0xd0] sm:$0xff] %v12841
  %12906 = vst.msk [vmem:[%s12 + $0xd8] sm:$0xff] %vm108, %v12842
  %12907 = vst [vmem:[%s12 + $0xe0] sm:$0xff] %v12843
  %12908 = vst.msk [vmem:[%s12 + $0xe8] sm:$0xff] %vm108, %v12844
  %12909 = vst [vmem:[%s12 + $0xf0] sm:$0xff] %v12845
  %12910 = vst.msk [vmem:[%s12 + $0xf8] sm:$0xff] %vm108, %v12846
  %12911 = vst [vmem:[%s12 + $0x100] sm:$0xff] %v12847
  %12912 = vst.msk [vmem:[%s12 + $0x108] sm:$0xff] %vm108, %v12848
  %12913 = vst [vmem:[%s12 + $0x110] sm:$0xff] %v12849
  %12914 = vst.msk [vmem:[%s12 + $0x118] sm:$0xff] %vm108, %v12850
  %12915 = vst [vmem:[%s12 + $0x120] sm:$0xff] %v12851
  %12916 = vst.msk [vmem:[%s12 + $0x128] sm:$0xff] %vm108, %v12852
  %12917 = vst [vmem:[%s12 + $0x130] sm:$0xff] %v12853
  %12918 = vst.msk [vmem:[%s12 + $0x138] sm:$0xff] %vm108, %v12854
  %12919 = vst [vmem:[%s12 + $0x140] sm:$0xff] %v12855
  %12920 = vst.msk [vmem:[%s12 + $0x148] sm:$0xff] %vm108, %v12856
  %12921 = vst [vmem:[%s12 + $0x150] sm:$0xff] %v12857
  %12922 = vst.msk [vmem:[%s12 + $0x158] sm:$0xff] %vm108, %v12858
  %12923 = vst [vmem:[%s12 + $0x160] sm:$0xff] %v12859
  %12924 = vst.msk [vmem:[%s12 + $0x168] sm:$0xff] %vm108, %v12860
  %12925 = vst [vmem:[%s12 + $0x170] sm:$0xff] %v12861
  %12926 = vst.msk [vmem:[%s12 + $0x178] sm:$0xff] %vm108, %v12862
  %12927 = vst [vmem:[%s12 + $0x180] sm:$0xff] %v12863
  %12928 = vst.msk [vmem:[%s12 + $0x188] sm:$0xff] %vm108, %v12864
  %12929 = vst [vmem:[%s12 + $0x190] sm:$0xff] %v12865
  %12930 = vst.msk [vmem:[%s12 + $0x198] sm:$0xff] %vm108, %v12866
  %12931 = vst [vmem:[%s12 + $0x1a0] sm:$0xff] %v12867
  %12932 = vst.msk [vmem:[%s12 + $0x1a8] sm:$0xff] %vm108, %v12868
  %12933 = vst [vmem:[%s12 + $0x1b0] sm:$0xff] %v12869
  %12934 = vst.msk [vmem:[%s12 + $0x1b8] sm:$0xff] %vm108, %v12870
  %12935 = vst [vmem:[%s12 + $0x1c0] sm:$0xff] %v12871
  %12936 = vst.msk [vmem:[%s12 + $0x1c8] sm:$0xff] %vm108, %v12872
  %12937 = vst [vmem:[%s12 + $0x1d0] sm:$0xff] %v12873
  %12938 = vst.msk [vmem:[%s12 + $0x1d8] sm:$0xff] %vm108, %v12874
  %12939 = vst [vmem:[%s12 + $0x1e0] sm:$0xff] %v12875
  %12940 = vst.msk [vmem:[%s12 + $0x1e8] sm:$0xff] %vm108, %v12876
  %12941 = vst [vmem:[%s12 + $0x1f0] sm:$0xff] %v12877
  %12942 = vst.msk [vmem:[%s12 + $0x1f8] sm:$0xff] %vm108, %v12878
  // Predicated region
  $region50: #{block_forward.1} parent=0 // pred_check
    _
  $region51: #{block_forward.1} parent=0 // pred_check_branch
    %12944 = sbr.rel (0) target = $region53
  $region52: #{block_forward.1} parent=0 // pred_region
    _
  $region53: #{block_forward.1} parent=0 // pred_fallthru
    _
  // Predicated region
  $region54: #{block_forward.1} parent=0 // pred_check
    _
  $region55: #{block_forward.1} parent=0 // pred_check_branch
    %12946 = sbr.rel (0) target = $region57
  $region56: #{block_forward.1} parent=0 // pred_region
    _
  $region57: #{block_forward.1} parent=0 // pred_fallthru
    _

</llo_original>
